<compile_context>
chip_gen: v6e
topology: v6e:2x2x1
jax: 0.10.0
libtpu: 0.0.40
codegen_flags: <defaults>
</compile_context>

<pallas_src>
import jax
import jax.numpy as jnp
from jax.experimental import pallas as pl
from jax.experimental.pallas import tpu as pltpu


def _largest_divisor_leq(n, cap):
    for d in range(min(n, cap), 0, -1):
        if n % d == 0:
            return d
    return 1


def _conv_batch_tile(b):
    # Several images per grid step, but keep >=2 grid steps when B >= 2 so both
    # v7x TensorCores get work; cap 8 keeps scratch+blocks ~13 MiB at Bt=8.
    cap = min(8, max(1, b // 2))
    return _largest_divisor_leq(b, cap)


def _mlp_batch_tile(b):
    # Prefer a multiple-of-8 tile giving >=2 grid steps (v7x megacore), capped
    # at 512 rows; tiny batches use a single full block (2nd-to-last dim == B).
    if b <= 16:
        return b
    cap = min(b // 2, 512)
    best = None
    for d in range(8, cap + 1, 8):
        if b % d == 0:
            best = d
    return best if best is not None else b


# ----------------------------------------------------------------------------
# Fused conv1 -> ReLU -> pool -> conv2 -> ReLU -> pool   (one batch tile / step)
# ----------------------------------------------------------------------------
def _conv_stack_kernel(cols1_ref, w1_ref, b1_ref, w2_ref, b2_ref, o_ref,
                       y1_scr, hp1_scr, pad_scr, y2_scr, hp2_scr):
    # cols1_ref: (Bt, 1024, 32) bf16  im2col'd conv1 input (27 taps + 5 zero pad)
    # w1_ref   : (32, 32)  bf16       conv1 weight (5 zero rows), b1: (1,32) f32
    # w2_ref   : (288, 64) bf16       conv2 weight,               b2: (1,64) f32
    # o_ref    : (Bt, 8, 8, 64) bf16  pooled conv2 output (NHWC)
    Bt = y1_scr.shape[0]
    H1, W1, C1 = 32, 32, 32            # conv1 output
    H2, W2, C2 = 16, 16, 64            # conv2 output
    K1 = w1_ref.shape[0]               # 32
    K2 = w2_ref.shape[0]               # 288

    # ---- conv1: one im2col matmul (M = Bt*1024, K = 32, N = 32) ----
    a1 = cols1_ref[...].reshape(Bt * H1 * W1, K1)
    h1 = jnp.dot(a1, w1_ref[...], preferred_element_type=jnp.float32)
    y1_scr[...] = jnp.maximum(h1.reshape(Bt, H1, W1, C1) + b1_ref[...], 0.0)

    # ---- 2x2 / stride-2 max-pool #1 (strided ref reads) ----
    hp1_scr[...] = jnp.maximum(y1_scr[:, pl.ds(0, H2, stride=2), :, :],
                               y1_scr[:, pl.ds(1, H2, stride=2), :, :])
    p1 = jnp.maximum(hp1_scr[:, :, pl.ds(0, W2, stride=2), :],
                     hp1_scr[:, :, pl.ds(1, W2, stride=2), :])      # (Bt,16,16,32)

    # ---- zero-padded bf16 copy of p1 for conv2 "same" padding.
    #      Interior is stored at W-offset 8 so the store stays sublane-aligned;
    #      the zero border lives at W columns 7 and 24 and H rows 0 and 17.
    #      Re-zeroed every step (scratch is per-core; pid==0 guard is unsafe
    #      with a parallel batch axis on megacore). ----
    pad_scr[...] = jnp.zeros_like(pad_scr)
    pad_scr[:, 1:H2 + 1, 8:8 + W2, :] = p1.astype(jnp.bfloat16)

    # ---- conv2: build (Bt*256, 288) bf16 im2col block with 9 shifted reads
    #      plus one lane-axis concat, then a single MXU matmul (K=288, N=64). ----
    cols2 = jnp.concatenate(
        [pad_scr[:, dy:dy + H2, 7 + dx:7 + dx + W2, :]
         for dy in range(3) for dx in range(3)],
        axis=-1)                                                    # (Bt,16,16,288)
    a2 = cols2.reshape(Bt * H2 * W2, K2)
    h2 = jnp.dot(a2, w2_ref[...], preferred_element_type=jnp.float32)
    y2_scr[...] = jnp.maximum(h2.reshape(Bt, H2, W2, C2) + b2_ref[...], 0.0)

    # ---- 2x2 / stride-2 max-pool #2, written straight to the bf16 output ----
    hp2_scr[...] = jnp.maximum(y2_scr[:, pl.ds(0, 8, stride=2), :, :],
                               y2_scr[:, pl.ds(1, 8, stride=2), :, :])
    o_ref[...] = jnp.maximum(hp2_scr[:, :, pl.ds(0, 8, stride=2), :],
                             hp2_scr[:, :, pl.ds(1, 8, stride=2), :]
                             ).astype(o_ref.dtype)


def _conv_stack(x_nchw, p):
    B = x_nchw.shape[0]
    Bt = _conv_batch_tile(B)

    # Wrapper-side im2col for conv1 (tiny: B*1024*32), NHWC tap-major ordering,
    # K zero-padded 27 -> 32 for aligned rows.
    xh = jnp.transpose(x_nchw, (0, 2, 3, 1))                        # NCHW -> NHWC
    xp = jnp.pad(xh, ((0, 0), (1, 1), (1, 1), (0, 0)))              # padding=1
    cols1 = jnp.concatenate(
        [xp[:, dy:dy + 32, dx:dx + 32, :] for dy in range(3) for dx in range(3)],
        axis=-1)                                                    # (B,32,32,27)
    cols1 = jnp.pad(cols1, ((0, 0), (0, 0), (0, 0), (0, 5)))
    cols1 = cols1.reshape(B, 32 * 32, 32).astype(jnp.bfloat16)

    # Weights: (Cout,Cin,kh,kw) -> (kh*kw*Cin, Cout), bf16 for the MXU.
    w1 = jnp.transpose(p["conv1_w"], (2, 3, 1, 0)).reshape(27, 32)
    w1 = jnp.pad(w1, ((0, 5), (0, 0))).astype(jnp.bfloat16)          # (32, 32)
    b1 = p["conv1_b"].reshape(1, 32).astype(jnp.float32)
    w2 = jnp.transpose(p["conv2_w"], (2, 3, 1, 0)).reshape(288, 64).astype(jnp.bfloat16)
    b2 = p["conv2_b"].reshape(1, 64).astype(jnp.float32)

    return pl.pallas_call(
        _conv_stack_kernel,
        out_shape=jax.ShapeDtypeStruct((B, 8, 8, 64), jnp.bfloat16),
        grid=(B // Bt,),
        in_specs=[
            pl.BlockSpec((Bt, 32 * 32, 32), lambda i: (i, 0, 0)),
            pl.BlockSpec((32, 32), lambda i: (0, 0)),
            pl.BlockSpec((1, 32), lambda i: (0, 0)),
            pl.BlockSpec((288, 64), lambda i: (0, 0)),
            pl.BlockSpec((1, 64), lambda i: (0, 0)),
        ],
        out_specs=pl.BlockSpec((Bt, 8, 8, 64), lambda i: (i, 0, 0, 0)),
        scratch_shapes=[
            pltpu.VMEM((Bt, 32, 32, 32), jnp.float32),   # conv1 + ReLU
            pltpu.VMEM((Bt, 16, 32, 32), jnp.float32),   # row-pooled conv1
            pltpu.VMEM((Bt, 18, 32, 32), jnp.bfloat16),  # zero-padded pool1 (W@8..23)
            pltpu.VMEM((Bt, 16, 16, 64), jnp.float32),   # conv2 + ReLU
            pltpu.VMEM((Bt, 8, 16, 64), jnp.float32),    # row-pooled conv2
        ],
        compiler_params=pltpu.CompilerParams(
            dimension_semantics=("parallel",),
            vmem_limit_bytes=32 * 1024 * 1024),
    )(cols1, w1, b1, w2, b2)


# ----------------------------------------------------------------------------
# Fused fc1 + ReLU + fc2   (fc2 padded to 128 lane-dense output columns)
# ----------------------------------------------------------------------------
def _mlp_kernel(x_ref, w1_ref, b1_ref, w2_ref, b2_ref, o_ref):
    # x_ref is already bf16 (conv-stack output); MXU accumulates in f32.
    h = jnp.dot(x_ref[...], w1_ref[...], preferred_element_type=jnp.float32)
    h = jnp.maximum(h + b1_ref[...], 0.0)
    o_ref[...] = (jnp.dot(h.astype(jnp.bfloat16), w2_ref[...],
                          preferred_element_type=jnp.float32) + b2_ref[...])


def _mlp(x, p):
    B, F = x.shape                       # (B, 4096), bf16
    nh = p["fc1_w"].shape[0]             # 128
    nc = p["fc2_w"].shape[0]             # 10
    C2, Hp, Wp = 64, 8, 8
    NP = 128                             # lane-dense padded output width

    # Re-order fc1 columns from NCHW flatten (c,h,w) to NHWC flatten (h,w,c)
    # so no runtime transpose of activations is needed.
    w1 = (p["fc1_w"].reshape(nh, C2, Hp, Wp).transpose(0, 2, 3, 1)
          .reshape(nh, F).T.astype(jnp.bfloat16))                   # (4096, 128)
    b1 = p["fc1_b"].reshape(1, nh).astype(jnp.float32)
    w2 = jnp.zeros((nh, NP), jnp.float32).at[:, :nc].set(p["fc2_w"].T)
    w2 = w2.astype(jnp.bfloat16)                                    # (128, 128)
    b2 = jnp.zeros((1, NP), jnp.float32).at[:, :nc].set(
        p["fc2_b"].reshape(1, nc))

    Bm = _mlp_batch_tile(B)
    out = pl.pallas_call(
        _mlp_kernel,
        out_shape=jax.ShapeDtypeStruct((B, NP), jnp.float32),
        grid=(B // Bm,),
        in_specs=[
            pl.BlockSpec((Bm, F), lambda i: (i, 0)),
            pl.BlockSpec((F, nh), lambda i: (0, 0)),
            pl.BlockSpec((1, nh), lambda i: (0, 0)),
            pl.BlockSpec((nh, NP), lambda i: (0, 0)),
            pl.BlockSpec((1, NP), lambda i: (0, 0)),
        ],
        out_specs=pl.BlockSpec((Bm, NP), lambda i: (i, 0)),
        compiler_params=pltpu.CompilerParams(
            dimension_semantics=("parallel",),
            vmem_limit_bytes=32 * 1024 * 1024),
    )(x, w1, b1, w2, b2)
    return out[:, :nc]


# ----------------------------------------------------------------------------
# Full forward, matching SimpleCNN.forward
# ----------------------------------------------------------------------------
def simple_cnn_forward(x_nchw, params):
    feat = _conv_stack(x_nchw, params)           # (B, 8, 8, 64) NHWC, bf16
    feat = feat.reshape(feat.shape[0], -1)       # (B, 4096), (h, w, c) order (free)
    return _mlp(feat, params)                    # (B, num_classes), f32


# Pure-JAX f32 reference (torch semantics: NCHW convs, NCHW flatten).
def reference_forward(x_nchw, p):
    def conv(x, w, b):
        y = jax.lax.conv_general_dilated(
            x, w, window_strides=(1, 1), padding=((1, 1), (1, 1)),
            dimension_numbers=("NCHW", "OIHW", "NCHW"),
            precision=jax.lax.Precision.HIGHEST)
        return y + b[None, :, None, None]

    def pool(x):
        return jax.lax.reduce_window(x, -jnp.inf, jax.lax.max,
                                     (1, 1, 2, 2), (1, 1, 2, 2), "VALID")

    y = pool(jax.nn.relu(conv(x_nchw, p["conv1_w"], p["conv1_b"])))
    y = pool(jax.nn.relu(conv(y, p["conv2_w"], p["conv2_b"])))
    y = y.reshape(y.shape[0], -1)
    y = jax.nn.relu(jnp.dot(y, p["fc1_w"].T,
                            precision=jax.lax.Precision.HIGHEST) + p["fc1_b"])
    return jnp.dot(y, p["fc2_w"].T,
                   precision=jax.lax.Precision.HIGHEST) + p["fc2_b"]


if __name__ == "__main__":
    key = jax.random.PRNGKey(0)
    ks = jax.random.split(key, 9)
    # Deterministic synthetic parameters, PyTorch shape conventions.
    params = {
        "conv1_w": 0.10 * jax.random.normal(ks[0], (32, 3, 3, 3), jnp.float32),
        "conv1_b": 0.10 * jax.random.normal(ks[1], (32,), jnp.float32),
        "conv2_w": 0.05 * jax.random.normal(ks[2], (64, 32, 3, 3), jnp.float32),
        "conv2_b": 0.10 * jax.random.normal(ks[3], (64,), jnp.float32),
        "fc1_w":   0.02 * jax.random.normal(ks[4], (128, 64 * 8 * 8), jnp.float32),
        "fc1_b":   0.10 * jax.random.normal(ks[5], (128,), jnp.float32),
        "fc2_w":   0.05 * jax.random.normal(ks[6], (10, 128), jnp.float32),
        "fc2_b":   0.10 * jax.random.normal(ks[7], (10,), jnp.float32),
    }
    # Module implies 3x32x32 inputs (fc1 expects 64*8*8 after two /2 pools).
    x = jax.random.normal(ks[8], (2, 3, 32, 32), jnp.float32)

    fwd = jax.jit(simple_cnn_forward)
    out = jax.block_until_ready(fwd(x, params))
    ref = jax.block_until_ready(reference_forward(x, params))

    assert out.shape == (2, 10), out.shape
    if not jnp.allclose(out, ref, atol=5e-2, rtol=5e-2):
        raise AssertionError(
            f"mismatch vs reference, max abs diff={jnp.max(jnp.abs(out - ref))}")
    print("KERNEL_OK")
</pallas_src>

<mosaic_0001>
module attributes {stable_mosaic.version = 11 : i64} {
  func.func @_conv_stack_kernel(%arg0: i32, %arg1: memref<1x1024x32xbf16, #tpu.memory_space<vmem>>, %arg2: memref<32x32xbf16, #tpu.memory_space<vmem>>, %arg3: memref<1x32xf32, #tpu.memory_space<vmem>>, %arg4: memref<288x64xbf16, #tpu.memory_space<vmem>>, %arg5: memref<1x64xf32, #tpu.memory_space<vmem>>, %arg6: memref<1x8x8x64xbf16, #tpu.memory_space<vmem>>, %arg7: memref<1x32x32x32xf32, #tpu.memory_space<vmem>>, %arg8: memref<1x16x32x32xf32, #tpu.memory_space<vmem>>, %arg9: memref<1x18x32x32xbf16, #tpu.memory_space<vmem>>, %arg10: memref<1x16x16x64xf32, #tpu.memory_space<vmem>>, %arg11: memref<1x8x16x64xf32, #tpu.memory_space<vmem>>) attributes {dimension_semantics = [#tpu.dimension_semantics<parallel>], iteration_bounds = array<i64: 2>, scalar_prefetch = 0 : i64, scratch_operands = 5 : i64, tpu.core_type = #tpu.core_type<tc>, window_params = [{transform_indices = @transform_0, window_bounds = array<i64: 1, 1024, 32>}, {pipeline_mode = #tpu.pipeline_mode<synchronous>, transform_indices = @transform_1, window_bounds = array<i64: 32, 32>}, {pipeline_mode = #tpu.pipeline_mode<synchronous>, transform_indices = @transform_2, window_bounds = array<i64: 1, 32>}, {pipeline_mode = #tpu.pipeline_mode<synchronous>, transform_indices = @transform_3, window_bounds = array<i64: 288, 64>}, {pipeline_mode = #tpu.pipeline_mode<synchronous>, transform_indices = @transform_4, window_bounds = array<i64: 1, 64>}, {transform_indices = @transform_5, window_bounds = array<i64: 1, 8, 8, 64>}]} {
    %c0 = arith.constant 0 : index
    %c0_0 = arith.constant 0 : index
    %c0_1 = arith.constant 0 : index
    %0 = vector.load %arg1[%c0, %c0_0, %c0_1] : memref<1x1024x32xbf16, #tpu.memory_space<vmem>>, vector<1x1024x32xbf16>
    %1 = vector.shape_cast %0 : vector<1x1024x32xbf16> to vector<1024x32xbf16>
    %c0_2 = arith.constant 0 : index
    %c0_3 = arith.constant 0 : index
    %2 = vector.load %arg2[%c0_2, %c0_3] : memref<32x32xbf16, #tpu.memory_space<vmem>>, vector<32x32xbf16>
    %cst = arith.constant dense<0.000000e+00> : vector<1024x32xf32>
    %3 = tpu.matmul %1, %2, %cst {dimension_numbers = #tpu.dot_dimension_numbers<[1], [0], [0], [1], [0, 0, 1, 1], [], []>} : vector<1024x32xbf16>, vector<32x32xbf16>, vector<1024x32xf32> -> vector<1024x32xf32>
    %4 = vector.shape_cast %3 : vector<1024x32xf32> to vector<1x32x32x32xf32>
    %c0_4 = arith.constant 0 : index
    %c0_5 = arith.constant 0 : index
    %5 = vector.load %arg3[%c0_4, %c0_5] : memref<1x32xf32, #tpu.memory_space<vmem>>, vector<1x32xf32>
    %6 = vector.shape_cast %5 : vector<1x32xf32> to vector<1x1x1x32xf32>
    %7 = vector.broadcast %6 : vector<1x1x1x32xf32> to vector<1x32x32x32xf32>
    %8 = arith.addf %4, %7 : vector<1x32x32x32xf32>
    %cst_6 = arith.constant 0.000000e+00 : f32
    %9 = vector.broadcast %cst_6 : f32 to vector<1x32x32x32xf32>
    %10 = arith.maximumf %8, %9 : vector<1x32x32x32xf32>
    %c0_7 = arith.constant 0 : index
    %c0_8 = arith.constant 0 : index
    %c0_9 = arith.constant 0 : index
    %c0_10 = arith.constant 0 : index
    %11 = vector.load %arg7[%c0_7, %c0_8, %c0_9, %c0_10] : memref<1x32x32x32xf32, #tpu.memory_space<vmem>>, vector<1x32x32x32xf32>
    tpu.vector_store %arg7[%c0_7, %c0_8, %c0_9, %c0_10], %10 {strides = array<i32>} : memref<1x32x32x32xf32, #tpu.memory_space<vmem>>, vector<1x32x32x32xf32>,
    %c0_11 = arith.constant 0 : index
    %c0_12 = arith.constant 0 : index
    %c0_13 = arith.constant 0 : index
    %c0_14 = arith.constant 0 : index
    %12 = tpu.strided_load %arg7[%c0_11, %c0_12, %c0_13, %c0_14] {strides = array<i32: 1, 2, 1, 1>} : memref<1x32x32x32xf32, #tpu.memory_space<vmem>>, vector<1x16x32x32xf32>
    %c0_15 = arith.constant 0 : index
    %c1 = arith.constant 1 : index
    %c0_16 = arith.constant 0 : index
    %c0_17 = arith.constant 0 : index
    %13 = tpu.strided_load %arg7[%c0_15, %c1, %c0_16, %c0_17] {strides = array<i32: 1, 2, 1, 1>} : memref<1x32x32x32xf32, #tpu.memory_space<vmem>>, vector<1x16x32x32xf32>
    %14 = arith.maximumf %12, %13 : vector<1x16x32x32xf32>
    %c0_18 = arith.constant 0 : index
    %c0_19 = arith.constant 0 : index
    %c0_20 = arith.constant 0 : index
    %c0_21 = arith.constant 0 : index
    %15 = vector.load %arg8[%c0_18, %c0_19, %c0_20, %c0_21] : memref<1x16x32x32xf32, #tpu.memory_space<vmem>>, vector<1x16x32x32xf32>
    tpu.vector_store %arg8[%c0_18, %c0_19, %c0_20, %c0_21], %14 {strides = array<i32>} : memref<1x16x32x32xf32, #tpu.memory_space<vmem>>, vector<1x16x32x32xf32>,
    %c0_22 = arith.constant 0 : index
    %c0_23 = arith.constant 0 : index
    %c0_24 = arith.constant 0 : index
    %c0_25 = arith.constant 0 : index
    %16 = tpu.strided_load %arg8[%c0_22, %c0_23, %c0_24, %c0_25] {strides = array<i32: 1, 1, 2, 1>} : memref<1x16x32x32xf32, #tpu.memory_space<vmem>>, vector<1x16x16x32xf32>
    %c0_26 = arith.constant 0 : index
    %c0_27 = arith.constant 0 : index
    %c1_28 = arith.constant 1 : index
    %c0_29 = arith.constant 0 : index
    %17 = tpu.strided_load %arg8[%c0_26, %c0_27, %c1_28, %c0_29] {strides = array<i32: 1, 1, 2, 1>} : memref<1x16x32x32xf32, #tpu.memory_space<vmem>>, vector<1x16x16x32xf32>
    %18 = arith.maximumf %16, %17 : vector<1x16x16x32xf32>
    %cst_30 = arith.constant 0.000000e+00 : bf16
    %19 = vector.broadcast %cst_30 : bf16 to vector<1x18x32x32xbf16>
    %c0_31 = arith.constant 0 : index
    %c0_32 = arith.constant 0 : index
    %c0_33 = arith.constant 0 : index
    %c0_34 = arith.constant 0 : index
    %20 = vector.load %arg9[%c0_31, %c0_32, %c0_33, %c0_34] : memref<1x18x32x32xbf16, #tpu.memory_space<vmem>>, vector<1x18x32x32xbf16>
    tpu.vector_store %arg9[%c0_31, %c0_32, %c0_33, %c0_34], %19 {strides = array<i32>} : memref<1x18x32x32xbf16, #tpu.memory_space<vmem>>, vector<1x18x32x32xbf16>,
    %21 = arith.truncf %18 : vector<1x16x16x32xf32> to vector<1x16x16x32xbf16>
    %c0_35 = arith.constant 0 : index
    %c1_36 = arith.constant 1 : index
    %c8 = arith.constant 8 : index
    %c0_37 = arith.constant 0 : index
    %22 = vector.load %arg9[%c0_35, %c1_36, %c8, %c0_37] : memref<1x18x32x32xbf16, #tpu.memory_space<vmem>>, vector<1x16x16x32xbf16>
    tpu.vector_store %arg9[%c0_35, %c1_36, %c8, %c0_37], %21 {strides = array<i32>} : memref<1x18x32x32xbf16, #tpu.memory_space<vmem>>, vector<1x16x16x32xbf16>,
    %c0_38 = arith.constant 0 : index
    %c0_39 = arith.constant 0 : index
    %c7 = arith.constant 7 : index
    %c0_40 = arith.constant 0 : index
    %23 = vector.load %arg9[%c0_38, %c0_39, %c7, %c0_40] : memref<1x18x32x32xbf16, #tpu.memory_space<vmem>>, vector<1x16x16x32xbf16>
    %c0_41 = arith.constant 0 : index
    %c0_42 = arith.constant 0 : index
    %c8_43 = arith.constant 8 : index
    %c0_44 = arith.constant 0 : index
    %24 = vector.load %arg9[%c0_41, %c0_42, %c8_43, %c0_44] : memref<1x18x32x32xbf16, #tpu.memory_space<vmem>>, vector<1x16x16x32xbf16>
    %c0_45 = arith.constant 0 : index
    %c0_46 = arith.constant 0 : index
    %c9 = arith.constant 9 : index
    %c0_47 = arith.constant 0 : index
    %25 = vector.load %arg9[%c0_45, %c0_46, %c9, %c0_47] : memref<1x18x32x32xbf16, #tpu.memory_space<vmem>>, vector<1x16x16x32xbf16>
    %c0_48 = arith.constant 0 : index
    %c1_49 = arith.constant 1 : index
    %c7_50 = arith.constant 7 : index
    %c0_51 = arith.constant 0 : index
    %26 = vector.load %arg9[%c0_48, %c1_49, %c7_50, %c0_51] : memref<1x18x32x32xbf16, #tpu.memory_space<vmem>>, vector<1x16x16x32xbf16>
    %c0_52 = arith.constant 0 : index
    %c1_53 = arith.constant 1 : index
    %c8_54 = arith.constant 8 : index
    %c0_55 = arith.constant 0 : index
    %27 = vector.load %arg9[%c0_52, %c1_53, %c8_54, %c0_55] : memref<1x18x32x32xbf16, #tpu.memory_space<vmem>>, vector<1x16x16x32xbf16>
    %c0_56 = arith.constant 0 : index
    %c1_57 = arith.constant 1 : index
    %c9_58 = arith.constant 9 : index
    %c0_59 = arith.constant 0 : index
    %28 = vector.load %arg9[%c0_56, %c1_57, %c9_58, %c0_59] : memref<1x18x32x32xbf16, #tpu.memory_space<vmem>>, vector<1x16x16x32xbf16>
    %c0_60 = arith.constant 0 : index
    %c2 = arith.constant 2 : index
    %c7_61 = arith.constant 7 : index
    %c0_62 = arith.constant 0 : index
    %29 = vector.load %arg9[%c0_60, %c2, %c7_61, %c0_62] : memref<1x18x32x32xbf16, #tpu.memory_space<vmem>>, vector<1x16x16x32xbf16>
    %c0_63 = arith.constant 0 : index
    %c2_64 = arith.constant 2 : index
    %c8_65 = arith.constant 8 : index
    %c0_66 = arith.constant 0 : index
    %30 = vector.load %arg9[%c0_63, %c2_64, %c8_65, %c0_66] : memref<1x18x32x32xbf16, #tpu.memory_space<vmem>>, vector<1x16x16x32xbf16>
    %c0_67 = arith.constant 0 : index
    %c2_68 = arith.constant 2 : index
    %c9_69 = arith.constant 9 : index
    %c0_70 = arith.constant 0 : index
    %31 = vector.load %arg9[%c0_67, %c2_68, %c9_69, %c0_70] : memref<1x18x32x32xbf16, #tpu.memory_space<vmem>>, vector<1x16x16x32xbf16>
    %32 = tpu.concatenate %23, %24, %25, %26, %27, %28, %29, %30, %31 in 3 : vector<1x16x16x32xbf16>, vector<1x16x16x32xbf16>, vector<1x16x16x32xbf16>, vector<1x16x16x32xbf16>, vector<1x16x16x32xbf16>, vector<1x16x16x32xbf16>, vector<1x16x16x32xbf16>, vector<1x16x16x32xbf16>, vector<1x16x16x32xbf16> -> vector<1x16x16x288xbf16>
    %33 = vector.shape_cast %32 : vector<1x16x16x288xbf16> to vector<256x288xbf16>
    %c0_71 = arith.constant 0 : index
    %c0_72 = arith.constant 0 : index
    %34 = vector.load %arg4[%c0_71, %c0_72] : memref<288x64xbf16, #tpu.memory_space<vmem>>, vector<288x64xbf16>
    %cst_73 = arith.constant dense<0.000000e+00> : vector<256x64xf32>
    %35 = tpu.matmul %33, %34, %cst_73 {dimension_numbers = #tpu.dot_dimension_numbers<[1], [0], [0], [1], [0, 0, 1, 1], [], []>} : vector<256x288xbf16>, vector<288x64xbf16>, vector<256x64xf32> -> vector<256x64xf32>
    %36 = vector.shape_cast %35 : vector<256x64xf32> to vector<1x16x16x64xf32>
    %c0_74 = arith.constant 0 : index
    %c0_75 = arith.constant 0 : index
    %37 = vector.load %arg5[%c0_74, %c0_75] : memref<1x64xf32, #tpu.memory_space<vmem>>, vector<1x64xf32>
    %38 = vector.shape_cast %37 : vector<1x64xf32> to vector<1x1x1x64xf32>
    %39 = vector.broadcast %38 : vector<1x1x1x64xf32> to vector<1x16x16x64xf32>
    %40 = arith.addf %36, %39 : vector<1x16x16x64xf32>
    %cst_76 = arith.constant 0.000000e+00 : f32
    %41 = vector.broadcast %cst_76 : f32 to vector<1x16x16x64xf32>
    %42 = arith.maximumf %40, %41 : vector<1x16x16x64xf32>
    %c0_77 = arith.constant 0 : index
    %c0_78 = arith.constant 0 : index
    %c0_79 = arith.constant 0 : index
    %c0_80 = arith.constant 0 : index
    %43 = vector.load %arg10[%c0_77, %c0_78, %c0_79, %c0_80] : memref<1x16x16x64xf32, #tpu.memory_space<vmem>>, vector<1x16x16x64xf32>
    tpu.vector_store %arg10[%c0_77, %c0_78, %c0_79, %c0_80], %42 {strides = array<i32>} : memref<1x16x16x64xf32, #tpu.memory_space<vmem>>, vector<1x16x16x64xf32>,
    %c0_81 = arith.constant 0 : index
    %c0_82 = arith.constant 0 : index
    %c0_83 = arith.constant 0 : index
    %c0_84 = arith.constant 0 : index
    %44 = tpu.strided_load %arg10[%c0_81, %c0_82, %c0_83, %c0_84] {strides = array<i32: 1, 2, 1, 1>} : memref<1x16x16x64xf32, #tpu.memory_space<vmem>>, vector<1x8x16x64xf32>
    %c0_85 = arith.constant 0 : index
    %c1_86 = arith.constant 1 : index
    %c0_87 = arith.constant 0 : index
    %c0_88 = arith.constant 0 : index
    %45 = tpu.strided_load %arg10[%c0_85, %c1_86, %c0_87, %c0_88] {strides = array<i32: 1, 2, 1, 1>} : memref<1x16x16x64xf32, #tpu.memory_space<vmem>>, vector<1x8x16x64xf32>
    %46 = arith.maximumf %44, %45 : vector<1x8x16x64xf32>
    %c0_89 = arith.constant 0 : index
    %c0_90 = arith.constant 0 : index
    %c0_91 = arith.constant 0 : index
    %c0_92 = arith.constant 0 : index
    %47 = vector.load %arg11[%c0_89, %c0_90, %c0_91, %c0_92] : memref<1x8x16x64xf32, #tpu.memory_space<vmem>>, vector<1x8x16x64xf32>
    tpu.vector_store %arg11[%c0_89, %c0_90, %c0_91, %c0_92], %46 {strides = array<i32>} : memref<1x8x16x64xf32, #tpu.memory_space<vmem>>, vector<1x8x16x64xf32>,
    %c0_93 = arith.constant 0 : index
    %c0_94 = arith.constant 0 : index
    %c0_95 = arith.constant 0 : index
    %c0_96 = arith.constant 0 : index
    %48 = tpu.strided_load %arg11[%c0_93, %c0_94, %c0_95, %c0_96] {strides = array<i32: 1, 1, 2, 1>} : memref<1x8x16x64xf32, #tpu.memory_space<vmem>>, vector<1x8x8x64xf32>
    %c0_97 = arith.constant 0 : index
    %c0_98 = arith.constant 0 : index
    %c1_99 = arith.constant 1 : index
    %c0_100 = arith.constant 0 : index
    %49 = tpu.strided_load %arg11[%c0_97, %c0_98, %c1_99, %c0_100] {strides = array<i32: 1, 1, 2, 1>} : memref<1x8x16x64xf32, #tpu.memory_space<vmem>>, vector<1x8x8x64xf32>
    %50 = arith.maximumf %48, %49 : vector<1x8x8x64xf32>
    %51 = arith.truncf %50 : vector<1x8x8x64xf32> to vector<1x8x8x64xbf16>
    %c0_101 = arith.constant 0 : index
    %c0_102 = arith.constant 0 : index
    %c0_103 = arith.constant 0 : index
    %c0_104 = arith.constant 0 : index
    %52 = vector.load %arg6[%c0_101, %c0_102, %c0_103, %c0_104] : memref<1x8x8x64xbf16, #tpu.memory_space<vmem>>, vector<1x8x8x64xbf16>
    tpu.vector_store %arg6[%c0_101, %c0_102, %c0_103, %c0_104], %51 {strides = array<i32>} : memref<1x8x8x64xbf16, #tpu.memory_space<vmem>>, vector<1x8x8x64xbf16>,
    return
  }
  func.func @transform_0(%arg0: i32) -> (i32, i32, i32) {
    %c0_i32 = arith.constant 0 : i32
    %c0_i32_0 = arith.constant 0 : i32
    %c0_i32_1 = arith.constant 0 : i32
    return %arg0, %c0_i32, %c0_i32_0 : i32, i32, i32
  }
  func.func @transform_1(%arg0: i32) -> (i32, i32) {
    %c0_i32 = arith.constant 0 : i32
    %c0_i32_0 = arith.constant 0 : i32
    %c0_i32_1 = arith.constant 0 : i32
    return %c0_i32, %c0_i32_0 : i32, i32
  }
  func.func @transform_2(%arg0: i32) -> (i32, i32) {
    %c0_i32 = arith.constant 0 : i32
    %c0_i32_0 = arith.constant 0 : i32
    %c0_i32_1 = arith.constant 0 : i32
    return %c0_i32, %c0_i32_0 : i32, i32
  }
  func.func @transform_3(%arg0: i32) -> (i32, i32) {
    %c0_i32 = arith.constant 0 : i32
    %c0_i32_0 = arith.constant 0 : i32
    %c0_i32_1 = arith.constant 0 : i32
    return %c0_i32, %c0_i32_0 : i32, i32
  }
  func.func @transform_4(%arg0: i32) -> (i32, i32) {
    %c0_i32 = arith.constant 0 : i32
    %c0_i32_0 = arith.constant 0 : i32
    %c0_i32_1 = arith.constant 0 : i32
    return %c0_i32, %c0_i32_0 : i32, i32
  }
  func.func @transform_5(%arg0: i32) -> (i32, i32, i32, i32) {
    %c0_i32 = arith.constant 0 : i32
    %c0_i32_0 = arith.constant 0 : i32
    %c0_i32_1 = arith.constant 0 : i32
    %c0_i32_2 = arith.constant 0 : i32
    return %arg0, %c0_i32, %c0_i32_0, %c0_i32_1 : i32, i32, i32, i32
  }
}

module attributes {stable_mosaic.version = 11 : i64} {
  func.func @_mlp_kernel(%arg0: i32, %arg1: memref<2x4096xbf16, #tpu.memory_space<vmem>>, %arg2: memref<4096x128xbf16, #tpu.memory_space<vmem>>, %arg3: memref<1x128xf32, #tpu.memory_space<vmem>>, %arg4: memref<128x128xbf16, #tpu.memory_space<vmem>>, %arg5: memref<1x128xf32, #tpu.memory_space<vmem>>, %arg6: memref<2x128xf32, #tpu.memory_space<vmem>>) attributes {dimension_semantics = [#tpu.dimension_semantics<parallel>], iteration_bounds = array<i64: 1>, scalar_prefetch = 0 : i64, scratch_operands = 0 : i64, tpu.core_type = #tpu.core_type<tc>, window_params = [{transform_indices = @transform_0, window_bounds = array<i64: 2, 4096>}, {pipeline_mode = #tpu.pipeline_mode<synchronous>, transform_indices = @transform_1, window_bounds = array<i64: 4096, 128>}, {pipeline_mode = #tpu.pipeline_mode<synchronous>, transform_indices = @transform_2, window_bounds = array<i64: 1, 128>}, {pipeline_mode = #tpu.pipeline_mode<synchronous>, transform_indices = @transform_3, window_bounds = array<i64: 128, 128>}, {pipeline_mode = #tpu.pipeline_mode<synchronous>, transform_indices = @transform_4, window_bounds = array<i64: 1, 128>}, {transform_indices = @transform_5, window_bounds = array<i64: 2, 128>}]} {
    %c0 = arith.constant 0 : index
    %c0_0 = arith.constant 0 : index
    %0 = vector.load %arg1[%c0, %c0_0] : memref<2x4096xbf16, #tpu.memory_space<vmem>>, vector<2x4096xbf16>
    %c0_1 = arith.constant 0 : index
    %c0_2 = arith.constant 0 : index
    %1 = vector.load %arg2[%c0_1, %c0_2] : memref<4096x128xbf16, #tpu.memory_space<vmem>>, vector<4096x128xbf16>
    %cst = arith.constant dense<0.000000e+00> : vector<2x128xf32>
    %2 = tpu.matmul %0, %1, %cst {dimension_numbers = #tpu.dot_dimension_numbers<[1], [0], [0], [1], [0, 0, 1, 1], [], []>} : vector<2x4096xbf16>, vector<4096x128xbf16>, vector<2x128xf32> -> vector<2x128xf32>
    %c0_3 = arith.constant 0 : index
    %c0_4 = arith.constant 0 : index
    %3 = vector.load %arg3[%c0_3, %c0_4] : memref<1x128xf32, #tpu.memory_space<vmem>>, vector<1x128xf32>
    %4 = vector.broadcast %3 : vector<1x128xf32> to vector<2x128xf32>
    %5 = arith.addf %2, %4 : vector<2x128xf32>
    %cst_5 = arith.constant 0.000000e+00 : f32
    %6 = vector.broadcast %cst_5 : f32 to vector<2x128xf32>
    %7 = arith.maximumf %5, %6 : vector<2x128xf32>
    %8 = arith.truncf %7 : vector<2x128xf32> to vector<2x128xbf16>
    %c0_6 = arith.constant 0 : index
    %c0_7 = arith.constant 0 : index
    %9 = vector.load %arg4[%c0_6, %c0_7] : memref<128x128xbf16, #tpu.memory_space<vmem>>, vector<128x128xbf16>
    %cst_8 = arith.constant dense<0.000000e+00> : vector<2x128xf32>
    %10 = tpu.matmul %8, %9, %cst_8 {dimension_numbers = #tpu.dot_dimension_numbers<[1], [0], [0], [1], [0, 0, 1, 1], [], []>} : vector<2x128xbf16>, vector<128x128xbf16>, vector<2x128xf32> -> vector<2x128xf32>
    %c0_9 = arith.constant 0 : index
    %c0_10 = arith.constant 0 : index
    %11 = vector.load %arg5[%c0_9, %c0_10] : memref<1x128xf32, #tpu.memory_space<vmem>>, vector<1x128xf32>
    %12 = vector.broadcast %11 : vector<1x128xf32> to vector<2x128xf32>
    %13 = arith.addf %10, %12 : vector<2x128xf32>
    %c0_11 = arith.constant 0 : index
    %c0_12 = arith.constant 0 : index
    %14 = vector.load %arg6[%c0_11, %c0_12] : memref<2x128xf32, #tpu.memory_space<vmem>>, vector<2x128xf32>
    tpu.vector_store %arg6[%c0_11, %c0_12], %13 {strides = array<i32>} : memref<2x128xf32, #tpu.memory_space<vmem>>, vector<2x128xf32>,
    return
  }
  func.func @transform_0(%arg0: i32) -> (i32, i32) {
    %c0_i32 = arith.constant 0 : i32
    %c0_i32_0 = arith.constant 0 : i32
    return %arg0, %c0_i32 : i32, i32
  }
  func.func @transform_1(%arg0: i32) -> (i32, i32) {
    %c0_i32 = arith.constant 0 : i32
    %c0_i32_0 = arith.constant 0 : i32
    %c0_i32_1 = arith.constant 0 : i32
    return %c0_i32, %c0_i32_0 : i32, i32
  }
  func.func @transform_2(%arg0: i32) -> (i32, i32) {
    %c0_i32 = arith.constant 0 : i32
    %c0_i32_0 = arith.constant 0 : i32
    %c0_i32_1 = arith.constant 0 : i32
    return %c0_i32, %c0_i32_0 : i32, i32
  }
  func.func @transform_3(%arg0: i32) -> (i32, i32) {
    %c0_i32 = arith.constant 0 : i32
    %c0_i32_0 = arith.constant 0 : i32
    %c0_i32_1 = arith.constant 0 : i32
    return %c0_i32, %c0_i32_0 : i32, i32
  }
  func.func @transform_4(%arg0: i32) -> (i32, i32) {
    %c0_i32 = arith.constant 0 : i32
    %c0_i32_0 = arith.constant 0 : i32
    %c0_i32_1 = arith.constant 0 : i32
    return %c0_i32, %c0_i32_0 : i32, i32
  }
  func.func @transform_5(%arg0: i32) -> (i32, i32) {
    %c0_i32 = arith.constant 0 : i32
    %c0_i32_0 = arith.constant 0 : i32
    return %arg0, %c0_i32 : i32, i32
  }
}

</mosaic_0001>

<llo_original>
// kernel: simple_cnn_forward.3
$region0: #{simple_cnn_forward.3}
  #allocation0 [shape = 'u32[]', space=smem, size = 0x4, offset = 0x4, fixed_abs, tag = 'smem constant byte address 0x4 - core index']
  #allocation1 [shape = 'u32[144,128]{1,0:T(1,128)}', space=vmem, size = 0x12000, scoped, tag = 'internal scratch']
  %s0 = inlined_call_operand.vmem [shape: bf16[2,4096], index: 0, kind: input, shape index: {}]
  %s1 = inlined_call_operand.vmem [shape: bf16[4096,128], index: 1, kind: input, shape index: {}]
  %s2 = inlined_call_operand.vmem [shape: f32[1,128], index: 2, kind: input, shape index: {}]
  %s3 = inlined_call_operand.vmem [shape: bf16[128,128], index: 3, kind: input, shape index: {}]
  %s4 = inlined_call_operand.vmem [shape: f32[1,128], index: 4, kind: input, shape index: {}]
  %s5 = inlined_call_operand.hbm [shape: f32[2,128], index: 5, kind: output, shape index: {}]
  %s6 = sld [smem:[#allocation0]]
  $region30: #{simple_cnn_forward.3} parent=0
    _
  %s8 = ssub.s32 1, %s6
  %s9 = scalar_select 0, %s8, %s6
  $region1: #{simple_cnn_forward.3} parent=0
    #allocation2 [shape = 'u8[1024]{0}', space=vmem, size = 0x400, scoped, tag = 'output window, operand 0, single buffered']
    #allocation3 [shape = 's32[1]{0}', space=sflag, size = 0x4, scoped, tag = 'scoped memory for simple_cnn_forward.3']
    %10 = vsyncpa [#allocation3], 0
    // Predicated region
    $region2: #{simple_cnn_forward.3} parent=1 // pred_check
      _
    $region3: #{simple_cnn_forward.3} parent=1 // pred_check_branch
      %12 = sbr.rel (0) target = $region5
    $region4: #{simple_cnn_forward.3} parent=1 // pred_region
      _
    $region5: #{simple_cnn_forward.3} parent=1 // pred_fallthru
      _
    // Predicated region
    $region6: #{simple_cnn_forward.3} parent=1 // pred_check
      _
    $region7: #{simple_cnn_forward.3} parent=1 // pred_check_branch
      %14 = sbr.rel (0) target = $region9
    $region8: #{simple_cnn_forward.3} parent=1 // pred_region
      _
    $region9: #{simple_cnn_forward.3} parent=1 // pred_fallthru
      _
    // Predicated region
    $region10: #{simple_cnn_forward.3} parent=1 // pred_check
      _
    $region11: #{simple_cnn_forward.3} parent=1 // pred_check_branch
      %16 = sbr.rel (0) target = $region13
    $region12: #{simple_cnn_forward.3} parent=1 // pred_region
      _
    $region13: #{simple_cnn_forward.3} parent=1 // pred_fallthru
      _
    // Predicated region
    $region14: #{simple_cnn_forward.3} parent=1 // pred_check
      _
    $region15: #{simple_cnn_forward.3} parent=1 // pred_check_branch
      %18 = sbr.rel (0) target = $region17
    $region16: #{simple_cnn_forward.3} parent=1 // pred_region
      _
    $region17: #{simple_cnn_forward.3} parent=1 // pred_fallthru
      _
    // Predicated region
    $region18: #{simple_cnn_forward.3} parent=1 // pred_check
      _
    $region19: #{simple_cnn_forward.3} parent=1 // pred_check_branch
      %20 = sbr.rel (0) target = $region21
    $region20: #{simple_cnn_forward.3} parent=1 // pred_region
      _
    $region21: #{simple_cnn_forward.3} parent=1 // pred_fallthru
      _
    %v22 = vld [vmem:[%s0] sm:$0xff]
    %v23 = vld [vmem:[%s0 + $0x8] sm:$0xff]
    %v24 = vld [vmem:[%s0 + $0x10] sm:$0xff]
    %v25 = vld [vmem:[%s0 + $0x18] sm:$0xff]
    %v26 = vld [vmem:[%s1] sm:$0xf]
    %v27 = vld [vmem:[%s1 + $0x4] sm:$0xf]
    %v28 = vld [vmem:[%s1 + $0x8] sm:$0xf]
    %v29 = vld [vmem:[%s1 + $0xc] sm:$0xf]
    %v30 = vld [vmem:[%s1 + $0x10] sm:$0xf]
    %v31 = vld [vmem:[%s1 + $0x14] sm:$0xf]
    %v32 = vld [vmem:[%s1 + $0x18] sm:$0xf]
    %v33 = vld [vmem:[%s1 + $0x1c] sm:$0xf]
    %v34 = vld [vmem:[%s1 + $0x20] sm:$0xf]
    %v35 = vld [vmem:[%s1 + $0x24] sm:$0xf]
    %v36 = vld [vmem:[%s1 + $0x28] sm:$0xf]
    %v37 = vld [vmem:[%s1 + $0x2c] sm:$0xf]
    %v38 = vld [vmem:[%s1 + $0x30] sm:$0xf]
    %v39 = vld [vmem:[%s1 + $0x34] sm:$0xf]
    %v40 = vld [vmem:[%s1 + $0x38] sm:$0xf]
    %v41 = vld [vmem:[%s1 + $0x3c] sm:$0xf]
    %v42 = vld [vmem:[%s1 + $0x40] sm:$0xf]
    %v43 = vld [vmem:[%s1 + $0x44] sm:$0xf]
    %v44 = vld [vmem:[%s1 + $0x48] sm:$0xf]
    %v45 = vld [vmem:[%s1 + $0x4c] sm:$0xf]
    %v46 = vld [vmem:[%s1 + $0x50] sm:$0xf]
    %v47 = vld [vmem:[%s1 + $0x54] sm:$0xf]
    %v48 = vld [vmem:[%s1 + $0x58] sm:$0xf]
    %v49 = vld [vmem:[%s1 + $0x5c] sm:$0xf]
    %v50 = vld [vmem:[%s1 + $0x60] sm:$0xf]
    %v51 = vld [vmem:[%s1 + $0x64] sm:$0xf]
    %v52 = vld [vmem:[%s1 + $0x68] sm:$0xf]
    %v53 = vld [vmem:[%s1 + $0x6c] sm:$0xf]
    %v54 = vld [vmem:[%s1 + $0x70] sm:$0xf]
    %v55 = vld [vmem:[%s1 + $0x74] sm:$0xf]
    %v56 = vld [vmem:[%s1 + $0x78] sm:$0xf]
    %v57 = vld [vmem:[%s1 + $0x7c] sm:$0xf]
    %v58 = vld [vmem:[%s1 + $0x80] sm:$0xf]
    %v59 = vld [vmem:[%s1 + $0x84] sm:$0xf]
    %v60 = vld [vmem:[%s1 + $0x88] sm:$0xf]
    %v61 = vld [vmem:[%s1 + $0x8c] sm:$0xf]
    %v62 = vld [vmem:[%s1 + $0x90] sm:$0xf]
    %v63 = vld [vmem:[%s1 + $0x94] sm:$0xf]
    %v64 = vld [vmem:[%s1 + $0x98] sm:$0xf]
    %v65 = vld [vmem:[%s1 + $0x9c] sm:$0xf]
    %v66 = vld [vmem:[%s1 + $0xa0] sm:$0xf]
    %v67 = vld [vmem:[%s1 + $0xa4] sm:$0xf]
    %v68 = vld [vmem:[%s1 + $0xa8] sm:$0xf]
    %v69 = vld [vmem:[%s1 + $0xac] sm:$0xf]
    %v70 = vld [vmem:[%s1 + $0xb0] sm:$0xf]
    %v71 = vld [vmem:[%s1 + $0xb4] sm:$0xf]
    %v72 = vld [vmem:[%s1 + $0xb8] sm:$0xf]
    %v73 = vld [vmem:[%s1 + $0xbc] sm:$0xf]
    %v74 = vld [vmem:[%s1 + $0xc0] sm:$0xf]
    %v75 = vld [vmem:[%s1 + $0xc4] sm:$0xf]
    %v76 = vld [vmem:[%s1 + $0xc8] sm:$0xf]
    %v77 = vld [vmem:[%s1 + $0xcc] sm:$0xf]
    %v78 = vld [vmem:[%s1 + $0xd0] sm:$0xf]
    %v79 = vld [vmem:[%s1 + $0xd4] sm:$0xf]
    %v80 = vld [vmem:[%s1 + $0xd8] sm:$0xf]
    %v81 = vld [vmem:[%s1 + $0xdc] sm:$0xf]
    %v82 = vld [vmem:[%s1 + $0xe0] sm:$0xf]
    %v83 = vld [vmem:[%s1 + $0xe4] sm:$0xf]
    %v84 = vld [vmem:[%s1 + $0xe8] sm:$0xf]
    %v85 = vld [vmem:[%s1 + $0xec] sm:$0xf]
    %v86 = vld [vmem:[%s1 + $0xf0] sm:$0xf]
    %v87 = vld [vmem:[%s1 + $0xf4] sm:$0xf]
    %v88 = vld [vmem:[%s1 + $0xf8] sm:$0xf]
    %v89 = vld [vmem:[%s1 + $0xfc] sm:$0xf]
    %v90 = vld [vmem:[%s1 + $0x100] sm:$0xf]
    %v91 = vld [vmem:[%s1 + $0x104] sm:$0xf]
    %v92 = vld [vmem:[%s1 + $0x108] sm:$0xf]
    %v93 = vld [vmem:[%s1 + $0x10c] sm:$0xf]
    %v94 = vld [vmem:[%s1 + $0x110] sm:$0xf]
    %v95 = vld [vmem:[%s1 + $0x114] sm:$0xf]
    %v96 = vld [vmem:[%s1 + $0x118] sm:$0xf]
    %v97 = vld [vmem:[%s1 + $0x11c] sm:$0xf]
    %v98 = vld [vmem:[%s1 + $0x120] sm:$0xf]
    %v99 = vld [vmem:[%s1 + $0x124] sm:$0xf]
    %v100 = vld [vmem:[%s1 + $0x128] sm:$0xf]
    %v101 = vld [vmem:[%s1 + $0x12c] sm:$0xf]
    %v102 = vld [vmem:[%s1 + $0x130] sm:$0xf]
    %v103 = vld [vmem:[%s1 + $0x134] sm:$0xf]
    %v104 = vld [vmem:[%s1 + $0x138] sm:$0xf]
    %v105 = vld [vmem:[%s1 + $0x13c] sm:$0xf]
    %v106 = vld [vmem:[%s1 + $0x140] sm:$0xf]
    %v107 = vld [vmem:[%s1 + $0x144] sm:$0xf]
    %v108 = vld [vmem:[%s1 + $0x148] sm:$0xf]
    %v109 = vld [vmem:[%s1 + $0x14c] sm:$0xf]
    %v110 = vld [vmem:[%s1 + $0x150] sm:$0xf]
    %v111 = vld [vmem:[%s1 + $0x154] sm:$0xf]
    %v112 = vld [vmem:[%s1 + $0x158] sm:$0xf]
    %v113 = vld [vmem:[%s1 + $0x15c] sm:$0xf]
    %v114 = vld [vmem:[%s1 + $0x160] sm:$0xf]
    %v115 = vld [vmem:[%s1 + $0x164] sm:$0xf]
    %v116 = vld [vmem:[%s1 + $0x168] sm:$0xf]
    %v117 = vld [vmem:[%s1 + $0x16c] sm:$0xf]
    %v118 = vld [vmem:[%s1 + $0x170] sm:$0xf]
    %v119 = vld [vmem:[%s1 + $0x174] sm:$0xf]
    %v120 = vld [vmem:[%s1 + $0x178] sm:$0xf]
    %v121 = vld [vmem:[%s1 + $0x17c] sm:$0xf]
    %v122 = vld [vmem:[%s1 + $0x180] sm:$0xf]
    %v123 = vld [vmem:[%s1 + $0x184] sm:$0xf]
    %v124 = vld [vmem:[%s1 + $0x188] sm:$0xf]
    %v125 = vld [vmem:[%s1 + $0x18c] sm:$0xf]
    %v126 = vld [vmem:[%s1 + $0x190] sm:$0xf]
    %v127 = vld [vmem:[%s1 + $0x194] sm:$0xf]
    %v128 = vld [vmem:[%s1 + $0x198] sm:$0xf]
    %v129 = vld [vmem:[%s1 + $0x19c] sm:$0xf]
    %v130 = vld [vmem:[%s1 + $0x1a0] sm:$0xf]
    %v131 = vld [vmem:[%s1 + $0x1a4] sm:$0xf]
    %v132 = vld [vmem:[%s1 + $0x1a8] sm:$0xf]
    %v133 = vld [vmem:[%s1 + $0x1ac] sm:$0xf]
    %v134 = vld [vmem:[%s1 + $0x1b0] sm:$0xf]
    %v135 = vld [vmem:[%s1 + $0x1b4] sm:$0xf]
    %v136 = vld [vmem:[%s1 + $0x1b8] sm:$0xf]
    %v137 = vld [vmem:[%s1 + $0x1bc] sm:$0xf]
    %v138 = vld [vmem:[%s1 + $0x1c0] sm:$0xf]
    %v139 = vld [vmem:[%s1 + $0x1c4] sm:$0xf]
    %v140 = vld [vmem:[%s1 + $0x1c8] sm:$0xf]
    %v141 = vld [vmem:[%s1 + $0x1cc] sm:$0xf]
    %v142 = vld [vmem:[%s1 + $0x1d0] sm:$0xf]
    %v143 = vld [vmem:[%s1 + $0x1d4] sm:$0xf]
    %v144 = vld [vmem:[%s1 + $0x1d8] sm:$0xf]
    %v145 = vld [vmem:[%s1 + $0x1dc] sm:$0xf]
    %v146 = vld [vmem:[%s1 + $0x1e0] sm:$0xf]
    %v147 = vld [vmem:[%s1 + $0x1e4] sm:$0xf]
    %v148 = vld [vmem:[%s1 + $0x1e8] sm:$0xf]
    %v149 = vld [vmem:[%s1 + $0x1ec] sm:$0xf]
    %v150 = vld [vmem:[%s1 + $0x1f0] sm:$0xf]
    %v151 = vld [vmem:[%s1 + $0x1f4] sm:$0xf]
    %v152 = vld [vmem:[%s1 + $0x1f8] sm:$0xf]
    %v153 = vld [vmem:[%s1 + $0x1fc] sm:$0xf]
    %v154 = vld [vmem:[%s1 + $0x200] sm:$0xf]
    %v155 = vld [vmem:[%s1 + $0x204] sm:$0xf]
    %v156 = vld [vmem:[%s1 + $0x208] sm:$0xf]
    %v157 = vld [vmem:[%s1 + $0x20c] sm:$0xf]
    %v158 = vld [vmem:[%s1 + $0x210] sm:$0xf]
    %v159 = vld [vmem:[%s1 + $0x214] sm:$0xf]
    %v160 = vld [vmem:[%s1 + $0x218] sm:$0xf]
    %v161 = vld [vmem:[%s1 + $0x21c] sm:$0xf]
    %v162 = vld [vmem:[%s1 + $0x220] sm:$0xf]
    %v163 = vld [vmem:[%s1 + $0x224] sm:$0xf]
    %v164 = vld [vmem:[%s1 + $0x228] sm:$0xf]
    %v165 = vld [vmem:[%s1 + $0x22c] sm:$0xf]
    %v166 = vld [vmem:[%s1 + $0x230] sm:$0xf]
    %v167 = vld [vmem:[%s1 + $0x234] sm:$0xf]
    %v168 = vld [vmem:[%s1 + $0x238] sm:$0xf]
    %v169 = vld [vmem:[%s1 + $0x23c] sm:$0xf]
    %v170 = vld [vmem:[%s1 + $0x240] sm:$0xf]
    %v171 = vld [vmem:[%s1 + $0x244] sm:$0xf]
    %v172 = vld [vmem:[%s1 + $0x248] sm:$0xf]
    %v173 = vld [vmem:[%s1 + $0x24c] sm:$0xf]
    %v174 = vld [vmem:[%s1 + $0x250] sm:$0xf]
    %v175 = vld [vmem:[%s1 + $0x254] sm:$0xf]
    %v176 = vld [vmem:[%s1 + $0x258] sm:$0xf]
    %v177 = vld [vmem:[%s1 + $0x25c] sm:$0xf]
    %v178 = vld [vmem:[%s1 + $0x260] sm:$0xf]
    %v179 = vld [vmem:[%s1 + $0x264] sm:$0xf]
    %v180 = vld [vmem:[%s1 + $0x268] sm:$0xf]
    %v181 = vld [vmem:[%s1 + $0x26c] sm:$0xf]
    %v182 = vld [vmem:[%s1 + $0x270] sm:$0xf]
    %v183 = vld [vmem:[%s1 + $0x274] sm:$0xf]
    %v184 = vld [vmem:[%s1 + $0x278] sm:$0xf]
    %v185 = vld [vmem:[%s1 + $0x27c] sm:$0xf]
    %v186 = vld [vmem:[%s1 + $0x280] sm:$0xf]
    %v187 = vld [vmem:[%s1 + $0x284] sm:$0xf]
    %v188 = vld [vmem:[%s1 + $0x288] sm:$0xf]
    %v189 = vld [vmem:[%s1 + $0x28c] sm:$0xf]
    %v190 = vld [vmem:[%s1 + $0x290] sm:$0xf]
    %v191 = vld [vmem:[%s1 + $0x294] sm:$0xf]
    %v192 = vld [vmem:[%s1 + $0x298] sm:$0xf]
    %v193 = vld [vmem:[%s1 + $0x29c] sm:$0xf]
    %v194 = vld [vmem:[%s1 + $0x2a0] sm:$0xf]
    %v195 = vld [vmem:[%s1 + $0x2a4] sm:$0xf]
    %v196 = vld [vmem:[%s1 + $0x2a8] sm:$0xf]
    %v197 = vld [vmem:[%s1 + $0x2ac] sm:$0xf]
    %v198 = vld [vmem:[%s1 + $0x2b0] sm:$0xf]
    %v199 = vld [vmem:[%s1 + $0x2b4] sm:$0xf]
    %v200 = vld [vmem:[%s1 + $0x2b8] sm:$0xf]
    %v201 = vld [vmem:[%s1 + $0x2bc] sm:$0xf]
    %v202 = vld [vmem:[%s1 + $0x2c0] sm:$0xf]
    %v203 = vld [vmem:[%s1 + $0x2c4] sm:$0xf]
    %v204 = vld [vmem:[%s1 + $0x2c8] sm:$0xf]
    %v205 = vld [vmem:[%s1 + $0x2cc] sm:$0xf]
    %v206 = vld [vmem:[%s1 + $0x2d0] sm:$0xf]
    %v207 = vld [vmem:[%s1 + $0x2d4] sm:$0xf]
    %v208 = vld [vmem:[%s1 + $0x2d8] sm:$0xf]
    %v209 = vld [vmem:[%s1 + $0x2dc] sm:$0xf]
    %v210 = vld [vmem:[%s1 + $0x2e0] sm:$0xf]
    %v211 = vld [vmem:[%s1 + $0x2e4] sm:$0xf]
    %v212 = vld [vmem:[%s1 + $0x2e8] sm:$0xf]
    %v213 = vld [vmem:[%s1 + $0x2ec] sm:$0xf]
    %v214 = vld [vmem:[%s1 + $0x2f0] sm:$0xf]
    %v215 = vld [vmem:[%s1 + $0x2f4] sm:$0xf]
    %v216 = vld [vmem:[%s1 + $0x2f8] sm:$0xf]
    %v217 = vld [vmem:[%s1 + $0x2fc] sm:$0xf]
    %v218 = vld [vmem:[%s1 + $0x300] sm:$0xf]
    %v219 = vld [vmem:[%s1 + $0x304] sm:$0xf]
    %v220 = vld [vmem:[%s1 + $0x308] sm:$0xf]
    %v221 = vld [vmem:[%s1 + $0x30c] sm:$0xf]
    %v222 = vld [vmem:[%s1 + $0x310] sm:$0xf]
    %v223 = vld [vmem:[%s1 + $0x314] sm:$0xf]
    %v224 = vld [vmem:[%s1 + $0x318] sm:$0xf]
    %v225 = vld [vmem:[%s1 + $0x31c] sm:$0xf]
    %v226 = vld [vmem:[%s1 + $0x320] sm:$0xf]
    %v227 = vld [vmem:[%s1 + $0x324] sm:$0xf]
    %v228 = vld [vmem:[%s1 + $0x328] sm:$0xf]
    %v229 = vld [vmem:[%s1 + $0x32c] sm:$0xf]
    %v230 = vld [vmem:[%s1 + $0x330] sm:$0xf]
    %v231 = vld [vmem:[%s1 + $0x334] sm:$0xf]
    %v232 = vld [vmem:[%s1 + $0x338] sm:$0xf]
    %v233 = vld [vmem:[%s1 + $0x33c] sm:$0xf]
    %v234 = vld [vmem:[%s1 + $0x340] sm:$0xf]
    %v235 = vld [vmem:[%s1 + $0x344] sm:$0xf]
    %v236 = vld [vmem:[%s1 + $0x348] sm:$0xf]
    %v237 = vld [vmem:[%s1 + $0x34c] sm:$0xf]
    %v238 = vld [vmem:[%s1 + $0x350] sm:$0xf]
    %v239 = vld [vmem:[%s1 + $0x354] sm:$0xf]
    %v240 = vld [vmem:[%s1 + $0x358] sm:$0xf]
    %v241 = vld [vmem:[%s1 + $0x35c] sm:$0xf]
    %v242 = vld [vmem:[%s1 + $0x360] sm:$0xf]
    %v243 = vld [vmem:[%s1 + $0x364] sm:$0xf]
    %v244 = vld [vmem:[%s1 + $0x368] sm:$0xf]
    %v245 = vld [vmem:[%s1 + $0x36c] sm:$0xf]
    %v246 = vld [vmem:[%s1 + $0x370] sm:$0xf]
    %v247 = vld [vmem:[%s1 + $0x374] sm:$0xf]
    %v248 = vld [vmem:[%s1 + $0x378] sm:$0xf]
    %v249 = vld [vmem:[%s1 + $0x37c] sm:$0xf]
    %v250 = vld [vmem:[%s1 + $0x380] sm:$0xf]
    %v251 = vld [vmem:[%s1 + $0x384] sm:$0xf]
    %v252 = vld [vmem:[%s1 + $0x388] sm:$0xf]
    %v253 = vld [vmem:[%s1 + $0x38c] sm:$0xf]
    %v254 = vld [vmem:[%s1 + $0x390] sm:$0xf]
    %v255 = vld [vmem:[%s1 + $0x394] sm:$0xf]
    %v256 = vld [vmem:[%s1 + $0x398] sm:$0xf]
    %v257 = vld [vmem:[%s1 + $0x39c] sm:$0xf]
    %v258 = vld [vmem:[%s1 + $0x3a0] sm:$0xf]
    %v259 = vld [vmem:[%s1 + $0x3a4] sm:$0xf]
    %v260 = vld [vmem:[%s1 + $0x3a8] sm:$0xf]
    %v261 = vld [vmem:[%s1 + $0x3ac] sm:$0xf]
    %v262 = vld [vmem:[%s1 + $0x3b0] sm:$0xf]
    %v263 = vld [vmem:[%s1 + $0x3b4] sm:$0xf]
    %v264 = vld [vmem:[%s1 + $0x3b8] sm:$0xf]
    %v265 = vld [vmem:[%s1 + $0x3bc] sm:$0xf]
    %v266 = vld [vmem:[%s1 + $0x3c0] sm:$0xf]
    %v267 = vld [vmem:[%s1 + $0x3c4] sm:$0xf]
    %v268 = vld [vmem:[%s1 + $0x3c8] sm:$0xf]
    %v269 = vld [vmem:[%s1 + $0x3cc] sm:$0xf]
    %v270 = vld [vmem:[%s1 + $0x3d0] sm:$0xf]
    %v271 = vld [vmem:[%s1 + $0x3d4] sm:$0xf]
    %v272 = vld [vmem:[%s1 + $0x3d8] sm:$0xf]
    %v273 = vld [vmem:[%s1 + $0x3dc] sm:$0xf]
    %v274 = vld [vmem:[%s1 + $0x3e0] sm:$0xf]
    %v275 = vld [vmem:[%s1 + $0x3e4] sm:$0xf]
    %v276 = vld [vmem:[%s1 + $0x3e8] sm:$0xf]
    %v277 = vld [vmem:[%s1 + $0x3ec] sm:$0xf]
    %v278 = vld [vmem:[%s1 + $0x3f0] sm:$0xf]
    %v279 = vld [vmem:[%s1 + $0x3f4] sm:$0xf]
    %v280 = vld [vmem:[%s1 + $0x3f8] sm:$0xf]
    %v281 = vld [vmem:[%s1 + $0x3fc] sm:$0xf]
    %v282 = vld [vmem:[%s1 + $0x400] sm:$0xf]
    %v283 = vld [vmem:[%s1 + $0x404] sm:$0xf]
    %v284 = vld [vmem:[%s1 + $0x408] sm:$0xf]
    %v285 = vld [vmem:[%s1 + $0x40c] sm:$0xf]
    %v286 = vld [vmem:[%s1 + $0x410] sm:$0xf]
    %v287 = vld [vmem:[%s1 + $0x414] sm:$0xf]
    %v288 = vld [vmem:[%s1 + $0x418] sm:$0xf]
    %v289 = vld [vmem:[%s1 + $0x41c] sm:$0xf]
    %v290 = vld [vmem:[%s1 + $0x420] sm:$0xf]
    %v291 = vld [vmem:[%s1 + $0x424] sm:$0xf]
    %v292 = vld [vmem:[%s1 + $0x428] sm:$0xf]
    %v293 = vld [vmem:[%s1 + $0x42c] sm:$0xf]
    %v294 = vld [vmem:[%s1 + $0x430] sm:$0xf]
    %v295 = vld [vmem:[%s1 + $0x434] sm:$0xf]
    %v296 = vld [vmem:[%s1 + $0x438] sm:$0xf]
    %v297 = vld [vmem:[%s1 + $0x43c] sm:$0xf]
    %v298 = vld [vmem:[%s1 + $0x440] sm:$0xf]
    %v299 = vld [vmem:[%s1 + $0x444] sm:$0xf]
    %v300 = vld [vmem:[%s1 + $0x448] sm:$0xf]
    %v301 = vld [vmem:[%s1 + $0x44c] sm:$0xf]
    %v302 = vld [vmem:[%s1 + $0x450] sm:$0xf]
    %v303 = vld [vmem:[%s1 + $0x454] sm:$0xf]
    %v304 = vld [vmem:[%s1 + $0x458] sm:$0xf]
    %v305 = vld [vmem:[%s1 + $0x45c] sm:$0xf]
    %v306 = vld [vmem:[%s1 + $0x460] sm:$0xf]
    %v307 = vld [vmem:[%s1 + $0x464] sm:$0xf]
    %v308 = vld [vmem:[%s1 + $0x468] sm:$0xf]
    %v309 = vld [vmem:[%s1 + $0x46c] sm:$0xf]
    %v310 = vld [vmem:[%s1 + $0x470] sm:$0xf]
    %v311 = vld [vmem:[%s1 + $0x474] sm:$0xf]
    %v312 = vld [vmem:[%s1 + $0x478] sm:$0xf]
    %v313 = vld [vmem:[%s1 + $0x47c] sm:$0xf]
    %v314 = vld [vmem:[%s1 + $0x480] sm:$0xf]
    %v315 = vld [vmem:[%s1 + $0x484] sm:$0xf]
    %v316 = vld [vmem:[%s1 + $0x488] sm:$0xf]
    %v317 = vld [vmem:[%s1 + $0x48c] sm:$0xf]
    %v318 = vld [vmem:[%s1 + $0x490] sm:$0xf]
    %v319 = vld [vmem:[%s1 + $0x494] sm:$0xf]
    %v320 = vld [vmem:[%s1 + $0x498] sm:$0xf]
    %v321 = vld [vmem:[%s1 + $0x49c] sm:$0xf]
    %v322 = vld [vmem:[%s1 + $0x4a0] sm:$0xf]
    %v323 = vld [vmem:[%s1 + $0x4a4] sm:$0xf]
    %v324 = vld [vmem:[%s1 + $0x4a8] sm:$0xf]
    %v325 = vld [vmem:[%s1 + $0x4ac] sm:$0xf]
    %v326 = vld [vmem:[%s1 + $0x4b0] sm:$0xf]
    %v327 = vld [vmem:[%s1 + $0x4b4] sm:$0xf]
    %v328 = vld [vmem:[%s1 + $0x4b8] sm:$0xf]
    %v329 = vld [vmem:[%s1 + $0x4bc] sm:$0xf]
    %v330 = vld [vmem:[%s1 + $0x4c0] sm:$0xf]
    %v331 = vld [vmem:[%s1 + $0x4c4] sm:$0xf]
    %v332 = vld [vmem:[%s1 + $0x4c8] sm:$0xf]
    %v333 = vld [vmem:[%s1 + $0x4cc] sm:$0xf]
    %v334 = vld [vmem:[%s1 + $0x4d0] sm:$0xf]
    %v335 = vld [vmem:[%s1 + $0x4d4] sm:$0xf]
    %v336 = vld [vmem:[%s1 + $0x4d8] sm:$0xf]
    %v337 = vld [vmem:[%s1 + $0x4dc] sm:$0xf]
    %v338 = vld [vmem:[%s1 + $0x4e0] sm:$0xf]
    %v339 = vld [vmem:[%s1 + $0x4e4] sm:$0xf]
    %v340 = vld [vmem:[%s1 + $0x4e8] sm:$0xf]
    %v341 = vld [vmem:[%s1 + $0x4ec] sm:$0xf]
    %v342 = vld [vmem:[%s1 + $0x4f0] sm:$0xf]
    %v343 = vld [vmem:[%s1 + $0x4f4] sm:$0xf]
    %v344 = vld [vmem:[%s1 + $0x4f8] sm:$0xf]
    %v345 = vld [vmem:[%s1 + $0x4fc] sm:$0xf]
    %v346 = vld [vmem:[%s1 + $0x500] sm:$0xf]
    %v347 = vld [vmem:[%s1 + $0x504] sm:$0xf]
    %v348 = vld [vmem:[%s1 + $0x508] sm:$0xf]
    %v349 = vld [vmem:[%s1 + $0x50c] sm:$0xf]
    %v350 = vld [vmem:[%s1 + $0x510] sm:$0xf]
    %v351 = vld [vmem:[%s1 + $0x514] sm:$0xf]
    %v352 = vld [vmem:[%s1 + $0x518] sm:$0xf]
    %v353 = vld [vmem:[%s1 + $0x51c] sm:$0xf]
    %v354 = vld [vmem:[%s1 + $0x520] sm:$0xf]
    %v355 = vld [vmem:[%s1 + $0x524] sm:$0xf]
    %v356 = vld [vmem:[%s1 + $0x528] sm:$0xf]
    %v357 = vld [vmem:[%s1 + $0x52c] sm:$0xf]
    %v358 = vld [vmem:[%s1 + $0x530] sm:$0xf]
    %v359 = vld [vmem:[%s1 + $0x534] sm:$0xf]
    %v360 = vld [vmem:[%s1 + $0x538] sm:$0xf]
    %v361 = vld [vmem:[%s1 + $0x53c] sm:$0xf]
    %v362 = vld [vmem:[%s1 + $0x540] sm:$0xf]
    %v363 = vld [vmem:[%s1 + $0x544] sm:$0xf]
    %v364 = vld [vmem:[%s1 + $0x548] sm:$0xf]
    %v365 = vld [vmem:[%s1 + $0x54c] sm:$0xf]
    %v366 = vld [vmem:[%s1 + $0x550] sm:$0xf]
    %v367 = vld [vmem:[%s1 + $0x554] sm:$0xf]
    %v368 = vld [vmem:[%s1 + $0x558] sm:$0xf]
    %v369 = vld [vmem:[%s1 + $0x55c] sm:$0xf]
    %v370 = vld [vmem:[%s1 + $0x560] sm:$0xf]
    %v371 = vld [vmem:[%s1 + $0x564] sm:$0xf]
    %v372 = vld [vmem:[%s1 + $0x568] sm:$0xf]
    %v373 = vld [vmem:[%s1 + $0x56c] sm:$0xf]
    %v374 = vld [vmem:[%s1 + $0x570] sm:$0xf]
    %v375 = vld [vmem:[%s1 + $0x574] sm:$0xf]
    %v376 = vld [vmem:[%s1 + $0x578] sm:$0xf]
    %v377 = vld [vmem:[%s1 + $0x57c] sm:$0xf]
    %v378 = vld [vmem:[%s1 + $0x580] sm:$0xf]
    %v379 = vld [vmem:[%s1 + $0x584] sm:$0xf]
    %v380 = vld [vmem:[%s1 + $0x588] sm:$0xf]
    %v381 = vld [vmem:[%s1 + $0x58c] sm:$0xf]
    %v382 = vld [vmem:[%s1 + $0x590] sm:$0xf]
    %v383 = vld [vmem:[%s1 + $0x594] sm:$0xf]
    %v384 = vld [vmem:[%s1 + $0x598] sm:$0xf]
    %v385 = vld [vmem:[%s1 + $0x59c] sm:$0xf]
    %v386 = vld [vmem:[%s1 + $0x5a0] sm:$0xf]
    %v387 = vld [vmem:[%s1 + $0x5a4] sm:$0xf]
    %v388 = vld [vmem:[%s1 + $0x5a8] sm:$0xf]
    %v389 = vld [vmem:[%s1 + $0x5ac] sm:$0xf]
    %v390 = vld [vmem:[%s1 + $0x5b0] sm:$0xf]
    %v391 = vld [vmem:[%s1 + $0x5b4] sm:$0xf]
    %v392 = vld [vmem:[%s1 + $0x5b8] sm:$0xf]
    %v393 = vld [vmem:[%s1 + $0x5bc] sm:$0xf]
    %v394 = vld [vmem:[%s1 + $0x5c0] sm:$0xf]
    %v395 = vld [vmem:[%s1 + $0x5c4] sm:$0xf]
    %v396 = vld [vmem:[%s1 + $0x5c8] sm:$0xf]
    %v397 = vld [vmem:[%s1 + $0x5cc] sm:$0xf]
    %v398 = vld [vmem:[%s1 + $0x5d0] sm:$0xf]
    %v399 = vld [vmem:[%s1 + $0x5d4] sm:$0xf]
    %v400 = vld [vmem:[%s1 + $0x5d8] sm:$0xf]
    %v401 = vld [vmem:[%s1 + $0x5dc] sm:$0xf]
    %v402 = vld [vmem:[%s1 + $0x5e0] sm:$0xf]
    %v403 = vld [vmem:[%s1 + $0x5e4] sm:$0xf]
    %v404 = vld [vmem:[%s1 + $0x5e8] sm:$0xf]
    %v405 = vld [vmem:[%s1 + $0x5ec] sm:$0xf]
    %v406 = vld [vmem:[%s1 + $0x5f0] sm:$0xf]
    %v407 = vld [vmem:[%s1 + $0x5f4] sm:$0xf]
    %v408 = vld [vmem:[%s1 + $0x5f8] sm:$0xf]
    %v409 = vld [vmem:[%s1 + $0x5fc] sm:$0xf]
    %v410 = vld [vmem:[%s1 + $0x600] sm:$0xf]
    %v411 = vld [vmem:[%s1 + $0x604] sm:$0xf]
    %v412 = vld [vmem:[%s1 + $0x608] sm:$0xf]
    %v413 = vld [vmem:[%s1 + $0x60c] sm:$0xf]
    %v414 = vld [vmem:[%s1 + $0x610] sm:$0xf]
    %v415 = vld [vmem:[%s1 + $0x614] sm:$0xf]
    %v416 = vld [vmem:[%s1 + $0x618] sm:$0xf]
    %v417 = vld [vmem:[%s1 + $0x61c] sm:$0xf]
    %v418 = vld [vmem:[%s1 + $0x620] sm:$0xf]
    %v419 = vld [vmem:[%s1 + $0x624] sm:$0xf]
    %v420 = vld [vmem:[%s1 + $0x628] sm:$0xf]
    %v421 = vld [vmem:[%s1 + $0x62c] sm:$0xf]
    %v422 = vld [vmem:[%s1 + $0x630] sm:$0xf]
    %v423 = vld [vmem:[%s1 + $0x634] sm:$0xf]
    %v424 = vld [vmem:[%s1 + $0x638] sm:$0xf]
    %v425 = vld [vmem:[%s1 + $0x63c] sm:$0xf]
    %v426 = vld [vmem:[%s1 + $0x640] sm:$0xf]
    %v427 = vld [vmem:[%s1 + $0x644] sm:$0xf]
    %v428 = vld [vmem:[%s1 + $0x648] sm:$0xf]
    %v429 = vld [vmem:[%s1 + $0x64c] sm:$0xf]
    %v430 = vld [vmem:[%s1 + $0x650] sm:$0xf]
    %v431 = vld [vmem:[%s1 + $0x654] sm:$0xf]
    %v432 = vld [vmem:[%s1 + $0x658] sm:$0xf]
    %v433 = vld [vmem:[%s1 + $0x65c] sm:$0xf]
    %v434 = vld [vmem:[%s1 + $0x660] sm:$0xf]
    %v435 = vld [vmem:[%s1 + $0x664] sm:$0xf]
    %v436 = vld [vmem:[%s1 + $0x668] sm:$0xf]
    %v437 = vld [vmem:[%s1 + $0x66c] sm:$0xf]
    %v438 = vld [vmem:[%s1 + $0x670] sm:$0xf]
    %v439 = vld [vmem:[%s1 + $0x674] sm:$0xf]
    %v440 = vld [vmem:[%s1 + $0x678] sm:$0xf]
    %v441 = vld [vmem:[%s1 + $0x67c] sm:$0xf]
    %v442 = vld [vmem:[%s1 + $0x680] sm:$0xf]
    %v443 = vld [vmem:[%s1 + $0x684] sm:$0xf]
    %v444 = vld [vmem:[%s1 + $0x688] sm:$0xf]
    %v445 = vld [vmem:[%s1 + $0x68c] sm:$0xf]
    %v446 = vld [vmem:[%s1 + $0x690] sm:$0xf]
    %v447 = vld [vmem:[%s1 + $0x694] sm:$0xf]
    %v448 = vld [vmem:[%s1 + $0x698] sm:$0xf]
    %v449 = vld [vmem:[%s1 + $0x69c] sm:$0xf]
    %v450 = vld [vmem:[%s1 + $0x6a0] sm:$0xf]
    %v451 = vld [vmem:[%s1 + $0x6a4] sm:$0xf]
    %v452 = vld [vmem:[%s1 + $0x6a8] sm:$0xf]
    %v453 = vld [vmem:[%s1 + $0x6ac] sm:$0xf]
    %v454 = vld [vmem:[%s1 + $0x6b0] sm:$0xf]
    %v455 = vld [vmem:[%s1 + $0x6b4] sm:$0xf]
    %v456 = vld [vmem:[%s1 + $0x6b8] sm:$0xf]
    %v457 = vld [vmem:[%s1 + $0x6bc] sm:$0xf]
    %v458 = vld [vmem:[%s1 + $0x6c0] sm:$0xf]
    %v459 = vld [vmem:[%s1 + $0x6c4] sm:$0xf]
    %v460 = vld [vmem:[%s1 + $0x6c8] sm:$0xf]
    %v461 = vld [vmem:[%s1 + $0x6cc] sm:$0xf]
    %v462 = vld [vmem:[%s1 + $0x6d0] sm:$0xf]
    %v463 = vld [vmem:[%s1 + $0x6d4] sm:$0xf]
    %v464 = vld [vmem:[%s1 + $0x6d8] sm:$0xf]
    %v465 = vld [vmem:[%s1 + $0x6dc] sm:$0xf]
    %v466 = vld [vmem:[%s1 + $0x6e0] sm:$0xf]
    %v467 = vld [vmem:[%s1 + $0x6e4] sm:$0xf]
    %v468 = vld [vmem:[%s1 + $0x6e8] sm:$0xf]
    %v469 = vld [vmem:[%s1 + $0x6ec] sm:$0xf]
    %v470 = vld [vmem:[%s1 + $0x6f0] sm:$0xf]
    %v471 = vld [vmem:[%s1 + $0x6f4] sm:$0xf]
    %v472 = vld [vmem:[%s1 + $0x6f8] sm:$0xf]
    %v473 = vld [vmem:[%s1 + $0x6fc] sm:$0xf]
    %v474 = vld [vmem:[%s1 + $0x700] sm:$0xf]
    %v475 = vld [vmem:[%s1 + $0x704] sm:$0xf]
    %v476 = vld [vmem:[%s1 + $0x708] sm:$0xf]
    %v477 = vld [vmem:[%s1 + $0x70c] sm:$0xf]
    %v478 = vld [vmem:[%s1 + $0x710] sm:$0xf]
    %v479 = vld [vmem:[%s1 + $0x714] sm:$0xf]
    %v480 = vld [vmem:[%s1 + $0x718] sm:$0xf]
    %v481 = vld [vmem:[%s1 + $0x71c] sm:$0xf]
    %v482 = vld [vmem:[%s1 + $0x720] sm:$0xf]
    %v483 = vld [vmem:[%s1 + $0x724] sm:$0xf]
    %v484 = vld [vmem:[%s1 + $0x728] sm:$0xf]
    %v485 = vld [vmem:[%s1 + $0x72c] sm:$0xf]
    %v486 = vld [vmem:[%s1 + $0x730] sm:$0xf]
    %v487 = vld [vmem:[%s1 + $0x734] sm:$0xf]
    %v488 = vld [vmem:[%s1 + $0x738] sm:$0xf]
    %v489 = vld [vmem:[%s1 + $0x73c] sm:$0xf]
    %v490 = vld [vmem:[%s1 + $0x740] sm:$0xf]
    %v491 = vld [vmem:[%s1 + $0x744] sm:$0xf]
    %v492 = vld [vmem:[%s1 + $0x748] sm:$0xf]
    %v493 = vld [vmem:[%s1 + $0x74c] sm:$0xf]
    %v494 = vld [vmem:[%s1 + $0x750] sm:$0xf]
    %v495 = vld [vmem:[%s1 + $0x754] sm:$0xf]
    %v496 = vld [vmem:[%s1 + $0x758] sm:$0xf]
    %v497 = vld [vmem:[%s1 + $0x75c] sm:$0xf]
    %v498 = vld [vmem:[%s1 + $0x760] sm:$0xf]
    %v499 = vld [vmem:[%s1 + $0x764] sm:$0xf]
    %v500 = vld [vmem:[%s1 + $0x768] sm:$0xf]
    %v501 = vld [vmem:[%s1 + $0x76c] sm:$0xf]
    %v502 = vld [vmem:[%s1 + $0x770] sm:$0xf]
    %v503 = vld [vmem:[%s1 + $0x774] sm:$0xf]
    %v504 = vld [vmem:[%s1 + $0x778] sm:$0xf]
    %v505 = vld [vmem:[%s1 + $0x77c] sm:$0xf]
    %v506 = vld [vmem:[%s1 + $0x780] sm:$0xf]
    %v507 = vld [vmem:[%s1 + $0x784] sm:$0xf]
    %v508 = vld [vmem:[%s1 + $0x788] sm:$0xf]
    %v509 = vld [vmem:[%s1 + $0x78c] sm:$0xf]
    %v510 = vld [vmem:[%s1 + $0x790] sm:$0xf]
    %v511 = vld [vmem:[%s1 + $0x794] sm:$0xf]
    %v512 = vld [vmem:[%s1 + $0x798] sm:$0xf]
    %v513 = vld [vmem:[%s1 + $0x79c] sm:$0xf]
    %v514 = vld [vmem:[%s1 + $0x7a0] sm:$0xf]
    %v515 = vld [vmem:[%s1 + $0x7a4] sm:$0xf]
    %v516 = vld [vmem:[%s1 + $0x7a8] sm:$0xf]
    %v517 = vld [vmem:[%s1 + $0x7ac] sm:$0xf]
    %v518 = vld [vmem:[%s1 + $0x7b0] sm:$0xf]
    %v519 = vld [vmem:[%s1 + $0x7b4] sm:$0xf]
    %v520 = vld [vmem:[%s1 + $0x7b8] sm:$0xf]
    %v521 = vld [vmem:[%s1 + $0x7bc] sm:$0xf]
    %v522 = vld [vmem:[%s1 + $0x7c0] sm:$0xf]
    %v523 = vld [vmem:[%s1 + $0x7c4] sm:$0xf]
    %v524 = vld [vmem:[%s1 + $0x7c8] sm:$0xf]
    %v525 = vld [vmem:[%s1 + $0x7cc] sm:$0xf]
    %v526 = vld [vmem:[%s1 + $0x7d0] sm:$0xf]
    %v527 = vld [vmem:[%s1 + $0x7d4] sm:$0xf]
    %v528 = vld [vmem:[%s1 + $0x7d8] sm:$0xf]
    %v529 = vld [vmem:[%s1 + $0x7dc] sm:$0xf]
    %v530 = vld [vmem:[%s1 + $0x7e0] sm:$0xf]
    %v531 = vld [vmem:[%s1 + $0x7e4] sm:$0xf]
    %v532 = vld [vmem:[%s1 + $0x7e8] sm:$0xf]
    %v533 = vld [vmem:[%s1 + $0x7ec] sm:$0xf]
    %v534 = vld [vmem:[%s1 + $0x7f0] sm:$0xf]
    %v535 = vld [vmem:[%s1 + $0x7f4] sm:$0xf]
    %v536 = vld [vmem:[%s1 + $0x7f8] sm:$0xf]
    %v537 = vld [vmem:[%s1 + $0x7fc] sm:$0xf]
    %v538 = vld [vmem:[%s2] sm:$0x1]
    %v540 = vlaneseq
    %v541 = vshrl.u32 %v540, 7
    %v542 = vsub.s32 0, %v541
    %v543 = vrot.slane %v538, %v542
    %v549 = vcombine.high %v22, %v22
    %v551 = vunpack.c.l.s4 1966171168
    %v552 = vunpack.c.0.s8 %v551
    %v553 = vlaneseq
    %v554 = vshrl.u32 %v553, 7
    %v555 = vsub.s32 %v552, %v554
    %v556 = vrot.slane %v22, %v555
    %v558 = vunpack.c.l.s4 1966171168
    %v559 = vunpack.c.0.s8 %v558
    %v560 = vlaneseq
    %v561 = vshrl.u32 %v560, 7
    %v562 = vsub.s32 %v559, %v561
    %v563 = vrot.slane %v549, %v562
    %v564 = vcombine.high %v556, %v556
    %v565 = vcombine.high %v563, %v563
    %v567 = vunpack.c.l.s4 1966171168
    %v568 = vunpack.c.0.s8 %v567
    %v569 = vlaneseq
    %v570 = vshrl.u32 %v569, 7
    %v571 = vsub.s32 %v568, %v570
    %v572 = vrot.slane %v556, %v571
    %v574 = vunpack.c.l.s4 1966171168
    %v575 = vunpack.c.0.s8 %v574
    %v576 = vlaneseq
    %v577 = vshrl.u32 %v576, 7
    %v578 = vsub.s32 %v575, %v577
    %v579 = vrot.slane %v563, %v578
    %v581 = vunpack.c.l.s4 1966171168
    %v582 = vunpack.c.0.s8 %v581
    %v583 = vlaneseq
    %v584 = vshrl.u32 %v583, 7
    %v585 = vsub.s32 %v582, %v584
    %v586 = vrot.slane %v564, %v585
    %v588 = vunpack.c.l.s4 1966171168
    %v589 = vunpack.c.0.s8 %v588
    %v590 = vlaneseq
    %v591 = vshrl.u32 %v590, 7
    %v592 = vsub.s32 %v589, %v591
    %v593 = vrot.slane %v565, %v592
    %v594 = vcombine.high %v572, %v572
    %v595 = vcombine.high %v579, %v579
    %v596 = vcombine.high %v586, %v586
    %v597 = vcombine.high %v593, %v593
    %v598 = vcombine.high %v23, %v23
    %v600 = vunpack.c.l.s4 1966171168
    %v601 = vunpack.c.0.s8 %v600
    %v602 = vlaneseq
    %v603 = vshrl.u32 %v602, 7
    %v604 = vsub.s32 %v601, %v603
    %v605 = vrot.slane %v23, %v604
    %v607 = vunpack.c.l.s4 1966171168
    %v608 = vunpack.c.0.s8 %v607
    %v609 = vlaneseq
    %v610 = vshrl.u32 %v609, 7
    %v611 = vsub.s32 %v608, %v610
    %v612 = vrot.slane %v598, %v611
    %v613 = vcombine.high %v605, %v605
    %v614 = vcombine.high %v612, %v612
    %v616 = vunpack.c.l.s4 1966171168
    %v617 = vunpack.c.0.s8 %v616
    %v618 = vlaneseq
    %v619 = vshrl.u32 %v618, 7
    %v620 = vsub.s32 %v617, %v619
    %v621 = vrot.slane %v605, %v620
    %v623 = vunpack.c.l.s4 1966171168
    %v624 = vunpack.c.0.s8 %v623
    %v625 = vlaneseq
    %v626 = vshrl.u32 %v625, 7
    %v627 = vsub.s32 %v624, %v626
    %v628 = vrot.slane %v612, %v627
    %v630 = vunpack.c.l.s4 1966171168
    %v631 = vunpack.c.0.s8 %v630
    %v632 = vlaneseq
    %v633 = vshrl.u32 %v632, 7
    %v634 = vsub.s32 %v631, %v633
    %v635 = vrot.slane %v613, %v634
    %v637 = vunpack.c.l.s4 1966171168
    %v638 = vunpack.c.0.s8 %v637
    %v639 = vlaneseq
    %v640 = vshrl.u32 %v639, 7
    %v641 = vsub.s32 %v638, %v640
    %v642 = vrot.slane %v614, %v641
    %v643 = vcombine.high %v621, %v621
    %v644 = vcombine.high %v628, %v628
    %v645 = vcombine.high %v635, %v635
    %v646 = vcombine.high %v642, %v642
    %v647 = vcombine.high %v24, %v24
    %v649 = vunpack.c.l.s4 1966171168
    %v650 = vunpack.c.0.s8 %v649
    %v651 = vlaneseq
    %v652 = vshrl.u32 %v651, 7
    %v653 = vsub.s32 %v650, %v652
    %v654 = vrot.slane %v24, %v653
    %v656 = vunpack.c.l.s4 1966171168
    %v657 = vunpack.c.0.s8 %v656
    %v658 = vlaneseq
    %v659 = vshrl.u32 %v658, 7
    %v660 = vsub.s32 %v657, %v659
    %v661 = vrot.slane %v647, %v660
    %v662 = vcombine.high %v654, %v654
    %v663 = vcombine.high %v661, %v661
    %v665 = vunpack.c.l.s4 1966171168
    %v666 = vunpack.c.0.s8 %v665
    %v667 = vlaneseq
    %v668 = vshrl.u32 %v667, 7
    %v669 = vsub.s32 %v666, %v668
    %v670 = vrot.slane %v654, %v669
    %v672 = vunpack.c.l.s4 1966171168
    %v673 = vunpack.c.0.s8 %v672
    %v674 = vlaneseq
    %v675 = vshrl.u32 %v674, 7
    %v676 = vsub.s32 %v673, %v675
    %v677 = vrot.slane %v661, %v676
    %v679 = vunpack.c.l.s4 1966171168
    %v680 = vunpack.c.0.s8 %v679
    %v681 = vlaneseq
    %v682 = vshrl.u32 %v681, 7
    %v683 = vsub.s32 %v680, %v682
    %v684 = vrot.slane %v662, %v683
    %v686 = vunpack.c.l.s4 1966171168
    %v687 = vunpack.c.0.s8 %v686
    %v688 = vlaneseq
    %v689 = vshrl.u32 %v688, 7
    %v690 = vsub.s32 %v687, %v689
    %v691 = vrot.slane %v663, %v690
    %v692 = vcombine.high %v670, %v670
    %v693 = vcombine.high %v677, %v677
    %v694 = vcombine.high %v684, %v684
    %v695 = vcombine.high %v691, %v691
    %v696 = vcombine.high %v25, %v25
    %v698 = vunpack.c.l.s4 1966171168
    %v699 = vunpack.c.0.s8 %v698
    %v700 = vlaneseq
    %v701 = vshrl.u32 %v700, 7
    %v702 = vsub.s32 %v699, %v701
    %v703 = vrot.slane %v25, %v702
    %v705 = vunpack.c.l.s4 1966171168
    %v706 = vunpack.c.0.s8 %v705
    %v707 = vlaneseq
    %v708 = vshrl.u32 %v707, 7
    %v709 = vsub.s32 %v706, %v708
    %v710 = vrot.slane %v696, %v709
    %v711 = vcombine.high %v703, %v703
    %v712 = vcombine.high %v710, %v710
    %v714 = vunpack.c.l.s4 1966171168
    %v715 = vunpack.c.0.s8 %v714
    %v716 = vlaneseq
    %v717 = vshrl.u32 %v716, 7
    %v718 = vsub.s32 %v715, %v717
    %v719 = vrot.slane %v703, %v718
    %v721 = vunpack.c.l.s4 1966171168
    %v722 = vunpack.c.0.s8 %v721
    %v723 = vlaneseq
    %v724 = vshrl.u32 %v723, 7
    %v725 = vsub.s32 %v722, %v724
    %v726 = vrot.slane %v710, %v725
    %v728 = vunpack.c.l.s4 1966171168
    %v729 = vunpack.c.0.s8 %v728
    %v730 = vlaneseq
    %v731 = vshrl.u32 %v730, 7
    %v732 = vsub.s32 %v729, %v731
    %v733 = vrot.slane %v711, %v732
    %v735 = vunpack.c.l.s4 1966171168
    %v736 = vunpack.c.0.s8 %v735
    %v737 = vlaneseq
    %v738 = vshrl.u32 %v737, 7
    %v739 = vsub.s32 %v736, %v738
    %v740 = vrot.slane %v712, %v739
    %v741 = vcombine.high %v719, %v719
    %v742 = vcombine.high %v726, %v726
    %v743 = vcombine.high %v733, %v733
    %v744 = vcombine.high %v740, %v740
    %v1289 = vunpack.c.l.b16 %v26
    %v1290 = vunpack.c.l.b16 %v27
    %v1291 = vunpack.c.l.b16 %v28
    %v1292 = vunpack.c.l.b16 %v29
    %v1293 = vunpack.c.l.b16 %v30
    %v1294 = vunpack.c.l.b16 %v31
    %v1295 = vunpack.c.l.b16 %v32
    %v1296 = vunpack.c.l.b16 %v33
    %v1297 = vunpack.c.l.b16 %v34
    %v1298 = vunpack.c.l.b16 %v35
    %v1299 = vunpack.c.l.b16 %v36
    %v1300 = vunpack.c.l.b16 %v37
    %v1301 = vunpack.c.l.b16 %v38
    %v1302 = vunpack.c.l.b16 %v39
    %v1303 = vunpack.c.l.b16 %v40
    %v1304 = vunpack.c.l.b16 %v41
    %v1305 = vunpack.c.l.b16 %v42
    %v1306 = vunpack.c.l.b16 %v43
    %v1307 = vunpack.c.l.b16 %v44
    %v1308 = vunpack.c.l.b16 %v45
    %v1309 = vunpack.c.l.b16 %v46
    %v1310 = vunpack.c.l.b16 %v47
    %v1311 = vunpack.c.l.b16 %v48
    %v1312 = vunpack.c.l.b16 %v49
    %v1313 = vunpack.c.l.b16 %v50
    %v1314 = vunpack.c.l.b16 %v51
    %v1315 = vunpack.c.l.b16 %v52
    %v1316 = vunpack.c.l.b16 %v53
    %v1317 = vunpack.c.l.b16 %v54
    %v1318 = vunpack.c.l.b16 %v55
    %v1319 = vunpack.c.l.b16 %v56
    %v1320 = vunpack.c.l.b16 %v57
    %v1321 = vunpack.c.l.b16 %v58
    %v1322 = vunpack.c.l.b16 %v59
    %v1323 = vunpack.c.l.b16 %v60
    %v1324 = vunpack.c.l.b16 %v61
    %v1325 = vunpack.c.l.b16 %v62
    %v1326 = vunpack.c.l.b16 %v63
    %v1327 = vunpack.c.l.b16 %v64
    %v1328 = vunpack.c.l.b16 %v65
    %v1329 = vunpack.c.l.b16 %v66
    %v1330 = vunpack.c.l.b16 %v67
    %v1331 = vunpack.c.l.b16 %v68
    %v1332 = vunpack.c.l.b16 %v69
    %v1333 = vunpack.c.l.b16 %v70
    %v1334 = vunpack.c.l.b16 %v71
    %v1335 = vunpack.c.l.b16 %v72
    %v1336 = vunpack.c.l.b16 %v73
    %v1337 = vunpack.c.l.b16 %v74
    %v1338 = vunpack.c.l.b16 %v75
    %v1339 = vunpack.c.l.b16 %v76
    %v1340 = vunpack.c.l.b16 %v77
    %v1341 = vunpack.c.l.b16 %v78
    %v1342 = vunpack.c.l.b16 %v79
    %v1343 = vunpack.c.l.b16 %v80
    %v1344 = vunpack.c.l.b16 %v81
    %v1345 = vunpack.c.l.b16 %v82
    %v1346 = vunpack.c.l.b16 %v83
    %v1347 = vunpack.c.l.b16 %v84
    %v1348 = vunpack.c.l.b16 %v85
    %v1349 = vunpack.c.l.b16 %v86
    %v1350 = vunpack.c.l.b16 %v87
    %v1351 = vunpack.c.l.b16 %v88
    %v1352 = vunpack.c.l.b16 %v89
    %v1353 = vunpack.c.l.b16 %v90
    %v1354 = vunpack.c.l.b16 %v91
    %v1355 = vunpack.c.l.b16 %v92
    %v1356 = vunpack.c.l.b16 %v93
    %v1357 = vunpack.c.l.b16 %v94
    %v1358 = vunpack.c.l.b16 %v95
    %v1359 = vunpack.c.l.b16 %v96
    %v1360 = vunpack.c.l.b16 %v97
    %v1361 = vunpack.c.l.b16 %v98
    %v1362 = vunpack.c.l.b16 %v99
    %v1363 = vunpack.c.l.b16 %v100
    %v1364 = vunpack.c.l.b16 %v101
    %v1365 = vunpack.c.l.b16 %v102
    %v1366 = vunpack.c.l.b16 %v103
    %v1367 = vunpack.c.l.b16 %v104
    %v1368 = vunpack.c.l.b16 %v105
    %v1369 = vunpack.c.l.b16 %v106
    %v1370 = vunpack.c.l.b16 %v107
    %v1371 = vunpack.c.l.b16 %v108
    %v1372 = vunpack.c.l.b16 %v109
    %v1373 = vunpack.c.l.b16 %v110
    %v1374 = vunpack.c.l.b16 %v111
    %v1375 = vunpack.c.l.b16 %v112
    %v1376 = vunpack.c.l.b16 %v113
    %v1377 = vunpack.c.l.b16 %v114
    %v1378 = vunpack.c.l.b16 %v115
    %v1379 = vunpack.c.l.b16 %v116
    %v1380 = vunpack.c.l.b16 %v117
    %v1381 = vunpack.c.l.b16 %v118
    %v1382 = vunpack.c.l.b16 %v119
    %v1383 = vunpack.c.l.b16 %v120
    %v1384 = vunpack.c.l.b16 %v121
    %v1385 = vunpack.c.l.b16 %v122
    %v1386 = vunpack.c.l.b16 %v123
    %v1387 = vunpack.c.l.b16 %v124
    %v1388 = vunpack.c.l.b16 %v125
    %v1389 = vunpack.c.l.b16 %v126
    %v1390 = vunpack.c.l.b16 %v127
    %v1391 = vunpack.c.l.b16 %v128
    %v1392 = vunpack.c.l.b16 %v129
    %v1393 = vunpack.c.l.b16 %v130
    %v1394 = vunpack.c.l.b16 %v131
    %v1395 = vunpack.c.l.b16 %v132
    %v1396 = vunpack.c.l.b16 %v133
    %v1397 = vunpack.c.l.b16 %v134
    %v1398 = vunpack.c.l.b16 %v135
    %v1399 = vunpack.c.l.b16 %v136
    %v1400 = vunpack.c.l.b16 %v137
    %v1401 = vunpack.c.l.b16 %v138
    %v1402 = vunpack.c.l.b16 %v139
    %v1403 = vunpack.c.l.b16 %v140
    %v1404 = vunpack.c.l.b16 %v141
    %v1405 = vunpack.c.l.b16 %v142
    %v1406 = vunpack.c.l.b16 %v143
    %v1407 = vunpack.c.l.b16 %v144
    %v1408 = vunpack.c.l.b16 %v145
    %v1409 = vunpack.c.l.b16 %v146
    %v1410 = vunpack.c.l.b16 %v147
    %v1411 = vunpack.c.l.b16 %v148
    %v1412 = vunpack.c.l.b16 %v149
    %v1413 = vunpack.c.l.b16 %v150
    %v1414 = vunpack.c.l.b16 %v151
    %v1415 = vunpack.c.l.b16 %v152
    %v1416 = vunpack.c.l.b16 %v153
    %v1417 = vunpack.c.l.b16 %v154
    %v1418 = vunpack.c.l.b16 %v155
    %v1419 = vunpack.c.l.b16 %v156
    %v1420 = vunpack.c.l.b16 %v157
    %v1421 = vunpack.c.l.b16 %v158
    %v1422 = vunpack.c.l.b16 %v159
    %v1423 = vunpack.c.l.b16 %v160
    %v1424 = vunpack.c.l.b16 %v161
    %v1425 = vunpack.c.l.b16 %v162
    %v1426 = vunpack.c.l.b16 %v163
    %v1427 = vunpack.c.l.b16 %v164
    %v1428 = vunpack.c.l.b16 %v165
    %v1429 = vunpack.c.l.b16 %v166
    %v1430 = vunpack.c.l.b16 %v167
    %v1431 = vunpack.c.l.b16 %v168
    %v1432 = vunpack.c.l.b16 %v169
    %v1433 = vunpack.c.l.b16 %v170
    %v1434 = vunpack.c.l.b16 %v171
    %v1435 = vunpack.c.l.b16 %v172
    %v1436 = vunpack.c.l.b16 %v173
    %v1437 = vunpack.c.l.b16 %v174
    %v1438 = vunpack.c.l.b16 %v175
    %v1439 = vunpack.c.l.b16 %v176
    %v1440 = vunpack.c.l.b16 %v177
    %v1441 = vunpack.c.l.b16 %v178
    %v1442 = vunpack.c.l.b16 %v179
    %v1443 = vunpack.c.l.b16 %v180
    %v1444 = vunpack.c.l.b16 %v181
    %v1445 = vunpack.c.l.b16 %v182
    %v1446 = vunpack.c.l.b16 %v183
    %v1447 = vunpack.c.l.b16 %v184
    %v1448 = vunpack.c.l.b16 %v185
    %v1449 = vunpack.c.l.b16 %v186
    %v1450 = vunpack.c.l.b16 %v187
    %v1451 = vunpack.c.l.b16 %v188
    %v1452 = vunpack.c.l.b16 %v189
    %v1453 = vunpack.c.l.b16 %v190
    %v1454 = vunpack.c.l.b16 %v191
    %v1455 = vunpack.c.l.b16 %v192
    %v1456 = vunpack.c.l.b16 %v193
    %v1457 = vunpack.c.l.b16 %v194
    %v1458 = vunpack.c.l.b16 %v195
    %v1459 = vunpack.c.l.b16 %v196
    %v1460 = vunpack.c.l.b16 %v197
    %v1461 = vunpack.c.l.b16 %v198
    %v1462 = vunpack.c.l.b16 %v199
    %v1463 = vunpack.c.l.b16 %v200
    %v1464 = vunpack.c.l.b16 %v201
    %v1465 = vunpack.c.l.b16 %v202
    %v1466 = vunpack.c.l.b16 %v203
    %v1467 = vunpack.c.l.b16 %v204
    %v1468 = vunpack.c.l.b16 %v205
    %v1469 = vunpack.c.l.b16 %v206
    %v1470 = vunpack.c.l.b16 %v207
    %v1471 = vunpack.c.l.b16 %v208
    %v1472 = vunpack.c.l.b16 %v209
    %v1473 = vunpack.c.l.b16 %v210
    %v1474 = vunpack.c.l.b16 %v211
    %v1475 = vunpack.c.l.b16 %v212
    %v1476 = vunpack.c.l.b16 %v213
    %v1477 = vunpack.c.l.b16 %v214
    %v1478 = vunpack.c.l.b16 %v215
    %v1479 = vunpack.c.l.b16 %v216
    %v1480 = vunpack.c.l.b16 %v217
    %v1481 = vunpack.c.l.b16 %v218
    %v1482 = vunpack.c.l.b16 %v219
    %v1483 = vunpack.c.l.b16 %v220
    %v1484 = vunpack.c.l.b16 %v221
    %v1485 = vunpack.c.l.b16 %v222
    %v1486 = vunpack.c.l.b16 %v223
    %v1487 = vunpack.c.l.b16 %v224
    %v1488 = vunpack.c.l.b16 %v225
    %v1489 = vunpack.c.l.b16 %v226
    %v1490 = vunpack.c.l.b16 %v227
    %v1491 = vunpack.c.l.b16 %v228
    %v1492 = vunpack.c.l.b16 %v229
    %v1493 = vunpack.c.l.b16 %v230
    %v1494 = vunpack.c.l.b16 %v231
    %v1495 = vunpack.c.l.b16 %v232
    %v1496 = vunpack.c.l.b16 %v233
    %v1497 = vunpack.c.l.b16 %v234
    %v1498 = vunpack.c.l.b16 %v235
    %v1499 = vunpack.c.l.b16 %v236
    %v1500 = vunpack.c.l.b16 %v237
    %v1501 = vunpack.c.l.b16 %v238
    %v1502 = vunpack.c.l.b16 %v239
    %v1503 = vunpack.c.l.b16 %v240
    %v1504 = vunpack.c.l.b16 %v241
    %v1505 = vunpack.c.l.b16 %v242
    %v1506 = vunpack.c.l.b16 %v243
    %v1507 = vunpack.c.l.b16 %v244
    %v1508 = vunpack.c.l.b16 %v245
    %v1509 = vunpack.c.l.b16 %v246
    %v1510 = vunpack.c.l.b16 %v247
    %v1511 = vunpack.c.l.b16 %v248
    %v1512 = vunpack.c.l.b16 %v249
    %v1513 = vunpack.c.l.b16 %v250
    %v1514 = vunpack.c.l.b16 %v251
    %v1515 = vunpack.c.l.b16 %v252
    %v1516 = vunpack.c.l.b16 %v253
    %v1517 = vunpack.c.l.b16 %v254
    %v1518 = vunpack.c.l.b16 %v255
    %v1519 = vunpack.c.l.b16 %v256
    %v1520 = vunpack.c.l.b16 %v257
    %v1521 = vunpack.c.l.b16 %v258
    %v1522 = vunpack.c.l.b16 %v259
    %v1523 = vunpack.c.l.b16 %v260
    %v1524 = vunpack.c.l.b16 %v261
    %v1525 = vunpack.c.l.b16 %v262
    %v1526 = vunpack.c.l.b16 %v263
    %v1527 = vunpack.c.l.b16 %v264
    %v1528 = vunpack.c.l.b16 %v265
    %v1529 = vunpack.c.l.b16 %v266
    %v1530 = vunpack.c.l.b16 %v267
    %v1531 = vunpack.c.l.b16 %v268
    %v1532 = vunpack.c.l.b16 %v269
    %v1533 = vunpack.c.l.b16 %v270
    %v1534 = vunpack.c.l.b16 %v271
    %v1535 = vunpack.c.l.b16 %v272
    %v1536 = vunpack.c.l.b16 %v273
    %v1537 = vunpack.c.l.b16 %v274
    %v1538 = vunpack.c.l.b16 %v275
    %v1539 = vunpack.c.l.b16 %v276
    %v1540 = vunpack.c.l.b16 %v277
    %v1541 = vunpack.c.l.b16 %v278
    %v1542 = vunpack.c.l.b16 %v279
    %v1543 = vunpack.c.l.b16 %v280
    %v1544 = vunpack.c.l.b16 %v281
    %v1545 = vunpack.c.l.b16 %v282
    %v1546 = vunpack.c.l.b16 %v283
    %v1547 = vunpack.c.l.b16 %v284
    %v1548 = vunpack.c.l.b16 %v285
    %v1549 = vunpack.c.l.b16 %v286
    %v1550 = vunpack.c.l.b16 %v287
    %v1551 = vunpack.c.l.b16 %v288
    %v1552 = vunpack.c.l.b16 %v289
    %v1553 = vunpack.c.l.b16 %v290
    %v1554 = vunpack.c.l.b16 %v291
    %v1555 = vunpack.c.l.b16 %v292
    %v1556 = vunpack.c.l.b16 %v293
    %v1557 = vunpack.c.l.b16 %v294
    %v1558 = vunpack.c.l.b16 %v295
    %v1559 = vunpack.c.l.b16 %v296
    %v1560 = vunpack.c.l.b16 %v297
    %v1561 = vunpack.c.l.b16 %v298
    %v1562 = vunpack.c.l.b16 %v299
    %v1563 = vunpack.c.l.b16 %v300
    %v1564 = vunpack.c.l.b16 %v301
    %v1565 = vunpack.c.l.b16 %v302
    %v1566 = vunpack.c.l.b16 %v303
    %v1567 = vunpack.c.l.b16 %v304
    %v1568 = vunpack.c.l.b16 %v305
    %v1569 = vunpack.c.l.b16 %v306
    %v1570 = vunpack.c.l.b16 %v307
    %v1571 = vunpack.c.l.b16 %v308
    %v1572 = vunpack.c.l.b16 %v309
    %v1573 = vunpack.c.l.b16 %v310
    %v1574 = vunpack.c.l.b16 %v311
    %v1575 = vunpack.c.l.b16 %v312
    %v1576 = vunpack.c.l.b16 %v313
    %v1577 = vunpack.c.l.b16 %v314
    %v1578 = vunpack.c.l.b16 %v315
    %v1579 = vunpack.c.l.b16 %v316
    %v1580 = vunpack.c.l.b16 %v317
    %v1581 = vunpack.c.l.b16 %v318
    %v1582 = vunpack.c.l.b16 %v319
    %v1583 = vunpack.c.l.b16 %v320
    %v1584 = vunpack.c.l.b16 %v321
    %v1585 = vunpack.c.l.b16 %v322
    %v1586 = vunpack.c.l.b16 %v323
    %v1587 = vunpack.c.l.b16 %v324
    %v1588 = vunpack.c.l.b16 %v325
    %v1589 = vunpack.c.l.b16 %v326
    %v1590 = vunpack.c.l.b16 %v327
    %v1591 = vunpack.c.l.b16 %v328
    %v1592 = vunpack.c.l.b16 %v329
    %v1593 = vunpack.c.l.b16 %v330
    %v1594 = vunpack.c.l.b16 %v331
    %v1595 = vunpack.c.l.b16 %v332
    %v1596 = vunpack.c.l.b16 %v333
    %v1597 = vunpack.c.l.b16 %v334
    %v1598 = vunpack.c.l.b16 %v335
    %v1599 = vunpack.c.l.b16 %v336
    %v1600 = vunpack.c.l.b16 %v337
    %v1601 = vunpack.c.l.b16 %v338
    %v1602 = vunpack.c.l.b16 %v339
    %v1603 = vunpack.c.l.b16 %v340
    %v1604 = vunpack.c.l.b16 %v341
    %v1605 = vunpack.c.l.b16 %v342
    %v1606 = vunpack.c.l.b16 %v343
    %v1607 = vunpack.c.l.b16 %v344
    %v1608 = vunpack.c.l.b16 %v345
    %v1609 = vunpack.c.l.b16 %v346
    %v1610 = vunpack.c.l.b16 %v347
    %v1611 = vunpack.c.l.b16 %v348
    %v1612 = vunpack.c.l.b16 %v349
    %v1613 = vunpack.c.l.b16 %v350
    %v1614 = vunpack.c.l.b16 %v351
    %v1615 = vunpack.c.l.b16 %v352
    %v1616 = vunpack.c.l.b16 %v353
    %v1617 = vunpack.c.l.b16 %v354
    %v1618 = vunpack.c.l.b16 %v355
    %v1619 = vunpack.c.l.b16 %v356
    %v1620 = vunpack.c.l.b16 %v357
    %v1621 = vunpack.c.l.b16 %v358
    %v1622 = vunpack.c.l.b16 %v359
    %v1623 = vunpack.c.l.b16 %v360
    %v1624 = vunpack.c.l.b16 %v361
    %v1625 = vunpack.c.l.b16 %v362
    %v1626 = vunpack.c.l.b16 %v363
    %v1627 = vunpack.c.l.b16 %v364
    %v1628 = vunpack.c.l.b16 %v365
    %v1629 = vunpack.c.l.b16 %v366
    %v1630 = vunpack.c.l.b16 %v367
    %v1631 = vunpack.c.l.b16 %v368
    %v1632 = vunpack.c.l.b16 %v369
    %v1633 = vunpack.c.l.b16 %v370
    %v1634 = vunpack.c.l.b16 %v371
    %v1635 = vunpack.c.l.b16 %v372
    %v1636 = vunpack.c.l.b16 %v373
    %v1637 = vunpack.c.l.b16 %v374
    %v1638 = vunpack.c.l.b16 %v375
    %v1639 = vunpack.c.l.b16 %v376
    %v1640 = vunpack.c.l.b16 %v377
    %v1641 = vunpack.c.l.b16 %v378
    %v1642 = vunpack.c.l.b16 %v379
    %v1643 = vunpack.c.l.b16 %v380
    %v1644 = vunpack.c.l.b16 %v381
    %v1645 = vunpack.c.l.b16 %v382
    %v1646 = vunpack.c.l.b16 %v383
    %v1647 = vunpack.c.l.b16 %v384
    %v1648 = vunpack.c.l.b16 %v385
    %v1649 = vunpack.c.l.b16 %v386
    %v1650 = vunpack.c.l.b16 %v387
    %v1651 = vunpack.c.l.b16 %v388
    %v1652 = vunpack.c.l.b16 %v389
    %v1653 = vunpack.c.l.b16 %v390
    %v1654 = vunpack.c.l.b16 %v391
    %v1655 = vunpack.c.l.b16 %v392
    %v1656 = vunpack.c.l.b16 %v393
    %v1657 = vunpack.c.l.b16 %v394
    %v1658 = vunpack.c.l.b16 %v395
    %v1659 = vunpack.c.l.b16 %v396
    %v1660 = vunpack.c.l.b16 %v397
    %v1661 = vunpack.c.l.b16 %v398
    %v1662 = vunpack.c.l.b16 %v399
    %v1663 = vunpack.c.l.b16 %v400
    %v1664 = vunpack.c.l.b16 %v401
    %v1665 = vunpack.c.l.b16 %v402
    %v1666 = vunpack.c.l.b16 %v403
    %v1667 = vunpack.c.l.b16 %v404
    %v1668 = vunpack.c.l.b16 %v405
    %v1669 = vunpack.c.l.b16 %v406
    %v1670 = vunpack.c.l.b16 %v407
    %v1671 = vunpack.c.l.b16 %v408
    %v1672 = vunpack.c.l.b16 %v409
    %v1673 = vunpack.c.l.b16 %v410
    %v1674 = vunpack.c.l.b16 %v411
    %v1675 = vunpack.c.l.b16 %v412
    %v1676 = vunpack.c.l.b16 %v413
    %v1677 = vunpack.c.l.b16 %v414
    %v1678 = vunpack.c.l.b16 %v415
    %v1679 = vunpack.c.l.b16 %v416
    %v1680 = vunpack.c.l.b16 %v417
    %v1681 = vunpack.c.l.b16 %v418
    %v1682 = vunpack.c.l.b16 %v419
    %v1683 = vunpack.c.l.b16 %v420
    %v1684 = vunpack.c.l.b16 %v421
    %v1685 = vunpack.c.l.b16 %v422
    %v1686 = vunpack.c.l.b16 %v423
    %v1687 = vunpack.c.l.b16 %v424
    %v1688 = vunpack.c.l.b16 %v425
    %v1689 = vunpack.c.l.b16 %v426
    %v1690 = vunpack.c.l.b16 %v427
    %v1691 = vunpack.c.l.b16 %v428
    %v1692 = vunpack.c.l.b16 %v429
    %v1693 = vunpack.c.l.b16 %v430
    %v1694 = vunpack.c.l.b16 %v431
    %v1695 = vunpack.c.l.b16 %v432
    %v1696 = vunpack.c.l.b16 %v433
    %v1697 = vunpack.c.l.b16 %v434
    %v1698 = vunpack.c.l.b16 %v435
    %v1699 = vunpack.c.l.b16 %v436
    %v1700 = vunpack.c.l.b16 %v437
    %v1701 = vunpack.c.l.b16 %v438
    %v1702 = vunpack.c.l.b16 %v439
    %v1703 = vunpack.c.l.b16 %v440
    %v1704 = vunpack.c.l.b16 %v441
    %v1705 = vunpack.c.l.b16 %v442
    %v1706 = vunpack.c.l.b16 %v443
    %v1707 = vunpack.c.l.b16 %v444
    %v1708 = vunpack.c.l.b16 %v445
    %v1709 = vunpack.c.l.b16 %v446
    %v1710 = vunpack.c.l.b16 %v447
    %v1711 = vunpack.c.l.b16 %v448
    %v1712 = vunpack.c.l.b16 %v449
    %v1713 = vunpack.c.l.b16 %v450
    %v1714 = vunpack.c.l.b16 %v451
    %v1715 = vunpack.c.l.b16 %v452
    %v1716 = vunpack.c.l.b16 %v453
    %v1717 = vunpack.c.l.b16 %v454
    %v1718 = vunpack.c.l.b16 %v455
    %v1719 = vunpack.c.l.b16 %v456
    %v1720 = vunpack.c.l.b16 %v457
    %v1721 = vunpack.c.l.b16 %v458
    %v1722 = vunpack.c.l.b16 %v459
    %v1723 = vunpack.c.l.b16 %v460
    %v1724 = vunpack.c.l.b16 %v461
    %v1725 = vunpack.c.l.b16 %v462
    %v1726 = vunpack.c.l.b16 %v463
    %v1727 = vunpack.c.l.b16 %v464
    %v1728 = vunpack.c.l.b16 %v465
    %v1729 = vunpack.c.l.b16 %v466
    %v1730 = vunpack.c.l.b16 %v467
    %v1731 = vunpack.c.l.b16 %v468
    %v1732 = vunpack.c.l.b16 %v469
    %v1733 = vunpack.c.l.b16 %v470
    %v1734 = vunpack.c.l.b16 %v471
    %v1735 = vunpack.c.l.b16 %v472
    %v1736 = vunpack.c.l.b16 %v473
    %v1737 = vunpack.c.l.b16 %v474
    %v1738 = vunpack.c.l.b16 %v475
    %v1739 = vunpack.c.l.b16 %v476
    %v1740 = vunpack.c.l.b16 %v477
    %v1741 = vunpack.c.l.b16 %v478
    %v1742 = vunpack.c.l.b16 %v479
    %v1743 = vunpack.c.l.b16 %v480
    %v1744 = vunpack.c.l.b16 %v481
    %v1745 = vunpack.c.l.b16 %v482
    %v1746 = vunpack.c.l.b16 %v483
    %v1747 = vunpack.c.l.b16 %v484
    %v1748 = vunpack.c.l.b16 %v485
    %v1749 = vunpack.c.l.b16 %v486
    %v1750 = vunpack.c.l.b16 %v487
    %v1751 = vunpack.c.l.b16 %v488
    %v1752 = vunpack.c.l.b16 %v489
    %v1753 = vunpack.c.l.b16 %v490
    %v1754 = vunpack.c.l.b16 %v491
    %v1755 = vunpack.c.l.b16 %v492
    %v1756 = vunpack.c.l.b16 %v493
    %v1757 = vunpack.c.l.b16 %v494
    %v1758 = vunpack.c.l.b16 %v495
    %v1759 = vunpack.c.l.b16 %v496
    %v1760 = vunpack.c.l.b16 %v497
    %v1761 = vunpack.c.l.b16 %v498
    %v1762 = vunpack.c.l.b16 %v499
    %v1763 = vunpack.c.l.b16 %v500
    %v1764 = vunpack.c.l.b16 %v501
    %v1765 = vunpack.c.l.b16 %v502
    %v1766 = vunpack.c.l.b16 %v503
    %v1767 = vunpack.c.l.b16 %v504
    %v1768 = vunpack.c.l.b16 %v505
    %v1769 = vunpack.c.l.b16 %v506
    %v1770 = vunpack.c.l.b16 %v507
    %v1771 = vunpack.c.l.b16 %v508
    %v1772 = vunpack.c.l.b16 %v509
    %v1773 = vunpack.c.l.b16 %v510
    %v1774 = vunpack.c.l.b16 %v511
    %v1775 = vunpack.c.l.b16 %v512
    %v1776 = vunpack.c.l.b16 %v513
    %v1777 = vunpack.c.l.b16 %v514
    %v1778 = vunpack.c.l.b16 %v515
    %v1779 = vunpack.c.l.b16 %v516
    %v1780 = vunpack.c.l.b16 %v517
    %v1781 = vunpack.c.l.b16 %v518
    %v1782 = vunpack.c.l.b16 %v519
    %v1783 = vunpack.c.l.b16 %v520
    %v1784 = vunpack.c.l.b16 %v521
    %v1785 = vunpack.c.l.b16 %v522
    %v1786 = vunpack.c.l.b16 %v523
    %v1787 = vunpack.c.l.b16 %v524
    %v1788 = vunpack.c.l.b16 %v525
    %v1789 = vunpack.c.l.b16 %v526
    %v1790 = vunpack.c.l.b16 %v527
    %v1791 = vunpack.c.l.b16 %v528
    %v1792 = vunpack.c.l.b16 %v529
    %v1793 = vunpack.c.l.b16 %v530
    %v1794 = vunpack.c.l.b16 %v531
    %v1795 = vunpack.c.l.b16 %v532
    %v1796 = vunpack.c.l.b16 %v533
    %v1797 = vunpack.c.l.b16 %v534
    %v1798 = vunpack.c.l.b16 %v535
    %v1799 = vunpack.c.l.b16 %v536
    %v1800 = vunpack.c.l.b16 %v537
    %v1801 = vpack.c.b16 %v1290, %v1289
    %v1802 = vpack.c.b16 %v1292, %v1291
    %v1803 = vpack.c.b16 %v1294, %v1293
    %v1804 = vpack.c.b16 %v1296, %v1295
    %v1805 = vpack.c.b16 %v1298, %v1297
    %v1806 = vpack.c.b16 %v1300, %v1299
    %v1807 = vpack.c.b16 %v1302, %v1301
    %v1808 = vpack.c.b16 %v1304, %v1303
    %v1809 = vpack.c.b16 %v1306, %v1305
    %v1810 = vpack.c.b16 %v1308, %v1307
    %v1811 = vpack.c.b16 %v1310, %v1309
    %v1812 = vpack.c.b16 %v1312, %v1311
    %v1813 = vpack.c.b16 %v1314, %v1313
    %v1814 = vpack.c.b16 %v1316, %v1315
    %v1815 = vpack.c.b16 %v1318, %v1317
    %v1816 = vpack.c.b16 %v1320, %v1319
    %v1817 = vpack.c.b16 %v1322, %v1321
    %v1818 = vpack.c.b16 %v1324, %v1323
    %v1819 = vpack.c.b16 %v1326, %v1325
    %v1820 = vpack.c.b16 %v1328, %v1327
    %v1821 = vpack.c.b16 %v1330, %v1329
    %v1822 = vpack.c.b16 %v1332, %v1331
    %v1823 = vpack.c.b16 %v1334, %v1333
    %v1824 = vpack.c.b16 %v1336, %v1335
    %v1825 = vpack.c.b16 %v1338, %v1337
    %v1826 = vpack.c.b16 %v1340, %v1339
    %v1827 = vpack.c.b16 %v1342, %v1341
    %v1828 = vpack.c.b16 %v1344, %v1343
    %v1829 = vpack.c.b16 %v1346, %v1345
    %v1830 = vpack.c.b16 %v1348, %v1347
    %v1831 = vpack.c.b16 %v1350, %v1349
    %v1832 = vpack.c.b16 %v1352, %v1351
    %v1833 = vpack.c.b16 %v1354, %v1353
    %v1834 = vpack.c.b16 %v1356, %v1355
    %v1835 = vpack.c.b16 %v1358, %v1357
    %v1836 = vpack.c.b16 %v1360, %v1359
    %v1837 = vpack.c.b16 %v1362, %v1361
    %v1838 = vpack.c.b16 %v1364, %v1363
    %v1839 = vpack.c.b16 %v1366, %v1365
    %v1840 = vpack.c.b16 %v1368, %v1367
    %v1841 = vpack.c.b16 %v1370, %v1369
    %v1842 = vpack.c.b16 %v1372, %v1371
    %v1843 = vpack.c.b16 %v1374, %v1373
    %v1844 = vpack.c.b16 %v1376, %v1375
    %v1845 = vpack.c.b16 %v1378, %v1377
    %v1846 = vpack.c.b16 %v1380, %v1379
    %v1847 = vpack.c.b16 %v1382, %v1381
    %v1848 = vpack.c.b16 %v1384, %v1383
    %v1849 = vpack.c.b16 %v1386, %v1385
    %v1850 = vpack.c.b16 %v1388, %v1387
    %v1851 = vpack.c.b16 %v1390, %v1389
    %v1852 = vpack.c.b16 %v1392, %v1391
    %v1853 = vpack.c.b16 %v1394, %v1393
    %v1854 = vpack.c.b16 %v1396, %v1395
    %v1855 = vpack.c.b16 %v1398, %v1397
    %v1856 = vpack.c.b16 %v1400, %v1399
    %v1857 = vpack.c.b16 %v1402, %v1401
    %v1858 = vpack.c.b16 %v1404, %v1403
    %v1859 = vpack.c.b16 %v1406, %v1405
    %v1860 = vpack.c.b16 %v1408, %v1407
    %v1861 = vpack.c.b16 %v1410, %v1409
    %v1862 = vpack.c.b16 %v1412, %v1411
    %v1863 = vpack.c.b16 %v1414, %v1413
    %v1864 = vpack.c.b16 %v1416, %v1415
    %v1865 = vpack.c.b16 %v1418, %v1417
    %v1866 = vpack.c.b16 %v1420, %v1419
    %v1867 = vpack.c.b16 %v1422, %v1421
    %v1868 = vpack.c.b16 %v1424, %v1423
    %v1869 = vpack.c.b16 %v1426, %v1425
    %v1870 = vpack.c.b16 %v1428, %v1427
    %v1871 = vpack.c.b16 %v1430, %v1429
    %v1872 = vpack.c.b16 %v1432, %v1431
    %v1873 = vpack.c.b16 %v1434, %v1433
    %v1874 = vpack.c.b16 %v1436, %v1435
    %v1875 = vpack.c.b16 %v1438, %v1437
    %v1876 = vpack.c.b16 %v1440, %v1439
    %v1877 = vpack.c.b16 %v1442, %v1441
    %v1878 = vpack.c.b16 %v1444, %v1443
    %v1879 = vpack.c.b16 %v1446, %v1445
    %v1880 = vpack.c.b16 %v1448, %v1447
    %v1881 = vpack.c.b16 %v1450, %v1449
    %v1882 = vpack.c.b16 %v1452, %v1451
    %v1883 = vpack.c.b16 %v1454, %v1453
    %v1884 = vpack.c.b16 %v1456, %v1455
    %v1885 = vpack.c.b16 %v1458, %v1457
    %v1886 = vpack.c.b16 %v1460, %v1459
    %v1887 = vpack.c.b16 %v1462, %v1461
    %v1888 = vpack.c.b16 %v1464, %v1463
    %v1889 = vpack.c.b16 %v1466, %v1465
    %v1890 = vpack.c.b16 %v1468, %v1467
    %v1891 = vpack.c.b16 %v1470, %v1469
    %v1892 = vpack.c.b16 %v1472, %v1471
    %v1893 = vpack.c.b16 %v1474, %v1473
    %v1894 = vpack.c.b16 %v1476, %v1475
    %v1895 = vpack.c.b16 %v1478, %v1477
    %v1896 = vpack.c.b16 %v1480, %v1479
    %v1897 = vpack.c.b16 %v1482, %v1481
    %v1898 = vpack.c.b16 %v1484, %v1483
    %v1899 = vpack.c.b16 %v1486, %v1485
    %v1900 = vpack.c.b16 %v1488, %v1487
    %v1901 = vpack.c.b16 %v1490, %v1489
    %v1902 = vpack.c.b16 %v1492, %v1491
    %v1903 = vpack.c.b16 %v1494, %v1493
    %v1904 = vpack.c.b16 %v1496, %v1495
    %v1905 = vpack.c.b16 %v1498, %v1497
    %v1906 = vpack.c.b16 %v1500, %v1499
    %v1907 = vpack.c.b16 %v1502, %v1501
    %v1908 = vpack.c.b16 %v1504, %v1503
    %v1909 = vpack.c.b16 %v1506, %v1505
    %v1910 = vpack.c.b16 %v1508, %v1507
    %v1911 = vpack.c.b16 %v1510, %v1509
    %v1912 = vpack.c.b16 %v1512, %v1511
    %v1913 = vpack.c.b16 %v1514, %v1513
    %v1914 = vpack.c.b16 %v1516, %v1515
    %v1915 = vpack.c.b16 %v1518, %v1517
    %v1916 = vpack.c.b16 %v1520, %v1519
    %v1917 = vpack.c.b16 %v1522, %v1521
    %v1918 = vpack.c.b16 %v1524, %v1523
    %v1919 = vpack.c.b16 %v1526, %v1525
    %v1920 = vpack.c.b16 %v1528, %v1527
    %v1921 = vpack.c.b16 %v1530, %v1529
    %v1922 = vpack.c.b16 %v1532, %v1531
    %v1923 = vpack.c.b16 %v1534, %v1533
    %v1924 = vpack.c.b16 %v1536, %v1535
    %v1925 = vpack.c.b16 %v1538, %v1537
    %v1926 = vpack.c.b16 %v1540, %v1539
    %v1927 = vpack.c.b16 %v1542, %v1541
    %v1928 = vpack.c.b16 %v1544, %v1543
    %v1929 = vpack.c.b16 %v1546, %v1545
    %v1930 = vpack.c.b16 %v1548, %v1547
    %v1931 = vpack.c.b16 %v1550, %v1549
    %v1932 = vpack.c.b16 %v1552, %v1551
    %v1933 = vpack.c.b16 %v1554, %v1553
    %v1934 = vpack.c.b16 %v1556, %v1555
    %v1935 = vpack.c.b16 %v1558, %v1557
    %v1936 = vpack.c.b16 %v1560, %v1559
    %v1937 = vpack.c.b16 %v1562, %v1561
    %v1938 = vpack.c.b16 %v1564, %v1563
    %v1939 = vpack.c.b16 %v1566, %v1565
    %v1940 = vpack.c.b16 %v1568, %v1567
    %v1941 = vpack.c.b16 %v1570, %v1569
    %v1942 = vpack.c.b16 %v1572, %v1571
    %v1943 = vpack.c.b16 %v1574, %v1573
    %v1944 = vpack.c.b16 %v1576, %v1575
    %v1945 = vpack.c.b16 %v1578, %v1577
    %v1946 = vpack.c.b16 %v1580, %v1579
    %v1947 = vpack.c.b16 %v1582, %v1581
    %v1948 = vpack.c.b16 %v1584, %v1583
    %v1949 = vpack.c.b16 %v1586, %v1585
    %v1950 = vpack.c.b16 %v1588, %v1587
    %v1951 = vpack.c.b16 %v1590, %v1589
    %v1952 = vpack.c.b16 %v1592, %v1591
    %v1953 = vpack.c.b16 %v1594, %v1593
    %v1954 = vpack.c.b16 %v1596, %v1595
    %v1955 = vpack.c.b16 %v1598, %v1597
    %v1956 = vpack.c.b16 %v1600, %v1599
    %v1957 = vpack.c.b16 %v1602, %v1601
    %v1958 = vpack.c.b16 %v1604, %v1603
    %v1959 = vpack.c.b16 %v1606, %v1605
    %v1960 = vpack.c.b16 %v1608, %v1607
    %v1961 = vpack.c.b16 %v1610, %v1609
    %v1962 = vpack.c.b16 %v1612, %v1611
    %v1963 = vpack.c.b16 %v1614, %v1613
    %v1964 = vpack.c.b16 %v1616, %v1615
    %v1965 = vpack.c.b16 %v1618, %v1617
    %v1966 = vpack.c.b16 %v1620, %v1619
    %v1967 = vpack.c.b16 %v1622, %v1621
    %v1968 = vpack.c.b16 %v1624, %v1623
    %v1969 = vpack.c.b16 %v1626, %v1625
    %v1970 = vpack.c.b16 %v1628, %v1627
    %v1971 = vpack.c.b16 %v1630, %v1629
    %v1972 = vpack.c.b16 %v1632, %v1631
    %v1973 = vpack.c.b16 %v1634, %v1633
    %v1974 = vpack.c.b16 %v1636, %v1635
    %v1975 = vpack.c.b16 %v1638, %v1637
    %v1976 = vpack.c.b16 %v1640, %v1639
    %v1977 = vpack.c.b16 %v1642, %v1641
    %v1978 = vpack.c.b16 %v1644, %v1643
    %v1979 = vpack.c.b16 %v1646, %v1645
    %v1980 = vpack.c.b16 %v1648, %v1647
    %v1981 = vpack.c.b16 %v1650, %v1649
    %v1982 = vpack.c.b16 %v1652, %v1651
    %v1983 = vpack.c.b16 %v1654, %v1653
    %v1984 = vpack.c.b16 %v1656, %v1655
    %v1985 = vpack.c.b16 %v1658, %v1657
    %v1986 = vpack.c.b16 %v1660, %v1659
    %v1987 = vpack.c.b16 %v1662, %v1661
    %v1988 = vpack.c.b16 %v1664, %v1663
    %v1989 = vpack.c.b16 %v1666, %v1665
    %v1990 = vpack.c.b16 %v1668, %v1667
    %v1991 = vpack.c.b16 %v1670, %v1669
    %v1992 = vpack.c.b16 %v1672, %v1671
    %v1993 = vpack.c.b16 %v1674, %v1673
    %v1994 = vpack.c.b16 %v1676, %v1675
    %v1995 = vpack.c.b16 %v1678, %v1677
    %v1996 = vpack.c.b16 %v1680, %v1679
    %v1997 = vpack.c.b16 %v1682, %v1681
    %v1998 = vpack.c.b16 %v1684, %v1683
    %v1999 = vpack.c.b16 %v1686, %v1685
    %v2000 = vpack.c.b16 %v1688, %v1687
    %v2001 = vpack.c.b16 %v1690, %v1689
    %v2002 = vpack.c.b16 %v1692, %v1691
    %v2003 = vpack.c.b16 %v1694, %v1693
    %v2004 = vpack.c.b16 %v1696, %v1695
    %v2005 = vpack.c.b16 %v1698, %v1697
    %v2006 = vpack.c.b16 %v1700, %v1699
    %v2007 = vpack.c.b16 %v1702, %v1701
    %v2008 = vpack.c.b16 %v1704, %v1703
    %v2009 = vpack.c.b16 %v1706, %v1705
    %v2010 = vpack.c.b16 %v1708, %v1707
    %v2011 = vpack.c.b16 %v1710, %v1709
    %v2012 = vpack.c.b16 %v1712, %v1711
    %v2013 = vpack.c.b16 %v1714, %v1713
    %v2014 = vpack.c.b16 %v1716, %v1715
    %v2015 = vpack.c.b16 %v1718, %v1717
    %v2016 = vpack.c.b16 %v1720, %v1719
    %v2017 = vpack.c.b16 %v1722, %v1721
    %v2018 = vpack.c.b16 %v1724, %v1723
    %v2019 = vpack.c.b16 %v1726, %v1725
    %v2020 = vpack.c.b16 %v1728, %v1727
    %v2021 = vpack.c.b16 %v1730, %v1729
    %v2022 = vpack.c.b16 %v1732, %v1731
    %v2023 = vpack.c.b16 %v1734, %v1733
    %v2024 = vpack.c.b16 %v1736, %v1735
    %v2025 = vpack.c.b16 %v1738, %v1737
    %v2026 = vpack.c.b16 %v1740, %v1739
    %v2027 = vpack.c.b16 %v1742, %v1741
    %v2028 = vpack.c.b16 %v1744, %v1743
    %v2029 = vpack.c.b16 %v1746, %v1745
    %v2030 = vpack.c.b16 %v1748, %v1747
    %v2031 = vpack.c.b16 %v1750, %v1749
    %v2032 = vpack.c.b16 %v1752, %v1751
    %v2033 = vpack.c.b16 %v1754, %v1753
    %v2034 = vpack.c.b16 %v1756, %v1755
    %v2035 = vpack.c.b16 %v1758, %v1757
    %v2036 = vpack.c.b16 %v1760, %v1759
    %v2037 = vpack.c.b16 %v1762, %v1761
    %v2038 = vpack.c.b16 %v1764, %v1763
    %v2039 = vpack.c.b16 %v1766, %v1765
    %v2040 = vpack.c.b16 %v1768, %v1767
    %v2041 = vpack.c.b16 %v1770, %v1769
    %v2042 = vpack.c.b16 %v1772, %v1771
    %v2043 = vpack.c.b16 %v1774, %v1773
    %v2044 = vpack.c.b16 %v1776, %v1775
    %v2045 = vpack.c.b16 %v1778, %v1777
    %v2046 = vpack.c.b16 %v1780, %v1779
    %v2047 = vpack.c.b16 %v1782, %v1781
    %v2048 = vpack.c.b16 %v1784, %v1783
    %v2049 = vpack.c.b16 %v1786, %v1785
    %v2050 = vpack.c.b16 %v1788, %v1787
    %v2051 = vpack.c.b16 %v1790, %v1789
    %v2052 = vpack.c.b16 %v1792, %v1791
    %v2053 = vpack.c.b16 %v1794, %v1793
    %v2054 = vpack.c.b16 %v1796, %v1795
    %v2055 = vpack.c.b16 %v1798, %v1797
    %v2056 = vpack.c.b16 %v1800, %v1799
    %2313 = vmatprep.subr.bf16.mxu0 0
    %2314 = vmatpush1.bf16.msra.mxu0 %v1808
    %2315 = vmatprep.subr.bf16.mxu0 0
    %2316 = vmatpush1.bf16.msra.mxu0 %v1807
    %2317 = vmatprep.subr.bf16.mxu0 0
    %2318 = vmatpush1.bf16.msra.mxu0 %v1806
    %2319 = vmatprep.subr.bf16.mxu0 0
    %2320 = vmatpush1.bf16.msra.mxu0 %v1805
    %2321 = vmatprep.subr.bf16.mxu0 0
    %2322 = vmatpush1.bf16.msra.mxu0 %v1804
    %2323 = vmatprep.subr.bf16.mxu0 0
    %2324 = vmatpush1.bf16.msra.mxu0 %v1803
    %2325 = vmatprep.subr.bf16.mxu0 0
    %2326 = vmatpush1.bf16.msra.mxu0 %v1802
    %2327 = vmatprep.subr.bf16.mxu0 0
    %2328 = vmatpush1.bf16.msra.mxu0 %v1801
    %2329 = vmatprep.subr.bf16.mxu0 0
    %2330 = vmatpush2.bf16.msra.mxu0 %v1816
    %2331 = vmatprep.subr.bf16.mxu0 0
    %2332 = vmatpush2.bf16.msra.mxu0 %v1815
    %2333 = vmatprep.subr.bf16.mxu0 0
    %2334 = vmatpush2.bf16.msra.mxu0 %v1814
    %2335 = vmatprep.subr.bf16.mxu0 0
    %2336 = vmatpush2.bf16.msra.mxu0 %v1813
    %2337 = vmatprep.subr.bf16.mxu0 0
    %2338 = vmatpush2.bf16.msra.mxu0 %v1812
    %2339 = vmatprep.subr.bf16.mxu0 0
    %2340 = vmatpush2.bf16.msra.mxu0 %v1811
    %2341 = vmatprep.subr.bf16.mxu0 0
    %2342 = vmatpush2.bf16.msra.mxu0 %v1810
    %2343 = vmatprep.subr.bf16.mxu0 0
    %2344 = vmatpush2.bf16.msra.mxu0 %v1809
    %2345 = vmatprep.mubr.bf16.mxu0 %v586
    %2346 = vmatmul.mubr.bf16.gmra.mxu0 %v572
    %v2347 = vpop.f32.mrf.mxu0
    %v2348 = vadd.f32 %v543, %v2347
    %v2349 = vpop.f32.mrf.mxu0
    %v2350 = vpop.f32.mrf.mxu0
    %v2351 = vpop.f32.mrf.mxu0
    %2352 = vdwg.mxu0
    %2353 = vmatprep.subr.bf16.mxu0 0
    %2354 = vmatpush1.bf16.msra.mxu0 %v1824
    %2355 = vmatprep.subr.bf16.mxu0 0
    %2356 = vmatpush1.bf16.msra.mxu0 %v1823
    %2357 = vmatprep.subr.bf16.mxu0 0
    %2358 = vmatpush1.bf16.msra.mxu0 %v1822
    %2359 = vmatprep.subr.bf16.mxu0 0
    %2360 = vmatpush1.bf16.msra.mxu0 %v1821
    %2361 = vmatprep.subr.bf16.mxu0 0
    %2362 = vmatpush1.bf16.msra.mxu0 %v1820
    %2363 = vmatprep.subr.bf16.mxu0 0
    %2364 = vmatpush1.bf16.msra.mxu0 %v1819
    %2365 = vmatprep.subr.bf16.mxu0 0
    %2366 = vmatpush1.bf16.msra.mxu0 %v1818
    %2367 = vmatprep.subr.bf16.mxu0 0
    %2368 = vmatpush1.bf16.msra.mxu0 %v1817
    %2369 = vmatprep.subr.bf16.mxu0 0
    %2370 = vmatpush2.bf16.msra.mxu0 %v1832
    %2371 = vmatprep.subr.bf16.mxu0 0
    %2372 = vmatpush2.bf16.msra.mxu0 %v1831
    %2373 = vmatprep.subr.bf16.mxu0 0
    %2374 = vmatpush2.bf16.msra.mxu0 %v1830
    %2375 = vmatprep.subr.bf16.mxu0 0
    %2376 = vmatpush2.bf16.msra.mxu0 %v1829
    %2377 = vmatprep.subr.bf16.mxu0 0
    %2378 = vmatpush2.bf16.msra.mxu0 %v1828
    %2379 = vmatprep.subr.bf16.mxu0 0
    %2380 = vmatpush2.bf16.msra.mxu0 %v1827
    %2381 = vmatprep.subr.bf16.mxu0 0
    %2382 = vmatpush2.bf16.msra.mxu0 %v1826
    %2383 = vmatprep.subr.bf16.mxu0 0
    %2384 = vmatpush2.bf16.msra.mxu0 %v1825
    %2385 = vmatprep.mubr.bf16.mxu0 %v596
    %2386 = vmatmul.mubr.bf16.gmra.mxu0 %v594
    %v2387 = vpop.f32.mrf.mxu0
    %v2388 = vadd.f32 %v2348, %v2387
    %v2389 = vpop.f32.mrf.mxu0
    %v2390 = vpop.f32.mrf.mxu0
    %v2391 = vpop.f32.mrf.mxu0
    %2392 = vdwg.mxu0
    %2393 = vmatprep.subr.bf16.mxu0 0
    %2394 = vmatpush1.bf16.msra.mxu0 %v1840
    %2395 = vmatprep.subr.bf16.mxu0 0
    %2396 = vmatpush1.bf16.msra.mxu0 %v1839
    %2397 = vmatprep.subr.bf16.mxu0 0
    %2398 = vmatpush1.bf16.msra.mxu0 %v1838
    %2399 = vmatprep.subr.bf16.mxu0 0
    %2400 = vmatpush1.bf16.msra.mxu0 %v1837
    %2401 = vmatprep.subr.bf16.mxu0 0
    %2402 = vmatpush1.bf16.msra.mxu0 %v1836
    %2403 = vmatprep.subr.bf16.mxu0 0
    %2404 = vmatpush1.bf16.msra.mxu0 %v1835
    %2405 = vmatprep.subr.bf16.mxu0 0
    %2406 = vmatpush1.bf16.msra.mxu0 %v1834
    %2407 = vmatprep.subr.bf16.mxu0 0
    %2408 = vmatpush1.bf16.msra.mxu0 %v1833
    %2409 = vmatprep.subr.bf16.mxu0 0
    %2410 = vmatpush2.bf16.msra.mxu0 %v1848
    %2411 = vmatprep.subr.bf16.mxu0 0
    %2412 = vmatpush2.bf16.msra.mxu0 %v1847
    %2413 = vmatprep.subr.bf16.mxu0 0
    %2414 = vmatpush2.bf16.msra.mxu0 %v1846
    %2415 = vmatprep.subr.bf16.mxu0 0
    %2416 = vmatpush2.bf16.msra.mxu0 %v1845
    %2417 = vmatprep.subr.bf16.mxu0 0
    %2418 = vmatpush2.bf16.msra.mxu0 %v1844
    %2419 = vmatprep.subr.bf16.mxu0 0
    %2420 = vmatpush2.bf16.msra.mxu0 %v1843
    %2421 = vmatprep.subr.bf16.mxu0 0
    %2422 = vmatpush2.bf16.msra.mxu0 %v1842
    %2423 = vmatprep.subr.bf16.mxu0 0
    %2424 = vmatpush2.bf16.msra.mxu0 %v1841
    %2425 = vmatprep.mubr.bf16.mxu0 %v593
    %2426 = vmatmul.mubr.bf16.gmra.mxu0 %v579
    %v2427 = vpop.f32.mrf.mxu0
    %v2428 = vadd.f32 %v2388, %v2427
    %v2429 = vpop.f32.mrf.mxu0
    %v2430 = vpop.f32.mrf.mxu0
    %v2431 = vpop.f32.mrf.mxu0
    %2432 = vdwg.mxu0
    %2433 = vmatprep.subr.bf16.mxu0 0
    %2434 = vmatpush1.bf16.msra.mxu0 %v1856
    %2435 = vmatprep.subr.bf16.mxu0 0
    %2436 = vmatpush1.bf16.msra.mxu0 %v1855
    %2437 = vmatprep.subr.bf16.mxu0 0
    %2438 = vmatpush1.bf16.msra.mxu0 %v1854
    %2439 = vmatprep.subr.bf16.mxu0 0
    %2440 = vmatpush1.bf16.msra.mxu0 %v1853
    %2441 = vmatprep.subr.bf16.mxu0 0
    %2442 = vmatpush1.bf16.msra.mxu0 %v1852
    %2443 = vmatprep.subr.bf16.mxu0 0
    %2444 = vmatpush1.bf16.msra.mxu0 %v1851
    %2445 = vmatprep.subr.bf16.mxu0 0
    %2446 = vmatpush1.bf16.msra.mxu0 %v1850
    %2447 = vmatprep.subr.bf16.mxu0 0
    %2448 = vmatpush1.bf16.msra.mxu0 %v1849
    %2449 = vmatprep.subr.bf16.mxu0 0
    %2450 = vmatpush2.bf16.msra.mxu0 %v1864
    %2451 = vmatprep.subr.bf16.mxu0 0
    %2452 = vmatpush2.bf16.msra.mxu0 %v1863
    %2453 = vmatprep.subr.bf16.mxu0 0
    %2454 = vmatpush2.bf16.msra.mxu0 %v1862
    %2455 = vmatprep.subr.bf16.mxu0 0
    %2456 = vmatpush2.bf16.msra.mxu0 %v1861
    %2457 = vmatprep.subr.bf16.mxu0 0
    %2458 = vmatpush2.bf16.msra.mxu0 %v1860
    %2459 = vmatprep.subr.bf16.mxu0 0
    %2460 = vmatpush2.bf16.msra.mxu0 %v1859
    %2461 = vmatprep.subr.bf16.mxu0 0
    %2462 = vmatpush2.bf16.msra.mxu0 %v1858
    %2463 = vmatprep.subr.bf16.mxu0 0
    %2464 = vmatpush2.bf16.msra.mxu0 %v1857
    %2465 = vmatprep.mubr.bf16.mxu0 %v597
    %2466 = vmatmul.mubr.bf16.gmra.mxu0 %v595
    %v2467 = vpop.f32.mrf.mxu0
    %v2468 = vadd.f32 %v2428, %v2467
    %v2469 = vpop.f32.mrf.mxu0
    %v2470 = vpop.f32.mrf.mxu0
    %v2471 = vpop.f32.mrf.mxu0
    %2472 = vdwg.mxu0
    %2473 = vmatprep.subr.bf16.mxu0 0
    %2474 = vmatpush1.bf16.msra.mxu0 %v1872
    %2475 = vmatprep.subr.bf16.mxu0 0
    %2476 = vmatpush1.bf16.msra.mxu0 %v1871
    %2477 = vmatprep.subr.bf16.mxu0 0
    %2478 = vmatpush1.bf16.msra.mxu0 %v1870
    %2479 = vmatprep.subr.bf16.mxu0 0
    %2480 = vmatpush1.bf16.msra.mxu0 %v1869
    %2481 = vmatprep.subr.bf16.mxu0 0
    %2482 = vmatpush1.bf16.msra.mxu0 %v1868
    %2483 = vmatprep.subr.bf16.mxu0 0
    %2484 = vmatpush1.bf16.msra.mxu0 %v1867
    %2485 = vmatprep.subr.bf16.mxu0 0
    %2486 = vmatpush1.bf16.msra.mxu0 %v1866
    %2487 = vmatprep.subr.bf16.mxu0 0
    %2488 = vmatpush1.bf16.msra.mxu0 %v1865
    %2489 = vmatprep.subr.bf16.mxu0 0
    %2490 = vmatpush2.bf16.msra.mxu0 %v1880
    %2491 = vmatprep.subr.bf16.mxu0 0
    %2492 = vmatpush2.bf16.msra.mxu0 %v1879
    %2493 = vmatprep.subr.bf16.mxu0 0
    %2494 = vmatpush2.bf16.msra.mxu0 %v1878
    %2495 = vmatprep.subr.bf16.mxu0 0
    %2496 = vmatpush2.bf16.msra.mxu0 %v1877
    %2497 = vmatprep.subr.bf16.mxu0 0
    %2498 = vmatpush2.bf16.msra.mxu0 %v1876
    %2499 = vmatprep.subr.bf16.mxu0 0
    %2500 = vmatpush2.bf16.msra.mxu0 %v1875
    %2501 = vmatprep.subr.bf16.mxu0 0
    %2502 = vmatpush2.bf16.msra.mxu0 %v1874
    %2503 = vmatprep.subr.bf16.mxu0 0
    %2504 = vmatpush2.bf16.msra.mxu0 %v1873
    %2505 = vmatprep.mubr.bf16.mxu0 %v635
    %2506 = vmatmul.mubr.bf16.gmra.mxu0 %v621
    %v2507 = vpop.f32.mrf.mxu0
    %v2508 = vadd.f32 %v2468, %v2507
    %v2509 = vpop.f32.mrf.mxu0
    %v2510 = vpop.f32.mrf.mxu0
    %v2511 = vpop.f32.mrf.mxu0
    %2512 = vdwg.mxu0
    %2513 = vmatprep.subr.bf16.mxu0 0
    %2514 = vmatpush1.bf16.msra.mxu0 %v1888
    %2515 = vmatprep.subr.bf16.mxu0 0
    %2516 = vmatpush1.bf16.msra.mxu0 %v1887
    %2517 = vmatprep.subr.bf16.mxu0 0
    %2518 = vmatpush1.bf16.msra.mxu0 %v1886
    %2519 = vmatprep.subr.bf16.mxu0 0
    %2520 = vmatpush1.bf16.msra.mxu0 %v1885
    %2521 = vmatprep.subr.bf16.mxu0 0
    %2522 = vmatpush1.bf16.msra.mxu0 %v1884
    %2523 = vmatprep.subr.bf16.mxu0 0
    %2524 = vmatpush1.bf16.msra.mxu0 %v1883
    %2525 = vmatprep.subr.bf16.mxu0 0
    %2526 = vmatpush1.bf16.msra.mxu0 %v1882
    %2527 = vmatprep.subr.bf16.mxu0 0
    %2528 = vmatpush1.bf16.msra.mxu0 %v1881
    %2529 = vmatprep.subr.bf16.mxu0 0
    %2530 = vmatpush2.bf16.msra.mxu0 %v1896
    %2531 = vmatprep.subr.bf16.mxu0 0
    %2532 = vmatpush2.bf16.msra.mxu0 %v1895
    %2533 = vmatprep.subr.bf16.mxu0 0
    %2534 = vmatpush2.bf16.msra.mxu0 %v1894
    %2535 = vmatprep.subr.bf16.mxu0 0
    %2536 = vmatpush2.bf16.msra.mxu0 %v1893
    %2537 = vmatprep.subr.bf16.mxu0 0
    %2538 = vmatpush2.bf16.msra.mxu0 %v1892
    %2539 = vmatprep.subr.bf16.mxu0 0
    %2540 = vmatpush2.bf16.msra.mxu0 %v1891
    %2541 = vmatprep.subr.bf16.mxu0 0
    %2542 = vmatpush2.bf16.msra.mxu0 %v1890
    %2543 = vmatprep.subr.bf16.mxu0 0
    %2544 = vmatpush2.bf16.msra.mxu0 %v1889
    %2545 = vmatprep.mubr.bf16.mxu0 %v645
    %2546 = vmatmul.mubr.bf16.gmra.mxu0 %v643
    %v2547 = vpop.f32.mrf.mxu0
    %v2548 = vadd.f32 %v2508, %v2547
    %v2549 = vpop.f32.mrf.mxu0
    %v2550 = vpop.f32.mrf.mxu0
    %v2551 = vpop.f32.mrf.mxu0
    %2552 = vdwg.mxu0
    %2553 = vmatprep.subr.bf16.mxu0 0
    %2554 = vmatpush1.bf16.msra.mxu0 %v1904
    %2555 = vmatprep.subr.bf16.mxu0 0
    %2556 = vmatpush1.bf16.msra.mxu0 %v1903
    %2557 = vmatprep.subr.bf16.mxu0 0
    %2558 = vmatpush1.bf16.msra.mxu0 %v1902
    %2559 = vmatprep.subr.bf16.mxu0 0
    %2560 = vmatpush1.bf16.msra.mxu0 %v1901
    %2561 = vmatprep.subr.bf16.mxu0 0
    %2562 = vmatpush1.bf16.msra.mxu0 %v1900
    %2563 = vmatprep.subr.bf16.mxu0 0
    %2564 = vmatpush1.bf16.msra.mxu0 %v1899
    %2565 = vmatprep.subr.bf16.mxu0 0
    %2566 = vmatpush1.bf16.msra.mxu0 %v1898
    %2567 = vmatprep.subr.bf16.mxu0 0
    %2568 = vmatpush1.bf16.msra.mxu0 %v1897
    %2569 = vmatprep.subr.bf16.mxu0 0
    %2570 = vmatpush2.bf16.msra.mxu0 %v1912
    %2571 = vmatprep.subr.bf16.mxu0 0
    %2572 = vmatpush2.bf16.msra.mxu0 %v1911
    %2573 = vmatprep.subr.bf16.mxu0 0
    %2574 = vmatpush2.bf16.msra.mxu0 %v1910
    %2575 = vmatprep.subr.bf16.mxu0 0
    %2576 = vmatpush2.bf16.msra.mxu0 %v1909
    %2577 = vmatprep.subr.bf16.mxu0 0
    %2578 = vmatpush2.bf16.msra.mxu0 %v1908
    %2579 = vmatprep.subr.bf16.mxu0 0
    %2580 = vmatpush2.bf16.msra.mxu0 %v1907
    %2581 = vmatprep.subr.bf16.mxu0 0
    %2582 = vmatpush2.bf16.msra.mxu0 %v1906
    %2583 = vmatprep.subr.bf16.mxu0 0
    %2584 = vmatpush2.bf16.msra.mxu0 %v1905
    %2585 = vmatprep.mubr.bf16.mxu0 %v642
    %2586 = vmatmul.mubr.bf16.gmra.mxu0 %v628
    %v2587 = vpop.f32.mrf.mxu0
    %v2588 = vadd.f32 %v2548, %v2587
    %v2589 = vpop.f32.mrf.mxu0
    %v2590 = vpop.f32.mrf.mxu0
    %v2591 = vpop.f32.mrf.mxu0
    %2592 = vdwg.mxu0
    %2593 = vmatprep.subr.bf16.mxu0 0
    %2594 = vmatpush1.bf16.msra.mxu0 %v1920
    %2595 = vmatprep.subr.bf16.mxu0 0
    %2596 = vmatpush1.bf16.msra.mxu0 %v1919
    %2597 = vmatprep.subr.bf16.mxu0 0
    %2598 = vmatpush1.bf16.msra.mxu0 %v1918
    %2599 = vmatprep.subr.bf16.mxu0 0
    %2600 = vmatpush1.bf16.msra.mxu0 %v1917
    %2601 = vmatprep.subr.bf16.mxu0 0
    %2602 = vmatpush1.bf16.msra.mxu0 %v1916
    %2603 = vmatprep.subr.bf16.mxu0 0
    %2604 = vmatpush1.bf16.msra.mxu0 %v1915
    %2605 = vmatprep.subr.bf16.mxu0 0
    %2606 = vmatpush1.bf16.msra.mxu0 %v1914
    %2607 = vmatprep.subr.bf16.mxu0 0
    %2608 = vmatpush1.bf16.msra.mxu0 %v1913
    %2609 = vmatprep.subr.bf16.mxu0 0
    %2610 = vmatpush2.bf16.msra.mxu0 %v1928
    %2611 = vmatprep.subr.bf16.mxu0 0
    %2612 = vmatpush2.bf16.msra.mxu0 %v1927
    %2613 = vmatprep.subr.bf16.mxu0 0
    %2614 = vmatpush2.bf16.msra.mxu0 %v1926
    %2615 = vmatprep.subr.bf16.mxu0 0
    %2616 = vmatpush2.bf16.msra.mxu0 %v1925
    %2617 = vmatprep.subr.bf16.mxu0 0
    %2618 = vmatpush2.bf16.msra.mxu0 %v1924
    %2619 = vmatprep.subr.bf16.mxu0 0
    %2620 = vmatpush2.bf16.msra.mxu0 %v1923
    %2621 = vmatprep.subr.bf16.mxu0 0
    %2622 = vmatpush2.bf16.msra.mxu0 %v1922
    %2623 = vmatprep.subr.bf16.mxu0 0
    %2624 = vmatpush2.bf16.msra.mxu0 %v1921
    %2625 = vmatprep.mubr.bf16.mxu0 %v646
    %2626 = vmatmul.mubr.bf16.gmra.mxu0 %v644
    %v2627 = vpop.f32.mrf.mxu0
    %v2628 = vadd.f32 %v2588, %v2627
    %v2629 = vpop.f32.mrf.mxu0
    %v2630 = vpop.f32.mrf.mxu0
    %v2631 = vpop.f32.mrf.mxu0
    %2632 = vdwg.mxu0
    %2633 = vmatprep.subr.bf16.mxu0 0
    %2634 = vmatpush1.bf16.msra.mxu0 %v1936
    %2635 = vmatprep.subr.bf16.mxu0 0
    %2636 = vmatpush1.bf16.msra.mxu0 %v1935
    %2637 = vmatprep.subr.bf16.mxu0 0
    %2638 = vmatpush1.bf16.msra.mxu0 %v1934
    %2639 = vmatprep.subr.bf16.mxu0 0
    %2640 = vmatpush1.bf16.msra.mxu0 %v1933
    %2641 = vmatprep.subr.bf16.mxu0 0
    %2642 = vmatpush1.bf16.msra.mxu0 %v1932
    %2643 = vmatprep.subr.bf16.mxu0 0
    %2644 = vmatpush1.bf16.msra.mxu0 %v1931
    %2645 = vmatprep.subr.bf16.mxu0 0
    %2646 = vmatpush1.bf16.msra.mxu0 %v1930
    %2647 = vmatprep.subr.bf16.mxu0 0
    %2648 = vmatpush1.bf16.msra.mxu0 %v1929
    %2649 = vmatprep.subr.bf16.mxu0 0
    %2650 = vmatpush2.bf16.msra.mxu0 %v1944
    %2651 = vmatprep.subr.bf16.mxu0 0
    %2652 = vmatpush2.bf16.msra.mxu0 %v1943
    %2653 = vmatprep.subr.bf16.mxu0 0
    %2654 = vmatpush2.bf16.msra.mxu0 %v1942
    %2655 = vmatprep.subr.bf16.mxu0 0
    %2656 = vmatpush2.bf16.msra.mxu0 %v1941
    %2657 = vmatprep.subr.bf16.mxu0 0
    %2658 = vmatpush2.bf16.msra.mxu0 %v1940
    %2659 = vmatprep.subr.bf16.mxu0 0
    %2660 = vmatpush2.bf16.msra.mxu0 %v1939
    %2661 = vmatprep.subr.bf16.mxu0 0
    %2662 = vmatpush2.bf16.msra.mxu0 %v1938
    %2663 = vmatprep.subr.bf16.mxu0 0
    %2664 = vmatpush2.bf16.msra.mxu0 %v1937
    %2665 = vmatprep.mubr.bf16.mxu0 %v684
    %2666 = vmatmul.mubr.bf16.gmra.mxu0 %v670
    %v2667 = vpop.f32.mrf.mxu0
    %v2668 = vadd.f32 %v2628, %v2667
    %v2669 = vpop.f32.mrf.mxu0
    %v2670 = vpop.f32.mrf.mxu0
    %v2671 = vpop.f32.mrf.mxu0
    %2672 = vdwg.mxu0
    %2673 = vmatprep.subr.bf16.mxu0 0
    %2674 = vmatpush1.bf16.msra.mxu0 %v1952
    %2675 = vmatprep.subr.bf16.mxu0 0
    %2676 = vmatpush1.bf16.msra.mxu0 %v1951
    %2677 = vmatprep.subr.bf16.mxu0 0
    %2678 = vmatpush1.bf16.msra.mxu0 %v1950
    %2679 = vmatprep.subr.bf16.mxu0 0
    %2680 = vmatpush1.bf16.msra.mxu0 %v1949
    %2681 = vmatprep.subr.bf16.mxu0 0
    %2682 = vmatpush1.bf16.msra.mxu0 %v1948
    %2683 = vmatprep.subr.bf16.mxu0 0
    %2684 = vmatpush1.bf16.msra.mxu0 %v1947
    %2685 = vmatprep.subr.bf16.mxu0 0
    %2686 = vmatpush1.bf16.msra.mxu0 %v1946
    %2687 = vmatprep.subr.bf16.mxu0 0
    %2688 = vmatpush1.bf16.msra.mxu0 %v1945
    %2689 = vmatprep.subr.bf16.mxu0 0
    %2690 = vmatpush2.bf16.msra.mxu0 %v1960
    %2691 = vmatprep.subr.bf16.mxu0 0
    %2692 = vmatpush2.bf16.msra.mxu0 %v1959
    %2693 = vmatprep.subr.bf16.mxu0 0
    %2694 = vmatpush2.bf16.msra.mxu0 %v1958
    %2695 = vmatprep.subr.bf16.mxu0 0
    %2696 = vmatpush2.bf16.msra.mxu0 %v1957
    %2697 = vmatprep.subr.bf16.mxu0 0
    %2698 = vmatpush2.bf16.msra.mxu0 %v1956
    %2699 = vmatprep.subr.bf16.mxu0 0
    %2700 = vmatpush2.bf16.msra.mxu0 %v1955
    %2701 = vmatprep.subr.bf16.mxu0 0
    %2702 = vmatpush2.bf16.msra.mxu0 %v1954
    %2703 = vmatprep.subr.bf16.mxu0 0
    %2704 = vmatpush2.bf16.msra.mxu0 %v1953
    %2705 = vmatprep.mubr.bf16.mxu0 %v694
    %2706 = vmatmul.mubr.bf16.gmra.mxu0 %v692
    %v2707 = vpop.f32.mrf.mxu0
    %v2708 = vadd.f32 %v2668, %v2707
    %v2709 = vpop.f32.mrf.mxu0
    %v2710 = vpop.f32.mrf.mxu0
    %v2711 = vpop.f32.mrf.mxu0
    %2712 = vdwg.mxu0
    %2713 = vmatprep.subr.bf16.mxu0 0
    %2714 = vmatpush1.bf16.msra.mxu0 %v1968
    %2715 = vmatprep.subr.bf16.mxu0 0
    %2716 = vmatpush1.bf16.msra.mxu0 %v1967
    %2717 = vmatprep.subr.bf16.mxu0 0
    %2718 = vmatpush1.bf16.msra.mxu0 %v1966
    %2719 = vmatprep.subr.bf16.mxu0 0
    %2720 = vmatpush1.bf16.msra.mxu0 %v1965
    %2721 = vmatprep.subr.bf16.mxu0 0
    %2722 = vmatpush1.bf16.msra.mxu0 %v1964
    %2723 = vmatprep.subr.bf16.mxu0 0
    %2724 = vmatpush1.bf16.msra.mxu0 %v1963
    %2725 = vmatprep.subr.bf16.mxu0 0
    %2726 = vmatpush1.bf16.msra.mxu0 %v1962
    %2727 = vmatprep.subr.bf16.mxu0 0
    %2728 = vmatpush1.bf16.msra.mxu0 %v1961
    %2729 = vmatprep.subr.bf16.mxu0 0
    %2730 = vmatpush2.bf16.msra.mxu0 %v1976
    %2731 = vmatprep.subr.bf16.mxu0 0
    %2732 = vmatpush2.bf16.msra.mxu0 %v1975
    %2733 = vmatprep.subr.bf16.mxu0 0
    %2734 = vmatpush2.bf16.msra.mxu0 %v1974
    %2735 = vmatprep.subr.bf16.mxu0 0
    %2736 = vmatpush2.bf16.msra.mxu0 %v1973
    %2737 = vmatprep.subr.bf16.mxu0 0
    %2738 = vmatpush2.bf16.msra.mxu0 %v1972
    %2739 = vmatprep.subr.bf16.mxu0 0
    %2740 = vmatpush2.bf16.msra.mxu0 %v1971
    %2741 = vmatprep.subr.bf16.mxu0 0
    %2742 = vmatpush2.bf16.msra.mxu0 %v1970
    %2743 = vmatprep.subr.bf16.mxu0 0
    %2744 = vmatpush2.bf16.msra.mxu0 %v1969
    %2745 = vmatprep.mubr.bf16.mxu0 %v691
    %2746 = vmatmul.mubr.bf16.gmra.mxu0 %v677
    %v2747 = vpop.f32.mrf.mxu0
    %v2748 = vadd.f32 %v2708, %v2747
    %v2749 = vpop.f32.mrf.mxu0
    %v2750 = vpop.f32.mrf.mxu0
    %v2751 = vpop.f32.mrf.mxu0
    %2752 = vdwg.mxu0
    %2753 = vmatprep.subr.bf16.mxu0 0
    %2754 = vmatpush1.bf16.msra.mxu0 %v1984
    %2755 = vmatprep.subr.bf16.mxu0 0
    %2756 = vmatpush1.bf16.msra.mxu0 %v1983
    %2757 = vmatprep.subr.bf16.mxu0 0
    %2758 = vmatpush1.bf16.msra.mxu0 %v1982
    %2759 = vmatprep.subr.bf16.mxu0 0
    %2760 = vmatpush1.bf16.msra.mxu0 %v1981
    %2761 = vmatprep.subr.bf16.mxu0 0
    %2762 = vmatpush1.bf16.msra.mxu0 %v1980
    %2763 = vmatprep.subr.bf16.mxu0 0
    %2764 = vmatpush1.bf16.msra.mxu0 %v1979
    %2765 = vmatprep.subr.bf16.mxu0 0
    %2766 = vmatpush1.bf16.msra.mxu0 %v1978
    %2767 = vmatprep.subr.bf16.mxu0 0
    %2768 = vmatpush1.bf16.msra.mxu0 %v1977
    %2769 = vmatprep.subr.bf16.mxu0 0
    %2770 = vmatpush2.bf16.msra.mxu0 %v1992
    %2771 = vmatprep.subr.bf16.mxu0 0
    %2772 = vmatpush2.bf16.msra.mxu0 %v1991
    %2773 = vmatprep.subr.bf16.mxu0 0
    %2774 = vmatpush2.bf16.msra.mxu0 %v1990
    %2775 = vmatprep.subr.bf16.mxu0 0
    %2776 = vmatpush2.bf16.msra.mxu0 %v1989
    %2777 = vmatprep.subr.bf16.mxu0 0
    %2778 = vmatpush2.bf16.msra.mxu0 %v1988
    %2779 = vmatprep.subr.bf16.mxu0 0
    %2780 = vmatpush2.bf16.msra.mxu0 %v1987
    %2781 = vmatprep.subr.bf16.mxu0 0
    %2782 = vmatpush2.bf16.msra.mxu0 %v1986
    %2783 = vmatprep.subr.bf16.mxu0 0
    %2784 = vmatpush2.bf16.msra.mxu0 %v1985
    %2785 = vmatprep.mubr.bf16.mxu0 %v695
    %2786 = vmatmul.mubr.bf16.gmra.mxu0 %v693
    %v2787 = vpop.f32.mrf.mxu0
    %v2788 = vadd.f32 %v2748, %v2787
    %v2789 = vpop.f32.mrf.mxu0
    %v2790 = vpop.f32.mrf.mxu0
    %v2791 = vpop.f32.mrf.mxu0
    %2792 = vdwg.mxu0
    %2793 = vmatprep.subr.bf16.mxu0 0
    %2794 = vmatpush1.bf16.msra.mxu0 %v2000
    %2795 = vmatprep.subr.bf16.mxu0 0
    %2796 = vmatpush1.bf16.msra.mxu0 %v1999
    %2797 = vmatprep.subr.bf16.mxu0 0
    %2798 = vmatpush1.bf16.msra.mxu0 %v1998
    %2799 = vmatprep.subr.bf16.mxu0 0
    %2800 = vmatpush1.bf16.msra.mxu0 %v1997
    %2801 = vmatprep.subr.bf16.mxu0 0
    %2802 = vmatpush1.bf16.msra.mxu0 %v1996
    %2803 = vmatprep.subr.bf16.mxu0 0
    %2804 = vmatpush1.bf16.msra.mxu0 %v1995
    %2805 = vmatprep.subr.bf16.mxu0 0
    %2806 = vmatpush1.bf16.msra.mxu0 %v1994
    %2807 = vmatprep.subr.bf16.mxu0 0
    %2808 = vmatpush1.bf16.msra.mxu0 %v1993
    %2809 = vmatprep.subr.bf16.mxu0 0
    %2810 = vmatpush2.bf16.msra.mxu0 %v2008
    %2811 = vmatprep.subr.bf16.mxu0 0
    %2812 = vmatpush2.bf16.msra.mxu0 %v2007
    %2813 = vmatprep.subr.bf16.mxu0 0
    %2814 = vmatpush2.bf16.msra.mxu0 %v2006
    %2815 = vmatprep.subr.bf16.mxu0 0
    %2816 = vmatpush2.bf16.msra.mxu0 %v2005
    %2817 = vmatprep.subr.bf16.mxu0 0
    %2818 = vmatpush2.bf16.msra.mxu0 %v2004
    %2819 = vmatprep.subr.bf16.mxu0 0
    %2820 = vmatpush2.bf16.msra.mxu0 %v2003
    %2821 = vmatprep.subr.bf16.mxu0 0
    %2822 = vmatpush2.bf16.msra.mxu0 %v2002
    %2823 = vmatprep.subr.bf16.mxu0 0
    %2824 = vmatpush2.bf16.msra.mxu0 %v2001
    %2825 = vmatprep.mubr.bf16.mxu0 %v733
    %2826 = vmatmul.mubr.bf16.gmra.mxu0 %v719
    %v2827 = vpop.f32.mrf.mxu0
    %v2828 = vadd.f32 %v2788, %v2827
    %v2829 = vpop.f32.mrf.mxu0
    %v2830 = vpop.f32.mrf.mxu0
    %v2831 = vpop.f32.mrf.mxu0
    %2832 = vdwg.mxu0
    %2833 = vmatprep.subr.bf16.mxu0 0
    %2834 = vmatpush1.bf16.msra.mxu0 %v2016
    %2835 = vmatprep.subr.bf16.mxu0 0
    %2836 = vmatpush1.bf16.msra.mxu0 %v2015
    %2837 = vmatprep.subr.bf16.mxu0 0
    %2838 = vmatpush1.bf16.msra.mxu0 %v2014
    %2839 = vmatprep.subr.bf16.mxu0 0
    %2840 = vmatpush1.bf16.msra.mxu0 %v2013
    %2841 = vmatprep.subr.bf16.mxu0 0
    %2842 = vmatpush1.bf16.msra.mxu0 %v2012
    %2843 = vmatprep.subr.bf16.mxu0 0
    %2844 = vmatpush1.bf16.msra.mxu0 %v2011
    %2845 = vmatprep.subr.bf16.mxu0 0
    %2846 = vmatpush1.bf16.msra.mxu0 %v2010
    %2847 = vmatprep.subr.bf16.mxu0 0
    %2848 = vmatpush1.bf16.msra.mxu0 %v2009
    %2849 = vmatprep.subr.bf16.mxu0 0
    %2850 = vmatpush2.bf16.msra.mxu0 %v2024
    %2851 = vmatprep.subr.bf16.mxu0 0
    %2852 = vmatpush2.bf16.msra.mxu0 %v2023
    %2853 = vmatprep.subr.bf16.mxu0 0
    %2854 = vmatpush2.bf16.msra.mxu0 %v2022
    %2855 = vmatprep.subr.bf16.mxu0 0
    %2856 = vmatpush2.bf16.msra.mxu0 %v2021
    %2857 = vmatprep.subr.bf16.mxu0 0
    %2858 = vmatpush2.bf16.msra.mxu0 %v2020
    %2859 = vmatprep.subr.bf16.mxu0 0
    %2860 = vmatpush2.bf16.msra.mxu0 %v2019
    %2861 = vmatprep.subr.bf16.mxu0 0
    %2862 = vmatpush2.bf16.msra.mxu0 %v2018
    %2863 = vmatprep.subr.bf16.mxu0 0
    %2864 = vmatpush2.bf16.msra.mxu0 %v2017
    %2865 = vmatprep.mubr.bf16.mxu0 %v743
    %2866 = vmatmul.mubr.bf16.gmra.mxu0 %v741
    %v2867 = vpop.f32.mrf.mxu0
    %v2868 = vadd.f32 %v2828, %v2867
    %v2869 = vpop.f32.mrf.mxu0
    %v2870 = vpop.f32.mrf.mxu0
    %v2871 = vpop.f32.mrf.mxu0
    %2872 = vdwg.mxu0
    %2873 = vmatprep.subr.bf16.mxu0 0
    %2874 = vmatpush1.bf16.msra.mxu0 %v2032
    %2875 = vmatprep.subr.bf16.mxu0 0
    %2876 = vmatpush1.bf16.msra.mxu0 %v2031
    %2877 = vmatprep.subr.bf16.mxu0 0
    %2878 = vmatpush1.bf16.msra.mxu0 %v2030
    %2879 = vmatprep.subr.bf16.mxu0 0
    %2880 = vmatpush1.bf16.msra.mxu0 %v2029
    %2881 = vmatprep.subr.bf16.mxu0 0
    %2882 = vmatpush1.bf16.msra.mxu0 %v2028
    %2883 = vmatprep.subr.bf16.mxu0 0
    %2884 = vmatpush1.bf16.msra.mxu0 %v2027
    %2885 = vmatprep.subr.bf16.mxu0 0
    %2886 = vmatpush1.bf16.msra.mxu0 %v2026
    %2887 = vmatprep.subr.bf16.mxu0 0
    %2888 = vmatpush1.bf16.msra.mxu0 %v2025
    %2889 = vmatprep.subr.bf16.mxu0 0
    %2890 = vmatpush2.bf16.msra.mxu0 %v2040
    %2891 = vmatprep.subr.bf16.mxu0 0
    %2892 = vmatpush2.bf16.msra.mxu0 %v2039
    %2893 = vmatprep.subr.bf16.mxu0 0
    %2894 = vmatpush2.bf16.msra.mxu0 %v2038
    %2895 = vmatprep.subr.bf16.mxu0 0
    %2896 = vmatpush2.bf16.msra.mxu0 %v2037
    %2897 = vmatprep.subr.bf16.mxu0 0
    %2898 = vmatpush2.bf16.msra.mxu0 %v2036
    %2899 = vmatprep.subr.bf16.mxu0 0
    %2900 = vmatpush2.bf16.msra.mxu0 %v2035
    %2901 = vmatprep.subr.bf16.mxu0 0
    %2902 = vmatpush2.bf16.msra.mxu0 %v2034
    %2903 = vmatprep.subr.bf16.mxu0 0
    %2904 = vmatpush2.bf16.msra.mxu0 %v2033
    %2905 = vmatprep.mubr.bf16.mxu0 %v740
    %2906 = vmatmul.mubr.bf16.gmra.mxu0 %v726
    %v2907 = vpop.f32.mrf.mxu0
    %v2908 = vadd.f32 %v2868, %v2907
    %v2909 = vpop.f32.mrf.mxu0
    %v2910 = vpop.f32.mrf.mxu0
    %v2911 = vpop.f32.mrf.mxu0
    %2912 = vdwg.mxu0
    %2913 = vmatprep.subr.bf16.mxu0 0
    %2914 = vmatpush1.bf16.msra.mxu0 %v2048
    %2915 = vmatprep.subr.bf16.mxu0 0
    %2916 = vmatpush1.bf16.msra.mxu0 %v2047
    %2917 = vmatprep.subr.bf16.mxu0 0
    %2918 = vmatpush1.bf16.msra.mxu0 %v2046
    %2919 = vmatprep.subr.bf16.mxu0 0
    %2920 = vmatpush1.bf16.msra.mxu0 %v2045
    %2921 = vmatprep.subr.bf16.mxu0 0
    %2922 = vmatpush1.bf16.msra.mxu0 %v2044
    %2923 = vmatprep.subr.bf16.mxu0 0
    %2924 = vmatpush1.bf16.msra.mxu0 %v2043
    %2925 = vmatprep.subr.bf16.mxu0 0
    %2926 = vmatpush1.bf16.msra.mxu0 %v2042
    %2927 = vmatprep.subr.bf16.mxu0 0
    %2928 = vmatpush1.bf16.msra.mxu0 %v2041
    %2929 = vmatprep.subr.bf16.mxu0 0
    %2930 = vmatpush2.bf16.msra.mxu0 %v2056
    %2931 = vmatprep.subr.bf16.mxu0 0
    %2932 = vmatpush2.bf16.msra.mxu0 %v2055
    %2933 = vmatprep.subr.bf16.mxu0 0
    %2934 = vmatpush2.bf16.msra.mxu0 %v2054
    %2935 = vmatprep.subr.bf16.mxu0 0
    %2936 = vmatpush2.bf16.msra.mxu0 %v2053
    %2937 = vmatprep.subr.bf16.mxu0 0
    %2938 = vmatpush2.bf16.msra.mxu0 %v2052
    %2939 = vmatprep.subr.bf16.mxu0 0
    %2940 = vmatpush2.bf16.msra.mxu0 %v2051
    %2941 = vmatprep.subr.bf16.mxu0 0
    %2942 = vmatpush2.bf16.msra.mxu0 %v2050
    %2943 = vmatprep.subr.bf16.mxu0 0
    %2944 = vmatpush2.bf16.msra.mxu0 %v2049
    %2945 = vmatprep.mubr.bf16.mxu0 %v744
    %2946 = vmatmul.mubr.bf16.gmra.mxu0 %v742
    %v2947 = vpop.f32.mrf.mxu0
    %v2948 = vadd.f32 %v2908, %v2947
    %v2949 = vpop.f32.mrf.mxu0
    %v2950 = vpop.f32.mrf.mxu0
    %v2951 = vpop.f32.mrf.mxu0
    %2952 = vdwg.mxu0
    %v2953 = vmax.f32 %v2948, 0.0
    %v2954 = vpack.c.bf16 %v2953, %v2953
    %v2955 = vld [vmem:[%s3] sm:$0xf]
    %v2956 = vld [vmem:[%s3 + $0x4] sm:$0xf]
    %v2957 = vld [vmem:[%s3 + $0x8] sm:$0xf]
    %v2958 = vld [vmem:[%s3 + $0xc] sm:$0xf]
    %v2959 = vld [vmem:[%s3 + $0x10] sm:$0xf]
    %v2960 = vld [vmem:[%s3 + $0x14] sm:$0xf]
    %v2961 = vld [vmem:[%s3 + $0x18] sm:$0xf]
    %v2962 = vld [vmem:[%s3 + $0x1c] sm:$0xf]
    %v2963 = vld [vmem:[%s3 + $0x20] sm:$0xf]
    %v2964 = vld [vmem:[%s3 + $0x24] sm:$0xf]
    %v2965 = vld [vmem:[%s3 + $0x28] sm:$0xf]
    %v2966 = vld [vmem:[%s3 + $0x2c] sm:$0xf]
    %v2967 = vld [vmem:[%s3 + $0x30] sm:$0xf]
    %v2968 = vld [vmem:[%s3 + $0x34] sm:$0xf]
    %v2969 = vld [vmem:[%s3 + $0x38] sm:$0xf]
    %v2970 = vld [vmem:[%s3 + $0x3c] sm:$0xf]
    %v2971 = vld [vmem:[%s4] sm:$0x1]
    %v2973 = vlaneseq
    %v2974 = vshrl.u32 %v2973, 7
    %v2975 = vsub.s32 0, %v2974
    %v2976 = vrot.slane %v2971, %v2975
    %v2994 = vunpack.c.l.b16 %v2955
    %v2995 = vunpack.c.l.b16 %v2956
    %v2996 = vunpack.c.l.b16 %v2957
    %v2997 = vunpack.c.l.b16 %v2958
    %v2998 = vunpack.c.l.b16 %v2959
    %v2999 = vunpack.c.l.b16 %v2960
    %v3000 = vunpack.c.l.b16 %v2961
    %v3001 = vunpack.c.l.b16 %v2962
    %v3002 = vunpack.c.l.b16 %v2963
    %v3003 = vunpack.c.l.b16 %v2964
    %v3004 = vunpack.c.l.b16 %v2965
    %v3005 = vunpack.c.l.b16 %v2966
    %v3006 = vunpack.c.l.b16 %v2967
    %v3007 = vunpack.c.l.b16 %v2968
    %v3008 = vunpack.c.l.b16 %v2969
    %v3009 = vunpack.c.l.b16 %v2970
    %v3010 = vpack.c.b16 %v2995, %v2994
    %v3011 = vpack.c.b16 %v2997, %v2996
    %v3012 = vpack.c.b16 %v2999, %v2998
    %v3013 = vpack.c.b16 %v3001, %v3000
    %v3014 = vpack.c.b16 %v3003, %v3002
    %v3015 = vpack.c.b16 %v3005, %v3004
    %v3016 = vpack.c.b16 %v3007, %v3006
    %v3017 = vpack.c.b16 %v3009, %v3008
    %3026 = vmatprep.subr.bf16.mxu0 0
    %3027 = vmatpush1.bf16.msra.mxu0 %v3017
    %3028 = vmatprep.subr.bf16.mxu0 0
    %3029 = vmatpush1.bf16.msra.mxu0 %v3016
    %3030 = vmatprep.subr.bf16.mxu0 0
    %3031 = vmatpush1.bf16.msra.mxu0 %v3015
    %3032 = vmatprep.subr.bf16.mxu0 0
    %3033 = vmatpush1.bf16.msra.mxu0 %v3014
    %3034 = vmatprep.subr.bf16.mxu0 0
    %3035 = vmatpush1.bf16.msra.mxu0 %v3013
    %3036 = vmatprep.subr.bf16.mxu0 0
    %3037 = vmatpush1.bf16.msra.mxu0 %v3012
    %3038 = vmatprep.subr.bf16.mxu0 0
    %3039 = vmatpush1.bf16.msra.mxu0 %v3011
    %3040 = vmatprep.subr.bf16.mxu0 0
    %3041 = vmatpush1.bf16.msra.mxu0 %v3010
    %3042 = vmatprep.subr.bf16.mxu0 0
    %3043 = vmatpush2.bf16.msra.mxu0 0
    %3044 = vmatprep.subr.bf16.mxu0 0
    %3045 = vmatpush2.bf16.msra.mxu0 0
    %3046 = vmatprep.subr.bf16.mxu0 0
    %3047 = vmatpush2.bf16.msra.mxu0 0
    %3048 = vmatprep.subr.bf16.mxu0 0
    %3049 = vmatpush2.bf16.msra.mxu0 0
    %3050 = vmatprep.subr.bf16.mxu0 0
    %3051 = vmatpush2.bf16.msra.mxu0 0
    %3052 = vmatprep.subr.bf16.mxu0 0
    %3053 = vmatpush2.bf16.msra.mxu0 0
    %3054 = vmatprep.subr.bf16.mxu0 0
    %3055 = vmatpush2.bf16.msra.mxu0 0
    %3056 = vmatprep.subr.bf16.mxu0 0
    %3057 = vmatpush2.bf16.msra.mxu0 0
    %3058 = vmatprep.mubr.bf16.mxu0 0
    %3059 = vmatmul.mubr.bf16.gmra.mxu0 %v2954
    %v3060 = vpop.f32.mrf.mxu0
    %v3061 = vadd.f32 %v2976, %v3060
    %v3062 = vpop.f32.mrf.mxu0
    %v3063 = vpop.f32.mrf.mxu0
    %v3064 = vpop.f32.mrf.mxu0
    %3065 = vdwg.mxu0
    %3066 = vst [vmem:[#allocation2] sm:$0x3] %v3061
    // Predicated region
    $region22: #{simple_cnn_forward.3} parent=1 // pred_check
      _
    $region23: #{simple_cnn_forward.3} parent=1 // pred_check_branch
      %3068 = sbr.rel (0) target = $region25
    $region24: #{simple_cnn_forward.3} parent=1 // pred_region
      %s3070 = ssub.s32 32, 32
      %3071 = vsyncadd [#allocation3], %s3070
      %s3073 = sshll.u32 [#allocation2], 4
      %s3074 = int_to_ptr.vmem [resolvable:$true] %s3073
      %3076 = dma.vmem_to_hbm [thread:$0]  %s3074, 32, %s5, [#allocation3]
    $region25: #{simple_cnn_forward.3} parent=1 // pred_fallthru
      _
    // Predicated region
    $region26: #{simple_cnn_forward.3} parent=1 // pred_check
      _
    $region27: #{simple_cnn_forward.3} parent=1 // pred_check_branch
      %3078 = sbr.rel (0) target = $region29
    $region28: #{simple_cnn_forward.3} parent=1 // pred_region
      %3079 = dma.done [#allocation3], 32
    $region29: #{simple_cnn_forward.3} parent=1 // pred_fallthru
      _
    %3080 = vsyncpa [#allocation3], 1

// kernel: simple_cnn_forward.2
$region0: #{simple_cnn_forward.2}
  #allocation0 [shape = 'u32[]', space=smem, size = 0x4, offset = 0x4, fixed_abs, tag = 'smem constant byte address 0x4 - core index']
  #allocation1 [shape = 'u32[144,128]{1,0:T(1,128)}', space=vmem, size = 0x12000, scoped, tag = 'internal scratch']
  #allocation2 [shape = 'f32[1,32,32,32]{3,2,1,0:T(8,128)}', space=vmem, size = 0x80000, scoped, tag = 'scratch operand']
  #allocation3 [shape = 'f32[1,16,32,32]{3,2,1,0:T(8,128)}', space=vmem, size = 0x40000, scoped, tag = 'scratch operand']
  #allocation4 [shape = 'bf16[1,18,32,32]{3,2,1,0:T(8,128)(2,1)}', space=vmem, size = 0x24000, scoped, tag = 'scratch operand']
  #allocation5 [shape = 'f32[1,16,16,64]{3,2,1,0:T(8,128)}', space=vmem, size = 0x20000, scoped, tag = 'scratch operand']
  #allocation6 [shape = 'f32[1,8,16,64]{3,2,1,0:T(8,128)}', space=vmem, size = 0x10000, scoped, tag = 'scratch operand']
  %s0 = inlined_call_operand.vmem [shape: bf16[2,1024,32], index: 0, kind: input, shape index: {}]
  %s1 = inlined_call_operand.vmem [shape: bf16[32,32], index: 1, kind: input, shape index: {}]
  %s2 = inlined_call_operand.vmem [shape: f32[1,32], index: 2, kind: input, shape index: {}]
  %s3 = inlined_call_operand.vmem [shape: bf16[288,64], index: 3, kind: input, shape index: {}]
  %s4 = inlined_call_operand.vmem [shape: f32[1,64], index: 4, kind: input, shape index: {}]
  %s5 = inlined_call_operand.vmem [shape: bf16[2,8,8,64], index: 5, kind: output, shape index: {}]
  %s6 = sld [smem:[#allocation0]]
  $region53: #{simple_cnn_forward.2} parent=0
    _
  %s8 = ssub.s32 1, %s6
  %s9 = scalar_select 0, %s8, %s6
  loop: start=0, step=1, limit=4
  $region2: #{simple_cnn_forward.2} parent=0 // loop_pre_header
    _
  $region3: #{simple_cnn_forward.2} parent=0 // loop_header
    %s11 = sphi 0, %s15
    %p12 = scmp.ge.s32.totalorder %s11, 4
    %s21 = sphi 0, %s23
    %s24 = sphi 0, %s21
    %s25 = sphi 0, %s24
    %s41 = sphi 0, %s25
    %s45 = sphi 0, %s45
    %s47 = sphi 0, %s45
    %s48 = sphi 0, %s47
    %s62 = sphi 0, %s48
    %s66 = sphi 0, %s66
    %s68 = sphi 0, %s66
    %s69 = sphi 0, %s68
    %s83 = sphi 0, %s69
    %s87 = sphi 0, %s87
    %s89 = sphi 0, %s87
    %s90 = sphi 0, %s89
    %s104 = sphi 0, %s90
    %s108 = sphi 0, %s108
    %s110 = sphi 0, %s108
    %s111 = sphi 0, %s110
    %s125 = sphi 0, %s111
    %s131 = sphi 0, %s133
    %s134 = sphi 0, %s131
    %s135 = sphi 0, %s134
    %s151 = sphi 0, %s135
  $region4: #{simple_cnn_forward.2} parent=0 // loop_header_branch
    %14 = sbr.rel (%p12) target = $region8
  $region5: #{simple_cnn_forward.2} parent=0 // loop_body
    %s16 = ssub.s32 %s11, 1
    %s17 = ssub.s32 %s11, 2
    %s18 = sadd.s32 %s11, 1
    %s19 = ssub.s32 %s11, %s18
    %p20 = scmp.eq.s32.totalorder %s19, 0
    %s22 = sadd.s32 %s21, 1
    %s23 = scalar_select %p20, %s21, %s22
    %p26 = pneg %p20
    %p27 = scmp.eq.s32.totalorder %s11, 1
    %p28 = por %p26, %p27
    %p29 = scmp.ne.s32.totalorder %s21, %s24
    %p30 = scmp.eq.s32.totalorder %s11, 0
    %p31 = por %p29, %p30
    %p32 = scmp.ne.s32.totalorder %s21, %s24
    %p33 = scmp.eq.s32.totalorder %s16, 1
    %p34 = por %p32, %p33
    %p35 = scmp.ne.s32.totalorder %s24, %s25
    %p36 = scmp.eq.s32.totalorder %s16, 0
    %p37 = por %p35, %p36
    %p38 = scmp.ne.s32.totalorder %s24, %s25
    %p39 = scmp.eq.s32.totalorder %s17, 1
    %p40 = por %p38, %p39
    %p42 = scmp.ne.s32.totalorder %s25, %s41
    %p43 = scmp.eq.s32.totalorder %s17, 0
    %p44 = por %p42, %p43
    %s46 = sadd.s32 %s45, 1
    %p49 = scmp.eq.s32.totalorder %s11, 1
    %p50 = scmp.ne.s32.totalorder %s45, %s47
    %p51 = scmp.eq.s32.totalorder %s11, 0
    %p52 = por %p50, %p51
    %p53 = scmp.ne.s32.totalorder %s45, %s47
    %p54 = scmp.eq.s32.totalorder %s16, 1
    %p55 = por %p53, %p54
    %p56 = scmp.ne.s32.totalorder %s47, %s48
    %p57 = scmp.eq.s32.totalorder %s16, 0
    %p58 = por %p56, %p57
    %p59 = scmp.ne.s32.totalorder %s47, %s48
    %p60 = scmp.eq.s32.totalorder %s17, 1
    %p61 = por %p59, %p60
    %p63 = scmp.ne.s32.totalorder %s48, %s62
    %p64 = scmp.eq.s32.totalorder %s17, 0
    %p65 = por %p63, %p64
    %s67 = sadd.s32 %s66, 1
    %p70 = scmp.eq.s32.totalorder %s11, 1
    %p71 = scmp.ne.s32.totalorder %s66, %s68
    %p72 = scmp.eq.s32.totalorder %s11, 0
    %p73 = por %p71, %p72
    %p74 = scmp.ne.s32.totalorder %s66, %s68
    %p75 = scmp.eq.s32.totalorder %s16, 1
    %p76 = por %p74, %p75
    %p77 = scmp.ne.s32.totalorder %s68, %s69
    %p78 = scmp.eq.s32.totalorder %s16, 0
    %p79 = por %p77, %p78
    %p80 = scmp.ne.s32.totalorder %s68, %s69
    %p81 = scmp.eq.s32.totalorder %s17, 1
    %p82 = por %p80, %p81
    %p84 = scmp.ne.s32.totalorder %s69, %s83
    %p85 = scmp.eq.s32.totalorder %s17, 0
    %p86 = por %p84, %p85
    %s88 = sadd.s32 %s87, 1
    %p91 = scmp.eq.s32.totalorder %s11, 1
    %p92 = scmp.ne.s32.totalorder %s87, %s89
    %p93 = scmp.eq.s32.totalorder %s11, 0
    %p94 = por %p92, %p93
    %p95 = scmp.ne.s32.totalorder %s87, %s89
    %p96 = scmp.eq.s32.totalorder %s16, 1
    %p97 = por %p95, %p96
    %p98 = scmp.ne.s32.totalorder %s89, %s90
    %p99 = scmp.eq.s32.totalorder %s16, 0
    %p100 = por %p98, %p99
    %p101 = scmp.ne.s32.totalorder %s89, %s90
    %p102 = scmp.eq.s32.totalorder %s17, 1
    %p103 = por %p101, %p102
    %p105 = scmp.ne.s32.totalorder %s90, %s104
    %p106 = scmp.eq.s32.totalorder %s17, 0
    %p107 = por %p105, %p106
    %s109 = sadd.s32 %s108, 1
    %p112 = scmp.eq.s32.totalorder %s11, 1
    %p113 = scmp.ne.s32.totalorder %s108, %s110
    %p114 = scmp.eq.s32.totalorder %s11, 0
    %p115 = por %p113, %p114
    %p116 = scmp.ne.s32.totalorder %s108, %s110
    %p117 = scmp.eq.s32.totalorder %s16, 1
    %p118 = por %p116, %p117
    %p119 = scmp.ne.s32.totalorder %s110, %s111
    %p120 = scmp.eq.s32.totalorder %s16, 0
    %p121 = por %p119, %p120
    %p122 = scmp.ne.s32.totalorder %s110, %s111
    %p123 = scmp.eq.s32.totalorder %s17, 1
    %p124 = por %p122, %p123
    %p126 = scmp.ne.s32.totalorder %s111, %s125
    %p127 = scmp.eq.s32.totalorder %s17, 0
    %p128 = por %p126, %p127
    %s129 = ssub.s32 %s11, %s18
    %p130 = scmp.eq.s32.totalorder %s129, 0
    %s132 = sadd.s32 %s131, 1
    %s133 = scalar_select %p130, %s131, %s132
    %p136 = pneg %p130
    %p137 = scmp.eq.s32.totalorder %s11, 1
    %p138 = por %p136, %p137
    %p139 = scmp.ne.s32.totalorder %s131, %s134
    %p140 = scmp.eq.s32.totalorder %s11, 0
    %p141 = por %p139, %p140
    %p142 = scmp.ne.s32.totalorder %s131, %s134
    %p143 = scmp.eq.s32.totalorder %s16, 1
    %p144 = por %p142, %p143
    %p145 = scmp.ne.s32.totalorder %s134, %s135
    %p146 = scmp.eq.s32.totalorder %s16, 0
    %p147 = por %p145, %p146
    %p148 = scmp.ne.s32.totalorder %s134, %s135
    %p149 = scmp.eq.s32.totalorder %s17, 1
    %p150 = por %p148, %p149
    %p152 = scmp.ne.s32.totalorder %s135, %s151
    %p153 = scmp.eq.s32.totalorder %s17, 0
    %p154 = por %p152, %p153
    %p155 = scmp.le.s32.totalorder 1, %s11
    %p156 = scmp.lt.s32.totalorder %s11, 3
    %p157 = pnand %p155, %p156
    %p158 = pneg %p157
    // Predicated region
    $region9: #{simple_cnn_forward.2} parent=5 // pred_check
      _
    $region10: #{simple_cnn_forward.2} parent=5 // pred_check_branch
      %160 = sbr.rel (%p157) target = $region12
    $region11: #{simple_cnn_forward.2} parent=5 // pred_region
      %s161 = ssub.s32 %s11, 1
      // Predicated region
      $region13: #{simple_cnn_forward.2} parent=11 // pred_check
        %p162 = pneg %p58
      $region14: #{simple_cnn_forward.2} parent=11 // pred_check_branch
        %164 = sbr.rel (%p162) target = $region16
      $region15: #{simple_cnn_forward.2} parent=11 // pred_region
        _
      $region16: #{simple_cnn_forward.2} parent=11 // pred_fallthru
        _
      // Predicated region
      $region17: #{simple_cnn_forward.2} parent=11 // pred_check
        %p165 = pneg %p79
      $region18: #{simple_cnn_forward.2} parent=11 // pred_check_branch
        %167 = sbr.rel (%p165) target = $region20
      $region19: #{simple_cnn_forward.2} parent=11 // pred_region
        _
      $region20: #{simple_cnn_forward.2} parent=11 // pred_fallthru
        _
      // Predicated region
      $region21: #{simple_cnn_forward.2} parent=11 // pred_check
        %p168 = pneg %p100
      $region22: #{simple_cnn_forward.2} parent=11 // pred_check_branch
        %170 = sbr.rel (%p168) target = $region24
      $region23: #{simple_cnn_forward.2} parent=11 // pred_region
        _
      $region24: #{simple_cnn_forward.2} parent=11 // pred_fallthru
        _
      // Predicated region
      $region25: #{simple_cnn_forward.2} parent=11 // pred_check
        %p171 = pneg %p121
      $region26: #{simple_cnn_forward.2} parent=11 // pred_check_branch
        %173 = sbr.rel (%p171) target = $region28
      $region27: #{simple_cnn_forward.2} parent=11 // pred_region
        _
      $region28: #{simple_cnn_forward.2} parent=11 // pred_fallthru
        _
    $region12: #{simple_cnn_forward.2} parent=5 // pred_fallthru
      _
    %p174 = scmp.lt.s32.totalorder %s11, 2
    // Predicated region
    $region29: #{simple_cnn_forward.2} parent=5 // pred_check
      %p175 = pneg %p174
    $region30: #{simple_cnn_forward.2} parent=5 // pred_check_branch
      %177 = sbr.rel (%p175) target = $region32
    $region31: #{simple_cnn_forward.2} parent=5 // pred_region
      // Predicated region
      $region33: #{simple_cnn_forward.2} parent=31 // pred_check
        %p178 = pneg %p31
      $region34: #{simple_cnn_forward.2} parent=31 // pred_check_branch
        %180 = sbr.rel (%p178) target = $region36
      $region35: #{simple_cnn_forward.2} parent=31 // pred_region
        %p181 = scmp.lt.s32.totalorder %s11, 1
        %s182 = scalar_select %p181, %s11, 1
        %s183 = smul.addr %s182, 128
        %s184 = smul.addr %s183, 4
        %s185 = scalar_lea.vmem %s0, %s184
      $region36: #{simple_cnn_forward.2} parent=31 // pred_fallthru
        _
    $region32: #{simple_cnn_forward.2} parent=5 // pred_fallthru
      _
    %p186 = scmp.le.s32.totalorder 1, %s11
    %p187 = scmp.lt.s32.totalorder %s11, 3
    %p188 = pnand %p186, %p187
    %p189 = pneg %p188
    // Predicated region
    $region37: #{simple_cnn_forward.2} parent=5 // pred_check
      _
    $region38: #{simple_cnn_forward.2} parent=5 // pred_check_branch
      %191 = sbr.rel (%p188) target = $region40
    $region39: #{simple_cnn_forward.2} parent=5 // pred_region
      %s192 = ssub.s32 %s11, 1
      %p193 = scmp.lt.s32.totalorder %s16, 1
      %s194 = scalar_select %p193, %s16, 1
      %s195 = smul.addr %s194, 128
      %s196 = smul.addr %s195, 4
      %s197 = scalar_lea.vmem %s0, %s196
      %p198 = pneg %p37
      %p199 = pneg %p34
      %p200 = pneg %p58
      %p201 = pneg %p55
      %p202 = pneg %p79
      %p203 = pneg %p76
      %p204 = pneg %p100
      %p205 = pneg %p97
      %p206 = pneg %p121
      %p207 = pneg %p118
      %p208 = pneg %p147
      %p209 = pneg %p144
      %p210 = scmp.lt.s32.totalorder %s16, 1
      %s211 = scalar_select %p210, %s16, 1
      %s212 = smul.addr %s211, 8
      %s213 = smul.addr %s212, 4
      %s214 = scalar_lea.vmem %s5, %s213
      %p215 = scmp.lt.s32.totalorder %s16, 1
      %s216 = scalar_select %p215, %s16, 1
      %s217 = smul.addr %s216, 128
      %s218 = smul.addr %s217, 4
      %s219 = scalar_lea.vmem %s0, %s218
      %p220 = scmp.lt.s32.totalorder %s16, 1
      %s221 = scalar_select %p220, %s16, 1
      %s222 = smul.addr %s221, 8
      %s223 = smul.addr %s222, 4
      %s224 = scalar_lea.vmem %s5, %s223
      %v226 = vld [vmem:[%s219] sm:$0xf]
      %v227 = vld [vmem:[%s219 + $0x4] sm:$0xf]
      %v228 = vld [vmem:[%s219 + $0x8] sm:$0xf]
      %v229 = vld [vmem:[%s219 + $0xc] sm:$0xf]
      %v230 = vld [vmem:[%s219 + $0x10] sm:$0xf]
      %v231 = vld [vmem:[%s219 + $0x14] sm:$0xf]
      %v232 = vld [vmem:[%s219 + $0x18] sm:$0xf]
      %v233 = vld [vmem:[%s219 + $0x1c] sm:$0xf]
      %v234 = vld [vmem:[%s219 + $0x20] sm:$0xf]
      %v235 = vld [vmem:[%s219 + $0x24] sm:$0xf]
      %v236 = vld [vmem:[%s219 + $0x28] sm:$0xf]
      %v237 = vld [vmem:[%s219 + $0x2c] sm:$0xf]
      %v238 = vld [vmem:[%s219 + $0x30] sm:$0xf]
      %v239 = vld [vmem:[%s219 + $0x34] sm:$0xf]
      %v240 = vld [vmem:[%s219 + $0x38] sm:$0xf]
      %v241 = vld [vmem:[%s219 + $0x3c] sm:$0xf]
      %v242 = vld [vmem:[%s219 + $0x40] sm:$0xf]
      %v243 = vld [vmem:[%s219 + $0x44] sm:$0xf]
      %v244 = vld [vmem:[%s219 + $0x48] sm:$0xf]
      %v245 = vld [vmem:[%s219 + $0x4c] sm:$0xf]
      %v246 = vld [vmem:[%s219 + $0x50] sm:$0xf]
      %v247 = vld [vmem:[%s219 + $0x54] sm:$0xf]
      %v248 = vld [vmem:[%s219 + $0x58] sm:$0xf]
      %v249 = vld [vmem:[%s219 + $0x5c] sm:$0xf]
      %v250 = vld [vmem:[%s219 + $0x60] sm:$0xf]
      %v251 = vld [vmem:[%s219 + $0x64] sm:$0xf]
      %v252 = vld [vmem:[%s219 + $0x68] sm:$0xf]
      %v253 = vld [vmem:[%s219 + $0x6c] sm:$0xf]
      %v254 = vld [vmem:[%s219 + $0x70] sm:$0xf]
      %v255 = vld [vmem:[%s219 + $0x74] sm:$0xf]
      %v256 = vld [vmem:[%s219 + $0x78] sm:$0xf]
      %v257 = vld [vmem:[%s219 + $0x7c] sm:$0xf]
      %v258 = vld [vmem:[%s219 + $0x80] sm:$0xf]
      %v259 = vld [vmem:[%s219 + $0x84] sm:$0xf]
      %v260 = vld [vmem:[%s219 + $0x88] sm:$0xf]
      %v261 = vld [vmem:[%s219 + $0x8c] sm:$0xf]
      %v262 = vld [vmem:[%s219 + $0x90] sm:$0xf]
      %v263 = vld [vmem:[%s219 + $0x94] sm:$0xf]
      %v264 = vld [vmem:[%s219 + $0x98] sm:$0xf]
      %v265 = vld [vmem:[%s219 + $0x9c] sm:$0xf]
      %v266 = vld [vmem:[%s219 + $0xa0] sm:$0xf]
      %v267 = vld [vmem:[%s219 + $0xa4] sm:$0xf]
      %v268 = vld [vmem:[%s219 + $0xa8] sm:$0xf]
      %v269 = vld [vmem:[%s219 + $0xac] sm:$0xf]
      %v270 = vld [vmem:[%s219 + $0xb0] sm:$0xf]
      %v271 = vld [vmem:[%s219 + $0xb4] sm:$0xf]
      %v272 = vld [vmem:[%s219 + $0xb8] sm:$0xf]
      %v273 = vld [vmem:[%s219 + $0xbc] sm:$0xf]
      %v274 = vld [vmem:[%s219 + $0xc0] sm:$0xf]
      %v275 = vld [vmem:[%s219 + $0xc4] sm:$0xf]
      %v276 = vld [vmem:[%s219 + $0xc8] sm:$0xf]
      %v277 = vld [vmem:[%s219 + $0xcc] sm:$0xf]
      %v278 = vld [vmem:[%s219 + $0xd0] sm:$0xf]
      %v279 = vld [vmem:[%s219 + $0xd4] sm:$0xf]
      %v280 = vld [vmem:[%s219 + $0xd8] sm:$0xf]
      %v281 = vld [vmem:[%s219 + $0xdc] sm:$0xf]
      %v282 = vld [vmem:[%s219 + $0xe0] sm:$0xf]
      %v283 = vld [vmem:[%s219 + $0xe4] sm:$0xf]
      %v284 = vld [vmem:[%s219 + $0xe8] sm:$0xf]
      %v285 = vld [vmem:[%s219 + $0xec] sm:$0xf]
      %v286 = vld [vmem:[%s219 + $0xf0] sm:$0xf]
      %v287 = vld [vmem:[%s219 + $0xf4] sm:$0xf]
      %v288 = vld [vmem:[%s219 + $0xf8] sm:$0xf]
      %v289 = vld [vmem:[%s219 + $0xfc] sm:$0xf]
      %v290 = vld [vmem:[%s219 + $0x100] sm:$0xf]
      %v291 = vld [vmem:[%s219 + $0x104] sm:$0xf]
      %v292 = vld [vmem:[%s219 + $0x108] sm:$0xf]
      %v293 = vld [vmem:[%s219 + $0x10c] sm:$0xf]
      %v294 = vld [vmem:[%s219 + $0x110] sm:$0xf]
      %v295 = vld [vmem:[%s219 + $0x114] sm:$0xf]
      %v296 = vld [vmem:[%s219 + $0x118] sm:$0xf]
      %v297 = vld [vmem:[%s219 + $0x11c] sm:$0xf]
      %v298 = vld [vmem:[%s219 + $0x120] sm:$0xf]
      %v299 = vld [vmem:[%s219 + $0x124] sm:$0xf]
      %v300 = vld [vmem:[%s219 + $0x128] sm:$0xf]
      %v301 = vld [vmem:[%s219 + $0x12c] sm:$0xf]
      %v302 = vld [vmem:[%s219 + $0x130] sm:$0xf]
      %v303 = vld [vmem:[%s219 + $0x134] sm:$0xf]
      %v304 = vld [vmem:[%s219 + $0x138] sm:$0xf]
      %v305 = vld [vmem:[%s219 + $0x13c] sm:$0xf]
      %v306 = vld [vmem:[%s219 + $0x140] sm:$0xf]
      %v307 = vld [vmem:[%s219 + $0x144] sm:$0xf]
      %v308 = vld [vmem:[%s219 + $0x148] sm:$0xf]
      %v309 = vld [vmem:[%s219 + $0x14c] sm:$0xf]
      %v310 = vld [vmem:[%s219 + $0x150] sm:$0xf]
      %v311 = vld [vmem:[%s219 + $0x154] sm:$0xf]
      %v312 = vld [vmem:[%s219 + $0x158] sm:$0xf]
      %v313 = vld [vmem:[%s219 + $0x15c] sm:$0xf]
      %v314 = vld [vmem:[%s219 + $0x160] sm:$0xf]
      %v315 = vld [vmem:[%s219 + $0x164] sm:$0xf]
      %v316 = vld [vmem:[%s219 + $0x168] sm:$0xf]
      %v317 = vld [vmem:[%s219 + $0x16c] sm:$0xf]
      %v318 = vld [vmem:[%s219 + $0x170] sm:$0xf]
      %v319 = vld [vmem:[%s219 + $0x174] sm:$0xf]
      %v320 = vld [vmem:[%s219 + $0x178] sm:$0xf]
      %v321 = vld [vmem:[%s219 + $0x17c] sm:$0xf]
      %v322 = vld [vmem:[%s219 + $0x180] sm:$0xf]
      %v323 = vld [vmem:[%s219 + $0x184] sm:$0xf]
      %v324 = vld [vmem:[%s219 + $0x188] sm:$0xf]
      %v325 = vld [vmem:[%s219 + $0x18c] sm:$0xf]
      %v326 = vld [vmem:[%s219 + $0x190] sm:$0xf]
      %v327 = vld [vmem:[%s219 + $0x194] sm:$0xf]
      %v328 = vld [vmem:[%s219 + $0x198] sm:$0xf]
      %v329 = vld [vmem:[%s219 + $0x19c] sm:$0xf]
      %v330 = vld [vmem:[%s219 + $0x1a0] sm:$0xf]
      %v331 = vld [vmem:[%s219 + $0x1a4] sm:$0xf]
      %v332 = vld [vmem:[%s219 + $0x1a8] sm:$0xf]
      %v333 = vld [vmem:[%s219 + $0x1ac] sm:$0xf]
      %v334 = vld [vmem:[%s219 + $0x1b0] sm:$0xf]
      %v335 = vld [vmem:[%s219 + $0x1b4] sm:$0xf]
      %v336 = vld [vmem:[%s219 + $0x1b8] sm:$0xf]
      %v337 = vld [vmem:[%s219 + $0x1bc] sm:$0xf]
      %v338 = vld [vmem:[%s219 + $0x1c0] sm:$0xf]
      %v339 = vld [vmem:[%s219 + $0x1c4] sm:$0xf]
      %v340 = vld [vmem:[%s219 + $0x1c8] sm:$0xf]
      %v341 = vld [vmem:[%s219 + $0x1cc] sm:$0xf]
      %v342 = vld [vmem:[%s219 + $0x1d0] sm:$0xf]
      %v343 = vld [vmem:[%s219 + $0x1d4] sm:$0xf]
      %v344 = vld [vmem:[%s219 + $0x1d8] sm:$0xf]
      %v345 = vld [vmem:[%s219 + $0x1dc] sm:$0xf]
      %v346 = vld [vmem:[%s219 + $0x1e0] sm:$0xf]
      %v347 = vld [vmem:[%s219 + $0x1e4] sm:$0xf]
      %v348 = vld [vmem:[%s219 + $0x1e8] sm:$0xf]
      %v349 = vld [vmem:[%s219 + $0x1ec] sm:$0xf]
      %v350 = vld [vmem:[%s219 + $0x1f0] sm:$0xf]
      %v351 = vld [vmem:[%s219 + $0x1f4] sm:$0xf]
      %v352 = vld [vmem:[%s219 + $0x1f8] sm:$0xf]
      %v353 = vld [vmem:[%s219 + $0x1fc] sm:$0xf]
      %v354 = vld [vmem:[%s1] sm:$0xf]
      %v355 = vld [vmem:[%s1 + $0x4] sm:$0xf]
      %v356 = vld [vmem:[%s1 + $0x8] sm:$0xf]
      %v357 = vld [vmem:[%s1 + $0xc] sm:$0xf]
      %v486 = vunpack.c.l.b16 %v226
      %v487 = vunpack.c.l.b16 %v227
      %v488 = vunpack.c.l.b16 %v228
      %v489 = vunpack.c.l.b16 %v229
      %v490 = vunpack.c.l.b16 %v230
      %v491 = vunpack.c.l.b16 %v231
      %v492 = vunpack.c.l.b16 %v232
      %v493 = vunpack.c.l.b16 %v233
      %v494 = vunpack.c.l.b16 %v234
      %v495 = vunpack.c.l.b16 %v235
      %v496 = vunpack.c.l.b16 %v236
      %v497 = vunpack.c.l.b16 %v237
      %v498 = vunpack.c.l.b16 %v238
      %v499 = vunpack.c.l.b16 %v239
      %v500 = vunpack.c.l.b16 %v240
      %v501 = vunpack.c.l.b16 %v241
      %v502 = vunpack.c.l.b16 %v242
      %v503 = vunpack.c.l.b16 %v243
      %v504 = vunpack.c.l.b16 %v244
      %v505 = vunpack.c.l.b16 %v245
      %v506 = vunpack.c.l.b16 %v246
      %v507 = vunpack.c.l.b16 %v247
      %v508 = vunpack.c.l.b16 %v248
      %v509 = vunpack.c.l.b16 %v249
      %v510 = vunpack.c.l.b16 %v250
      %v511 = vunpack.c.l.b16 %v251
      %v512 = vunpack.c.l.b16 %v252
      %v513 = vunpack.c.l.b16 %v253
      %v514 = vunpack.c.l.b16 %v254
      %v515 = vunpack.c.l.b16 %v255
      %v516 = vunpack.c.l.b16 %v256
      %v517 = vunpack.c.l.b16 %v257
      %v518 = vunpack.c.l.b16 %v258
      %v519 = vunpack.c.l.b16 %v259
      %v520 = vunpack.c.l.b16 %v260
      %v521 = vunpack.c.l.b16 %v261
      %v522 = vunpack.c.l.b16 %v262
      %v523 = vunpack.c.l.b16 %v263
      %v524 = vunpack.c.l.b16 %v264
      %v525 = vunpack.c.l.b16 %v265
      %v526 = vunpack.c.l.b16 %v266
      %v527 = vunpack.c.l.b16 %v267
      %v528 = vunpack.c.l.b16 %v268
      %v529 = vunpack.c.l.b16 %v269
      %v530 = vunpack.c.l.b16 %v270
      %v531 = vunpack.c.l.b16 %v271
      %v532 = vunpack.c.l.b16 %v272
      %v533 = vunpack.c.l.b16 %v273
      %v534 = vunpack.c.l.b16 %v274
      %v535 = vunpack.c.l.b16 %v275
      %v536 = vunpack.c.l.b16 %v276
      %v537 = vunpack.c.l.b16 %v277
      %v538 = vunpack.c.l.b16 %v278
      %v539 = vunpack.c.l.b16 %v279
      %v540 = vunpack.c.l.b16 %v280
      %v541 = vunpack.c.l.b16 %v281
      %v542 = vunpack.c.l.b16 %v282
      %v543 = vunpack.c.l.b16 %v283
      %v544 = vunpack.c.l.b16 %v284
      %v545 = vunpack.c.l.b16 %v285
      %v546 = vunpack.c.l.b16 %v286
      %v547 = vunpack.c.l.b16 %v287
      %v548 = vunpack.c.l.b16 %v288
      %v549 = vunpack.c.l.b16 %v289
      %v550 = vunpack.c.l.b16 %v290
      %v551 = vunpack.c.l.b16 %v291
      %v552 = vunpack.c.l.b16 %v292
      %v553 = vunpack.c.l.b16 %v293
      %v554 = vunpack.c.l.b16 %v294
      %v555 = vunpack.c.l.b16 %v295
      %v556 = vunpack.c.l.b16 %v296
      %v557 = vunpack.c.l.b16 %v297
      %v558 = vunpack.c.l.b16 %v298
      %v559 = vunpack.c.l.b16 %v299
      %v560 = vunpack.c.l.b16 %v300
      %v561 = vunpack.c.l.b16 %v301
      %v562 = vunpack.c.l.b16 %v302
      %v563 = vunpack.c.l.b16 %v303
      %v564 = vunpack.c.l.b16 %v304
      %v565 = vunpack.c.l.b16 %v305
      %v566 = vunpack.c.l.b16 %v306
      %v567 = vunpack.c.l.b16 %v307
      %v568 = vunpack.c.l.b16 %v308
      %v569 = vunpack.c.l.b16 %v309
      %v570 = vunpack.c.l.b16 %v310
      %v571 = vunpack.c.l.b16 %v311
      %v572 = vunpack.c.l.b16 %v312
      %v573 = vunpack.c.l.b16 %v313
      %v574 = vunpack.c.l.b16 %v314
      %v575 = vunpack.c.l.b16 %v315
      %v576 = vunpack.c.l.b16 %v316
      %v577 = vunpack.c.l.b16 %v317
      %v578 = vunpack.c.l.b16 %v318
      %v579 = vunpack.c.l.b16 %v319
      %v580 = vunpack.c.l.b16 %v320
      %v581 = vunpack.c.l.b16 %v321
      %v582 = vunpack.c.l.b16 %v322
      %v583 = vunpack.c.l.b16 %v323
      %v584 = vunpack.c.l.b16 %v324
      %v585 = vunpack.c.l.b16 %v325
      %v586 = vunpack.c.l.b16 %v326
      %v587 = vunpack.c.l.b16 %v327
      %v588 = vunpack.c.l.b16 %v328
      %v589 = vunpack.c.l.b16 %v329
      %v590 = vunpack.c.l.b16 %v330
      %v591 = vunpack.c.l.b16 %v331
      %v592 = vunpack.c.l.b16 %v332
      %v593 = vunpack.c.l.b16 %v333
      %v594 = vunpack.c.l.b16 %v334
      %v595 = vunpack.c.l.b16 %v335
      %v596 = vunpack.c.l.b16 %v336
      %v597 = vunpack.c.l.b16 %v337
      %v598 = vunpack.c.l.b16 %v338
      %v599 = vunpack.c.l.b16 %v339
      %v600 = vunpack.c.l.b16 %v340
      %v601 = vunpack.c.l.b16 %v341
      %v602 = vunpack.c.l.b16 %v342
      %v603 = vunpack.c.l.b16 %v343
      %v604 = vunpack.c.l.b16 %v344
      %v605 = vunpack.c.l.b16 %v345
      %v606 = vunpack.c.l.b16 %v346
      %v607 = vunpack.c.l.b16 %v347
      %v608 = vunpack.c.l.b16 %v348
      %v609 = vunpack.c.l.b16 %v349
      %v610 = vunpack.c.l.b16 %v350
      %v611 = vunpack.c.l.b16 %v351
      %v612 = vunpack.c.l.b16 %v352
      %v613 = vunpack.c.l.b16 %v353
      %v614 = vpack.c.b16 %v487, %v486
      %v615 = vpack.c.b16 %v489, %v488
      %v616 = vpack.c.b16 %v491, %v490
      %v617 = vpack.c.b16 %v493, %v492
      %v618 = vpack.c.b16 %v495, %v494
      %v619 = vpack.c.b16 %v497, %v496
      %v620 = vpack.c.b16 %v499, %v498
      %v621 = vpack.c.b16 %v501, %v500
      %v622 = vpack.c.b16 %v503, %v502
      %v623 = vpack.c.b16 %v505, %v504
      %v624 = vpack.c.b16 %v507, %v506
      %v625 = vpack.c.b16 %v509, %v508
      %v626 = vpack.c.b16 %v511, %v510
      %v627 = vpack.c.b16 %v513, %v512
      %v628 = vpack.c.b16 %v515, %v514
      %v629 = vpack.c.b16 %v517, %v516
      %v630 = vpack.c.b16 %v519, %v518
      %v631 = vpack.c.b16 %v521, %v520
      %v632 = vpack.c.b16 %v523, %v522
      %v633 = vpack.c.b16 %v525, %v524
      %v634 = vpack.c.b16 %v527, %v526
      %v635 = vpack.c.b16 %v529, %v528
      %v636 = vpack.c.b16 %v531, %v530
      %v637 = vpack.c.b16 %v533, %v532
      %v638 = vpack.c.b16 %v535, %v534
      %v639 = vpack.c.b16 %v537, %v536
      %v640 = vpack.c.b16 %v539, %v538
      %v641 = vpack.c.b16 %v541, %v540
      %v642 = vpack.c.b16 %v543, %v542
      %v643 = vpack.c.b16 %v545, %v544
      %v644 = vpack.c.b16 %v547, %v546
      %v645 = vpack.c.b16 %v549, %v548
      %v646 = vpack.c.b16 %v551, %v550
      %v647 = vpack.c.b16 %v553, %v552
      %v648 = vpack.c.b16 %v555, %v554
      %v649 = vpack.c.b16 %v557, %v556
      %v650 = vpack.c.b16 %v559, %v558
      %v651 = vpack.c.b16 %v561, %v560
      %v652 = vpack.c.b16 %v563, %v562
      %v653 = vpack.c.b16 %v565, %v564
      %v654 = vpack.c.b16 %v567, %v566
      %v655 = vpack.c.b16 %v569, %v568
      %v656 = vpack.c.b16 %v571, %v570
      %v657 = vpack.c.b16 %v573, %v572
      %v658 = vpack.c.b16 %v575, %v574
      %v659 = vpack.c.b16 %v577, %v576
      %v660 = vpack.c.b16 %v579, %v578
      %v661 = vpack.c.b16 %v581, %v580
      %v662 = vpack.c.b16 %v583, %v582
      %v663 = vpack.c.b16 %v585, %v584
      %v664 = vpack.c.b16 %v587, %v586
      %v665 = vpack.c.b16 %v589, %v588
      %v666 = vpack.c.b16 %v591, %v590
      %v667 = vpack.c.b16 %v593, %v592
      %v668 = vpack.c.b16 %v595, %v594
      %v669 = vpack.c.b16 %v597, %v596
      %v670 = vpack.c.b16 %v599, %v598
      %v671 = vpack.c.b16 %v601, %v600
      %v672 = vpack.c.b16 %v603, %v602
      %v673 = vpack.c.b16 %v605, %v604
      %v674 = vpack.c.b16 %v607, %v606
      %v675 = vpack.c.b16 %v609, %v608
      %v676 = vpack.c.b16 %v611, %v610
      %v677 = vpack.c.b16 %v613, %v612
      %v682 = vunpack.c.l.b16 %v354
      %v683 = vunpack.c.l.b16 %v355
      %v684 = vunpack.c.l.b16 %v356
      %v685 = vunpack.c.l.b16 %v357
      %v686 = vpack.c.b16 %v683, %v682
      %v687 = vpack.c.b16 %v685, %v684
      %vm690 = vcmask 261120
      %v692 = vsel %vm690, %v614, 0
      %v695 = vsel %vm690, %v615, 0
      %v698 = vsel %vm690, %v616, 0
      %v701 = vsel %vm690, %v617, 0
      %v704 = vsel %vm690, %v618, 0
      %v707 = vsel %vm690, %v619, 0
      %v710 = vsel %vm690, %v620, 0
      %v713 = vsel %vm690, %v621, 0
      %v716 = vsel %vm690, %v622, 0
      %v719 = vsel %vm690, %v623, 0
      %v722 = vsel %vm690, %v624, 0
      %v725 = vsel %vm690, %v625, 0
      %v728 = vsel %vm690, %v626, 0
      %v731 = vsel %vm690, %v627, 0
      %v734 = vsel %vm690, %v628, 0
      %v737 = vsel %vm690, %v629, 0
      %v740 = vsel %vm690, %v630, 0
      %v743 = vsel %vm690, %v631, 0
      %v746 = vsel %vm690, %v632, 0
      %v749 = vsel %vm690, %v633, 0
      %v752 = vsel %vm690, %v634, 0
      %v755 = vsel %vm690, %v635, 0
      %v758 = vsel %vm690, %v636, 0
      %v761 = vsel %vm690, %v637, 0
      %v764 = vsel %vm690, %v638, 0
      %v767 = vsel %vm690, %v639, 0
      %v770 = vsel %vm690, %v640, 0
      %v773 = vsel %vm690, %v641, 0
      %v776 = vsel %vm690, %v642, 0
      %v779 = vsel %vm690, %v643, 0
      %v782 = vsel %vm690, %v644, 0
      %v785 = vsel %vm690, %v645, 0
      %v788 = vsel %vm690, %v646, 0
      %v791 = vsel %vm690, %v647, 0
      %v794 = vsel %vm690, %v648, 0
      %v797 = vsel %vm690, %v649, 0
      %v800 = vsel %vm690, %v650, 0
      %v803 = vsel %vm690, %v651, 0
      %v806 = vsel %vm690, %v652, 0
      %v809 = vsel %vm690, %v653, 0
      %v812 = vsel %vm690, %v654, 0
      %v815 = vsel %vm690, %v655, 0
      %v818 = vsel %vm690, %v656, 0
      %v821 = vsel %vm690, %v657, 0
      %v824 = vsel %vm690, %v658, 0
      %v827 = vsel %vm690, %v659, 0
      %v830 = vsel %vm690, %v660, 0
      %v833 = vsel %vm690, %v661, 0
      %v836 = vsel %vm690, %v662, 0
      %v839 = vsel %vm690, %v663, 0
      %v842 = vsel %vm690, %v664, 0
      %v845 = vsel %vm690, %v665, 0
      %v848 = vsel %vm690, %v666, 0
      %v851 = vsel %vm690, %v667, 0
      %v854 = vsel %vm690, %v668, 0
      %v857 = vsel %vm690, %v669, 0
      %v860 = vsel %vm690, %v670, 0
      %v863 = vsel %vm690, %v671, 0
      %v866 = vsel %vm690, %v672, 0
      %v869 = vsel %vm690, %v673, 0
      %v872 = vsel %vm690, %v674, 0
      %v875 = vsel %vm690, %v675, 0
      %v878 = vsel %vm690, %v676, 0
      %v881 = vsel %vm690, %v677, 0
      %883 = vmatprep.subr.bf16.mxu0 0
      %884 = vmatpush1.bf16.msra.mxu0 0
      %885 = vmatprep.subr.bf16.mxu0 0
      %886 = vmatpush1.bf16.msra.mxu0 0
      %887 = vmatprep.subr.bf16.mxu0 0
      %888 = vmatpush1.bf16.msra.mxu0 0
      %889 = vmatprep.subr.bf16.mxu0 0
      %890 = vmatpush1.bf16.msra.mxu0 0
      %891 = vmatprep.subr.bf16.mxu0 0
      %892 = vmatpush1.bf16.msra.mxu0 0
      %893 = vmatprep.subr.bf16.mxu0 0
      %894 = vmatpush1.bf16.msra.mxu0 0
      %895 = vmatprep.subr.bf16.mxu0 0
      %896 = vmatpush1.bf16.msra.mxu0 %v687
      %897 = vmatprep.subr.bf16.mxu0 0
      %898 = vmatpush1.bf16.msra.mxu0 %v686
      %899 = vmatprep.subr.bf16.mxu0 0
      %900 = vmatpush2.bf16.msra.mxu0 0
      %901 = vmatprep.subr.bf16.mxu0 0
      %902 = vmatpush2.bf16.msra.mxu0 0
      %903 = vmatprep.subr.bf16.mxu0 0
      %904 = vmatpush2.bf16.msra.mxu0 0
      %905 = vmatprep.subr.bf16.mxu0 0
      %906 = vmatpush2.bf16.msra.mxu0 0
      %907 = vmatprep.subr.bf16.mxu0 0
      %908 = vmatpush2.bf16.msra.mxu0 0
      %909 = vmatprep.subr.bf16.mxu0 0
      %910 = vmatpush2.bf16.msra.mxu0 0
      %911 = vmatprep.subr.bf16.mxu0 0
      %912 = vmatpush2.bf16.msra.mxu0 0
      %913 = vmatprep.subr.bf16.mxu0 0
      %914 = vmatpush2.bf16.msra.mxu0 0
      %915 = vmatprep.mubr.bf16.mxu0 0
      %916 = vmatmul.mubr.bf16.gmra.mxu0 %v692
      %v917 = vpop.f32.mrf.mxu0
      %v918 = vadd.f32 0.0, %v917
      %v919 = vpop.f32.mrf.mxu0
      %v920 = vpop.f32.mrf.mxu0
      %v921 = vadd.f32 0.0, %v920
      %v922 = vpop.f32.mrf.mxu0
      %923 = vmatprep.mubr.bf16.mxu0 0
      %924 = vmatmul.mubr.bf16.gmra.mxu0 %v695
      %v925 = vpop.f32.mrf.mxu0
      %v926 = vadd.f32 0.0, %v925
      %v927 = vpop.f32.mrf.mxu0
      %v928 = vpop.f32.mrf.mxu0
      %v929 = vadd.f32 0.0, %v928
      %v930 = vpop.f32.mrf.mxu0
      %931 = vmatprep.mubr.bf16.mxu0 0
      %932 = vmatmul.mubr.bf16.gmra.mxu0 %v698
      %v933 = vpop.f32.mrf.mxu0
      %v934 = vadd.f32 0.0, %v933
      %v935 = vpop.f32.mrf.mxu0
      %v936 = vpop.f32.mrf.mxu0
      %v937 = vadd.f32 0.0, %v936
      %v938 = vpop.f32.mrf.mxu0
      %939 = vmatprep.mubr.bf16.mxu0 0
      %940 = vmatmul.mubr.bf16.gmra.mxu0 %v701
      %v941 = vpop.f32.mrf.mxu0
      %v942 = vadd.f32 0.0, %v941
      %v943 = vpop.f32.mrf.mxu0
      %v944 = vpop.f32.mrf.mxu0
      %v945 = vadd.f32 0.0, %v944
      %v946 = vpop.f32.mrf.mxu0
      %947 = vmatprep.mubr.bf16.mxu0 0
      %948 = vmatmul.mubr.bf16.gmra.mxu0 %v704
      %v949 = vpop.f32.mrf.mxu0
      %v950 = vadd.f32 0.0, %v949
      %v951 = vpop.f32.mrf.mxu0
      %v952 = vpop.f32.mrf.mxu0
      %v953 = vadd.f32 0.0, %v952
      %v954 = vpop.f32.mrf.mxu0
      %955 = vmatprep.mubr.bf16.mxu0 0
      %956 = vmatmul.mubr.bf16.gmra.mxu0 %v707
      %v957 = vpop.f32.mrf.mxu0
      %v958 = vadd.f32 0.0, %v957
      %v959 = vpop.f32.mrf.mxu0
      %v960 = vpop.f32.mrf.mxu0
      %v961 = vadd.f32 0.0, %v960
      %v962 = vpop.f32.mrf.mxu0
      %963 = vmatprep.mubr.bf16.mxu0 0
      %964 = vmatmul.mubr.bf16.gmra.mxu0 %v710
      %v965 = vpop.f32.mrf.mxu0
      %v966 = vadd.f32 0.0, %v965
      %v967 = vpop.f32.mrf.mxu0
      %v968 = vpop.f32.mrf.mxu0
      %v969 = vadd.f32 0.0, %v968
      %v970 = vpop.f32.mrf.mxu0
      %971 = vmatprep.mubr.bf16.mxu0 0
      %972 = vmatmul.mubr.bf16.gmra.mxu0 %v713
      %v973 = vpop.f32.mrf.mxu0
      %v974 = vadd.f32 0.0, %v973
      %v975 = vpop.f32.mrf.mxu0
      %v976 = vpop.f32.mrf.mxu0
      %v977 = vadd.f32 0.0, %v976
      %v978 = vpop.f32.mrf.mxu0
      %979 = vmatprep.mubr.bf16.mxu0 0
      %980 = vmatmul.mubr.bf16.gmra.mxu0 %v716
      %v981 = vpop.f32.mrf.mxu0
      %v982 = vadd.f32 0.0, %v981
      %v983 = vpop.f32.mrf.mxu0
      %v984 = vpop.f32.mrf.mxu0
      %v985 = vadd.f32 0.0, %v984
      %v986 = vpop.f32.mrf.mxu0
      %987 = vmatprep.mubr.bf16.mxu0 0
      %988 = vmatmul.mubr.bf16.gmra.mxu0 %v719
      %v989 = vpop.f32.mrf.mxu0
      %v990 = vadd.f32 0.0, %v989
      %v991 = vpop.f32.mrf.mxu0
      %v992 = vpop.f32.mrf.mxu0
      %v993 = vadd.f32 0.0, %v992
      %v994 = vpop.f32.mrf.mxu0
      %995 = vmatprep.mubr.bf16.mxu0 0
      %996 = vmatmul.mubr.bf16.gmra.mxu0 %v722
      %v997 = vpop.f32.mrf.mxu0
      %v998 = vadd.f32 0.0, %v997
      %v999 = vpop.f32.mrf.mxu0
      %v1000 = vpop.f32.mrf.mxu0
      %v1001 = vadd.f32 0.0, %v1000
      %v1002 = vpop.f32.mrf.mxu0
      %1003 = vmatprep.mubr.bf16.mxu0 0
      %1004 = vmatmul.mubr.bf16.gmra.mxu0 %v725
      %v1005 = vpop.f32.mrf.mxu0
      %v1006 = vadd.f32 0.0, %v1005
      %v1007 = vpop.f32.mrf.mxu0
      %v1008 = vpop.f32.mrf.mxu0
      %v1009 = vadd.f32 0.0, %v1008
      %v1010 = vpop.f32.mrf.mxu0
      %1011 = vmatprep.mubr.bf16.mxu0 0
      %1012 = vmatmul.mubr.bf16.gmra.mxu0 %v728
      %v1013 = vpop.f32.mrf.mxu0
      %v1014 = vadd.f32 0.0, %v1013
      %v1015 = vpop.f32.mrf.mxu0
      %v1016 = vpop.f32.mrf.mxu0
      %v1017 = vadd.f32 0.0, %v1016
      %v1018 = vpop.f32.mrf.mxu0
      %1019 = vmatprep.mubr.bf16.mxu0 0
      %1020 = vmatmul.mubr.bf16.gmra.mxu0 %v731
      %v1021 = vpop.f32.mrf.mxu0
      %v1022 = vadd.f32 0.0, %v1021
      %v1023 = vpop.f32.mrf.mxu0
      %v1024 = vpop.f32.mrf.mxu0
      %v1025 = vadd.f32 0.0, %v1024
      %v1026 = vpop.f32.mrf.mxu0
      %1027 = vmatprep.mubr.bf16.mxu0 0
      %1028 = vmatmul.mubr.bf16.gmra.mxu0 %v734
      %v1029 = vpop.f32.mrf.mxu0
      %v1030 = vadd.f32 0.0, %v1029
      %v1031 = vpop.f32.mrf.mxu0
      %v1032 = vpop.f32.mrf.mxu0
      %v1033 = vadd.f32 0.0, %v1032
      %v1034 = vpop.f32.mrf.mxu0
      %1035 = vmatprep.mubr.bf16.mxu0 0
      %1036 = vmatmul.mubr.bf16.gmra.mxu0 %v737
      %v1037 = vpop.f32.mrf.mxu0
      %v1038 = vadd.f32 0.0, %v1037
      %v1039 = vpop.f32.mrf.mxu0
      %v1040 = vpop.f32.mrf.mxu0
      %v1041 = vadd.f32 0.0, %v1040
      %v1042 = vpop.f32.mrf.mxu0
      %1043 = vmatprep.mubr.bf16.mxu0 0
      %1044 = vmatmul.mubr.bf16.gmra.mxu0 %v740
      %v1045 = vpop.f32.mrf.mxu0
      %v1046 = vadd.f32 0.0, %v1045
      %v1047 = vpop.f32.mrf.mxu0
      %v1048 = vpop.f32.mrf.mxu0
      %v1049 = vadd.f32 0.0, %v1048
      %v1050 = vpop.f32.mrf.mxu0
      %1051 = vmatprep.mubr.bf16.mxu0 0
      %1052 = vmatmul.mubr.bf16.gmra.mxu0 %v743
      %v1053 = vpop.f32.mrf.mxu0
      %v1054 = vadd.f32 0.0, %v1053
      %v1055 = vpop.f32.mrf.mxu0
      %v1056 = vpop.f32.mrf.mxu0
      %v1057 = vadd.f32 0.0, %v1056
      %v1058 = vpop.f32.mrf.mxu0
      %1059 = vmatprep.mubr.bf16.mxu0 0
      %1060 = vmatmul.mubr.bf16.gmra.mxu0 %v746
      %v1061 = vpop.f32.mrf.mxu0
      %v1062 = vadd.f32 0.0, %v1061
      %v1063 = vpop.f32.mrf.mxu0
      %v1064 = vpop.f32.mrf.mxu0
      %v1065 = vadd.f32 0.0, %v1064
      %v1066 = vpop.f32.mrf.mxu0
      %1067 = vmatprep.mubr.bf16.mxu0 0
      %1068 = vmatmul.mubr.bf16.gmra.mxu0 %v749
      %v1069 = vpop.f32.mrf.mxu0
      %v1070 = vadd.f32 0.0, %v1069
      %v1071 = vpop.f32.mrf.mxu0
      %v1072 = vpop.f32.mrf.mxu0
      %v1073 = vadd.f32 0.0, %v1072
      %v1074 = vpop.f32.mrf.mxu0
      %1075 = vmatprep.mubr.bf16.mxu0 0
      %1076 = vmatmul.mubr.bf16.gmra.mxu0 %v752
      %v1077 = vpop.f32.mrf.mxu0
      %v1078 = vadd.f32 0.0, %v1077
      %v1079 = vpop.f32.mrf.mxu0
      %v1080 = vpop.f32.mrf.mxu0
      %v1081 = vadd.f32 0.0, %v1080
      %v1082 = vpop.f32.mrf.mxu0
      %1083 = vmatprep.mubr.bf16.mxu0 0
      %1084 = vmatmul.mubr.bf16.gmra.mxu0 %v755
      %v1085 = vpop.f32.mrf.mxu0
      %v1086 = vadd.f32 0.0, %v1085
      %v1087 = vpop.f32.mrf.mxu0
      %v1088 = vpop.f32.mrf.mxu0
      %v1089 = vadd.f32 0.0, %v1088
      %v1090 = vpop.f32.mrf.mxu0
      %1091 = vmatprep.mubr.bf16.mxu0 0
      %1092 = vmatmul.mubr.bf16.gmra.mxu0 %v758
      %v1093 = vpop.f32.mrf.mxu0
      %v1094 = vadd.f32 0.0, %v1093
      %v1095 = vpop.f32.mrf.mxu0
      %v1096 = vpop.f32.mrf.mxu0
      %v1097 = vadd.f32 0.0, %v1096
      %v1098 = vpop.f32.mrf.mxu0
      %1099 = vmatprep.mubr.bf16.mxu0 0
      %1100 = vmatmul.mubr.bf16.gmra.mxu0 %v761
      %v1101 = vpop.f32.mrf.mxu0
      %v1102 = vadd.f32 0.0, %v1101
      %v1103 = vpop.f32.mrf.mxu0
      %v1104 = vpop.f32.mrf.mxu0
      %v1105 = vadd.f32 0.0, %v1104
      %v1106 = vpop.f32.mrf.mxu0
      %1107 = vmatprep.mubr.bf16.mxu0 0
      %1108 = vmatmul.mubr.bf16.gmra.mxu0 %v764
      %v1109 = vpop.f32.mrf.mxu0
      %v1110 = vadd.f32 0.0, %v1109
      %v1111 = vpop.f32.mrf.mxu0
      %v1112 = vpop.f32.mrf.mxu0
      %v1113 = vadd.f32 0.0, %v1112
      %v1114 = vpop.f32.mrf.mxu0
      %1115 = vmatprep.mubr.bf16.mxu0 0
      %1116 = vmatmul.mubr.bf16.gmra.mxu0 %v767
      %v1117 = vpop.f32.mrf.mxu0
      %v1118 = vadd.f32 0.0, %v1117
      %v1119 = vpop.f32.mrf.mxu0
      %v1120 = vpop.f32.mrf.mxu0
      %v1121 = vadd.f32 0.0, %v1120
      %v1122 = vpop.f32.mrf.mxu0
      %1123 = vmatprep.mubr.bf16.mxu0 0
      %1124 = vmatmul.mubr.bf16.gmra.mxu0 %v770
      %v1125 = vpop.f32.mrf.mxu0
      %v1126 = vadd.f32 0.0, %v1125
      %v1127 = vpop.f32.mrf.mxu0
      %v1128 = vpop.f32.mrf.mxu0
      %v1129 = vadd.f32 0.0, %v1128
      %v1130 = vpop.f32.mrf.mxu0
      %1131 = vmatprep.mubr.bf16.mxu0 0
      %1132 = vmatmul.mubr.bf16.gmra.mxu0 %v773
      %v1133 = vpop.f32.mrf.mxu0
      %v1134 = vadd.f32 0.0, %v1133
      %v1135 = vpop.f32.mrf.mxu0
      %v1136 = vpop.f32.mrf.mxu0
      %v1137 = vadd.f32 0.0, %v1136
      %v1138 = vpop.f32.mrf.mxu0
      %1139 = vmatprep.mubr.bf16.mxu0 0
      %1140 = vmatmul.mubr.bf16.gmra.mxu0 %v776
      %v1141 = vpop.f32.mrf.mxu0
      %v1142 = vadd.f32 0.0, %v1141
      %v1143 = vpop.f32.mrf.mxu0
      %v1144 = vpop.f32.mrf.mxu0
      %v1145 = vadd.f32 0.0, %v1144
      %v1146 = vpop.f32.mrf.mxu0
      %1147 = vmatprep.mubr.bf16.mxu0 0
      %1148 = vmatmul.mubr.bf16.gmra.mxu0 %v779
      %v1149 = vpop.f32.mrf.mxu0
      %v1150 = vadd.f32 0.0, %v1149
      %v1151 = vpop.f32.mrf.mxu0
      %v1152 = vpop.f32.mrf.mxu0
      %v1153 = vadd.f32 0.0, %v1152
      %v1154 = vpop.f32.mrf.mxu0
      %1155 = vmatprep.mubr.bf16.mxu0 0
      %1156 = vmatmul.mubr.bf16.gmra.mxu0 %v782
      %v1157 = vpop.f32.mrf.mxu0
      %v1158 = vadd.f32 0.0, %v1157
      %v1159 = vpop.f32.mrf.mxu0
      %v1160 = vpop.f32.mrf.mxu0
      %v1161 = vadd.f32 0.0, %v1160
      %v1162 = vpop.f32.mrf.mxu0
      %1163 = vmatprep.mubr.bf16.mxu0 0
      %1164 = vmatmul.mubr.bf16.gmra.mxu0 %v785
      %v1165 = vpop.f32.mrf.mxu0
      %v1166 = vadd.f32 0.0, %v1165
      %v1167 = vpop.f32.mrf.mxu0
      %v1168 = vpop.f32.mrf.mxu0
      %v1169 = vadd.f32 0.0, %v1168
      %v1170 = vpop.f32.mrf.mxu0
      %1171 = vmatprep.mubr.bf16.mxu0 0
      %1172 = vmatmul.mubr.bf16.gmra.mxu0 %v788
      %v1173 = vpop.f32.mrf.mxu0
      %v1174 = vadd.f32 0.0, %v1173
      %v1175 = vpop.f32.mrf.mxu0
      %v1176 = vpop.f32.mrf.mxu0
      %v1177 = vadd.f32 0.0, %v1176
      %v1178 = vpop.f32.mrf.mxu0
      %1179 = vmatprep.mubr.bf16.mxu0 0
      %1180 = vmatmul.mubr.bf16.gmra.mxu0 %v791
      %v1181 = vpop.f32.mrf.mxu0
      %v1182 = vadd.f32 0.0, %v1181
      %v1183 = vpop.f32.mrf.mxu0
      %v1184 = vpop.f32.mrf.mxu0
      %v1185 = vadd.f32 0.0, %v1184
      %v1186 = vpop.f32.mrf.mxu0
      %1187 = vmatprep.mubr.bf16.mxu0 0
      %1188 = vmatmul.mubr.bf16.gmra.mxu0 %v794
      %v1189 = vpop.f32.mrf.mxu0
      %v1190 = vadd.f32 0.0, %v1189
      %v1191 = vpop.f32.mrf.mxu0
      %v1192 = vpop.f32.mrf.mxu0
      %v1193 = vadd.f32 0.0, %v1192
      %v1194 = vpop.f32.mrf.mxu0
      %1195 = vmatprep.mubr.bf16.mxu0 0
      %1196 = vmatmul.mubr.bf16.gmra.mxu0 %v797
      %v1197 = vpop.f32.mrf.mxu0
      %v1198 = vadd.f32 0.0, %v1197
      %v1199 = vpop.f32.mrf.mxu0
      %v1200 = vpop.f32.mrf.mxu0
      %v1201 = vadd.f32 0.0, %v1200
      %v1202 = vpop.f32.mrf.mxu0
      %1203 = vmatprep.mubr.bf16.mxu0 0
      %1204 = vmatmul.mubr.bf16.gmra.mxu0 %v800
      %v1205 = vpop.f32.mrf.mxu0
      %v1206 = vadd.f32 0.0, %v1205
      %v1207 = vpop.f32.mrf.mxu0
      %v1208 = vpop.f32.mrf.mxu0
      %v1209 = vadd.f32 0.0, %v1208
      %v1210 = vpop.f32.mrf.mxu0
      %1211 = vmatprep.mubr.bf16.mxu0 0
      %1212 = vmatmul.mubr.bf16.gmra.mxu0 %v803
      %v1213 = vpop.f32.mrf.mxu0
      %v1214 = vadd.f32 0.0, %v1213
      %v1215 = vpop.f32.mrf.mxu0
      %v1216 = vpop.f32.mrf.mxu0
      %v1217 = vadd.f32 0.0, %v1216
      %v1218 = vpop.f32.mrf.mxu0
      %1219 = vmatprep.mubr.bf16.mxu0 0
      %1220 = vmatmul.mubr.bf16.gmra.mxu0 %v806
      %v1221 = vpop.f32.mrf.mxu0
      %v1222 = vadd.f32 0.0, %v1221
      %v1223 = vpop.f32.mrf.mxu0
      %v1224 = vpop.f32.mrf.mxu0
      %v1225 = vadd.f32 0.0, %v1224
      %v1226 = vpop.f32.mrf.mxu0
      %1227 = vmatprep.mubr.bf16.mxu0 0
      %1228 = vmatmul.mubr.bf16.gmra.mxu0 %v809
      %v1229 = vpop.f32.mrf.mxu0
      %v1230 = vadd.f32 0.0, %v1229
      %v1231 = vpop.f32.mrf.mxu0
      %v1232 = vpop.f32.mrf.mxu0
      %v1233 = vadd.f32 0.0, %v1232
      %v1234 = vpop.f32.mrf.mxu0
      %1235 = vmatprep.mubr.bf16.mxu0 0
      %1236 = vmatmul.mubr.bf16.gmra.mxu0 %v812
      %v1237 = vpop.f32.mrf.mxu0
      %v1238 = vadd.f32 0.0, %v1237
      %v1239 = vpop.f32.mrf.mxu0
      %v1240 = vpop.f32.mrf.mxu0
      %v1241 = vadd.f32 0.0, %v1240
      %v1242 = vpop.f32.mrf.mxu0
      %1243 = vmatprep.mubr.bf16.mxu0 0
      %1244 = vmatmul.mubr.bf16.gmra.mxu0 %v815
      %v1245 = vpop.f32.mrf.mxu0
      %v1246 = vadd.f32 0.0, %v1245
      %v1247 = vpop.f32.mrf.mxu0
      %v1248 = vpop.f32.mrf.mxu0
      %v1249 = vadd.f32 0.0, %v1248
      %v1250 = vpop.f32.mrf.mxu0
      %1251 = vmatprep.mubr.bf16.mxu0 0
      %1252 = vmatmul.mubr.bf16.gmra.mxu0 %v818
      %v1253 = vpop.f32.mrf.mxu0
      %v1254 = vadd.f32 0.0, %v1253
      %v1255 = vpop.f32.mrf.mxu0
      %v1256 = vpop.f32.mrf.mxu0
      %v1257 = vadd.f32 0.0, %v1256
      %v1258 = vpop.f32.mrf.mxu0
      %1259 = vmatprep.mubr.bf16.mxu0 0
      %1260 = vmatmul.mubr.bf16.gmra.mxu0 %v821
      %v1261 = vpop.f32.mrf.mxu0
      %v1262 = vadd.f32 0.0, %v1261
      %v1263 = vpop.f32.mrf.mxu0
      %v1264 = vpop.f32.mrf.mxu0
      %v1265 = vadd.f32 0.0, %v1264
      %v1266 = vpop.f32.mrf.mxu0
      %1267 = vmatprep.mubr.bf16.mxu0 0
      %1268 = vmatmul.mubr.bf16.gmra.mxu0 %v824
      %v1269 = vpop.f32.mrf.mxu0
      %v1270 = vadd.f32 0.0, %v1269
      %v1271 = vpop.f32.mrf.mxu0
      %v1272 = vpop.f32.mrf.mxu0
      %v1273 = vadd.f32 0.0, %v1272
      %v1274 = vpop.f32.mrf.mxu0
      %1275 = vmatprep.mubr.bf16.mxu0 0
      %1276 = vmatmul.mubr.bf16.gmra.mxu0 %v827
      %v1277 = vpop.f32.mrf.mxu0
      %v1278 = vadd.f32 0.0, %v1277
      %v1279 = vpop.f32.mrf.mxu0
      %v1280 = vpop.f32.mrf.mxu0
      %v1281 = vadd.f32 0.0, %v1280
      %v1282 = vpop.f32.mrf.mxu0
      %1283 = vmatprep.mubr.bf16.mxu0 0
      %1284 = vmatmul.mubr.bf16.gmra.mxu0 %v830
      %v1285 = vpop.f32.mrf.mxu0
      %v1286 = vadd.f32 0.0, %v1285
      %v1287 = vpop.f32.mrf.mxu0
      %v1288 = vpop.f32.mrf.mxu0
      %v1289 = vadd.f32 0.0, %v1288
      %v1290 = vpop.f32.mrf.mxu0
      %1291 = vmatprep.mubr.bf16.mxu0 0
      %1292 = vmatmul.mubr.bf16.gmra.mxu0 %v833
      %v1293 = vpop.f32.mrf.mxu0
      %v1294 = vadd.f32 0.0, %v1293
      %v1295 = vpop.f32.mrf.mxu0
      %v1296 = vpop.f32.mrf.mxu0
      %v1297 = vadd.f32 0.0, %v1296
      %v1298 = vpop.f32.mrf.mxu0
      %1299 = vmatprep.mubr.bf16.mxu0 0
      %1300 = vmatmul.mubr.bf16.gmra.mxu0 %v836
      %v1301 = vpop.f32.mrf.mxu0
      %v1302 = vadd.f32 0.0, %v1301
      %v1303 = vpop.f32.mrf.mxu0
      %v1304 = vpop.f32.mrf.mxu0
      %v1305 = vadd.f32 0.0, %v1304
      %v1306 = vpop.f32.mrf.mxu0
      %1307 = vmatprep.mubr.bf16.mxu0 0
      %1308 = vmatmul.mubr.bf16.gmra.mxu0 %v839
      %v1309 = vpop.f32.mrf.mxu0
      %v1310 = vadd.f32 0.0, %v1309
      %v1311 = vpop.f32.mrf.mxu0
      %v1312 = vpop.f32.mrf.mxu0
      %v1313 = vadd.f32 0.0, %v1312
      %v1314 = vpop.f32.mrf.mxu0
      %1315 = vmatprep.mubr.bf16.mxu0 0
      %1316 = vmatmul.mubr.bf16.gmra.mxu0 %v842
      %v1317 = vpop.f32.mrf.mxu0
      %v1318 = vadd.f32 0.0, %v1317
      %v1319 = vpop.f32.mrf.mxu0
      %v1320 = vpop.f32.mrf.mxu0
      %v1321 = vadd.f32 0.0, %v1320
      %v1322 = vpop.f32.mrf.mxu0
      %1323 = vmatprep.mubr.bf16.mxu0 0
      %1324 = vmatmul.mubr.bf16.gmra.mxu0 %v845
      %v1325 = vpop.f32.mrf.mxu0
      %v1326 = vadd.f32 0.0, %v1325
      %v1327 = vpop.f32.mrf.mxu0
      %v1328 = vpop.f32.mrf.mxu0
      %v1329 = vadd.f32 0.0, %v1328
      %v1330 = vpop.f32.mrf.mxu0
      %1331 = vmatprep.mubr.bf16.mxu0 0
      %1332 = vmatmul.mubr.bf16.gmra.mxu0 %v848
      %v1333 = vpop.f32.mrf.mxu0
      %v1334 = vadd.f32 0.0, %v1333
      %v1335 = vpop.f32.mrf.mxu0
      %v1336 = vpop.f32.mrf.mxu0
      %v1337 = vadd.f32 0.0, %v1336
      %v1338 = vpop.f32.mrf.mxu0
      %1339 = vmatprep.mubr.bf16.mxu0 0
      %1340 = vmatmul.mubr.bf16.gmra.mxu0 %v851
      %v1341 = vpop.f32.mrf.mxu0
      %v1342 = vadd.f32 0.0, %v1341
      %v1343 = vpop.f32.mrf.mxu0
      %v1344 = vpop.f32.mrf.mxu0
      %v1345 = vadd.f32 0.0, %v1344
      %v1346 = vpop.f32.mrf.mxu0
      %1347 = vmatprep.mubr.bf16.mxu0 0
      %1348 = vmatmul.mubr.bf16.gmra.mxu0 %v854
      %v1349 = vpop.f32.mrf.mxu0
      %v1350 = vadd.f32 0.0, %v1349
      %v1351 = vpop.f32.mrf.mxu0
      %v1352 = vpop.f32.mrf.mxu0
      %v1353 = vadd.f32 0.0, %v1352
      %v1354 = vpop.f32.mrf.mxu0
      %1355 = vmatprep.mubr.bf16.mxu0 0
      %1356 = vmatmul.mubr.bf16.gmra.mxu0 %v857
      %v1357 = vpop.f32.mrf.mxu0
      %v1358 = vadd.f32 0.0, %v1357
      %v1359 = vpop.f32.mrf.mxu0
      %v1360 = vpop.f32.mrf.mxu0
      %v1361 = vadd.f32 0.0, %v1360
      %v1362 = vpop.f32.mrf.mxu0
      %1363 = vmatprep.mubr.bf16.mxu0 0
      %1364 = vmatmul.mubr.bf16.gmra.mxu0 %v860
      %v1365 = vpop.f32.mrf.mxu0
      %v1366 = vadd.f32 0.0, %v1365
      %v1367 = vpop.f32.mrf.mxu0
      %v1368 = vpop.f32.mrf.mxu0
      %v1369 = vadd.f32 0.0, %v1368
      %v1370 = vpop.f32.mrf.mxu0
      %1371 = vmatprep.mubr.bf16.mxu0 0
      %1372 = vmatmul.mubr.bf16.gmra.mxu0 %v863
      %v1373 = vpop.f32.mrf.mxu0
      %v1374 = vadd.f32 0.0, %v1373
      %v1375 = vpop.f32.mrf.mxu0
      %v1376 = vpop.f32.mrf.mxu0
      %v1377 = vadd.f32 0.0, %v1376
      %v1378 = vpop.f32.mrf.mxu0
      %1379 = vmatprep.mubr.bf16.mxu0 0
      %1380 = vmatmul.mubr.bf16.gmra.mxu0 %v866
      %v1381 = vpop.f32.mrf.mxu0
      %v1382 = vadd.f32 0.0, %v1381
      %v1383 = vpop.f32.mrf.mxu0
      %v1384 = vpop.f32.mrf.mxu0
      %v1385 = vadd.f32 0.0, %v1384
      %v1386 = vpop.f32.mrf.mxu0
      %1387 = vmatprep.mubr.bf16.mxu0 0
      %1388 = vmatmul.mubr.bf16.gmra.mxu0 %v869
      %v1389 = vpop.f32.mrf.mxu0
      %v1390 = vadd.f32 0.0, %v1389
      %v1391 = vpop.f32.mrf.mxu0
      %v1392 = vpop.f32.mrf.mxu0
      %v1393 = vadd.f32 0.0, %v1392
      %v1394 = vpop.f32.mrf.mxu0
      %1395 = vmatprep.mubr.bf16.mxu0 0
      %1396 = vmatmul.mubr.bf16.gmra.mxu0 %v872
      %v1397 = vpop.f32.mrf.mxu0
      %v1398 = vadd.f32 0.0, %v1397
      %v1399 = vpop.f32.mrf.mxu0
      %v1400 = vpop.f32.mrf.mxu0
      %v1401 = vadd.f32 0.0, %v1400
      %v1402 = vpop.f32.mrf.mxu0
      %1403 = vmatprep.mubr.bf16.mxu0 0
      %1404 = vmatmul.mubr.bf16.gmra.mxu0 %v875
      %v1405 = vpop.f32.mrf.mxu0
      %v1406 = vadd.f32 0.0, %v1405
      %v1407 = vpop.f32.mrf.mxu0
      %v1408 = vpop.f32.mrf.mxu0
      %v1409 = vadd.f32 0.0, %v1408
      %v1410 = vpop.f32.mrf.mxu0
      %1411 = vmatprep.mubr.bf16.mxu0 0
      %1412 = vmatmul.mubr.bf16.gmra.mxu0 %v878
      %v1413 = vpop.f32.mrf.mxu0
      %v1414 = vadd.f32 0.0, %v1413
      %v1415 = vpop.f32.mrf.mxu0
      %v1416 = vpop.f32.mrf.mxu0
      %v1417 = vadd.f32 0.0, %v1416
      %v1418 = vpop.f32.mrf.mxu0
      %1419 = vmatprep.mubr.bf16.mxu0 0
      %1420 = vmatmul.mubr.bf16.gmra.mxu0 %v881
      %v1421 = vpop.f32.mrf.mxu0
      %v1422 = vadd.f32 0.0, %v1421
      %v1423 = vpop.f32.mrf.mxu0
      %v1424 = vpop.f32.mrf.mxu0
      %v1425 = vadd.f32 0.0, %v1424
      %v1426 = vpop.f32.mrf.mxu0
      %1427 = vdwg.mxu0
      %v1428 = vld [vmem:[%s2] sm:$0x1]
      %v1430 = vlaneseq
      %v1431 = vshrl.u32 %v1430, 7
      %v1432 = vsub.s32 0, %v1431
      %v1433 = vrot.slane %v1428, %v1432
      %v1435 = vadd.f32 %v918, %v1433
      %v1436 = vadd.f32 %v921, %v1433
      %v1437 = vadd.f32 %v926, %v1433
      %v1438 = vadd.f32 %v929, %v1433
      %v1439 = vadd.f32 %v934, %v1433
      %v1440 = vadd.f32 %v937, %v1433
      %v1441 = vadd.f32 %v942, %v1433
      %v1442 = vadd.f32 %v945, %v1433
      %v1443 = vadd.f32 %v950, %v1433
      %v1444 = vadd.f32 %v953, %v1433
      %v1445 = vadd.f32 %v958, %v1433
      %v1446 = vadd.f32 %v961, %v1433
      %v1447 = vadd.f32 %v966, %v1433
      %v1448 = vadd.f32 %v969, %v1433
      %v1449 = vadd.f32 %v974, %v1433
      %v1450 = vadd.f32 %v977, %v1433
      %v1451 = vadd.f32 %v982, %v1433
      %v1452 = vadd.f32 %v985, %v1433
      %v1453 = vadd.f32 %v990, %v1433
      %v1454 = vadd.f32 %v993, %v1433
      %v1455 = vadd.f32 %v998, %v1433
      %v1456 = vadd.f32 %v1001, %v1433
      %v1457 = vadd.f32 %v1006, %v1433
      %v1458 = vadd.f32 %v1009, %v1433
      %v1459 = vadd.f32 %v1014, %v1433
      %v1460 = vadd.f32 %v1017, %v1433
      %v1461 = vadd.f32 %v1022, %v1433
      %v1462 = vadd.f32 %v1025, %v1433
      %v1463 = vadd.f32 %v1030, %v1433
      %v1464 = vadd.f32 %v1033, %v1433
      %v1465 = vadd.f32 %v1038, %v1433
      %v1466 = vadd.f32 %v1041, %v1433
      %v1467 = vadd.f32 %v1046, %v1433
      %v1468 = vadd.f32 %v1049, %v1433
      %v1469 = vadd.f32 %v1054, %v1433
      %v1470 = vadd.f32 %v1057, %v1433
      %v1471 = vadd.f32 %v1062, %v1433
      %v1472 = vadd.f32 %v1065, %v1433
      %v1473 = vadd.f32 %v1070, %v1433
      %v1474 = vadd.f32 %v1073, %v1433
      %v1475 = vadd.f32 %v1078, %v1433
      %v1476 = vadd.f32 %v1081, %v1433
      %v1477 = vadd.f32 %v1086, %v1433
      %v1478 = vadd.f32 %v1089, %v1433
      %v1479 = vadd.f32 %v1094, %v1433
      %v1480 = vadd.f32 %v1097, %v1433
      %v1481 = vadd.f32 %v1102, %v1433
      %v1482 = vadd.f32 %v1105, %v1433
      %v1483 = vadd.f32 %v1110, %v1433
      %v1484 = vadd.f32 %v1113, %v1433
      %v1485 = vadd.f32 %v1118, %v1433
      %v1486 = vadd.f32 %v1121, %v1433
      %v1487 = vadd.f32 %v1126, %v1433
      %v1488 = vadd.f32 %v1129, %v1433
      %v1489 = vadd.f32 %v1134, %v1433
      %v1490 = vadd.f32 %v1137, %v1433
      %v1491 = vadd.f32 %v1142, %v1433
      %v1492 = vadd.f32 %v1145, %v1433
      %v1493 = vadd.f32 %v1150, %v1433
      %v1494 = vadd.f32 %v1153, %v1433
      %v1495 = vadd.f32 %v1158, %v1433
      %v1496 = vadd.f32 %v1161, %v1433
      %v1497 = vadd.f32 %v1166, %v1433
      %v1498 = vadd.f32 %v1169, %v1433
      %v1499 = vadd.f32 %v1174, %v1433
      %v1500 = vadd.f32 %v1177, %v1433
      %v1501 = vadd.f32 %v1182, %v1433
      %v1502 = vadd.f32 %v1185, %v1433
      %v1503 = vadd.f32 %v1190, %v1433
      %v1504 = vadd.f32 %v1193, %v1433
      %v1505 = vadd.f32 %v1198, %v1433
      %v1506 = vadd.f32 %v1201, %v1433
      %v1507 = vadd.f32 %v1206, %v1433
      %v1508 = vadd.f32 %v1209, %v1433
      %v1509 = vadd.f32 %v1214, %v1433
      %v1510 = vadd.f32 %v1217, %v1433
      %v1511 = vadd.f32 %v1222, %v1433
      %v1512 = vadd.f32 %v1225, %v1433
      %v1513 = vadd.f32 %v1230, %v1433
      %v1514 = vadd.f32 %v1233, %v1433
      %v1515 = vadd.f32 %v1238, %v1433
      %v1516 = vadd.f32 %v1241, %v1433
      %v1517 = vadd.f32 %v1246, %v1433
      %v1518 = vadd.f32 %v1249, %v1433
      %v1519 = vadd.f32 %v1254, %v1433
      %v1520 = vadd.f32 %v1257, %v1433
      %v1521 = vadd.f32 %v1262, %v1433
      %v1522 = vadd.f32 %v1265, %v1433
      %v1523 = vadd.f32 %v1270, %v1433
      %v1524 = vadd.f32 %v1273, %v1433
      %v1525 = vadd.f32 %v1278, %v1433
      %v1526 = vadd.f32 %v1281, %v1433
      %v1527 = vadd.f32 %v1286, %v1433
      %v1528 = vadd.f32 %v1289, %v1433
      %v1529 = vadd.f32 %v1294, %v1433
      %v1530 = vadd.f32 %v1297, %v1433
      %v1531 = vadd.f32 %v1302, %v1433
      %v1532 = vadd.f32 %v1305, %v1433
      %v1533 = vadd.f32 %v1310, %v1433
      %v1534 = vadd.f32 %v1313, %v1433
      %v1535 = vadd.f32 %v1318, %v1433
      %v1536 = vadd.f32 %v1321, %v1433
      %v1537 = vadd.f32 %v1326, %v1433
      %v1538 = vadd.f32 %v1329, %v1433
      %v1539 = vadd.f32 %v1334, %v1433
      %v1540 = vadd.f32 %v1337, %v1433
      %v1541 = vadd.f32 %v1342, %v1433
      %v1542 = vadd.f32 %v1345, %v1433
      %v1543 = vadd.f32 %v1350, %v1433
      %v1544 = vadd.f32 %v1353, %v1433
      %v1545 = vadd.f32 %v1358, %v1433
      %v1546 = vadd.f32 %v1361, %v1433
      %v1547 = vadd.f32 %v1366, %v1433
      %v1548 = vadd.f32 %v1369, %v1433
      %v1549 = vadd.f32 %v1374, %v1433
      %v1550 = vadd.f32 %v1377, %v1433
      %v1551 = vadd.f32 %v1382, %v1433
      %v1552 = vadd.f32 %v1385, %v1433
      %v1553 = vadd.f32 %v1390, %v1433
      %v1554 = vadd.f32 %v1393, %v1433
      %v1555 = vadd.f32 %v1398, %v1433
      %v1556 = vadd.f32 %v1401, %v1433
      %v1557 = vadd.f32 %v1406, %v1433
      %v1558 = vadd.f32 %v1409, %v1433
      %v1559 = vadd.f32 %v1414, %v1433
      %v1560 = vadd.f32 %v1417, %v1433
      %v1561 = vadd.f32 %v1422, %v1433
      %v1562 = vadd.f32 %v1425, %v1433
      %v1563 = vmax.f32 %v1435, 0.0
      %v1564 = vmax.f32 %v1436, 0.0
      %v1565 = vmax.f32 %v1437, 0.0
      %v1566 = vmax.f32 %v1438, 0.0
      %v1567 = vmax.f32 %v1439, 0.0
      %v1568 = vmax.f32 %v1440, 0.0
      %v1569 = vmax.f32 %v1441, 0.0
      %v1570 = vmax.f32 %v1442, 0.0
      %v1571 = vmax.f32 %v1443, 0.0
      %v1572 = vmax.f32 %v1444, 0.0
      %v1573 = vmax.f32 %v1445, 0.0
      %v1574 = vmax.f32 %v1446, 0.0
      %v1575 = vmax.f32 %v1447, 0.0
      %v1576 = vmax.f32 %v1448, 0.0
      %v1577 = vmax.f32 %v1449, 0.0
      %v1578 = vmax.f32 %v1450, 0.0
      %v1579 = vmax.f32 %v1451, 0.0
      %v1580 = vmax.f32 %v1452, 0.0
      %v1581 = vmax.f32 %v1453, 0.0
      %v1582 = vmax.f32 %v1454, 0.0
      %v1583 = vmax.f32 %v1455, 0.0
      %v1584 = vmax.f32 %v1456, 0.0
      %v1585 = vmax.f32 %v1457, 0.0
      %v1586 = vmax.f32 %v1458, 0.0
      %v1587 = vmax.f32 %v1459, 0.0
      %v1588 = vmax.f32 %v1460, 0.0
      %v1589 = vmax.f32 %v1461, 0.0
      %v1590 = vmax.f32 %v1462, 0.0
      %v1591 = vmax.f32 %v1463, 0.0
      %v1592 = vmax.f32 %v1464, 0.0
      %v1593 = vmax.f32 %v1465, 0.0
      %v1594 = vmax.f32 %v1466, 0.0
      %v1595 = vmax.f32 %v1467, 0.0
      %v1596 = vmax.f32 %v1468, 0.0
      %v1597 = vmax.f32 %v1469, 0.0
      %v1598 = vmax.f32 %v1470, 0.0
      %v1599 = vmax.f32 %v1471, 0.0
      %v1600 = vmax.f32 %v1472, 0.0
      %v1601 = vmax.f32 %v1473, 0.0
      %v1602 = vmax.f32 %v1474, 0.0
      %v1603 = vmax.f32 %v1475, 0.0
      %v1604 = vmax.f32 %v1476, 0.0
      %v1605 = vmax.f32 %v1477, 0.0
      %v1606 = vmax.f32 %v1478, 0.0
      %v1607 = vmax.f32 %v1479, 0.0
      %v1608 = vmax.f32 %v1480, 0.0
      %v1609 = vmax.f32 %v1481, 0.0
      %v1610 = vmax.f32 %v1482, 0.0
      %v1611 = vmax.f32 %v1483, 0.0
      %v1612 = vmax.f32 %v1484, 0.0
      %v1613 = vmax.f32 %v1485, 0.0
      %v1614 = vmax.f32 %v1486, 0.0
      %v1615 = vmax.f32 %v1487, 0.0
      %v1616 = vmax.f32 %v1488, 0.0
      %v1617 = vmax.f32 %v1489, 0.0
      %v1618 = vmax.f32 %v1490, 0.0
      %v1619 = vmax.f32 %v1491, 0.0
      %v1620 = vmax.f32 %v1492, 0.0
      %v1621 = vmax.f32 %v1493, 0.0
      %v1622 = vmax.f32 %v1494, 0.0
      %v1623 = vmax.f32 %v1495, 0.0
      %v1624 = vmax.f32 %v1496, 0.0
      %v1625 = vmax.f32 %v1497, 0.0
      %v1626 = vmax.f32 %v1498, 0.0
      %v1627 = vmax.f32 %v1499, 0.0
      %v1628 = vmax.f32 %v1500, 0.0
      %v1629 = vmax.f32 %v1501, 0.0
      %v1630 = vmax.f32 %v1502, 0.0
      %v1631 = vmax.f32 %v1503, 0.0
      %v1632 = vmax.f32 %v1504, 0.0
      %v1633 = vmax.f32 %v1505, 0.0
      %v1634 = vmax.f32 %v1506, 0.0
      %v1635 = vmax.f32 %v1507, 0.0
      %v1636 = vmax.f32 %v1508, 0.0
      %v1637 = vmax.f32 %v1509, 0.0
      %v1638 = vmax.f32 %v1510, 0.0
      %v1639 = vmax.f32 %v1511, 0.0
      %v1640 = vmax.f32 %v1512, 0.0
      %v1641 = vmax.f32 %v1513, 0.0
      %v1642 = vmax.f32 %v1514, 0.0
      %v1643 = vmax.f32 %v1515, 0.0
      %v1644 = vmax.f32 %v1516, 0.0
      %v1645 = vmax.f32 %v1517, 0.0
      %v1646 = vmax.f32 %v1518, 0.0
      %v1647 = vmax.f32 %v1519, 0.0
      %v1648 = vmax.f32 %v1520, 0.0
      %v1649 = vmax.f32 %v1521, 0.0
      %v1650 = vmax.f32 %v1522, 0.0
      %v1651 = vmax.f32 %v1523, 0.0
      %v1652 = vmax.f32 %v1524, 0.0
      %v1653 = vmax.f32 %v1525, 0.0
      %v1654 = vmax.f32 %v1526, 0.0
      %v1655 = vmax.f32 %v1527, 0.0
      %v1656 = vmax.f32 %v1528, 0.0
      %v1657 = vmax.f32 %v1529, 0.0
      %v1658 = vmax.f32 %v1530, 0.0
      %v1659 = vmax.f32 %v1531, 0.0
      %v1660 = vmax.f32 %v1532, 0.0
      %v1661 = vmax.f32 %v1533, 0.0
      %v1662 = vmax.f32 %v1534, 0.0
      %v1663 = vmax.f32 %v1535, 0.0
      %v1664 = vmax.f32 %v1536, 0.0
      %v1665 = vmax.f32 %v1537, 0.0
      %v1666 = vmax.f32 %v1538, 0.0
      %v1667 = vmax.f32 %v1539, 0.0
      %v1668 = vmax.f32 %v1540, 0.0
      %v1669 = vmax.f32 %v1541, 0.0
      %v1670 = vmax.f32 %v1542, 0.0
      %v1671 = vmax.f32 %v1543, 0.0
      %v1672 = vmax.f32 %v1544, 0.0
      %v1673 = vmax.f32 %v1545, 0.0
      %v1674 = vmax.f32 %v1546, 0.0
      %v1675 = vmax.f32 %v1547, 0.0
      %v1676 = vmax.f32 %v1548, 0.0
      %v1677 = vmax.f32 %v1549, 0.0
      %v1678 = vmax.f32 %v1550, 0.0
      %v1679 = vmax.f32 %v1551, 0.0
      %v1680 = vmax.f32 %v1552, 0.0
      %v1681 = vmax.f32 %v1553, 0.0
      %v1682 = vmax.f32 %v1554, 0.0
      %v1683 = vmax.f32 %v1555, 0.0
      %v1684 = vmax.f32 %v1556, 0.0
      %v1685 = vmax.f32 %v1557, 0.0
      %v1686 = vmax.f32 %v1558, 0.0
      %v1687 = vmax.f32 %v1559, 0.0
      %v1688 = vmax.f32 %v1560, 0.0
      %v1689 = vmax.f32 %v1561, 0.0
      %v1690 = vmax.f32 %v1562, 0.0
      %1691 = vst.msk [vmem:[#allocation2] sm:$0xff] %vm690, %v1563
      %1692 = vst.msk [vmem:[#allocation2 + $0x8] sm:$0xff] %vm690, %v1564
      %1693 = vst.msk [vmem:[#allocation2 + $0x10] sm:$0xff] %vm690, %v1565
      %1694 = vst.msk [vmem:[#allocation2 + $0x18] sm:$0xff] %vm690, %v1566
      %1695 = vst.msk [vmem:[#allocation2 + $0x20] sm:$0xff] %vm690, %v1567
      %1696 = vst.msk [vmem:[#allocation2 + $0x28] sm:$0xff] %vm690, %v1568
      %1697 = vst.msk [vmem:[#allocation2 + $0x30] sm:$0xff] %vm690, %v1569
      %1698 = vst.msk [vmem:[#allocation2 + $0x38] sm:$0xff] %vm690, %v1570
      %1699 = vst.msk [vmem:[#allocation2 + $0x40] sm:$0xff] %vm690, %v1571
      %1700 = vst.msk [vmem:[#allocation2 + $0x48] sm:$0xff] %vm690, %v1572
      %1701 = vst.msk [vmem:[#allocation2 + $0x50] sm:$0xff] %vm690, %v1573
      %1702 = vst.msk [vmem:[#allocation2 + $0x58] sm:$0xff] %vm690, %v1574
      %1703 = vst.msk [vmem:[#allocation2 + $0x60] sm:$0xff] %vm690, %v1575
      %1704 = vst.msk [vmem:[#allocation2 + $0x68] sm:$0xff] %vm690, %v1576
      %1705 = vst.msk [vmem:[#allocation2 + $0x70] sm:$0xff] %vm690, %v1577
      %1706 = vst.msk [vmem:[#allocation2 + $0x78] sm:$0xff] %vm690, %v1578
      %1707 = vst.msk [vmem:[#allocation2 + $0x80] sm:$0xff] %vm690, %v1579
      %1708 = vst.msk [vmem:[#allocation2 + $0x88] sm:$0xff] %vm690, %v1580
      %1709 = vst.msk [vmem:[#allocation2 + $0x90] sm:$0xff] %vm690, %v1581
      %1710 = vst.msk [vmem:[#allocation2 + $0x98] sm:$0xff] %vm690, %v1582
      %1711 = vst.msk [vmem:[#allocation2 + $0xa0] sm:$0xff] %vm690, %v1583
      %1712 = vst.msk [vmem:[#allocation2 + $0xa8] sm:$0xff] %vm690, %v1584
      %1713 = vst.msk [vmem:[#allocation2 + $0xb0] sm:$0xff] %vm690, %v1585
      %1714 = vst.msk [vmem:[#allocation2 + $0xb8] sm:$0xff] %vm690, %v1586
      %1715 = vst.msk [vmem:[#allocation2 + $0xc0] sm:$0xff] %vm690, %v1587
      %1716 = vst.msk [vmem:[#allocation2 + $0xc8] sm:$0xff] %vm690, %v1588
      %1717 = vst.msk [vmem:[#allocation2 + $0xd0] sm:$0xff] %vm690, %v1589
      %1718 = vst.msk [vmem:[#allocation2 + $0xd8] sm:$0xff] %vm690, %v1590
      %1719 = vst.msk [vmem:[#allocation2 + $0xe0] sm:$0xff] %vm690, %v1591
      %1720 = vst.msk [vmem:[#allocation2 + $0xe8] sm:$0xff] %vm690, %v1592
      %1721 = vst.msk [vmem:[#allocation2 + $0xf0] sm:$0xff] %vm690, %v1593
      %1722 = vst.msk [vmem:[#allocation2 + $0xf8] sm:$0xff] %vm690, %v1594
      %1723 = vst.msk [vmem:[#allocation2 + $0x100] sm:$0xff] %vm690, %v1595
      %1724 = vst.msk [vmem:[#allocation2 + $0x108] sm:$0xff] %vm690, %v1596
      %1725 = vst.msk [vmem:[#allocation2 + $0x110] sm:$0xff] %vm690, %v1597
      %1726 = vst.msk [vmem:[#allocation2 + $0x118] sm:$0xff] %vm690, %v1598
      %1727 = vst.msk [vmem:[#allocation2 + $0x120] sm:$0xff] %vm690, %v1599
      %1728 = vst.msk [vmem:[#allocation2 + $0x128] sm:$0xff] %vm690, %v1600
      %1729 = vst.msk [vmem:[#allocation2 + $0x130] sm:$0xff] %vm690, %v1601
      %1730 = vst.msk [vmem:[#allocation2 + $0x138] sm:$0xff] %vm690, %v1602
      %1731 = vst.msk [vmem:[#allocation2 + $0x140] sm:$0xff] %vm690, %v1603
      %1732 = vst.msk [vmem:[#allocation2 + $0x148] sm:$0xff] %vm690, %v1604
      %1733 = vst.msk [vmem:[#allocation2 + $0x150] sm:$0xff] %vm690, %v1605
      %1734 = vst.msk [vmem:[#allocation2 + $0x158] sm:$0xff] %vm690, %v1606
      %1735 = vst.msk [vmem:[#allocation2 + $0x160] sm:$0xff] %vm690, %v1607
      %1736 = vst.msk [vmem:[#allocation2 + $0x168] sm:$0xff] %vm690, %v1608
      %1737 = vst.msk [vmem:[#allocation2 + $0x170] sm:$0xff] %vm690, %v1609
      %1738 = vst.msk [vmem:[#allocation2 + $0x178] sm:$0xff] %vm690, %v1610
      %1739 = vst.msk [vmem:[#allocation2 + $0x180] sm:$0xff] %vm690, %v1611
      %1740 = vst.msk [vmem:[#allocation2 + $0x188] sm:$0xff] %vm690, %v1612
      %1741 = vst.msk [vmem:[#allocation2 + $0x190] sm:$0xff] %vm690, %v1613
      %1742 = vst.msk [vmem:[#allocation2 + $0x198] sm:$0xff] %vm690, %v1614
      %1743 = vst.msk [vmem:[#allocation2 + $0x1a0] sm:$0xff] %vm690, %v1615
      %1744 = vst.msk [vmem:[#allocation2 + $0x1a8] sm:$0xff] %vm690, %v1616
      %1745 = vst.msk [vmem:[#allocation2 + $0x1b0] sm:$0xff] %vm690, %v1617
      %1746 = vst.msk [vmem:[#allocation2 + $0x1b8] sm:$0xff] %vm690, %v1618
      %1747 = vst.msk [vmem:[#allocation2 + $0x1c0] sm:$0xff] %vm690, %v1619
      %1748 = vst.msk [vmem:[#allocation2 + $0x1c8] sm:$0xff] %vm690, %v1620
      %1749 = vst.msk [vmem:[#allocation2 + $0x1d0] sm:$0xff] %vm690, %v1621
      %1750 = vst.msk [vmem:[#allocation2 + $0x1d8] sm:$0xff] %vm690, %v1622
      %1751 = vst.msk [vmem:[#allocation2 + $0x1e0] sm:$0xff] %vm690, %v1623
      %1752 = vst.msk [vmem:[#allocation2 + $0x1e8] sm:$0xff] %vm690, %v1624
      %1753 = vst.msk [vmem:[#allocation2 + $0x1f0] sm:$0xff] %vm690, %v1625
      %1754 = vst.msk [vmem:[#allocation2 + $0x1f8] sm:$0xff] %vm690, %v1626
      %1755 = vst.msk [vmem:[#allocation2 + $0x200] sm:$0xff] %vm690, %v1627
      %1756 = vst.msk [vmem:[#allocation2 + $0x208] sm:$0xff] %vm690, %v1628
      %1757 = vst.msk [vmem:[#allocation2 + $0x210] sm:$0xff] %vm690, %v1629
      %1758 = vst.msk [vmem:[#allocation2 + $0x218] sm:$0xff] %vm690, %v1630
      %1759 = vst.msk [vmem:[#allocation2 + $0x220] sm:$0xff] %vm690, %v1631
      %1760 = vst.msk [vmem:[#allocation2 + $0x228] sm:$0xff] %vm690, %v1632
      %1761 = vst.msk [vmem:[#allocation2 + $0x230] sm:$0xff] %vm690, %v1633
      %1762 = vst.msk [vmem:[#allocation2 + $0x238] sm:$0xff] %vm690, %v1634
      %1763 = vst.msk [vmem:[#allocation2 + $0x240] sm:$0xff] %vm690, %v1635
      %1764 = vst.msk [vmem:[#allocation2 + $0x248] sm:$0xff] %vm690, %v1636
      %1765 = vst.msk [vmem:[#allocation2 + $0x250] sm:$0xff] %vm690, %v1637
      %1766 = vst.msk [vmem:[#allocation2 + $0x258] sm:$0xff] %vm690, %v1638
      %1767 = vst.msk [vmem:[#allocation2 + $0x260] sm:$0xff] %vm690, %v1639
      %1768 = vst.msk [vmem:[#allocation2 + $0x268] sm:$0xff] %vm690, %v1640
      %1769 = vst.msk [vmem:[#allocation2 + $0x270] sm:$0xff] %vm690, %v1641
      %1770 = vst.msk [vmem:[#allocation2 + $0x278] sm:$0xff] %vm690, %v1642
      %1771 = vst.msk [vmem:[#allocation2 + $0x280] sm:$0xff] %vm690, %v1643
      %1772 = vst.msk [vmem:[#allocation2 + $0x288] sm:$0xff] %vm690, %v1644
      %1773 = vst.msk [vmem:[#allocation2 + $0x290] sm:$0xff] %vm690, %v1645
      %1774 = vst.msk [vmem:[#allocation2 + $0x298] sm:$0xff] %vm690, %v1646
      %1775 = vst.msk [vmem:[#allocation2 + $0x2a0] sm:$0xff] %vm690, %v1647
      %1776 = vst.msk [vmem:[#allocation2 + $0x2a8] sm:$0xff] %vm690, %v1648
      %1777 = vst.msk [vmem:[#allocation2 + $0x2b0] sm:$0xff] %vm690, %v1649
      %1778 = vst.msk [vmem:[#allocation2 + $0x2b8] sm:$0xff] %vm690, %v1650
      %1779 = vst.msk [vmem:[#allocation2 + $0x2c0] sm:$0xff] %vm690, %v1651
      %1780 = vst.msk [vmem:[#allocation2 + $0x2c8] sm:$0xff] %vm690, %v1652
      %1781 = vst.msk [vmem:[#allocation2 + $0x2d0] sm:$0xff] %vm690, %v1653
      %1782 = vst.msk [vmem:[#allocation2 + $0x2d8] sm:$0xff] %vm690, %v1654
      %1783 = vst.msk [vmem:[#allocation2 + $0x2e0] sm:$0xff] %vm690, %v1655
      %1784 = vst.msk [vmem:[#allocation2 + $0x2e8] sm:$0xff] %vm690, %v1656
      %1785 = vst.msk [vmem:[#allocation2 + $0x2f0] sm:$0xff] %vm690, %v1657
      %1786 = vst.msk [vmem:[#allocation2 + $0x2f8] sm:$0xff] %vm690, %v1658
      %1787 = vst.msk [vmem:[#allocation2 + $0x300] sm:$0xff] %vm690, %v1659
      %1788 = vst.msk [vmem:[#allocation2 + $0x308] sm:$0xff] %vm690, %v1660
      %1789 = vst.msk [vmem:[#allocation2 + $0x310] sm:$0xff] %vm690, %v1661
      %1790 = vst.msk [vmem:[#allocation2 + $0x318] sm:$0xff] %vm690, %v1662
      %1791 = vst.msk [vmem:[#allocation2 + $0x320] sm:$0xff] %vm690, %v1663
      %1792 = vst.msk [vmem:[#allocation2 + $0x328] sm:$0xff] %vm690, %v1664
      %1793 = vst.msk [vmem:[#allocation2 + $0x330] sm:$0xff] %vm690, %v1665
      %1794 = vst.msk [vmem:[#allocation2 + $0x338] sm:$0xff] %vm690, %v1666
      %1795 = vst.msk [vmem:[#allocation2 + $0x340] sm:$0xff] %vm690, %v1667
      %1796 = vst.msk [vmem:[#allocation2 + $0x348] sm:$0xff] %vm690, %v1668
      %1797 = vst.msk [vmem:[#allocation2 + $0x350] sm:$0xff] %vm690, %v1669
      %1798 = vst.msk [vmem:[#allocation2 + $0x358] sm:$0xff] %vm690, %v1670
      %1799 = vst.msk [vmem:[#allocation2 + $0x360] sm:$0xff] %vm690, %v1671
      %1800 = vst.msk [vmem:[#allocation2 + $0x368] sm:$0xff] %vm690, %v1672
      %1801 = vst.msk [vmem:[#allocation2 + $0x370] sm:$0xff] %vm690, %v1673
      %1802 = vst.msk [vmem:[#allocation2 + $0x378] sm:$0xff] %vm690, %v1674
      %1803 = vst.msk [vmem:[#allocation2 + $0x380] sm:$0xff] %vm690, %v1675
      %1804 = vst.msk [vmem:[#allocation2 + $0x388] sm:$0xff] %vm690, %v1676
      %1805 = vst.msk [vmem:[#allocation2 + $0x390] sm:$0xff] %vm690, %v1677
      %1806 = vst.msk [vmem:[#allocation2 + $0x398] sm:$0xff] %vm690, %v1678
      %1807 = vst.msk [vmem:[#allocation2 + $0x3a0] sm:$0xff] %vm690, %v1679
      %1808 = vst.msk [vmem:[#allocation2 + $0x3a8] sm:$0xff] %vm690, %v1680
      %1809 = vst.msk [vmem:[#allocation2 + $0x3b0] sm:$0xff] %vm690, %v1681
      %1810 = vst.msk [vmem:[#allocation2 + $0x3b8] sm:$0xff] %vm690, %v1682
      %1811 = vst.msk [vmem:[#allocation2 + $0x3c0] sm:$0xff] %vm690, %v1683
      %1812 = vst.msk [vmem:[#allocation2 + $0x3c8] sm:$0xff] %vm690, %v1684
      %1813 = vst.msk [vmem:[#allocation2 + $0x3d0] sm:$0xff] %vm690, %v1685
      %1814 = vst.msk [vmem:[#allocation2 + $0x3d8] sm:$0xff] %vm690, %v1686
      %1815 = vst.msk [vmem:[#allocation2 + $0x3e0] sm:$0xff] %vm690, %v1687
      %1816 = vst.msk [vmem:[#allocation2 + $0x3e8] sm:$0xff] %vm690, %v1688
      %1817 = vst.msk [vmem:[#allocation2 + $0x3f0] sm:$0xff] %vm690, %v1689
      %1818 = vst.msk [vmem:[#allocation2 + $0x3f8] sm:$0xff] %vm690, %v1690
      %v1819 = vld [vmem:[#allocation2] sm:$0xff]
      %v1820 = vld [vmem:[#allocation2 + $0x8] sm:$0xff]
      %v1821 = vld [vmem:[#allocation2 + $0x10] sm:$0xff]
      %v1822 = vld [vmem:[#allocation2 + $0x18] sm:$0xff]
      %v1823 = vld [vmem:[#allocation2 + $0x40] sm:$0xff]
      %v1824 = vld [vmem:[#allocation2 + $0x48] sm:$0xff]
      %v1825 = vld [vmem:[#allocation2 + $0x50] sm:$0xff]
      %v1826 = vld [vmem:[#allocation2 + $0x58] sm:$0xff]
      %v1827 = vld [vmem:[#allocation2 + $0x80] sm:$0xff]
      %v1828 = vld [vmem:[#allocation2 + $0x88] sm:$0xff]
      %v1829 = vld [vmem:[#allocation2 + $0x90] sm:$0xff]
      %v1830 = vld [vmem:[#allocation2 + $0x98] sm:$0xff]
      %v1831 = vld [vmem:[#allocation2 + $0xc0] sm:$0xff]
      %v1832 = vld [vmem:[#allocation2 + $0xc8] sm:$0xff]
      %v1833 = vld [vmem:[#allocation2 + $0xd0] sm:$0xff]
      %v1834 = vld [vmem:[#allocation2 + $0xd8] sm:$0xff]
      %v1835 = vld [vmem:[#allocation2 + $0x100] sm:$0xff]
      %v1836 = vld [vmem:[#allocation2 + $0x108] sm:$0xff]
      %v1837 = vld [vmem:[#allocation2 + $0x110] sm:$0xff]
      %v1838 = vld [vmem:[#allocation2 + $0x118] sm:$0xff]
      %v1839 = vld [vmem:[#allocation2 + $0x140] sm:$0xff]
      %v1840 = vld [vmem:[#allocation2 + $0x148] sm:$0xff]
      %v1841 = vld [vmem:[#allocation2 + $0x150] sm:$0xff]
      %v1842 = vld [vmem:[#allocation2 + $0x158] sm:$0xff]
      %v1843 = vld [vmem:[#allocation2 + $0x180] sm:$0xff]
      %v1844 = vld [vmem:[#allocation2 + $0x188] sm:$0xff]
      %v1845 = vld [vmem:[#allocation2 + $0x190] sm:$0xff]
      %v1846 = vld [vmem:[#allocation2 + $0x198] sm:$0xff]
      %v1847 = vld [vmem:[#allocation2 + $0x1c0] sm:$0xff]
      %v1848 = vld [vmem:[#allocation2 + $0x1c8] sm:$0xff]
      %v1849 = vld [vmem:[#allocation2 + $0x1d0] sm:$0xff]
      %v1850 = vld [vmem:[#allocation2 + $0x1d8] sm:$0xff]
      %v1851 = vld [vmem:[#allocation2 + $0x200] sm:$0xff]
      %v1852 = vld [vmem:[#allocation2 + $0x208] sm:$0xff]
      %v1853 = vld [vmem:[#allocation2 + $0x210] sm:$0xff]
      %v1854 = vld [vmem:[#allocation2 + $0x218] sm:$0xff]
      %v1855 = vld [vmem:[#allocation2 + $0x240] sm:$0xff]
      %v1856 = vld [vmem:[#allocation2 + $0x248] sm:$0xff]
      %v1857 = vld [vmem:[#allocation2 + $0x250] sm:$0xff]
      %v1858 = vld [vmem:[#allocation2 + $0x258] sm:$0xff]
      %v1859 = vld [vmem:[#allocation2 + $0x280] sm:$0xff]
      %v1860 = vld [vmem:[#allocation2 + $0x288] sm:$0xff]
      %v1861 = vld [vmem:[#allocation2 + $0x290] sm:$0xff]
      %v1862 = vld [vmem:[#allocation2 + $0x298] sm:$0xff]
      %v1863 = vld [vmem:[#allocation2 + $0x2c0] sm:$0xff]
      %v1864 = vld [vmem:[#allocation2 + $0x2c8] sm:$0xff]
      %v1865 = vld [vmem:[#allocation2 + $0x2d0] sm:$0xff]
      %v1866 = vld [vmem:[#allocation2 + $0x2d8] sm:$0xff]
      %v1867 = vld [vmem:[#allocation2 + $0x300] sm:$0xff]
      %v1868 = vld [vmem:[#allocation2 + $0x308] sm:$0xff]
      %v1869 = vld [vmem:[#allocation2 + $0x310] sm:$0xff]
      %v1870 = vld [vmem:[#allocation2 + $0x318] sm:$0xff]
      %v1871 = vld [vmem:[#allocation2 + $0x340] sm:$0xff]
      %v1872 = vld [vmem:[#allocation2 + $0x348] sm:$0xff]
      %v1873 = vld [vmem:[#allocation2 + $0x350] sm:$0xff]
      %v1874 = vld [vmem:[#allocation2 + $0x358] sm:$0xff]
      %v1875 = vld [vmem:[#allocation2 + $0x380] sm:$0xff]
      %v1876 = vld [vmem:[#allocation2 + $0x388] sm:$0xff]
      %v1877 = vld [vmem:[#allocation2 + $0x390] sm:$0xff]
      %v1878 = vld [vmem:[#allocation2 + $0x398] sm:$0xff]
      %v1879 = vld [vmem:[#allocation2 + $0x3c0] sm:$0xff]
      %v1880 = vld [vmem:[#allocation2 + $0x3c8] sm:$0xff]
      %v1881 = vld [vmem:[#allocation2 + $0x3d0] sm:$0xff]
      %v1882 = vld [vmem:[#allocation2 + $0x3d8] sm:$0xff]
      %s1883 = scalar_lea.vmem [#allocation2], 32
      %v1884 = vld [vmem:[%s1883] sm:$0xff]
      %v1885 = vld [vmem:[%s1883 + $0x8] sm:$0xff]
      %v1886 = vld [vmem:[%s1883 + $0x10] sm:$0xff]
      %v1887 = vld [vmem:[%s1883 + $0x18] sm:$0xff]
      %v1888 = vld [vmem:[%s1883 + $0x40] sm:$0xff]
      %v1889 = vld [vmem:[%s1883 + $0x48] sm:$0xff]
      %v1890 = vld [vmem:[%s1883 + $0x50] sm:$0xff]
      %v1891 = vld [vmem:[%s1883 + $0x58] sm:$0xff]
      %v1892 = vld [vmem:[%s1883 + $0x80] sm:$0xff]
      %v1893 = vld [vmem:[%s1883 + $0x88] sm:$0xff]
      %v1894 = vld [vmem:[%s1883 + $0x90] sm:$0xff]
      %v1895 = vld [vmem:[%s1883 + $0x98] sm:$0xff]
      %v1896 = vld [vmem:[%s1883 + $0xc0] sm:$0xff]
      %v1897 = vld [vmem:[%s1883 + $0xc8] sm:$0xff]
      %v1898 = vld [vmem:[%s1883 + $0xd0] sm:$0xff]
      %v1899 = vld [vmem:[%s1883 + $0xd8] sm:$0xff]
      %v1900 = vld [vmem:[%s1883 + $0x100] sm:$0xff]
      %v1901 = vld [vmem:[%s1883 + $0x108] sm:$0xff]
      %v1902 = vld [vmem:[%s1883 + $0x110] sm:$0xff]
      %v1903 = vld [vmem:[%s1883 + $0x118] sm:$0xff]
      %v1904 = vld [vmem:[%s1883 + $0x140] sm:$0xff]
      %v1905 = vld [vmem:[%s1883 + $0x148] sm:$0xff]
      %v1906 = vld [vmem:[%s1883 + $0x150] sm:$0xff]
      %v1907 = vld [vmem:[%s1883 + $0x158] sm:$0xff]
      %v1908 = vld [vmem:[%s1883 + $0x180] sm:$0xff]
      %v1909 = vld [vmem:[%s1883 + $0x188] sm:$0xff]
      %v1910 = vld [vmem:[%s1883 + $0x190] sm:$0xff]
      %v1911 = vld [vmem:[%s1883 + $0x198] sm:$0xff]
      %v1912 = vld [vmem:[%s1883 + $0x1c0] sm:$0xff]
      %v1913 = vld [vmem:[%s1883 + $0x1c8] sm:$0xff]
      %v1914 = vld [vmem:[%s1883 + $0x1d0] sm:$0xff]
      %v1915 = vld [vmem:[%s1883 + $0x1d8] sm:$0xff]
      %v1916 = vld [vmem:[%s1883 + $0x200] sm:$0xff]
      %v1917 = vld [vmem:[%s1883 + $0x208] sm:$0xff]
      %v1918 = vld [vmem:[%s1883 + $0x210] sm:$0xff]
      %v1919 = vld [vmem:[%s1883 + $0x218] sm:$0xff]
      %v1920 = vld [vmem:[%s1883 + $0x240] sm:$0xff]
      %v1921 = vld [vmem:[%s1883 + $0x248] sm:$0xff]
      %v1922 = vld [vmem:[%s1883 + $0x250] sm:$0xff]
      %v1923 = vld [vmem:[%s1883 + $0x258] sm:$0xff]
      %v1924 = vld [vmem:[%s1883 + $0x280] sm:$0xff]
      %v1925 = vld [vmem:[%s1883 + $0x288] sm:$0xff]
      %v1926 = vld [vmem:[%s1883 + $0x290] sm:$0xff]
      %v1927 = vld [vmem:[%s1883 + $0x298] sm:$0xff]
      %v1928 = vld [vmem:[%s1883 + $0x2c0] sm:$0xff]
      %v1929 = vld [vmem:[%s1883 + $0x2c8] sm:$0xff]
      %v1930 = vld [vmem:[%s1883 + $0x2d0] sm:$0xff]
      %v1931 = vld [vmem:[%s1883 + $0x2d8] sm:$0xff]
      %v1932 = vld [vmem:[%s1883 + $0x300] sm:$0xff]
      %v1933 = vld [vmem:[%s1883 + $0x308] sm:$0xff]
      %v1934 = vld [vmem:[%s1883 + $0x310] sm:$0xff]
      %v1935 = vld [vmem:[%s1883 + $0x318] sm:$0xff]
      %v1936 = vld [vmem:[%s1883 + $0x340] sm:$0xff]
      %v1937 = vld [vmem:[%s1883 + $0x348] sm:$0xff]
      %v1938 = vld [vmem:[%s1883 + $0x350] sm:$0xff]
      %v1939 = vld [vmem:[%s1883 + $0x358] sm:$0xff]
      %v1940 = vld [vmem:[%s1883 + $0x380] sm:$0xff]
      %v1941 = vld [vmem:[%s1883 + $0x388] sm:$0xff]
      %v1942 = vld [vmem:[%s1883 + $0x390] sm:$0xff]
      %v1943 = vld [vmem:[%s1883 + $0x398] sm:$0xff]
      %v1944 = vld [vmem:[%s1883 + $0x3c0] sm:$0xff]
      %v1945 = vld [vmem:[%s1883 + $0x3c8] sm:$0xff]
      %v1946 = vld [vmem:[%s1883 + $0x3d0] sm:$0xff]
      %v1947 = vld [vmem:[%s1883 + $0x3d8] sm:$0xff]
      %v1948 = vmax.f32 %v1819, %v1884
      %v1949 = vmax.f32 %v1820, %v1885
      %v1950 = vmax.f32 %v1821, %v1886
      %v1951 = vmax.f32 %v1822, %v1887
      %v1952 = vmax.f32 %v1823, %v1888
      %v1953 = vmax.f32 %v1824, %v1889
      %v1954 = vmax.f32 %v1825, %v1890
      %v1955 = vmax.f32 %v1826, %v1891
      %v1956 = vmax.f32 %v1827, %v1892
      %v1957 = vmax.f32 %v1828, %v1893
      %v1958 = vmax.f32 %v1829, %v1894
      %v1959 = vmax.f32 %v1830, %v1895
      %v1960 = vmax.f32 %v1831, %v1896
      %v1961 = vmax.f32 %v1832, %v1897
      %v1962 = vmax.f32 %v1833, %v1898
      %v1963 = vmax.f32 %v1834, %v1899
      %v1964 = vmax.f32 %v1835, %v1900
      %v1965 = vmax.f32 %v1836, %v1901
      %v1966 = vmax.f32 %v1837, %v1902
      %v1967 = vmax.f32 %v1838, %v1903
      %v1968 = vmax.f32 %v1839, %v1904
      %v1969 = vmax.f32 %v1840, %v1905
      %v1970 = vmax.f32 %v1841, %v1906
      %v1971 = vmax.f32 %v1842, %v1907
      %v1972 = vmax.f32 %v1843, %v1908
      %v1973 = vmax.f32 %v1844, %v1909
      %v1974 = vmax.f32 %v1845, %v1910
      %v1975 = vmax.f32 %v1846, %v1911
      %v1976 = vmax.f32 %v1847, %v1912
      %v1977 = vmax.f32 %v1848, %v1913
      %v1978 = vmax.f32 %v1849, %v1914
      %v1979 = vmax.f32 %v1850, %v1915
      %v1980 = vmax.f32 %v1851, %v1916
      %v1981 = vmax.f32 %v1852, %v1917
      %v1982 = vmax.f32 %v1853, %v1918
      %v1983 = vmax.f32 %v1854, %v1919
      %v1984 = vmax.f32 %v1855, %v1920
      %v1985 = vmax.f32 %v1856, %v1921
      %v1986 = vmax.f32 %v1857, %v1922
      %v1987 = vmax.f32 %v1858, %v1923
      %v1988 = vmax.f32 %v1859, %v1924
      %v1989 = vmax.f32 %v1860, %v1925
      %v1990 = vmax.f32 %v1861, %v1926
      %v1991 = vmax.f32 %v1862, %v1927
      %v1992 = vmax.f32 %v1863, %v1928
      %v1993 = vmax.f32 %v1864, %v1929
      %v1994 = vmax.f32 %v1865, %v1930
      %v1995 = vmax.f32 %v1866, %v1931
      %v1996 = vmax.f32 %v1867, %v1932
      %v1997 = vmax.f32 %v1868, %v1933
      %v1998 = vmax.f32 %v1869, %v1934
      %v1999 = vmax.f32 %v1870, %v1935
      %v2000 = vmax.f32 %v1871, %v1936
      %v2001 = vmax.f32 %v1872, %v1937
      %v2002 = vmax.f32 %v1873, %v1938
      %v2003 = vmax.f32 %v1874, %v1939
      %v2004 = vmax.f32 %v1875, %v1940
      %v2005 = vmax.f32 %v1876, %v1941
      %v2006 = vmax.f32 %v1877, %v1942
      %v2007 = vmax.f32 %v1878, %v1943
      %v2008 = vmax.f32 %v1879, %v1944
      %v2009 = vmax.f32 %v1880, %v1945
      %v2010 = vmax.f32 %v1881, %v1946
      %v2011 = vmax.f32 %v1882, %v1947
      %2012 = vst.msk [vmem:[#allocation3] sm:$0xff] %vm690, %v1948
      %2013 = vst.msk [vmem:[#allocation3 + $0x8] sm:$0xff] %vm690, %v1949
      %2014 = vst.msk [vmem:[#allocation3 + $0x10] sm:$0xff] %vm690, %v1950
      %2015 = vst.msk [vmem:[#allocation3 + $0x18] sm:$0xff] %vm690, %v1951
      %2016 = vst.msk [vmem:[#allocation3 + $0x20] sm:$0xff] %vm690, %v1952
      %2017 = vst.msk [vmem:[#allocation3 + $0x28] sm:$0xff] %vm690, %v1953
      %2018 = vst.msk [vmem:[#allocation3 + $0x30] sm:$0xff] %vm690, %v1954
      %2019 = vst.msk [vmem:[#allocation3 + $0x38] sm:$0xff] %vm690, %v1955
      %2020 = vst.msk [vmem:[#allocation3 + $0x40] sm:$0xff] %vm690, %v1956
      %2021 = vst.msk [vmem:[#allocation3 + $0x48] sm:$0xff] %vm690, %v1957
      %2022 = vst.msk [vmem:[#allocation3 + $0x50] sm:$0xff] %vm690, %v1958
      %2023 = vst.msk [vmem:[#allocation3 + $0x58] sm:$0xff] %vm690, %v1959
      %2024 = vst.msk [vmem:[#allocation3 + $0x60] sm:$0xff] %vm690, %v1960
      %2025 = vst.msk [vmem:[#allocation3 + $0x68] sm:$0xff] %vm690, %v1961
      %2026 = vst.msk [vmem:[#allocation3 + $0x70] sm:$0xff] %vm690, %v1962
      %2027 = vst.msk [vmem:[#allocation3 + $0x78] sm:$0xff] %vm690, %v1963
      %2028 = vst.msk [vmem:[#allocation3 + $0x80] sm:$0xff] %vm690, %v1964
      %2029 = vst.msk [vmem:[#allocation3 + $0x88] sm:$0xff] %vm690, %v1965
      %2030 = vst.msk [vmem:[#allocation3 + $0x90] sm:$0xff] %vm690, %v1966
      %2031 = vst.msk [vmem:[#allocation3 + $0x98] sm:$0xff] %vm690, %v1967
      %2032 = vst.msk [vmem:[#allocation3 + $0xa0] sm:$0xff] %vm690, %v1968
      %2033 = vst.msk [vmem:[#allocation3 + $0xa8] sm:$0xff] %vm690, %v1969
      %2034 = vst.msk [vmem:[#allocation3 + $0xb0] sm:$0xff] %vm690, %v1970
      %2035 = vst.msk [vmem:[#allocation3 + $0xb8] sm:$0xff] %vm690, %v1971
      %2036 = vst.msk [vmem:[#allocation3 + $0xc0] sm:$0xff] %vm690, %v1972
      %2037 = vst.msk [vmem:[#allocation3 + $0xc8] sm:$0xff] %vm690, %v1973
      %2038 = vst.msk [vmem:[#allocation3 + $0xd0] sm:$0xff] %vm690, %v1974
      %2039 = vst.msk [vmem:[#allocation3 + $0xd8] sm:$0xff] %vm690, %v1975
      %2040 = vst.msk [vmem:[#allocation3 + $0xe0] sm:$0xff] %vm690, %v1976
      %2041 = vst.msk [vmem:[#allocation3 + $0xe8] sm:$0xff] %vm690, %v1977
      %2042 = vst.msk [vmem:[#allocation3 + $0xf0] sm:$0xff] %vm690, %v1978
      %2043 = vst.msk [vmem:[#allocation3 + $0xf8] sm:$0xff] %vm690, %v1979
      %2044 = vst.msk [vmem:[#allocation3 + $0x100] sm:$0xff] %vm690, %v1980
      %2045 = vst.msk [vmem:[#allocation3 + $0x108] sm:$0xff] %vm690, %v1981
      %2046 = vst.msk [vmem:[#allocation3 + $0x110] sm:$0xff] %vm690, %v1982
      %2047 = vst.msk [vmem:[#allocation3 + $0x118] sm:$0xff] %vm690, %v1983
      %2048 = vst.msk [vmem:[#allocation3 + $0x120] sm:$0xff] %vm690, %v1984
      %2049 = vst.msk [vmem:[#allocation3 + $0x128] sm:$0xff] %vm690, %v1985
      %2050 = vst.msk [vmem:[#allocation3 + $0x130] sm:$0xff] %vm690, %v1986
      %2051 = vst.msk [vmem:[#allocation3 + $0x138] sm:$0xff] %vm690, %v1987
      %2052 = vst.msk [vmem:[#allocation3 + $0x140] sm:$0xff] %vm690, %v1988
      %2053 = vst.msk [vmem:[#allocation3 + $0x148] sm:$0xff] %vm690, %v1989
      %2054 = vst.msk [vmem:[#allocation3 + $0x150] sm:$0xff] %vm690, %v1990
      %2055 = vst.msk [vmem:[#allocation3 + $0x158] sm:$0xff] %vm690, %v1991
      %2056 = vst.msk [vmem:[#allocation3 + $0x160] sm:$0xff] %vm690, %v1992
      %2057 = vst.msk [vmem:[#allocation3 + $0x168] sm:$0xff] %vm690, %v1993
      %2058 = vst.msk [vmem:[#allocation3 + $0x170] sm:$0xff] %vm690, %v1994
      %2059 = vst.msk [vmem:[#allocation3 + $0x178] sm:$0xff] %vm690, %v1995
      %2060 = vst.msk [vmem:[#allocation3 + $0x180] sm:$0xff] %vm690, %v1996
      %2061 = vst.msk [vmem:[#allocation3 + $0x188] sm:$0xff] %vm690, %v1997
      %2062 = vst.msk [vmem:[#allocation3 + $0x190] sm:$0xff] %vm690, %v1998
      %2063 = vst.msk [vmem:[#allocation3 + $0x198] sm:$0xff] %vm690, %v1999
      %2064 = vst.msk [vmem:[#allocation3 + $0x1a0] sm:$0xff] %vm690, %v2000
      %2065 = vst.msk [vmem:[#allocation3 + $0x1a8] sm:$0xff] %vm690, %v2001
      %2066 = vst.msk [vmem:[#allocation3 + $0x1b0] sm:$0xff] %vm690, %v2002
      %2067 = vst.msk [vmem:[#allocation3 + $0x1b8] sm:$0xff] %vm690, %v2003
      %2068 = vst.msk [vmem:[#allocation3 + $0x1c0] sm:$0xff] %vm690, %v2004
      %2069 = vst.msk [vmem:[#allocation3 + $0x1c8] sm:$0xff] %vm690, %v2005
      %2070 = vst.msk [vmem:[#allocation3 + $0x1d0] sm:$0xff] %vm690, %v2006
      %2071 = vst.msk [vmem:[#allocation3 + $0x1d8] sm:$0xff] %vm690, %v2007
      %2072 = vst.msk [vmem:[#allocation3 + $0x1e0] sm:$0xff] %vm690, %v2008
      %2073 = vst.msk [vmem:[#allocation3 + $0x1e8] sm:$0xff] %vm690, %v2009
      %2074 = vst.msk [vmem:[#allocation3 + $0x1f0] sm:$0xff] %vm690, %v2010
      %2075 = vst.msk [vmem:[#allocation3 + $0x1f8] sm:$0xff] %vm690, %v2011
      %v2076 = vld [vmem:[#allocation3] ss:$2 sm:$0xff]
      %s2077 = scalar_lea.vmem [#allocation3], 16
      %v2078 = vld [vmem:[%s2077] ss:$2 sm:$0xff]
      %s2079 = scalar_lea.vmem [#allocation3], 32
      %v2080 = vld [vmem:[%s2079] ss:$2 sm:$0xff]
      %s2081 = scalar_lea.vmem [#allocation3], 48
      %v2082 = vld [vmem:[%s2081] ss:$2 sm:$0xff]
      %s2083 = scalar_lea.vmem [#allocation3], 64
      %v2084 = vld [vmem:[%s2083] ss:$2 sm:$0xff]
      %s2085 = scalar_lea.vmem [#allocation3], 80
      %v2086 = vld [vmem:[%s2085] ss:$2 sm:$0xff]
      %s2087 = scalar_lea.vmem [#allocation3], 96
      %v2088 = vld [vmem:[%s2087] ss:$2 sm:$0xff]
      %s2089 = scalar_lea.vmem [#allocation3], 112
      %v2090 = vld [vmem:[%s2089] ss:$2 sm:$0xff]
      %s2091 = scalar_lea.vmem [#allocation3], 128
      %v2092 = vld [vmem:[%s2091] ss:$2 sm:$0xff]
      %s2093 = scalar_lea.vmem [#allocation3], 144
      %v2094 = vld [vmem:[%s2093] ss:$2 sm:$0xff]
      %s2095 = scalar_lea.vmem [#allocation3], 160
      %v2096 = vld [vmem:[%s2095] ss:$2 sm:$0xff]
      %s2097 = scalar_lea.vmem [#allocation3], 176
      %v2098 = vld [vmem:[%s2097] ss:$2 sm:$0xff]
      %s2099 = scalar_lea.vmem [#allocation3], 192
      %v2100 = vld [vmem:[%s2099] ss:$2 sm:$0xff]
      %s2101 = scalar_lea.vmem [#allocation3], 208
      %v2102 = vld [vmem:[%s2101] ss:$2 sm:$0xff]
      %s2103 = scalar_lea.vmem [#allocation3], 224
      %v2104 = vld [vmem:[%s2103] ss:$2 sm:$0xff]
      %s2105 = scalar_lea.vmem [#allocation3], 240
      %v2106 = vld [vmem:[%s2105] ss:$2 sm:$0xff]
      %s2107 = scalar_lea.vmem [#allocation3], 256
      %v2108 = vld [vmem:[%s2107] ss:$2 sm:$0xff]
      %s2109 = scalar_lea.vmem [#allocation3], 272
      %v2110 = vld [vmem:[%s2109] ss:$2 sm:$0xff]
      %s2111 = scalar_lea.vmem [#allocation3], 288
      %v2112 = vld [vmem:[%s2111] ss:$2 sm:$0xff]
      %s2113 = scalar_lea.vmem [#allocation3], 304
      %v2114 = vld [vmem:[%s2113] ss:$2 sm:$0xff]
      %s2115 = scalar_lea.vmem [#allocation3], 320
      %v2116 = vld [vmem:[%s2115] ss:$2 sm:$0xff]
      %s2117 = scalar_lea.vmem [#allocation3], 336
      %v2118 = vld [vmem:[%s2117] ss:$2 sm:$0xff]
      %s2119 = scalar_lea.vmem [#allocation3], 352
      %v2120 = vld [vmem:[%s2119] ss:$2 sm:$0xff]
      %s2121 = scalar_lea.vmem [#allocation3], 368
      %v2122 = vld [vmem:[%s2121] ss:$2 sm:$0xff]
      %s2123 = scalar_lea.vmem [#allocation3], 384
      %v2124 = vld [vmem:[%s2123] ss:$2 sm:$0xff]
      %s2125 = scalar_lea.vmem [#allocation3], 400
      %v2126 = vld [vmem:[%s2125] ss:$2 sm:$0xff]
      %s2127 = scalar_lea.vmem [#allocation3], 416
      %v2128 = vld [vmem:[%s2127] ss:$2 sm:$0xff]
      %s2129 = scalar_lea.vmem [#allocation3], 432
      %v2130 = vld [vmem:[%s2129] ss:$2 sm:$0xff]
      %s2131 = scalar_lea.vmem [#allocation3], 448
      %v2132 = vld [vmem:[%s2131] ss:$2 sm:$0xff]
      %s2133 = scalar_lea.vmem [#allocation3], 464
      %v2134 = vld [vmem:[%s2133] ss:$2 sm:$0xff]
      %s2135 = scalar_lea.vmem [#allocation3], 480
      %v2136 = vld [vmem:[%s2135] ss:$2 sm:$0xff]
      %s2137 = scalar_lea.vmem [#allocation3], 496
      %v2138 = vld [vmem:[%s2137] ss:$2 sm:$0xff]
      %s2139 = scalar_lea.vmem [#allocation3], 1
      %v2140 = vld [vmem:[%s2139] ss:$2 sm:$0xff]
      %s2141 = scalar_lea.vmem [#allocation3], 17
      %v2142 = vld [vmem:[%s2141] ss:$2 sm:$0xff]
      %s2143 = scalar_lea.vmem [#allocation3], 33
      %v2144 = vld [vmem:[%s2143] ss:$2 sm:$0xff]
      %s2145 = scalar_lea.vmem [#allocation3], 49
      %v2146 = vld [vmem:[%s2145] ss:$2 sm:$0xff]
      %s2147 = scalar_lea.vmem [#allocation3], 65
      %v2148 = vld [vmem:[%s2147] ss:$2 sm:$0xff]
      %s2149 = scalar_lea.vmem [#allocation3], 81
      %v2150 = vld [vmem:[%s2149] ss:$2 sm:$0xff]
      %s2151 = scalar_lea.vmem [#allocation3], 97
      %v2152 = vld [vmem:[%s2151] ss:$2 sm:$0xff]
      %s2153 = scalar_lea.vmem [#allocation3], 113
      %v2154 = vld [vmem:[%s2153] ss:$2 sm:$0xff]
      %s2155 = scalar_lea.vmem [#allocation3], 129
      %v2156 = vld [vmem:[%s2155] ss:$2 sm:$0xff]
      %s2157 = scalar_lea.vmem [#allocation3], 145
      %v2158 = vld [vmem:[%s2157] ss:$2 sm:$0xff]
      %s2159 = scalar_lea.vmem [#allocation3], 161
      %v2160 = vld [vmem:[%s2159] ss:$2 sm:$0xff]
      %s2161 = scalar_lea.vmem [#allocation3], 177
      %v2162 = vld [vmem:[%s2161] ss:$2 sm:$0xff]
      %s2163 = scalar_lea.vmem [#allocation3], 193
      %v2164 = vld [vmem:[%s2163] ss:$2 sm:$0xff]
      %s2165 = scalar_lea.vmem [#allocation3], 209
      %v2166 = vld [vmem:[%s2165] ss:$2 sm:$0xff]
      %s2167 = scalar_lea.vmem [#allocation3], 225
      %v2168 = vld [vmem:[%s2167] ss:$2 sm:$0xff]
      %s2169 = scalar_lea.vmem [#allocation3], 241
      %v2170 = vld [vmem:[%s2169] ss:$2 sm:$0xff]
      %s2171 = scalar_lea.vmem [#allocation3], 257
      %v2172 = vld [vmem:[%s2171] ss:$2 sm:$0xff]
      %s2173 = scalar_lea.vmem [#allocation3], 273
      %v2174 = vld [vmem:[%s2173] ss:$2 sm:$0xff]
      %s2175 = scalar_lea.vmem [#allocation3], 289
      %v2176 = vld [vmem:[%s2175] ss:$2 sm:$0xff]
      %s2177 = scalar_lea.vmem [#allocation3], 305
      %v2178 = vld [vmem:[%s2177] ss:$2 sm:$0xff]
      %s2179 = scalar_lea.vmem [#allocation3], 321
      %v2180 = vld [vmem:[%s2179] ss:$2 sm:$0xff]
      %s2181 = scalar_lea.vmem [#allocation3], 337
      %v2182 = vld [vmem:[%s2181] ss:$2 sm:$0xff]
      %s2183 = scalar_lea.vmem [#allocation3], 353
      %v2184 = vld [vmem:[%s2183] ss:$2 sm:$0xff]
      %s2185 = scalar_lea.vmem [#allocation3], 369
      %v2186 = vld [vmem:[%s2185] ss:$2 sm:$0xff]
      %s2187 = scalar_lea.vmem [#allocation3], 385
      %v2188 = vld [vmem:[%s2187] ss:$2 sm:$0xff]
      %s2189 = scalar_lea.vmem [#allocation3], 401
      %v2190 = vld [vmem:[%s2189] ss:$2 sm:$0xff]
      %s2191 = scalar_lea.vmem [#allocation3], 417
      %v2192 = vld [vmem:[%s2191] ss:$2 sm:$0xff]
      %s2193 = scalar_lea.vmem [#allocation3], 433
      %v2194 = vld [vmem:[%s2193] ss:$2 sm:$0xff]
      %s2195 = scalar_lea.vmem [#allocation3], 449
      %v2196 = vld [vmem:[%s2195] ss:$2 sm:$0xff]
      %s2197 = scalar_lea.vmem [#allocation3], 465
      %v2198 = vld [vmem:[%s2197] ss:$2 sm:$0xff]
      %s2199 = scalar_lea.vmem [#allocation3], 481
      %v2200 = vld [vmem:[%s2199] ss:$2 sm:$0xff]
      %s2201 = scalar_lea.vmem [#allocation3], 497
      %v2202 = vld [vmem:[%s2201] ss:$2 sm:$0xff]
      %v2203 = vmax.f32 %v2076, %v2140
      %v2204 = vmax.f32 %v2078, %v2142
      %v2205 = vmax.f32 %v2080, %v2144
      %v2206 = vmax.f32 %v2082, %v2146
      %v2207 = vmax.f32 %v2084, %v2148
      %v2208 = vmax.f32 %v2086, %v2150
      %v2209 = vmax.f32 %v2088, %v2152
      %v2210 = vmax.f32 %v2090, %v2154
      %v2211 = vmax.f32 %v2092, %v2156
      %v2212 = vmax.f32 %v2094, %v2158
      %v2213 = vmax.f32 %v2096, %v2160
      %v2214 = vmax.f32 %v2098, %v2162
      %v2215 = vmax.f32 %v2100, %v2164
      %v2216 = vmax.f32 %v2102, %v2166
      %v2217 = vmax.f32 %v2104, %v2168
      %v2218 = vmax.f32 %v2106, %v2170
      %v2219 = vmax.f32 %v2108, %v2172
      %v2220 = vmax.f32 %v2110, %v2174
      %v2221 = vmax.f32 %v2112, %v2176
      %v2222 = vmax.f32 %v2114, %v2178
      %v2223 = vmax.f32 %v2116, %v2180
      %v2224 = vmax.f32 %v2118, %v2182
      %v2225 = vmax.f32 %v2120, %v2184
      %v2226 = vmax.f32 %v2122, %v2186
      %v2227 = vmax.f32 %v2124, %v2188
      %v2228 = vmax.f32 %v2126, %v2190
      %v2229 = vmax.f32 %v2128, %v2192
      %v2230 = vmax.f32 %v2130, %v2194
      %v2231 = vmax.f32 %v2132, %v2196
      %v2232 = vmax.f32 %v2134, %v2198
      %v2233 = vmax.f32 %v2136, %v2200
      %v2234 = vmax.f32 %v2138, %v2202
      %vm2235 = vcmask 257024
      %2236 = vst.msk [vmem:[#allocation4] sm:$0xf] %vm2235, 0
      %2237 = vst.msk [vmem:[#allocation4 + $0x4] sm:$0xf] %vm2235, 0
      %2238 = vst.msk [vmem:[#allocation4 + $0x8] sm:$0xf] %vm2235, 0
      %2239 = vst.msk [vmem:[#allocation4 + $0xc] sm:$0xf] %vm2235, 0
      %2240 = vst.msk [vmem:[#allocation4 + $0x10] sm:$0xf] %vm2235, 0
      %2241 = vst.msk [vmem:[#allocation4 + $0x14] sm:$0xf] %vm2235, 0
      %2242 = vst.msk [vmem:[#allocation4 + $0x18] sm:$0xf] %vm2235, 0
      %2243 = vst.msk [vmem:[#allocation4 + $0x1c] sm:$0xf] %vm2235, 0
      %2244 = vst.msk [vmem:[#allocation4 + $0x20] sm:$0xf] %vm2235, 0
      %2245 = vst.msk [vmem:[#allocation4 + $0x24] sm:$0xf] %vm2235, 0
      %2246 = vst.msk [vmem:[#allocation4 + $0x28] sm:$0xf] %vm2235, 0
      %2247 = vst.msk [vmem:[#allocation4 + $0x2c] sm:$0xf] %vm2235, 0
      %2248 = vst.msk [vmem:[#allocation4 + $0x30] sm:$0xf] %vm2235, 0
      %2249 = vst.msk [vmem:[#allocation4 + $0x34] sm:$0xf] %vm2235, 0
      %2250 = vst.msk [vmem:[#allocation4 + $0x38] sm:$0xf] %vm2235, 0
      %2251 = vst.msk [vmem:[#allocation4 + $0x3c] sm:$0xf] %vm2235, 0
      %2252 = vst.msk [vmem:[#allocation4 + $0x40] sm:$0xf] %vm2235, 0
      %2253 = vst.msk [vmem:[#allocation4 + $0x44] sm:$0xf] %vm2235, 0
      %2254 = vst.msk [vmem:[#allocation4 + $0x48] sm:$0xf] %vm2235, 0
      %2255 = vst.msk [vmem:[#allocation4 + $0x4c] sm:$0xf] %vm2235, 0
      %2256 = vst.msk [vmem:[#allocation4 + $0x50] sm:$0xf] %vm2235, 0
      %2257 = vst.msk [vmem:[#allocation4 + $0x54] sm:$0xf] %vm2235, 0
      %2258 = vst.msk [vmem:[#allocation4 + $0x58] sm:$0xf] %vm2235, 0
      %2259 = vst.msk [vmem:[#allocation4 + $0x5c] sm:$0xf] %vm2235, 0
      %2260 = vst.msk [vmem:[#allocation4 + $0x60] sm:$0xf] %vm2235, 0
      %2261 = vst.msk [vmem:[#allocation4 + $0x64] sm:$0xf] %vm2235, 0
      %2262 = vst.msk [vmem:[#allocation4 + $0x68] sm:$0xf] %vm2235, 0
      %2263 = vst.msk [vmem:[#allocation4 + $0x6c] sm:$0xf] %vm2235, 0
      %2264 = vst.msk [vmem:[#allocation4 + $0x70] sm:$0xf] %vm2235, 0
      %2265 = vst.msk [vmem:[#allocation4 + $0x74] sm:$0xf] %vm2235, 0
      %2266 = vst.msk [vmem:[#allocation4 + $0x78] sm:$0xf] %vm2235, 0
      %2267 = vst.msk [vmem:[#allocation4 + $0x7c] sm:$0xf] %vm2235, 0
      %2268 = vst.msk [vmem:[#allocation4 + $0x80] sm:$0xf] %vm2235, 0
      %2269 = vst.msk [vmem:[#allocation4 + $0x84] sm:$0xf] %vm2235, 0
      %2270 = vst.msk [vmem:[#allocation4 + $0x88] sm:$0xf] %vm2235, 0
      %2271 = vst.msk [vmem:[#allocation4 + $0x8c] sm:$0xf] %vm2235, 0
      %2272 = vst.msk [vmem:[#allocation4 + $0x90] sm:$0xf] %vm2235, 0
      %2273 = vst.msk [vmem:[#allocation4 + $0x94] sm:$0xf] %vm2235, 0
      %2274 = vst.msk [vmem:[#allocation4 + $0x98] sm:$0xf] %vm2235, 0
      %2275 = vst.msk [vmem:[#allocation4 + $0x9c] sm:$0xf] %vm2235, 0
      %2276 = vst.msk [vmem:[#allocation4 + $0xa0] sm:$0xf] %vm2235, 0
      %2277 = vst.msk [vmem:[#allocation4 + $0xa4] sm:$0xf] %vm2235, 0
      %2278 = vst.msk [vmem:[#allocation4 + $0xa8] sm:$0xf] %vm2235, 0
      %2279 = vst.msk [vmem:[#allocation4 + $0xac] sm:$0xf] %vm2235, 0
      %2280 = vst.msk [vmem:[#allocation4 + $0xb0] sm:$0xf] %vm2235, 0
      %2281 = vst.msk [vmem:[#allocation4 + $0xb4] sm:$0xf] %vm2235, 0
      %2282 = vst.msk [vmem:[#allocation4 + $0xb8] sm:$0xf] %vm2235, 0
      %2283 = vst.msk [vmem:[#allocation4 + $0xbc] sm:$0xf] %vm2235, 0
      %2284 = vst.msk [vmem:[#allocation4 + $0xc0] sm:$0xf] %vm2235, 0
      %2285 = vst.msk [vmem:[#allocation4 + $0xc4] sm:$0xf] %vm2235, 0
      %2286 = vst.msk [vmem:[#allocation4 + $0xc8] sm:$0xf] %vm2235, 0
      %2287 = vst.msk [vmem:[#allocation4 + $0xcc] sm:$0xf] %vm2235, 0
      %2288 = vst.msk [vmem:[#allocation4 + $0xd0] sm:$0xf] %vm2235, 0
      %2289 = vst.msk [vmem:[#allocation4 + $0xd4] sm:$0xf] %vm2235, 0
      %2290 = vst.msk [vmem:[#allocation4 + $0xd8] sm:$0xf] %vm2235, 0
      %2291 = vst.msk [vmem:[#allocation4 + $0xdc] sm:$0xf] %vm2235, 0
      %2292 = vst.msk [vmem:[#allocation4 + $0xe0] sm:$0xf] %vm2235, 0
      %2293 = vst.msk [vmem:[#allocation4 + $0xe4] sm:$0xf] %vm2235, 0
      %2294 = vst.msk [vmem:[#allocation4 + $0xe8] sm:$0xf] %vm2235, 0
      %2295 = vst.msk [vmem:[#allocation4 + $0xec] sm:$0xf] %vm2235, 0
      %2296 = vst.msk [vmem:[#allocation4 + $0xf0] sm:$0xf] %vm2235, 0
      %2297 = vst.msk [vmem:[#allocation4 + $0xf4] sm:$0xf] %vm2235, 0
      %2298 = vst.msk [vmem:[#allocation4 + $0xf8] sm:$0xf] %vm2235, 0
      %2299 = vst.msk [vmem:[#allocation4 + $0xfc] sm:$0xf] %vm2235, 0
      %2300 = vst.msk [vmem:[#allocation4 + $0x100] sm:$0xf] %vm2235, 0
      %2301 = vst.msk [vmem:[#allocation4 + $0x104] sm:$0xf] %vm2235, 0
      %2302 = vst.msk [vmem:[#allocation4 + $0x108] sm:$0xf] %vm2235, 0
      %2303 = vst.msk [vmem:[#allocation4 + $0x10c] sm:$0xf] %vm2235, 0
      %2304 = vst.msk [vmem:[#allocation4 + $0x110] sm:$0xf] %vm2235, 0
      %2305 = vst.msk [vmem:[#allocation4 + $0x114] sm:$0xf] %vm2235, 0
      %2306 = vst.msk [vmem:[#allocation4 + $0x118] sm:$0xf] %vm2235, 0
      %2307 = vst.msk [vmem:[#allocation4 + $0x11c] sm:$0xf] %vm2235, 0
      %v2308 = vpack.c.bf16 %v2204, %v2203
      %v2309 = vpack.c.bf16 %v2206, %v2205
      %v2310 = vpack.c.bf16 %v2208, %v2207
      %v2311 = vpack.c.bf16 %v2210, %v2209
      %v2312 = vpack.c.bf16 %v2212, %v2211
      %v2313 = vpack.c.bf16 %v2214, %v2213
      %v2314 = vpack.c.bf16 %v2216, %v2215
      %v2315 = vpack.c.bf16 %v2218, %v2217
      %v2316 = vpack.c.bf16 %v2220, %v2219
      %v2317 = vpack.c.bf16 %v2222, %v2221
      %v2318 = vpack.c.bf16 %v2224, %v2223
      %v2319 = vpack.c.bf16 %v2226, %v2225
      %v2320 = vpack.c.bf16 %v2228, %v2227
      %v2321 = vpack.c.bf16 %v2230, %v2229
      %v2322 = vpack.c.bf16 %v2232, %v2231
      %v2323 = vpack.c.bf16 %v2234, %v2233
      %v2340 = vunpack.c.l.b16 %v2308
      %v2341 = vunpack.c.h.b16 %v2308
      %v2342 = vunpack.c.l.b16 %v2309
      %v2343 = vunpack.c.h.b16 %v2309
      %v2344 = vunpack.c.l.b16 %v2310
      %v2345 = vunpack.c.h.b16 %v2310
      %v2346 = vunpack.c.l.b16 %v2311
      %v2347 = vunpack.c.h.b16 %v2311
      %v2348 = vunpack.c.l.b16 %v2312
      %v2349 = vunpack.c.h.b16 %v2312
      %v2350 = vunpack.c.l.b16 %v2313
      %v2351 = vunpack.c.h.b16 %v2313
      %v2352 = vunpack.c.l.b16 %v2314
      %v2353 = vunpack.c.h.b16 %v2314
      %v2354 = vunpack.c.l.b16 %v2315
      %v2355 = vunpack.c.h.b16 %v2315
      %v2356 = vunpack.c.l.b16 %v2316
      %v2357 = vunpack.c.h.b16 %v2316
      %v2358 = vunpack.c.l.b16 %v2317
      %v2359 = vunpack.c.h.b16 %v2317
      %v2360 = vunpack.c.l.b16 %v2318
      %v2361 = vunpack.c.h.b16 %v2318
      %v2362 = vunpack.c.l.b16 %v2319
      %v2363 = vunpack.c.h.b16 %v2319
      %v2364 = vunpack.c.l.b16 %v2320
      %v2365 = vunpack.c.h.b16 %v2320
      %v2366 = vunpack.c.l.b16 %v2321
      %v2367 = vunpack.c.h.b16 %v2321
      %v2368 = vunpack.c.l.b16 %v2322
      %v2369 = vunpack.c.h.b16 %v2322
      %v2370 = vunpack.c.l.b16 %v2323
      %v2371 = vunpack.c.h.b16 %v2323
      %v2372 = vpack.c.b16 %v2340, %v2340
      %v2373 = vpack.c.b16 %v2341, %v2341
      %v2374 = vpack.c.b16 %v2342, %v2342
      %v2375 = vpack.c.b16 %v2343, %v2343
      %v2376 = vpack.c.b16 %v2344, %v2344
      %v2377 = vpack.c.b16 %v2345, %v2345
      %v2378 = vpack.c.b16 %v2346, %v2346
      %v2379 = vpack.c.b16 %v2347, %v2347
      %v2380 = vpack.c.b16 %v2348, %v2348
      %v2381 = vpack.c.b16 %v2349, %v2349
      %v2382 = vpack.c.b16 %v2350, %v2350
      %v2383 = vpack.c.b16 %v2351, %v2351
      %v2384 = vpack.c.b16 %v2352, %v2352
      %v2385 = vpack.c.b16 %v2353, %v2353
      %v2386 = vpack.c.b16 %v2354, %v2354
      %v2387 = vpack.c.b16 %v2355, %v2355
      %v2388 = vpack.c.b16 %v2356, %v2356
      %v2389 = vpack.c.b16 %v2357, %v2357
      %v2390 = vpack.c.b16 %v2358, %v2358
      %v2391 = vpack.c.b16 %v2359, %v2359
      %v2392 = vpack.c.b16 %v2360, %v2360
      %v2393 = vpack.c.b16 %v2361, %v2361
      %v2394 = vpack.c.b16 %v2362, %v2362
      %v2395 = vpack.c.b16 %v2363, %v2363
      %v2396 = vpack.c.b16 %v2364, %v2364
      %v2397 = vpack.c.b16 %v2365, %v2365
      %v2398 = vpack.c.b16 %v2366, %v2366
      %v2399 = vpack.c.b16 %v2367, %v2367
      %v2400 = vpack.c.b16 %v2368, %v2368
      %v2401 = vpack.c.b16 %v2369, %v2369
      %v2402 = vpack.c.b16 %v2370, %v2370
      %v2403 = vpack.c.b16 %v2371, %v2371
      %s2436 = scalar_lea.vmem [#allocation4], 16
      %2437 = vst.msk [vmem:[%s2436 + $0x4] sm:$0xf] %vm2235, %v2372
      %2438 = vst.msk [vmem:[%s2436 + $0x8] sm:$0xf] %vm2235, %v2373
      %2439 = vst.msk [vmem:[%s2436 + $0x14] sm:$0xf] %vm2235, %v2374
      %2440 = vst.msk [vmem:[%s2436 + $0x18] sm:$0xf] %vm2235, %v2375
      %2441 = vst.msk [vmem:[%s2436 + $0x24] sm:$0xf] %vm2235, %v2376
      %2442 = vst.msk [vmem:[%s2436 + $0x28] sm:$0xf] %vm2235, %v2377
      %2443 = vst.msk [vmem:[%s2436 + $0x34] sm:$0xf] %vm2235, %v2378
      %2444 = vst.msk [vmem:[%s2436 + $0x38] sm:$0xf] %vm2235, %v2379
      %2445 = vst.msk [vmem:[%s2436 + $0x44] sm:$0xf] %vm2235, %v2380
      %2446 = vst.msk [vmem:[%s2436 + $0x48] sm:$0xf] %vm2235, %v2381
      %2447 = vst.msk [vmem:[%s2436 + $0x54] sm:$0xf] %vm2235, %v2382
      %2448 = vst.msk [vmem:[%s2436 + $0x58] sm:$0xf] %vm2235, %v2383
      %2449 = vst.msk [vmem:[%s2436 + $0x64] sm:$0xf] %vm2235, %v2384
      %2450 = vst.msk [vmem:[%s2436 + $0x68] sm:$0xf] %vm2235, %v2385
      %2451 = vst.msk [vmem:[%s2436 + $0x74] sm:$0xf] %vm2235, %v2386
      %2452 = vst.msk [vmem:[%s2436 + $0x78] sm:$0xf] %vm2235, %v2387
      %2453 = vst.msk [vmem:[%s2436 + $0x84] sm:$0xf] %vm2235, %v2388
      %2454 = vst.msk [vmem:[%s2436 + $0x88] sm:$0xf] %vm2235, %v2389
      %2455 = vst.msk [vmem:[%s2436 + $0x94] sm:$0xf] %vm2235, %v2390
      %2456 = vst.msk [vmem:[%s2436 + $0x98] sm:$0xf] %vm2235, %v2391
      %2457 = vst.msk [vmem:[%s2436 + $0xa4] sm:$0xf] %vm2235, %v2392
      %2458 = vst.msk [vmem:[%s2436 + $0xa8] sm:$0xf] %vm2235, %v2393
      %2459 = vst.msk [vmem:[%s2436 + $0xb4] sm:$0xf] %vm2235, %v2394
      %2460 = vst.msk [vmem:[%s2436 + $0xb8] sm:$0xf] %vm2235, %v2395
      %2461 = vst.msk [vmem:[%s2436 + $0xc4] sm:$0xf] %vm2235, %v2396
      %2462 = vst.msk [vmem:[%s2436 + $0xc8] sm:$0xf] %vm2235, %v2397
      %2463 = vst.msk [vmem:[%s2436 + $0xd4] sm:$0xf] %vm2235, %v2398
      %2464 = vst.msk [vmem:[%s2436 + $0xd8] sm:$0xf] %vm2235, %v2399
      %2465 = vst.msk [vmem:[%s2436 + $0xe4] sm:$0xf] %vm2235, %v2400
      %2466 = vst.msk [vmem:[%s2436 + $0xe8] sm:$0xf] %vm2235, %v2401
      %2467 = vst.msk [vmem:[%s2436 + $0xf4] sm:$0xf] %vm2235, %v2402
      %2468 = vst.msk [vmem:[%s2436 + $0xf8] sm:$0xf] %vm2235, %v2403
      %v2469 = vld [vmem:[#allocation4] sm:$0x8]
      %v2470 = vld [vmem:[#allocation4 + $0x4] sm:$0xf]
      %v2471 = vld [vmem:[#allocation4 + $0x8] sm:$0xf]
      %v2472 = vld [vmem:[#allocation4 + $0x10] sm:$0x8]
      %v2473 = vld [vmem:[#allocation4 + $0x14] sm:$0xf]
      %v2474 = vld [vmem:[#allocation4 + $0x18] sm:$0xf]
      %v2475 = vld [vmem:[#allocation4 + $0x20] sm:$0x8]
      %v2476 = vld [vmem:[#allocation4 + $0x24] sm:$0xf]
      %v2477 = vld [vmem:[#allocation4 + $0x28] sm:$0xf]
      %v2478 = vld [vmem:[#allocation4 + $0x30] sm:$0x8]
      %v2479 = vld [vmem:[#allocation4 + $0x34] sm:$0xf]
      %v2480 = vld [vmem:[#allocation4 + $0x38] sm:$0xf]
      %v2481 = vld [vmem:[#allocation4 + $0x40] sm:$0x8]
      %v2482 = vld [vmem:[#allocation4 + $0x44] sm:$0xf]
      %v2483 = vld [vmem:[#allocation4 + $0x48] sm:$0xf]
      %v2484 = vld [vmem:[#allocation4 + $0x50] sm:$0x8]
      %v2485 = vld [vmem:[#allocation4 + $0x54] sm:$0xf]
      %v2486 = vld [vmem:[#allocation4 + $0x58] sm:$0xf]
      %v2487 = vld [vmem:[#allocation4 + $0x60] sm:$0x8]
      %v2488 = vld [vmem:[#allocation4 + $0x64] sm:$0xf]
      %v2489 = vld [vmem:[#allocation4 + $0x68] sm:$0xf]
      %v2490 = vld [vmem:[#allocation4 + $0x70] sm:$0x8]
      %v2491 = vld [vmem:[#allocation4 + $0x74] sm:$0xf]
      %v2492 = vld [vmem:[#allocation4 + $0x78] sm:$0xf]
      %v2493 = vld [vmem:[#allocation4 + $0x80] sm:$0x8]
      %v2494 = vld [vmem:[#allocation4 + $0x84] sm:$0xf]
      %v2495 = vld [vmem:[#allocation4 + $0x88] sm:$0xf]
      %v2496 = vld [vmem:[#allocation4 + $0x90] sm:$0x8]
      %v2497 = vld [vmem:[#allocation4 + $0x94] sm:$0xf]
      %v2498 = vld [vmem:[#allocation4 + $0x98] sm:$0xf]
      %v2499 = vld [vmem:[#allocation4 + $0xa0] sm:$0x8]
      %v2500 = vld [vmem:[#allocation4 + $0xa4] sm:$0xf]
      %v2501 = vld [vmem:[#allocation4 + $0xa8] sm:$0xf]
      %v2502 = vld [vmem:[#allocation4 + $0xb0] sm:$0x8]
      %v2503 = vld [vmem:[#allocation4 + $0xb4] sm:$0xf]
      %v2504 = vld [vmem:[#allocation4 + $0xb8] sm:$0xf]
      %v2505 = vld [vmem:[#allocation4 + $0xc0] sm:$0x8]
      %v2506 = vld [vmem:[#allocation4 + $0xc4] sm:$0xf]
      %v2507 = vld [vmem:[#allocation4 + $0xc8] sm:$0xf]
      %v2508 = vld [vmem:[#allocation4 + $0xd0] sm:$0x8]
      %v2509 = vld [vmem:[#allocation4 + $0xd4] sm:$0xf]
      %v2510 = vld [vmem:[#allocation4 + $0xd8] sm:$0xf]
      %v2511 = vld [vmem:[#allocation4 + $0xe0] sm:$0x8]
      %v2512 = vld [vmem:[#allocation4 + $0xe4] sm:$0xf]
      %v2513 = vld [vmem:[#allocation4 + $0xe8] sm:$0xf]
      %v2514 = vld [vmem:[#allocation4 + $0xf0] sm:$0x8]
      %v2515 = vld [vmem:[#allocation4 + $0xf4] sm:$0xf]
      %v2516 = vld [vmem:[#allocation4 + $0xf8] sm:$0xf]
      %v2517 = vld [vmem:[#allocation4 + $0xc] sm:$0x1]
      %v2518 = vld [vmem:[#allocation4 + $0x1c] sm:$0x1]
      %v2519 = vld [vmem:[#allocation4 + $0x2c] sm:$0x1]
      %v2520 = vld [vmem:[#allocation4 + $0x3c] sm:$0x1]
      %v2521 = vld [vmem:[#allocation4 + $0x4c] sm:$0x1]
      %v2522 = vld [vmem:[#allocation4 + $0x5c] sm:$0x1]
      %v2523 = vld [vmem:[#allocation4 + $0x6c] sm:$0x1]
      %v2524 = vld [vmem:[#allocation4 + $0x7c] sm:$0x1]
      %v2525 = vld [vmem:[#allocation4 + $0x8c] sm:$0x1]
      %v2526 = vld [vmem:[#allocation4 + $0x9c] sm:$0x1]
      %v2527 = vld [vmem:[#allocation4 + $0xac] sm:$0x1]
      %v2528 = vld [vmem:[#allocation4 + $0xbc] sm:$0x1]
      %v2529 = vld [vmem:[#allocation4 + $0xcc] sm:$0x1]
      %v2530 = vld [vmem:[#allocation4 + $0xdc] sm:$0x1]
      %v2531 = vld [vmem:[#allocation4 + $0xec] sm:$0x1]
      %v2532 = vld [vmem:[#allocation4 + $0xfc] sm:$0x1]
      %v2533 = vld [vmem:[%s2436] sm:$0x8]
      %v2534 = vld [vmem:[%s2436 + $0x4] sm:$0xf]
      %v2535 = vld [vmem:[%s2436 + $0x8] sm:$0xf]
      %v2536 = vld [vmem:[%s2436 + $0x10] sm:$0x8]
      %v2537 = vld [vmem:[%s2436 + $0x14] sm:$0xf]
      %v2538 = vld [vmem:[%s2436 + $0x18] sm:$0xf]
      %v2539 = vld [vmem:[%s2436 + $0x20] sm:$0x8]
      %v2540 = vld [vmem:[%s2436 + $0x24] sm:$0xf]
      %v2541 = vld [vmem:[%s2436 + $0x28] sm:$0xf]
      %v2542 = vld [vmem:[%s2436 + $0x30] sm:$0x8]
      %v2543 = vld [vmem:[%s2436 + $0x34] sm:$0xf]
      %v2544 = vld [vmem:[%s2436 + $0x38] sm:$0xf]
      %v2545 = vld [vmem:[%s2436 + $0x40] sm:$0x8]
      %v2546 = vld [vmem:[%s2436 + $0x44] sm:$0xf]
      %v2547 = vld [vmem:[%s2436 + $0x48] sm:$0xf]
      %v2548 = vld [vmem:[%s2436 + $0x50] sm:$0x8]
      %v2549 = vld [vmem:[%s2436 + $0x54] sm:$0xf]
      %v2550 = vld [vmem:[%s2436 + $0x58] sm:$0xf]
      %v2551 = vld [vmem:[%s2436 + $0x60] sm:$0x8]
      %v2552 = vld [vmem:[%s2436 + $0x64] sm:$0xf]
      %v2553 = vld [vmem:[%s2436 + $0x68] sm:$0xf]
      %v2554 = vld [vmem:[%s2436 + $0x70] sm:$0x8]
      %v2555 = vld [vmem:[%s2436 + $0x74] sm:$0xf]
      %v2556 = vld [vmem:[%s2436 + $0x78] sm:$0xf]
      %v2557 = vld [vmem:[%s2436 + $0x80] sm:$0x8]
      %v2558 = vld [vmem:[%s2436 + $0x84] sm:$0xf]
      %v2559 = vld [vmem:[%s2436 + $0x88] sm:$0xf]
      %v2560 = vld [vmem:[%s2436 + $0x90] sm:$0x8]
      %v2561 = vld [vmem:[%s2436 + $0x94] sm:$0xf]
      %v2562 = vld [vmem:[%s2436 + $0x98] sm:$0xf]
      %v2563 = vld [vmem:[%s2436 + $0xa0] sm:$0x8]
      %v2564 = vld [vmem:[%s2436 + $0xa4] sm:$0xf]
      %v2565 = vld [vmem:[%s2436 + $0xa8] sm:$0xf]
      %v2566 = vld [vmem:[%s2436 + $0xb0] sm:$0x8]
      %v2567 = vld [vmem:[%s2436 + $0xb4] sm:$0xf]
      %v2568 = vld [vmem:[%s2436 + $0xb8] sm:$0xf]
      %v2569 = vld [vmem:[%s2436 + $0xc0] sm:$0x8]
      %v2570 = vld [vmem:[%s2436 + $0xc4] sm:$0xf]
      %v2571 = vld [vmem:[%s2436 + $0xc8] sm:$0xf]
      %v2572 = vld [vmem:[%s2436 + $0xd0] sm:$0x8]
      %v2573 = vld [vmem:[%s2436 + $0xd4] sm:$0xf]
      %v2574 = vld [vmem:[%s2436 + $0xd8] sm:$0xf]
      %v2575 = vld [vmem:[%s2436 + $0xe0] sm:$0x8]
      %v2576 = vld [vmem:[%s2436 + $0xe4] sm:$0xf]
      %v2577 = vld [vmem:[%s2436 + $0xe8] sm:$0xf]
      %v2578 = vld [vmem:[%s2436 + $0xf0] sm:$0x8]
      %v2579 = vld [vmem:[%s2436 + $0xf4] sm:$0xf]
      %v2580 = vld [vmem:[%s2436 + $0xf8] sm:$0xf]
      %v2581 = vld [vmem:[%s2436 + $0xc] sm:$0x1]
      %v2582 = vld [vmem:[%s2436 + $0x1c] sm:$0x1]
      %v2583 = vld [vmem:[%s2436 + $0x2c] sm:$0x1]
      %v2584 = vld [vmem:[%s2436 + $0x3c] sm:$0x1]
      %v2585 = vld [vmem:[%s2436 + $0x4c] sm:$0x1]
      %v2586 = vld [vmem:[%s2436 + $0x5c] sm:$0x1]
      %v2587 = vld [vmem:[%s2436 + $0x6c] sm:$0x1]
      %v2588 = vld [vmem:[%s2436 + $0x7c] sm:$0x1]
      %v2589 = vld [vmem:[%s2436 + $0x8c] sm:$0x1]
      %v2590 = vld [vmem:[%s2436 + $0x9c] sm:$0x1]
      %v2591 = vld [vmem:[%s2436 + $0xac] sm:$0x1]
      %v2592 = vld [vmem:[%s2436 + $0xbc] sm:$0x1]
      %v2593 = vld [vmem:[%s2436 + $0xcc] sm:$0x1]
      %v2594 = vld [vmem:[%s2436 + $0xdc] sm:$0x1]
      %v2595 = vld [vmem:[%s2436 + $0xec] sm:$0x1]
      %v2596 = vld [vmem:[%s2436 + $0xfc] sm:$0x1]
      %s2597 = scalar_lea.vmem [#allocation4], 32
      %v2598 = vld [vmem:[%s2597] sm:$0x8]
      %v2599 = vld [vmem:[%s2597 + $0x4] sm:$0xf]
      %v2600 = vld [vmem:[%s2597 + $0x8] sm:$0xf]
      %v2601 = vld [vmem:[%s2597 + $0x10] sm:$0x8]
      %v2602 = vld [vmem:[%s2597 + $0x14] sm:$0xf]
      %v2603 = vld [vmem:[%s2597 + $0x18] sm:$0xf]
      %v2604 = vld [vmem:[%s2597 + $0x20] sm:$0x8]
      %v2605 = vld [vmem:[%s2597 + $0x24] sm:$0xf]
      %v2606 = vld [vmem:[%s2597 + $0x28] sm:$0xf]
      %v2607 = vld [vmem:[%s2597 + $0x30] sm:$0x8]
      %v2608 = vld [vmem:[%s2597 + $0x34] sm:$0xf]
      %v2609 = vld [vmem:[%s2597 + $0x38] sm:$0xf]
      %v2610 = vld [vmem:[%s2597 + $0x40] sm:$0x8]
      %v2611 = vld [vmem:[%s2597 + $0x44] sm:$0xf]
      %v2612 = vld [vmem:[%s2597 + $0x48] sm:$0xf]
      %v2613 = vld [vmem:[%s2597 + $0x50] sm:$0x8]
      %v2614 = vld [vmem:[%s2597 + $0x54] sm:$0xf]
      %v2615 = vld [vmem:[%s2597 + $0x58] sm:$0xf]
      %v2616 = vld [vmem:[%s2597 + $0x60] sm:$0x8]
      %v2617 = vld [vmem:[%s2597 + $0x64] sm:$0xf]
      %v2618 = vld [vmem:[%s2597 + $0x68] sm:$0xf]
      %v2619 = vld [vmem:[%s2597 + $0x70] sm:$0x8]
      %v2620 = vld [vmem:[%s2597 + $0x74] sm:$0xf]
      %v2621 = vld [vmem:[%s2597 + $0x78] sm:$0xf]
      %v2622 = vld [vmem:[%s2597 + $0x80] sm:$0x8]
      %v2623 = vld [vmem:[%s2597 + $0x84] sm:$0xf]
      %v2624 = vld [vmem:[%s2597 + $0x88] sm:$0xf]
      %v2625 = vld [vmem:[%s2597 + $0x90] sm:$0x8]
      %v2626 = vld [vmem:[%s2597 + $0x94] sm:$0xf]
      %v2627 = vld [vmem:[%s2597 + $0x98] sm:$0xf]
      %v2628 = vld [vmem:[%s2597 + $0xa0] sm:$0x8]
      %v2629 = vld [vmem:[%s2597 + $0xa4] sm:$0xf]
      %v2630 = vld [vmem:[%s2597 + $0xa8] sm:$0xf]
      %v2631 = vld [vmem:[%s2597 + $0xb0] sm:$0x8]
      %v2632 = vld [vmem:[%s2597 + $0xb4] sm:$0xf]
      %v2633 = vld [vmem:[%s2597 + $0xb8] sm:$0xf]
      %v2634 = vld [vmem:[%s2597 + $0xc0] sm:$0x8]
      %v2635 = vld [vmem:[%s2597 + $0xc4] sm:$0xf]
      %v2636 = vld [vmem:[%s2597 + $0xc8] sm:$0xf]
      %v2637 = vld [vmem:[%s2597 + $0xd0] sm:$0x8]
      %v2638 = vld [vmem:[%s2597 + $0xd4] sm:$0xf]
      %v2639 = vld [vmem:[%s2597 + $0xd8] sm:$0xf]
      %v2640 = vld [vmem:[%s2597 + $0xe0] sm:$0x8]
      %v2641 = vld [vmem:[%s2597 + $0xe4] sm:$0xf]
      %v2642 = vld [vmem:[%s2597 + $0xe8] sm:$0xf]
      %v2643 = vld [vmem:[%s2597 + $0xf0] sm:$0x8]
      %v2644 = vld [vmem:[%s2597 + $0xf4] sm:$0xf]
      %v2645 = vld [vmem:[%s2597 + $0xf8] sm:$0xf]
      %v2646 = vld [vmem:[%s2597 + $0xc] sm:$0x1]
      %v2647 = vld [vmem:[%s2597 + $0x1c] sm:$0x1]
      %v2648 = vld [vmem:[%s2597 + $0x2c] sm:$0x1]
      %v2649 = vld [vmem:[%s2597 + $0x3c] sm:$0x1]
      %v2650 = vld [vmem:[%s2597 + $0x4c] sm:$0x1]
      %v2651 = vld [vmem:[%s2597 + $0x5c] sm:$0x1]
      %v2652 = vld [vmem:[%s2597 + $0x6c] sm:$0x1]
      %v2653 = vld [vmem:[%s2597 + $0x7c] sm:$0x1]
      %v2654 = vld [vmem:[%s2597 + $0x8c] sm:$0x1]
      %v2655 = vld [vmem:[%s2597 + $0x9c] sm:$0x1]
      %v2656 = vld [vmem:[%s2597 + $0xac] sm:$0x1]
      %v2657 = vld [vmem:[%s2597 + $0xbc] sm:$0x1]
      %v2658 = vld [vmem:[%s2597 + $0xcc] sm:$0x1]
      %v2659 = vld [vmem:[%s2597 + $0xdc] sm:$0x1]
      %v2660 = vld [vmem:[%s2597 + $0xec] sm:$0x1]
      %v2661 = vld [vmem:[%s2597 + $0xfc] sm:$0x1]
      %v2710 = vunpack.c.l.b16 %v2469
      %v2711 = vunpack.c.l.b16 %v2470
      %v2712 = vunpack.c.l.b16 %v2471
      %v2713 = vunpack.c.l.b16 %v2472
      %v2714 = vunpack.c.l.b16 %v2473
      %v2715 = vunpack.c.l.b16 %v2474
      %v2716 = vunpack.c.l.b16 %v2475
      %v2717 = vunpack.c.l.b16 %v2476
      %v2718 = vunpack.c.l.b16 %v2477
      %v2719 = vunpack.c.l.b16 %v2478
      %v2720 = vunpack.c.l.b16 %v2479
      %v2721 = vunpack.c.l.b16 %v2480
      %v2722 = vunpack.c.l.b16 %v2481
      %v2723 = vunpack.c.l.b16 %v2482
      %v2724 = vunpack.c.l.b16 %v2483
      %v2725 = vunpack.c.l.b16 %v2484
      %v2726 = vunpack.c.l.b16 %v2485
      %v2727 = vunpack.c.l.b16 %v2486
      %v2728 = vunpack.c.l.b16 %v2487
      %v2729 = vunpack.c.l.b16 %v2488
      %v2730 = vunpack.c.l.b16 %v2489
      %v2731 = vunpack.c.l.b16 %v2490
      %v2732 = vunpack.c.l.b16 %v2491
      %v2733 = vunpack.c.l.b16 %v2492
      %v2734 = vunpack.c.l.b16 %v2493
      %v2735 = vunpack.c.l.b16 %v2494
      %v2736 = vunpack.c.l.b16 %v2495
      %v2737 = vunpack.c.l.b16 %v2496
      %v2738 = vunpack.c.l.b16 %v2497
      %v2739 = vunpack.c.l.b16 %v2498
      %v2740 = vunpack.c.l.b16 %v2499
      %v2741 = vunpack.c.l.b16 %v2500
      %v2742 = vunpack.c.l.b16 %v2501
      %v2743 = vunpack.c.l.b16 %v2502
      %v2744 = vunpack.c.l.b16 %v2503
      %v2745 = vunpack.c.l.b16 %v2504
      %v2746 = vunpack.c.l.b16 %v2505
      %v2747 = vunpack.c.l.b16 %v2506
      %v2748 = vunpack.c.l.b16 %v2507
      %v2749 = vunpack.c.l.b16 %v2508
      %v2750 = vunpack.c.l.b16 %v2509
      %v2751 = vunpack.c.l.b16 %v2510
      %v2752 = vunpack.c.l.b16 %v2511
      %v2753 = vunpack.c.l.b16 %v2512
      %v2754 = vunpack.c.l.b16 %v2513
      %v2755 = vunpack.c.l.b16 %v2514
      %v2756 = vunpack.c.l.b16 %v2515
      %v2757 = vunpack.c.l.b16 %v2516
      %v2758 = vpack.c.b16 %v2711, %v2710
      %v2759 = vpack.c.b16 %v2712, %v2712
      %v2760 = vpack.c.b16 %v2714, %v2713
      %v2761 = vpack.c.b16 %v2715, %v2715
      %v2762 = vpack.c.b16 %v2717, %v2716
      %v2763 = vpack.c.b16 %v2718, %v2718
      %v2764 = vpack.c.b16 %v2720, %v2719
      %v2765 = vpack.c.b16 %v2721, %v2721
      %v2766 = vpack.c.b16 %v2723, %v2722
      %v2767 = vpack.c.b16 %v2724, %v2724
      %v2768 = vpack.c.b16 %v2726, %v2725
      %v2769 = vpack.c.b16 %v2727, %v2727
      %v2770 = vpack.c.b16 %v2729, %v2728
      %v2771 = vpack.c.b16 %v2730, %v2730
      %v2772 = vpack.c.b16 %v2732, %v2731
      %v2773 = vpack.c.b16 %v2733, %v2733
      %v2774 = vpack.c.b16 %v2735, %v2734
      %v2775 = vpack.c.b16 %v2736, %v2736
      %v2776 = vpack.c.b16 %v2738, %v2737
      %v2777 = vpack.c.b16 %v2739, %v2739
      %v2778 = vpack.c.b16 %v2741, %v2740
      %v2779 = vpack.c.b16 %v2742, %v2742
      %v2780 = vpack.c.b16 %v2744, %v2743
      %v2781 = vpack.c.b16 %v2745, %v2745
      %v2782 = vpack.c.b16 %v2747, %v2746
      %v2783 = vpack.c.b16 %v2748, %v2748
      %v2784 = vpack.c.b16 %v2750, %v2749
      %v2785 = vpack.c.b16 %v2751, %v2751
      %v2786 = vpack.c.b16 %v2753, %v2752
      %v2787 = vpack.c.b16 %v2754, %v2754
      %v2788 = vpack.c.b16 %v2756, %v2755
      %v2789 = vpack.c.b16 %v2757, %v2757
      %v2790 = vpack.c.b16 %v2712, %v2711
      %v2791 = vpack.c.b16 %v2715, %v2714
      %v2792 = vpack.c.b16 %v2718, %v2717
      %v2793 = vpack.c.b16 %v2721, %v2720
      %v2794 = vpack.c.b16 %v2724, %v2723
      %v2795 = vpack.c.b16 %v2727, %v2726
      %v2796 = vpack.c.b16 %v2730, %v2729
      %v2797 = vpack.c.b16 %v2733, %v2732
      %v2798 = vpack.c.b16 %v2736, %v2735
      %v2799 = vpack.c.b16 %v2739, %v2738
      %v2800 = vpack.c.b16 %v2742, %v2741
      %v2801 = vpack.c.b16 %v2745, %v2744
      %v2802 = vpack.c.b16 %v2748, %v2747
      %v2803 = vpack.c.b16 %v2751, %v2750
      %v2804 = vpack.c.b16 %v2754, %v2753
      %v2805 = vpack.c.b16 %v2757, %v2756
      %v2807 = vshrl.u32 %v2790, 16
      %v2809 = vrot.slane %v2807, 4
      %v2810 = vshll.u32 %v2790, 16
      %v2812 = vrot.slane %v2810, 5
      %v2813 = vor.u32 %v2809, %v2812
      %v2815 = vshrl.u32 %v2791, 16
      %v2817 = vrot.slane %v2815, 4
      %v2818 = vshll.u32 %v2791, 16
      %v2820 = vrot.slane %v2818, 5
      %v2821 = vor.u32 %v2817, %v2820
      %v2823 = vshrl.u32 %v2792, 16
      %v2825 = vrot.slane %v2823, 4
      %v2826 = vshll.u32 %v2792, 16
      %v2828 = vrot.slane %v2826, 5
      %v2829 = vor.u32 %v2825, %v2828
      %v2831 = vshrl.u32 %v2793, 16
      %v2833 = vrot.slane %v2831, 4
      %v2834 = vshll.u32 %v2793, 16
      %v2836 = vrot.slane %v2834, 5
      %v2837 = vor.u32 %v2833, %v2836
      %v2839 = vshrl.u32 %v2794, 16
      %v2841 = vrot.slane %v2839, 4
      %v2842 = vshll.u32 %v2794, 16
      %v2844 = vrot.slane %v2842, 5
      %v2845 = vor.u32 %v2841, %v2844
      %v2847 = vshrl.u32 %v2795, 16
      %v2849 = vrot.slane %v2847, 4
      %v2850 = vshll.u32 %v2795, 16
      %v2852 = vrot.slane %v2850, 5
      %v2853 = vor.u32 %v2849, %v2852
      %v2855 = vshrl.u32 %v2796, 16
      %v2857 = vrot.slane %v2855, 4
      %v2858 = vshll.u32 %v2796, 16
      %v2860 = vrot.slane %v2858, 5
      %v2861 = vor.u32 %v2857, %v2860
      %v2863 = vshrl.u32 %v2797, 16
      %v2865 = vrot.slane %v2863, 4
      %v2866 = vshll.u32 %v2797, 16
      %v2868 = vrot.slane %v2866, 5
      %v2869 = vor.u32 %v2865, %v2868
      %v2871 = vshrl.u32 %v2798, 16
      %v2873 = vrot.slane %v2871, 4
      %v2874 = vshll.u32 %v2798, 16
      %v2876 = vrot.slane %v2874, 5
      %v2877 = vor.u32 %v2873, %v2876
      %v2879 = vshrl.u32 %v2799, 16
      %v2881 = vrot.slane %v2879, 4
      %v2882 = vshll.u32 %v2799, 16
      %v2884 = vrot.slane %v2882, 5
      %v2885 = vor.u32 %v2881, %v2884
      %v2887 = vshrl.u32 %v2800, 16
      %v2889 = vrot.slane %v2887, 4
      %v2890 = vshll.u32 %v2800, 16
      %v2892 = vrot.slane %v2890, 5
      %v2893 = vor.u32 %v2889, %v2892
      %v2895 = vshrl.u32 %v2801, 16
      %v2897 = vrot.slane %v2895, 4
      %v2898 = vshll.u32 %v2801, 16
      %v2900 = vrot.slane %v2898, 5
      %v2901 = vor.u32 %v2897, %v2900
      %v2903 = vshrl.u32 %v2802, 16
      %v2905 = vrot.slane %v2903, 4
      %v2906 = vshll.u32 %v2802, 16
      %v2908 = vrot.slane %v2906, 5
      %v2909 = vor.u32 %v2905, %v2908
      %v2911 = vshrl.u32 %v2803, 16
      %v2913 = vrot.slane %v2911, 4
      %v2914 = vshll.u32 %v2803, 16
      %v2916 = vrot.slane %v2914, 5
      %v2917 = vor.u32 %v2913, %v2916
      %v2919 = vshrl.u32 %v2804, 16
      %v2921 = vrot.slane %v2919, 4
      %v2922 = vshll.u32 %v2804, 16
      %v2924 = vrot.slane %v2922, 5
      %v2925 = vor.u32 %v2921, %v2924
      %v2927 = vshrl.u32 %v2805, 16
      %v2929 = vrot.slane %v2927, 4
      %v2930 = vshll.u32 %v2805, 16
      %v2932 = vrot.slane %v2930, 5
      %v2933 = vor.u32 %v2929, %v2932
      %2934 = vrot.lane.b32.xlu0 %v2813, 32
      %v2935 = vpop.permute.xlu0 %2934
      %2936 = vrot.lane.b32.xlu0 %v2821, 32
      %v2937 = vpop.permute.xlu0 %2936
      %2938 = vrot.lane.b32.xlu0 %v2829, 32
      %v2939 = vpop.permute.xlu0 %2938
      %2940 = vrot.lane.b32.xlu0 %v2837, 32
      %v2941 = vpop.permute.xlu0 %2940
      %2942 = vrot.lane.b32.xlu0 %v2845, 32
      %v2943 = vpop.permute.xlu0 %2942
      %2944 = vrot.lane.b32.xlu0 %v2853, 32
      %v2945 = vpop.permute.xlu0 %2944
      %2946 = vrot.lane.b32.xlu0 %v2861, 32
      %v2947 = vpop.permute.xlu0 %2946
      %2948 = vrot.lane.b32.xlu0 %v2869, 32
      %v2949 = vpop.permute.xlu0 %2948
      %2950 = vrot.lane.b32.xlu0 %v2877, 32
      %v2951 = vpop.permute.xlu0 %2950
      %2952 = vrot.lane.b32.xlu0 %v2885, 32
      %v2953 = vpop.permute.xlu0 %2952
      %2954 = vrot.lane.b32.xlu0 %v2893, 32
      %v2955 = vpop.permute.xlu0 %2954
      %2956 = vrot.lane.b32.xlu0 %v2901, 32
      %v2957 = vpop.permute.xlu0 %2956
      %2958 = vrot.lane.b32.xlu0 %v2909, 32
      %v2959 = vpop.permute.xlu0 %2958
      %2960 = vrot.lane.b32.xlu0 %v2917, 32
      %v2961 = vpop.permute.xlu0 %2960
      %2962 = vrot.lane.b32.xlu0 %v2925, 32
      %v2963 = vpop.permute.xlu0 %2962
      %2964 = vrot.lane.b32.xlu0 %v2933, 32
      %v2965 = vpop.permute.xlu0 %2964
      %v2982 = vunpack.c.l.b16 %v2517
      %v2983 = vunpack.c.l.b16 %v2518
      %v2984 = vunpack.c.l.b16 %v2519
      %v2985 = vunpack.c.l.b16 %v2520
      %v2986 = vunpack.c.l.b16 %v2521
      %v2987 = vunpack.c.l.b16 %v2522
      %v2988 = vunpack.c.l.b16 %v2523
      %v2989 = vunpack.c.l.b16 %v2524
      %v2990 = vunpack.c.l.b16 %v2525
      %v2991 = vunpack.c.l.b16 %v2526
      %v2992 = vunpack.c.l.b16 %v2527
      %v2993 = vunpack.c.l.b16 %v2528
      %v2994 = vunpack.c.l.b16 %v2529
      %v2995 = vunpack.c.l.b16 %v2530
      %v2996 = vunpack.c.l.b16 %v2531
      %v2997 = vunpack.c.l.b16 %v2532
      %v2998 = vpack.c.b16 %v2982, %v2982
      %v2999 = vpack.c.b16 %v2983, %v2983
      %v3000 = vpack.c.b16 %v2984, %v2984
      %v3001 = vpack.c.b16 %v2985, %v2985
      %v3002 = vpack.c.b16 %v2986, %v2986
      %v3003 = vpack.c.b16 %v2987, %v2987
      %v3004 = vpack.c.b16 %v2988, %v2988
      %v3005 = vpack.c.b16 %v2989, %v2989
      %v3006 = vpack.c.b16 %v2990, %v2990
      %v3007 = vpack.c.b16 %v2991, %v2991
      %v3008 = vpack.c.b16 %v2992, %v2992
      %v3009 = vpack.c.b16 %v2993, %v2993
      %v3010 = vpack.c.b16 %v2994, %v2994
      %v3011 = vpack.c.b16 %v2995, %v2995
      %v3012 = vpack.c.b16 %v2996, %v2996
      %v3013 = vpack.c.b16 %v2997, %v2997
      %vm3014 = vcmask 1042432
      %v3015 = vrot.slane %v2790, 5
      %v3016 = vrot.slane %v2998, 5
      %v3017 = vsel %vm3014, %v3015, %v3016
      %v3018 = vrot.slane %v2791, 5
      %v3019 = vrot.slane %v2999, 5
      %v3020 = vsel %vm3014, %v3018, %v3019
      %v3021 = vrot.slane %v2792, 5
      %v3022 = vrot.slane %v3000, 5
      %v3023 = vsel %vm3014, %v3021, %v3022
      %v3024 = vrot.slane %v2793, 5
      %v3025 = vrot.slane %v3001, 5
      %v3026 = vsel %vm3014, %v3024, %v3025
      %v3027 = vrot.slane %v2794, 5
      %v3028 = vrot.slane %v3002, 5
      %v3029 = vsel %vm3014, %v3027, %v3028
      %v3030 = vrot.slane %v2795, 5
      %v3031 = vrot.slane %v3003, 5
      %v3032 = vsel %vm3014, %v3030, %v3031
      %v3033 = vrot.slane %v2796, 5
      %v3034 = vrot.slane %v3004, 5
      %v3035 = vsel %vm3014, %v3033, %v3034
      %v3036 = vrot.slane %v2797, 5
      %v3037 = vrot.slane %v3005, 5
      %v3038 = vsel %vm3014, %v3036, %v3037
      %v3039 = vrot.slane %v2798, 5
      %v3040 = vrot.slane %v3006, 5
      %v3041 = vsel %vm3014, %v3039, %v3040
      %v3042 = vrot.slane %v2799, 5
      %v3043 = vrot.slane %v3007, 5
      %v3044 = vsel %vm3014, %v3042, %v3043
      %v3045 = vrot.slane %v2800, 5
      %v3046 = vrot.slane %v3008, 5
      %v3047 = vsel %vm3014, %v3045, %v3046
      %v3048 = vrot.slane %v2801, 5
      %v3049 = vrot.slane %v3009, 5
      %v3050 = vsel %vm3014, %v3048, %v3049
      %v3051 = vrot.slane %v2802, 5
      %v3052 = vrot.slane %v3010, 5
      %v3053 = vsel %vm3014, %v3051, %v3052
      %v3054 = vrot.slane %v2803, 5
      %v3055 = vrot.slane %v3011, 5
      %v3056 = vsel %vm3014, %v3054, %v3055
      %v3057 = vrot.slane %v2804, 5
      %v3058 = vrot.slane %v3012, 5
      %v3059 = vsel %vm3014, %v3057, %v3058
      %v3060 = vrot.slane %v2805, 5
      %v3061 = vrot.slane %v3013, 5
      %v3062 = vsel %vm3014, %v3060, %v3061
      %3063 = vrot.lane.b32.xlu0 %v3015, 64
      %v3064 = vpop.permute.xlu0 %3063
      %3065 = vrot.lane.b32.xlu0 %v3017, 64
      %v3066 = vpop.permute.xlu0 %3065
      %3067 = vrot.lane.b32.xlu0 %v3018, 64
      %v3068 = vpop.permute.xlu0 %3067
      %3069 = vrot.lane.b32.xlu0 %v3020, 64
      %v3070 = vpop.permute.xlu0 %3069
      %3071 = vrot.lane.b32.xlu0 %v3021, 64
      %v3072 = vpop.permute.xlu0 %3071
      %3073 = vrot.lane.b32.xlu0 %v3023, 64
      %v3074 = vpop.permute.xlu0 %3073
      %3075 = vrot.lane.b32.xlu0 %v3024, 64
      %v3076 = vpop.permute.xlu0 %3075
      %3077 = vrot.lane.b32.xlu0 %v3026, 64
      %v3078 = vpop.permute.xlu0 %3077
      %3079 = vrot.lane.b32.xlu0 %v3027, 64
      %v3080 = vpop.permute.xlu0 %3079
      %3081 = vrot.lane.b32.xlu0 %v3029, 64
      %v3082 = vpop.permute.xlu0 %3081
      %3083 = vrot.lane.b32.xlu0 %v3030, 64
      %v3084 = vpop.permute.xlu0 %3083
      %3085 = vrot.lane.b32.xlu0 %v3032, 64
      %v3086 = vpop.permute.xlu0 %3085
      %3087 = vrot.lane.b32.xlu0 %v3033, 64
      %v3088 = vpop.permute.xlu0 %3087
      %3089 = vrot.lane.b32.xlu0 %v3035, 64
      %v3090 = vpop.permute.xlu0 %3089
      %3091 = vrot.lane.b32.xlu0 %v3036, 64
      %v3092 = vpop.permute.xlu0 %3091
      %3093 = vrot.lane.b32.xlu0 %v3038, 64
      %v3094 = vpop.permute.xlu0 %3093
      %3095 = vrot.lane.b32.xlu0 %v3039, 64
      %v3096 = vpop.permute.xlu0 %3095
      %3097 = vrot.lane.b32.xlu0 %v3041, 64
      %v3098 = vpop.permute.xlu0 %3097
      %3099 = vrot.lane.b32.xlu0 %v3042, 64
      %v3100 = vpop.permute.xlu0 %3099
      %3101 = vrot.lane.b32.xlu0 %v3044, 64
      %v3102 = vpop.permute.xlu0 %3101
      %3103 = vrot.lane.b32.xlu0 %v3045, 64
      %v3104 = vpop.permute.xlu0 %3103
      %3105 = vrot.lane.b32.xlu0 %v3047, 64
      %v3106 = vpop.permute.xlu0 %3105
      %3107 = vrot.lane.b32.xlu0 %v3048, 64
      %v3108 = vpop.permute.xlu0 %3107
      %3109 = vrot.lane.b32.xlu0 %v3050, 64
      %v3110 = vpop.permute.xlu0 %3109
      %3111 = vrot.lane.b32.xlu0 %v3051, 64
      %v3112 = vpop.permute.xlu0 %3111
      %3113 = vrot.lane.b32.xlu0 %v3053, 64
      %v3114 = vpop.permute.xlu0 %3113
      %3115 = vrot.lane.b32.xlu0 %v3054, 64
      %v3116 = vpop.permute.xlu0 %3115
      %3117 = vrot.lane.b32.xlu0 %v3056, 64
      %v3118 = vpop.permute.xlu0 %3117
      %3119 = vrot.lane.b32.xlu0 %v3057, 64
      %v3120 = vpop.permute.xlu0 %3119
      %3121 = vrot.lane.b32.xlu0 %v3059, 64
      %v3122 = vpop.permute.xlu0 %3121
      %3123 = vrot.lane.b32.xlu0 %v3060, 64
      %v3124 = vpop.permute.xlu0 %3123
      %3125 = vrot.lane.b32.xlu0 %v3062, 64
      %v3126 = vpop.permute.xlu0 %3125
      %v3175 = vunpack.c.l.b16 %v2533
      %v3176 = vunpack.c.l.b16 %v2534
      %v3177 = vunpack.c.l.b16 %v2535
      %v3178 = vunpack.c.l.b16 %v2536
      %v3179 = vunpack.c.l.b16 %v2537
      %v3180 = vunpack.c.l.b16 %v2538
      %v3181 = vunpack.c.l.b16 %v2539
      %v3182 = vunpack.c.l.b16 %v2540
      %v3183 = vunpack.c.l.b16 %v2541
      %v3184 = vunpack.c.l.b16 %v2542
      %v3185 = vunpack.c.l.b16 %v2543
      %v3186 = vunpack.c.l.b16 %v2544
      %v3187 = vunpack.c.l.b16 %v2545
      %v3188 = vunpack.c.l.b16 %v2546
      %v3189 = vunpack.c.l.b16 %v2547
      %v3190 = vunpack.c.l.b16 %v2548
      %v3191 = vunpack.c.l.b16 %v2549
      %v3192 = vunpack.c.l.b16 %v2550
      %v3193 = vunpack.c.l.b16 %v2551
      %v3194 = vunpack.c.l.b16 %v2552
      %v3195 = vunpack.c.l.b16 %v2553
      %v3196 = vunpack.c.l.b16 %v2554
      %v3197 = vunpack.c.l.b16 %v2555
      %v3198 = vunpack.c.l.b16 %v2556
      %v3199 = vunpack.c.l.b16 %v2557
      %v3200 = vunpack.c.l.b16 %v2558
      %v3201 = vunpack.c.l.b16 %v2559
      %v3202 = vunpack.c.l.b16 %v2560
      %v3203 = vunpack.c.l.b16 %v2561
      %v3204 = vunpack.c.l.b16 %v2562
      %v3205 = vunpack.c.l.b16 %v2563
      %v3206 = vunpack.c.l.b16 %v2564
      %v3207 = vunpack.c.l.b16 %v2565
      %v3208 = vunpack.c.l.b16 %v2566
      %v3209 = vunpack.c.l.b16 %v2567
      %v3210 = vunpack.c.l.b16 %v2568
      %v3211 = vunpack.c.l.b16 %v2569
      %v3212 = vunpack.c.l.b16 %v2570
      %v3213 = vunpack.c.l.b16 %v2571
      %v3214 = vunpack.c.l.b16 %v2572
      %v3215 = vunpack.c.l.b16 %v2573
      %v3216 = vunpack.c.l.b16 %v2574
      %v3217 = vunpack.c.l.b16 %v2575
      %v3218 = vunpack.c.l.b16 %v2576
      %v3219 = vunpack.c.l.b16 %v2577
      %v3220 = vunpack.c.l.b16 %v2578
      %v3221 = vunpack.c.l.b16 %v2579
      %v3222 = vunpack.c.l.b16 %v2580
      %v3223 = vpack.c.b16 %v3176, %v3175
      %v3224 = vpack.c.b16 %v3177, %v3177
      %v3225 = vpack.c.b16 %v3179, %v3178
      %v3226 = vpack.c.b16 %v3180, %v3180
      %v3227 = vpack.c.b16 %v3182, %v3181
      %v3228 = vpack.c.b16 %v3183, %v3183
      %v3229 = vpack.c.b16 %v3185, %v3184
      %v3230 = vpack.c.b16 %v3186, %v3186
      %v3231 = vpack.c.b16 %v3188, %v3187
      %v3232 = vpack.c.b16 %v3189, %v3189
      %v3233 = vpack.c.b16 %v3191, %v3190
      %v3234 = vpack.c.b16 %v3192, %v3192
      %v3235 = vpack.c.b16 %v3194, %v3193
      %v3236 = vpack.c.b16 %v3195, %v3195
      %v3237 = vpack.c.b16 %v3197, %v3196
      %v3238 = vpack.c.b16 %v3198, %v3198
      %v3239 = vpack.c.b16 %v3200, %v3199
      %v3240 = vpack.c.b16 %v3201, %v3201
      %v3241 = vpack.c.b16 %v3203, %v3202
      %v3242 = vpack.c.b16 %v3204, %v3204
      %v3243 = vpack.c.b16 %v3206, %v3205
      %v3244 = vpack.c.b16 %v3207, %v3207
      %v3245 = vpack.c.b16 %v3209, %v3208
      %v3246 = vpack.c.b16 %v3210, %v3210
      %v3247 = vpack.c.b16 %v3212, %v3211
      %v3248 = vpack.c.b16 %v3213, %v3213
      %v3249 = vpack.c.b16 %v3215, %v3214
      %v3250 = vpack.c.b16 %v3216, %v3216
      %v3251 = vpack.c.b16 %v3218, %v3217
      %v3252 = vpack.c.b16 %v3219, %v3219
      %v3253 = vpack.c.b16 %v3221, %v3220
      %v3254 = vpack.c.b16 %v3222, %v3222
      %3255 = vrot.lane.b32.xlu0 %v3223, 96
      %v3256 = vpop.permute.xlu0 %3255
      %3257 = vrot.lane.b32.xlu0 %v3224, 96
      %v3258 = vpop.permute.xlu0 %3257
      %3259 = vrot.lane.b32.xlu0 %v3225, 96
      %v3260 = vpop.permute.xlu0 %3259
      %3261 = vrot.lane.b32.xlu0 %v3226, 96
      %v3262 = vpop.permute.xlu0 %3261
      %3263 = vrot.lane.b32.xlu0 %v3227, 96
      %v3264 = vpop.permute.xlu0 %3263
      %3265 = vrot.lane.b32.xlu0 %v3228, 96
      %v3266 = vpop.permute.xlu0 %3265
      %3267 = vrot.lane.b32.xlu0 %v3229, 96
      %v3268 = vpop.permute.xlu0 %3267
      %3269 = vrot.lane.b32.xlu0 %v3230, 96
      %v3270 = vpop.permute.xlu0 %3269
      %3271 = vrot.lane.b32.xlu0 %v3231, 96
      %v3272 = vpop.permute.xlu0 %3271
      %3273 = vrot.lane.b32.xlu0 %v3232, 96
      %v3274 = vpop.permute.xlu0 %3273
      %3275 = vrot.lane.b32.xlu0 %v3233, 96
      %v3276 = vpop.permute.xlu0 %3275
      %3277 = vrot.lane.b32.xlu0 %v3234, 96
      %v3278 = vpop.permute.xlu0 %3277
      %3279 = vrot.lane.b32.xlu0 %v3235, 96
      %v3280 = vpop.permute.xlu0 %3279
      %3281 = vrot.lane.b32.xlu0 %v3236, 96
      %v3282 = vpop.permute.xlu0 %3281
      %3283 = vrot.lane.b32.xlu0 %v3237, 96
      %v3284 = vpop.permute.xlu0 %3283
      %3285 = vrot.lane.b32.xlu0 %v3238, 96
      %v3286 = vpop.permute.xlu0 %3285
      %3287 = vrot.lane.b32.xlu0 %v3239, 96
      %v3288 = vpop.permute.xlu0 %3287
      %3289 = vrot.lane.b32.xlu0 %v3240, 96
      %v3290 = vpop.permute.xlu0 %3289
      %3291 = vrot.lane.b32.xlu0 %v3241, 96
      %v3292 = vpop.permute.xlu0 %3291
      %3293 = vrot.lane.b32.xlu0 %v3242, 96
      %v3294 = vpop.permute.xlu0 %3293
      %3295 = vrot.lane.b32.xlu0 %v3243, 96
      %v3296 = vpop.permute.xlu0 %3295
      %3297 = vrot.lane.b32.xlu0 %v3244, 96
      %v3298 = vpop.permute.xlu0 %3297
      %3299 = vrot.lane.b32.xlu0 %v3245, 96
      %v3300 = vpop.permute.xlu0 %3299
      %3301 = vrot.lane.b32.xlu0 %v3246, 96
      %v3302 = vpop.permute.xlu0 %3301
      %3303 = vrot.lane.b32.xlu0 %v3247, 96
      %v3304 = vpop.permute.xlu0 %3303
      %3305 = vrot.lane.b32.xlu0 %v3248, 96
      %v3306 = vpop.permute.xlu0 %3305
      %3307 = vrot.lane.b32.xlu0 %v3249, 96
      %v3308 = vpop.permute.xlu0 %3307
      %3309 = vrot.lane.b32.xlu0 %v3250, 96
      %v3310 = vpop.permute.xlu0 %3309
      %3311 = vrot.lane.b32.xlu0 %v3251, 96
      %v3312 = vpop.permute.xlu0 %3311
      %3313 = vrot.lane.b32.xlu0 %v3252, 96
      %v3314 = vpop.permute.xlu0 %3313
      %3315 = vrot.lane.b32.xlu0 %v3253, 96
      %v3316 = vpop.permute.xlu0 %3315
      %3317 = vrot.lane.b32.xlu0 %v3254, 96
      %v3318 = vpop.permute.xlu0 %3317
      %v3319 = vpack.c.b16 %v3177, %v3176
      %v3320 = vpack.c.b16 %v3180, %v3179
      %v3321 = vpack.c.b16 %v3183, %v3182
      %v3322 = vpack.c.b16 %v3186, %v3185
      %v3323 = vpack.c.b16 %v3189, %v3188
      %v3324 = vpack.c.b16 %v3192, %v3191
      %v3325 = vpack.c.b16 %v3195, %v3194
      %v3326 = vpack.c.b16 %v3198, %v3197
      %v3327 = vpack.c.b16 %v3201, %v3200
      %v3328 = vpack.c.b16 %v3204, %v3203
      %v3329 = vpack.c.b16 %v3207, %v3206
      %v3330 = vpack.c.b16 %v3210, %v3209
      %v3331 = vpack.c.b16 %v3213, %v3212
      %v3332 = vpack.c.b16 %v3216, %v3215
      %v3333 = vpack.c.b16 %v3219, %v3218
      %v3334 = vpack.c.b16 %v3222, %v3221
      %v3336 = vshrl.u32 %v3319, 16
      %v3338 = vrot.slane %v3336, 4
      %v3339 = vshll.u32 %v3319, 16
      %v3341 = vrot.slane %v3339, 5
      %v3342 = vor.u32 %v3338, %v3341
      %v3344 = vshrl.u32 %v3320, 16
      %v3346 = vrot.slane %v3344, 4
      %v3347 = vshll.u32 %v3320, 16
      %v3349 = vrot.slane %v3347, 5
      %v3350 = vor.u32 %v3346, %v3349
      %v3352 = vshrl.u32 %v3321, 16
      %v3354 = vrot.slane %v3352, 4
      %v3355 = vshll.u32 %v3321, 16
      %v3357 = vrot.slane %v3355, 5
      %v3358 = vor.u32 %v3354, %v3357
      %v3360 = vshrl.u32 %v3322, 16
      %v3362 = vrot.slane %v3360, 4
      %v3363 = vshll.u32 %v3322, 16
      %v3365 = vrot.slane %v3363, 5
      %v3366 = vor.u32 %v3362, %v3365
      %v3368 = vshrl.u32 %v3323, 16
      %v3370 = vrot.slane %v3368, 4
      %v3371 = vshll.u32 %v3323, 16
      %v3373 = vrot.slane %v3371, 5
      %v3374 = vor.u32 %v3370, %v3373
      %v3376 = vshrl.u32 %v3324, 16
      %v3378 = vrot.slane %v3376, 4
      %v3379 = vshll.u32 %v3324, 16
      %v3381 = vrot.slane %v3379, 5
      %v3382 = vor.u32 %v3378, %v3381
      %v3384 = vshrl.u32 %v3325, 16
      %v3386 = vrot.slane %v3384, 4
      %v3387 = vshll.u32 %v3325, 16
      %v3389 = vrot.slane %v3387, 5
      %v3390 = vor.u32 %v3386, %v3389
      %v3392 = vshrl.u32 %v3326, 16
      %v3394 = vrot.slane %v3392, 4
      %v3395 = vshll.u32 %v3326, 16
      %v3397 = vrot.slane %v3395, 5
      %v3398 = vor.u32 %v3394, %v3397
      %v3400 = vshrl.u32 %v3327, 16
      %v3402 = vrot.slane %v3400, 4
      %v3403 = vshll.u32 %v3327, 16
      %v3405 = vrot.slane %v3403, 5
      %v3406 = vor.u32 %v3402, %v3405
      %v3408 = vshrl.u32 %v3328, 16
      %v3410 = vrot.slane %v3408, 4
      %v3411 = vshll.u32 %v3328, 16
      %v3413 = vrot.slane %v3411, 5
      %v3414 = vor.u32 %v3410, %v3413
      %v3416 = vshrl.u32 %v3329, 16
      %v3418 = vrot.slane %v3416, 4
      %v3419 = vshll.u32 %v3329, 16
      %v3421 = vrot.slane %v3419, 5
      %v3422 = vor.u32 %v3418, %v3421
      %v3424 = vshrl.u32 %v3330, 16
      %v3426 = vrot.slane %v3424, 4
      %v3427 = vshll.u32 %v3330, 16
      %v3429 = vrot.slane %v3427, 5
      %v3430 = vor.u32 %v3426, %v3429
      %v3432 = vshrl.u32 %v3331, 16
      %v3434 = vrot.slane %v3432, 4
      %v3435 = vshll.u32 %v3331, 16
      %v3437 = vrot.slane %v3435, 5
      %v3438 = vor.u32 %v3434, %v3437
      %v3440 = vshrl.u32 %v3332, 16
      %v3442 = vrot.slane %v3440, 4
      %v3443 = vshll.u32 %v3332, 16
      %v3445 = vrot.slane %v3443, 5
      %v3446 = vor.u32 %v3442, %v3445
      %v3448 = vshrl.u32 %v3333, 16
      %v3450 = vrot.slane %v3448, 4
      %v3451 = vshll.u32 %v3333, 16
      %v3453 = vrot.slane %v3451, 5
      %v3454 = vor.u32 %v3450, %v3453
      %v3456 = vshrl.u32 %v3334, 16
      %v3458 = vrot.slane %v3456, 4
      %v3459 = vshll.u32 %v3334, 16
      %v3461 = vrot.slane %v3459, 5
      %v3462 = vor.u32 %v3458, %v3461
      %v3479 = vunpack.c.l.b16 %v2581
      %v3480 = vunpack.c.l.b16 %v2582
      %v3481 = vunpack.c.l.b16 %v2583
      %v3482 = vunpack.c.l.b16 %v2584
      %v3483 = vunpack.c.l.b16 %v2585
      %v3484 = vunpack.c.l.b16 %v2586
      %v3485 = vunpack.c.l.b16 %v2587
      %v3486 = vunpack.c.l.b16 %v2588
      %v3487 = vunpack.c.l.b16 %v2589
      %v3488 = vunpack.c.l.b16 %v2590
      %v3489 = vunpack.c.l.b16 %v2591
      %v3490 = vunpack.c.l.b16 %v2592
      %v3491 = vunpack.c.l.b16 %v2593
      %v3492 = vunpack.c.l.b16 %v2594
      %v3493 = vunpack.c.l.b16 %v2595
      %v3494 = vunpack.c.l.b16 %v2596
      %v3495 = vpack.c.b16 %v3479, %v3479
      %v3496 = vpack.c.b16 %v3480, %v3480
      %v3497 = vpack.c.b16 %v3481, %v3481
      %v3498 = vpack.c.b16 %v3482, %v3482
      %v3499 = vpack.c.b16 %v3483, %v3483
      %v3500 = vpack.c.b16 %v3484, %v3484
      %v3501 = vpack.c.b16 %v3485, %v3485
      %v3502 = vpack.c.b16 %v3486, %v3486
      %v3503 = vpack.c.b16 %v3487, %v3487
      %v3504 = vpack.c.b16 %v3488, %v3488
      %v3505 = vpack.c.b16 %v3489, %v3489
      %v3506 = vpack.c.b16 %v3490, %v3490
      %v3507 = vpack.c.b16 %v3491, %v3491
      %v3508 = vpack.c.b16 %v3492, %v3492
      %v3509 = vpack.c.b16 %v3493, %v3493
      %v3510 = vpack.c.b16 %v3494, %v3494
      %v3511 = vrot.slane %v3319, 5
      %v3512 = vrot.slane %v3495, 5
      %v3513 = vsel %vm3014, %v3511, %v3512
      %v3514 = vrot.slane %v3320, 5
      %v3515 = vrot.slane %v3496, 5
      %v3516 = vsel %vm3014, %v3514, %v3515
      %v3517 = vrot.slane %v3321, 5
      %v3518 = vrot.slane %v3497, 5
      %v3519 = vsel %vm3014, %v3517, %v3518
      %v3520 = vrot.slane %v3322, 5
      %v3521 = vrot.slane %v3498, 5
      %v3522 = vsel %vm3014, %v3520, %v3521
      %v3523 = vrot.slane %v3323, 5
      %v3524 = vrot.slane %v3499, 5
      %v3525 = vsel %vm3014, %v3523, %v3524
      %v3526 = vrot.slane %v3324, 5
      %v3527 = vrot.slane %v3500, 5
      %v3528 = vsel %vm3014, %v3526, %v3527
      %v3529 = vrot.slane %v3325, 5
      %v3530 = vrot.slane %v3501, 5
      %v3531 = vsel %vm3014, %v3529, %v3530
      %v3532 = vrot.slane %v3326, 5
      %v3533 = vrot.slane %v3502, 5
      %v3534 = vsel %vm3014, %v3532, %v3533
      %v3535 = vrot.slane %v3327, 5
      %v3536 = vrot.slane %v3503, 5
      %v3537 = vsel %vm3014, %v3535, %v3536
      %v3538 = vrot.slane %v3328, 5
      %v3539 = vrot.slane %v3504, 5
      %v3540 = vsel %vm3014, %v3538, %v3539
      %v3541 = vrot.slane %v3329, 5
      %v3542 = vrot.slane %v3505, 5
      %v3543 = vsel %vm3014, %v3541, %v3542
      %v3544 = vrot.slane %v3330, 5
      %v3545 = vrot.slane %v3506, 5
      %v3546 = vsel %vm3014, %v3544, %v3545
      %v3547 = vrot.slane %v3331, 5
      %v3548 = vrot.slane %v3507, 5
      %v3549 = vsel %vm3014, %v3547, %v3548
      %v3550 = vrot.slane %v3332, 5
      %v3551 = vrot.slane %v3508, 5
      %v3552 = vsel %vm3014, %v3550, %v3551
      %v3553 = vrot.slane %v3333, 5
      %v3554 = vrot.slane %v3509, 5
      %v3555 = vsel %vm3014, %v3553, %v3554
      %v3556 = vrot.slane %v3334, 5
      %v3557 = vrot.slane %v3510, 5
      %v3558 = vsel %vm3014, %v3556, %v3557
      %3559 = vrot.lane.b32.xlu0 %v3511, 32
      %v3560 = vpop.permute.xlu0 %3559
      %3561 = vrot.lane.b32.xlu0 %v3513, 32
      %v3562 = vpop.permute.xlu0 %3561
      %3563 = vrot.lane.b32.xlu0 %v3514, 32
      %v3564 = vpop.permute.xlu0 %3563
      %3565 = vrot.lane.b32.xlu0 %v3516, 32
      %v3566 = vpop.permute.xlu0 %3565
      %3567 = vrot.lane.b32.xlu0 %v3517, 32
      %v3568 = vpop.permute.xlu0 %3567
      %3569 = vrot.lane.b32.xlu0 %v3519, 32
      %v3570 = vpop.permute.xlu0 %3569
      %3571 = vrot.lane.b32.xlu0 %v3520, 32
      %v3572 = vpop.permute.xlu0 %3571
      %3573 = vrot.lane.b32.xlu0 %v3522, 32
      %v3574 = vpop.permute.xlu0 %3573
      %3575 = vrot.lane.b32.xlu0 %v3523, 32
      %v3576 = vpop.permute.xlu0 %3575
      %3577 = vrot.lane.b32.xlu0 %v3525, 32
      %v3578 = vpop.permute.xlu0 %3577
      %3579 = vrot.lane.b32.xlu0 %v3526, 32
      %v3580 = vpop.permute.xlu0 %3579
      %3581 = vrot.lane.b32.xlu0 %v3528, 32
      %v3582 = vpop.permute.xlu0 %3581
      %3583 = vrot.lane.b32.xlu0 %v3529, 32
      %v3584 = vpop.permute.xlu0 %3583
      %3585 = vrot.lane.b32.xlu0 %v3531, 32
      %v3586 = vpop.permute.xlu0 %3585
      %3587 = vrot.lane.b32.xlu0 %v3532, 32
      %v3588 = vpop.permute.xlu0 %3587
      %3589 = vrot.lane.b32.xlu0 %v3534, 32
      %v3590 = vpop.permute.xlu0 %3589
      %3591 = vrot.lane.b32.xlu0 %v3535, 32
      %v3592 = vpop.permute.xlu0 %3591
      %3593 = vrot.lane.b32.xlu0 %v3537, 32
      %v3594 = vpop.permute.xlu0 %3593
      %3595 = vrot.lane.b32.xlu0 %v3538, 32
      %v3596 = vpop.permute.xlu0 %3595
      %3597 = vrot.lane.b32.xlu0 %v3540, 32
      %v3598 = vpop.permute.xlu0 %3597
      %3599 = vrot.lane.b32.xlu0 %v3541, 32
      %v3600 = vpop.permute.xlu0 %3599
      %3601 = vrot.lane.b32.xlu0 %v3543, 32
      %v3602 = vpop.permute.xlu0 %3601
      %3603 = vrot.lane.b32.xlu0 %v3544, 32
      %v3604 = vpop.permute.xlu0 %3603
      %3605 = vrot.lane.b32.xlu0 %v3546, 32
      %v3606 = vpop.permute.xlu0 %3605
      %3607 = vrot.lane.b32.xlu0 %v3547, 32
      %v3608 = vpop.permute.xlu0 %3607
      %3609 = vrot.lane.b32.xlu0 %v3549, 32
      %v3610 = vpop.permute.xlu0 %3609
      %3611 = vrot.lane.b32.xlu0 %v3550, 32
      %v3612 = vpop.permute.xlu0 %3611
      %3613 = vrot.lane.b32.xlu0 %v3552, 32
      %v3614 = vpop.permute.xlu0 %3613
      %3615 = vrot.lane.b32.xlu0 %v3553, 32
      %v3616 = vpop.permute.xlu0 %3615
      %3617 = vrot.lane.b32.xlu0 %v3555, 32
      %v3618 = vpop.permute.xlu0 %3617
      %3619 = vrot.lane.b32.xlu0 %v3556, 32
      %v3620 = vpop.permute.xlu0 %3619
      %3621 = vrot.lane.b32.xlu0 %v3558, 32
      %v3622 = vpop.permute.xlu0 %3621
      %v3671 = vunpack.c.l.b16 %v2598
      %v3672 = vunpack.c.l.b16 %v2599
      %v3673 = vunpack.c.l.b16 %v2600
      %v3674 = vunpack.c.l.b16 %v2601
      %v3675 = vunpack.c.l.b16 %v2602
      %v3676 = vunpack.c.l.b16 %v2603
      %v3677 = vunpack.c.l.b16 %v2604
      %v3678 = vunpack.c.l.b16 %v2605
      %v3679 = vunpack.c.l.b16 %v2606
      %v3680 = vunpack.c.l.b16 %v2607
      %v3681 = vunpack.c.l.b16 %v2608
      %v3682 = vunpack.c.l.b16 %v2609
      %v3683 = vunpack.c.l.b16 %v2610
      %v3684 = vunpack.c.l.b16 %v2611
      %v3685 = vunpack.c.l.b16 %v2612
      %v3686 = vunpack.c.l.b16 %v2613
      %v3687 = vunpack.c.l.b16 %v2614
      %v3688 = vunpack.c.l.b16 %v2615
      %v3689 = vunpack.c.l.b16 %v2616
      %v3690 = vunpack.c.l.b16 %v2617
      %v3691 = vunpack.c.l.b16 %v2618
      %v3692 = vunpack.c.l.b16 %v2619
      %v3693 = vunpack.c.l.b16 %v2620
      %v3694 = vunpack.c.l.b16 %v2621
      %v3695 = vunpack.c.l.b16 %v2622
      %v3696 = vunpack.c.l.b16 %v2623
      %v3697 = vunpack.c.l.b16 %v2624
      %v3698 = vunpack.c.l.b16 %v2625
      %v3699 = vunpack.c.l.b16 %v2626
      %v3700 = vunpack.c.l.b16 %v2627
      %v3701 = vunpack.c.l.b16 %v2628
      %v3702 = vunpack.c.l.b16 %v2629
      %v3703 = vunpack.c.l.b16 %v2630
      %v3704 = vunpack.c.l.b16 %v2631
      %v3705 = vunpack.c.l.b16 %v2632
      %v3706 = vunpack.c.l.b16 %v2633
      %v3707 = vunpack.c.l.b16 %v2634
      %v3708 = vunpack.c.l.b16 %v2635
      %v3709 = vunpack.c.l.b16 %v2636
      %v3710 = vunpack.c.l.b16 %v2637
      %v3711 = vunpack.c.l.b16 %v2638
      %v3712 = vunpack.c.l.b16 %v2639
      %v3713 = vunpack.c.l.b16 %v2640
      %v3714 = vunpack.c.l.b16 %v2641
      %v3715 = vunpack.c.l.b16 %v2642
      %v3716 = vunpack.c.l.b16 %v2643
      %v3717 = vunpack.c.l.b16 %v2644
      %v3718 = vunpack.c.l.b16 %v2645
      %v3719 = vpack.c.b16 %v3672, %v3671
      %v3720 = vpack.c.b16 %v3673, %v3673
      %v3721 = vpack.c.b16 %v3675, %v3674
      %v3722 = vpack.c.b16 %v3676, %v3676
      %v3723 = vpack.c.b16 %v3678, %v3677
      %v3724 = vpack.c.b16 %v3679, %v3679
      %v3725 = vpack.c.b16 %v3681, %v3680
      %v3726 = vpack.c.b16 %v3682, %v3682
      %v3727 = vpack.c.b16 %v3684, %v3683
      %v3728 = vpack.c.b16 %v3685, %v3685
      %v3729 = vpack.c.b16 %v3687, %v3686
      %v3730 = vpack.c.b16 %v3688, %v3688
      %v3731 = vpack.c.b16 %v3690, %v3689
      %v3732 = vpack.c.b16 %v3691, %v3691
      %v3733 = vpack.c.b16 %v3693, %v3692
      %v3734 = vpack.c.b16 %v3694, %v3694
      %v3735 = vpack.c.b16 %v3696, %v3695
      %v3736 = vpack.c.b16 %v3697, %v3697
      %v3737 = vpack.c.b16 %v3699, %v3698
      %v3738 = vpack.c.b16 %v3700, %v3700
      %v3739 = vpack.c.b16 %v3702, %v3701
      %v3740 = vpack.c.b16 %v3703, %v3703
      %v3741 = vpack.c.b16 %v3705, %v3704
      %v3742 = vpack.c.b16 %v3706, %v3706
      %v3743 = vpack.c.b16 %v3708, %v3707
      %v3744 = vpack.c.b16 %v3709, %v3709
      %v3745 = vpack.c.b16 %v3711, %v3710
      %v3746 = vpack.c.b16 %v3712, %v3712
      %v3747 = vpack.c.b16 %v3714, %v3713
      %v3748 = vpack.c.b16 %v3715, %v3715
      %v3749 = vpack.c.b16 %v3717, %v3716
      %v3750 = vpack.c.b16 %v3718, %v3718
      %3751 = vrot.lane.b32.xlu0 %v3719, 64
      %v3752 = vpop.permute.xlu0 %3751
      %3753 = vrot.lane.b32.xlu0 %v3720, 64
      %v3754 = vpop.permute.xlu0 %3753
      %3755 = vrot.lane.b32.xlu0 %v3721, 64
      %v3756 = vpop.permute.xlu0 %3755
      %3757 = vrot.lane.b32.xlu0 %v3722, 64
      %v3758 = vpop.permute.xlu0 %3757
      %3759 = vrot.lane.b32.xlu0 %v3723, 64
      %v3760 = vpop.permute.xlu0 %3759
      %3761 = vrot.lane.b32.xlu0 %v3724, 64
      %v3762 = vpop.permute.xlu0 %3761
      %3763 = vrot.lane.b32.xlu0 %v3725, 64
      %v3764 = vpop.permute.xlu0 %3763
      %3765 = vrot.lane.b32.xlu0 %v3726, 64
      %v3766 = vpop.permute.xlu0 %3765
      %3767 = vrot.lane.b32.xlu0 %v3727, 64
      %v3768 = vpop.permute.xlu0 %3767
      %3769 = vrot.lane.b32.xlu0 %v3728, 64
      %v3770 = vpop.permute.xlu0 %3769
      %3771 = vrot.lane.b32.xlu0 %v3729, 64
      %v3772 = vpop.permute.xlu0 %3771
      %3773 = vrot.lane.b32.xlu0 %v3730, 64
      %v3774 = vpop.permute.xlu0 %3773
      %3775 = vrot.lane.b32.xlu0 %v3731, 64
      %v3776 = vpop.permute.xlu0 %3775
      %3777 = vrot.lane.b32.xlu0 %v3732, 64
      %v3778 = vpop.permute.xlu0 %3777
      %3779 = vrot.lane.b32.xlu0 %v3733, 64
      %v3780 = vpop.permute.xlu0 %3779
      %3781 = vrot.lane.b32.xlu0 %v3734, 64
      %v3782 = vpop.permute.xlu0 %3781
      %3783 = vrot.lane.b32.xlu0 %v3735, 64
      %v3784 = vpop.permute.xlu0 %3783
      %3785 = vrot.lane.b32.xlu0 %v3736, 64
      %v3786 = vpop.permute.xlu0 %3785
      %3787 = vrot.lane.b32.xlu0 %v3737, 64
      %v3788 = vpop.permute.xlu0 %3787
      %3789 = vrot.lane.b32.xlu0 %v3738, 64
      %v3790 = vpop.permute.xlu0 %3789
      %3791 = vrot.lane.b32.xlu0 %v3739, 64
      %v3792 = vpop.permute.xlu0 %3791
      %3793 = vrot.lane.b32.xlu0 %v3740, 64
      %v3794 = vpop.permute.xlu0 %3793
      %3795 = vrot.lane.b32.xlu0 %v3741, 64
      %v3796 = vpop.permute.xlu0 %3795
      %3797 = vrot.lane.b32.xlu0 %v3742, 64
      %v3798 = vpop.permute.xlu0 %3797
      %3799 = vrot.lane.b32.xlu0 %v3743, 64
      %v3800 = vpop.permute.xlu0 %3799
      %3801 = vrot.lane.b32.xlu0 %v3744, 64
      %v3802 = vpop.permute.xlu0 %3801
      %3803 = vrot.lane.b32.xlu0 %v3745, 64
      %v3804 = vpop.permute.xlu0 %3803
      %3805 = vrot.lane.b32.xlu0 %v3746, 64
      %v3806 = vpop.permute.xlu0 %3805
      %3807 = vrot.lane.b32.xlu0 %v3747, 64
      %v3808 = vpop.permute.xlu0 %3807
      %3809 = vrot.lane.b32.xlu0 %v3748, 64
      %v3810 = vpop.permute.xlu0 %3809
      %3811 = vrot.lane.b32.xlu0 %v3749, 64
      %v3812 = vpop.permute.xlu0 %3811
      %3813 = vrot.lane.b32.xlu0 %v3750, 64
      %v3814 = vpop.permute.xlu0 %3813
      %v3815 = vpack.c.b16 %v3673, %v3672
      %v3816 = vpack.c.b16 %v3676, %v3675
      %v3817 = vpack.c.b16 %v3679, %v3678
      %v3818 = vpack.c.b16 %v3682, %v3681
      %v3819 = vpack.c.b16 %v3685, %v3684
      %v3820 = vpack.c.b16 %v3688, %v3687
      %v3821 = vpack.c.b16 %v3691, %v3690
      %v3822 = vpack.c.b16 %v3694, %v3693
      %v3823 = vpack.c.b16 %v3697, %v3696
      %v3824 = vpack.c.b16 %v3700, %v3699
      %v3825 = vpack.c.b16 %v3703, %v3702
      %v3826 = vpack.c.b16 %v3706, %v3705
      %v3827 = vpack.c.b16 %v3709, %v3708
      %v3828 = vpack.c.b16 %v3712, %v3711
      %v3829 = vpack.c.b16 %v3715, %v3714
      %v3830 = vpack.c.b16 %v3718, %v3717
      %v3832 = vshrl.u32 %v3815, 16
      %v3834 = vrot.slane %v3832, 4
      %v3835 = vshll.u32 %v3815, 16
      %v3837 = vrot.slane %v3835, 5
      %v3838 = vor.u32 %v3834, %v3837
      %v3840 = vshrl.u32 %v3816, 16
      %v3842 = vrot.slane %v3840, 4
      %v3843 = vshll.u32 %v3816, 16
      %v3845 = vrot.slane %v3843, 5
      %v3846 = vor.u32 %v3842, %v3845
      %v3848 = vshrl.u32 %v3817, 16
      %v3850 = vrot.slane %v3848, 4
      %v3851 = vshll.u32 %v3817, 16
      %v3853 = vrot.slane %v3851, 5
      %v3854 = vor.u32 %v3850, %v3853
      %v3856 = vshrl.u32 %v3818, 16
      %v3858 = vrot.slane %v3856, 4
      %v3859 = vshll.u32 %v3818, 16
      %v3861 = vrot.slane %v3859, 5
      %v3862 = vor.u32 %v3858, %v3861
      %v3864 = vshrl.u32 %v3819, 16
      %v3866 = vrot.slane %v3864, 4
      %v3867 = vshll.u32 %v3819, 16
      %v3869 = vrot.slane %v3867, 5
      %v3870 = vor.u32 %v3866, %v3869
      %v3872 = vshrl.u32 %v3820, 16
      %v3874 = vrot.slane %v3872, 4
      %v3875 = vshll.u32 %v3820, 16
      %v3877 = vrot.slane %v3875, 5
      %v3878 = vor.u32 %v3874, %v3877
      %v3880 = vshrl.u32 %v3821, 16
      %v3882 = vrot.slane %v3880, 4
      %v3883 = vshll.u32 %v3821, 16
      %v3885 = vrot.slane %v3883, 5
      %v3886 = vor.u32 %v3882, %v3885
      %v3888 = vshrl.u32 %v3822, 16
      %v3890 = vrot.slane %v3888, 4
      %v3891 = vshll.u32 %v3822, 16
      %v3893 = vrot.slane %v3891, 5
      %v3894 = vor.u32 %v3890, %v3893
      %v3896 = vshrl.u32 %v3823, 16
      %v3898 = vrot.slane %v3896, 4
      %v3899 = vshll.u32 %v3823, 16
      %v3901 = vrot.slane %v3899, 5
      %v3902 = vor.u32 %v3898, %v3901
      %v3904 = vshrl.u32 %v3824, 16
      %v3906 = vrot.slane %v3904, 4
      %v3907 = vshll.u32 %v3824, 16
      %v3909 = vrot.slane %v3907, 5
      %v3910 = vor.u32 %v3906, %v3909
      %v3912 = vshrl.u32 %v3825, 16
      %v3914 = vrot.slane %v3912, 4
      %v3915 = vshll.u32 %v3825, 16
      %v3917 = vrot.slane %v3915, 5
      %v3918 = vor.u32 %v3914, %v3917
      %v3920 = vshrl.u32 %v3826, 16
      %v3922 = vrot.slane %v3920, 4
      %v3923 = vshll.u32 %v3826, 16
      %v3925 = vrot.slane %v3923, 5
      %v3926 = vor.u32 %v3922, %v3925
      %v3928 = vshrl.u32 %v3827, 16
      %v3930 = vrot.slane %v3928, 4
      %v3931 = vshll.u32 %v3827, 16
      %v3933 = vrot.slane %v3931, 5
      %v3934 = vor.u32 %v3930, %v3933
      %v3936 = vshrl.u32 %v3828, 16
      %v3938 = vrot.slane %v3936, 4
      %v3939 = vshll.u32 %v3828, 16
      %v3941 = vrot.slane %v3939, 5
      %v3942 = vor.u32 %v3938, %v3941
      %v3944 = vshrl.u32 %v3829, 16
      %v3946 = vrot.slane %v3944, 4
      %v3947 = vshll.u32 %v3829, 16
      %v3949 = vrot.slane %v3947, 5
      %v3950 = vor.u32 %v3946, %v3949
      %v3952 = vshrl.u32 %v3830, 16
      %v3954 = vrot.slane %v3952, 4
      %v3955 = vshll.u32 %v3830, 16
      %v3957 = vrot.slane %v3955, 5
      %v3958 = vor.u32 %v3954, %v3957
      %3959 = vrot.lane.b32.xlu0 %v3838, 96
      %v3960 = vpop.permute.xlu0 %3959
      %3961 = vrot.lane.b32.xlu0 %v3846, 96
      %v3962 = vpop.permute.xlu0 %3961
      %3963 = vrot.lane.b32.xlu0 %v3854, 96
      %v3964 = vpop.permute.xlu0 %3963
      %3965 = vrot.lane.b32.xlu0 %v3862, 96
      %v3966 = vpop.permute.xlu0 %3965
      %3967 = vrot.lane.b32.xlu0 %v3870, 96
      %v3968 = vpop.permute.xlu0 %3967
      %3969 = vrot.lane.b32.xlu0 %v3878, 96
      %v3970 = vpop.permute.xlu0 %3969
      %3971 = vrot.lane.b32.xlu0 %v3886, 96
      %v3972 = vpop.permute.xlu0 %3971
      %3973 = vrot.lane.b32.xlu0 %v3894, 96
      %v3974 = vpop.permute.xlu0 %3973
      %3975 = vrot.lane.b32.xlu0 %v3902, 96
      %v3976 = vpop.permute.xlu0 %3975
      %3977 = vrot.lane.b32.xlu0 %v3910, 96
      %v3978 = vpop.permute.xlu0 %3977
      %3979 = vrot.lane.b32.xlu0 %v3918, 96
      %v3980 = vpop.permute.xlu0 %3979
      %3981 = vrot.lane.b32.xlu0 %v3926, 96
      %v3982 = vpop.permute.xlu0 %3981
      %3983 = vrot.lane.b32.xlu0 %v3934, 96
      %v3984 = vpop.permute.xlu0 %3983
      %3985 = vrot.lane.b32.xlu0 %v3942, 96
      %v3986 = vpop.permute.xlu0 %3985
      %3987 = vrot.lane.b32.xlu0 %v3950, 96
      %v3988 = vpop.permute.xlu0 %3987
      %3989 = vrot.lane.b32.xlu0 %v3958, 96
      %v3990 = vpop.permute.xlu0 %3989
      %v4007 = vunpack.c.l.b16 %v2646
      %v4008 = vunpack.c.l.b16 %v2647
      %v4009 = vunpack.c.l.b16 %v2648
      %v4010 = vunpack.c.l.b16 %v2649
      %v4011 = vunpack.c.l.b16 %v2650
      %v4012 = vunpack.c.l.b16 %v2651
      %v4013 = vunpack.c.l.b16 %v2652
      %v4014 = vunpack.c.l.b16 %v2653
      %v4015 = vunpack.c.l.b16 %v2654
      %v4016 = vunpack.c.l.b16 %v2655
      %v4017 = vunpack.c.l.b16 %v2656
      %v4018 = vunpack.c.l.b16 %v2657
      %v4019 = vunpack.c.l.b16 %v2658
      %v4020 = vunpack.c.l.b16 %v2659
      %v4021 = vunpack.c.l.b16 %v2660
      %v4022 = vunpack.c.l.b16 %v2661
      %v4023 = vpack.c.b16 %v4007, %v4007
      %v4024 = vpack.c.b16 %v4008, %v4008
      %v4025 = vpack.c.b16 %v4009, %v4009
      %v4026 = vpack.c.b16 %v4010, %v4010
      %v4027 = vpack.c.b16 %v4011, %v4011
      %v4028 = vpack.c.b16 %v4012, %v4012
      %v4029 = vpack.c.b16 %v4013, %v4013
      %v4030 = vpack.c.b16 %v4014, %v4014
      %v4031 = vpack.c.b16 %v4015, %v4015
      %v4032 = vpack.c.b16 %v4016, %v4016
      %v4033 = vpack.c.b16 %v4017, %v4017
      %v4034 = vpack.c.b16 %v4018, %v4018
      %v4035 = vpack.c.b16 %v4019, %v4019
      %v4036 = vpack.c.b16 %v4020, %v4020
      %v4037 = vpack.c.b16 %v4021, %v4021
      %v4038 = vpack.c.b16 %v4022, %v4022
      %v4039 = vrot.slane %v3815, 5
      %v4040 = vrot.slane %v4023, 5
      %v4041 = vsel %vm3014, %v4039, %v4040
      %v4042 = vrot.slane %v3816, 5
      %v4043 = vrot.slane %v4024, 5
      %v4044 = vsel %vm3014, %v4042, %v4043
      %v4045 = vrot.slane %v3817, 5
      %v4046 = vrot.slane %v4025, 5
      %v4047 = vsel %vm3014, %v4045, %v4046
      %v4048 = vrot.slane %v3818, 5
      %v4049 = vrot.slane %v4026, 5
      %v4050 = vsel %vm3014, %v4048, %v4049
      %v4051 = vrot.slane %v3819, 5
      %v4052 = vrot.slane %v4027, 5
      %v4053 = vsel %vm3014, %v4051, %v4052
      %v4054 = vrot.slane %v3820, 5
      %v4055 = vrot.slane %v4028, 5
      %v4056 = vsel %vm3014, %v4054, %v4055
      %v4057 = vrot.slane %v3821, 5
      %v4058 = vrot.slane %v4029, 5
      %v4059 = vsel %vm3014, %v4057, %v4058
      %v4060 = vrot.slane %v3822, 5
      %v4061 = vrot.slane %v4030, 5
      %v4062 = vsel %vm3014, %v4060, %v4061
      %v4063 = vrot.slane %v3823, 5
      %v4064 = vrot.slane %v4031, 5
      %v4065 = vsel %vm3014, %v4063, %v4064
      %v4066 = vrot.slane %v3824, 5
      %v4067 = vrot.slane %v4032, 5
      %v4068 = vsel %vm3014, %v4066, %v4067
      %v4069 = vrot.slane %v3825, 5
      %v4070 = vrot.slane %v4033, 5
      %v4071 = vsel %vm3014, %v4069, %v4070
      %v4072 = vrot.slane %v3826, 5
      %v4073 = vrot.slane %v4034, 5
      %v4074 = vsel %vm3014, %v4072, %v4073
      %v4075 = vrot.slane %v3827, 5
      %v4076 = vrot.slane %v4035, 5
      %v4077 = vsel %vm3014, %v4075, %v4076
      %v4078 = vrot.slane %v3828, 5
      %v4079 = vrot.slane %v4036, 5
      %v4080 = vsel %vm3014, %v4078, %v4079
      %v4081 = vrot.slane %v3829, 5
      %v4082 = vrot.slane %v4037, 5
      %v4083 = vsel %vm3014, %v4081, %v4082
      %v4084 = vrot.slane %v3830, 5
      %v4085 = vrot.slane %v4038, 5
      %v4086 = vsel %vm3014, %v4084, %v4085
      %v4089 = vsel %vm690, %v2758, %v2935
      %v4091 = vsel %vm690, %v2759, %v2935
      %v4094 = vsel %vm690, %v2760, %v2937
      %v4096 = vsel %vm690, %v2761, %v2937
      %v4099 = vsel %vm690, %v2762, %v2939
      %v4101 = vsel %vm690, %v2763, %v2939
      %v4104 = vsel %vm690, %v2764, %v2941
      %v4106 = vsel %vm690, %v2765, %v2941
      %v4109 = vsel %vm690, %v2766, %v2943
      %v4111 = vsel %vm690, %v2767, %v2943
      %v4114 = vsel %vm690, %v2768, %v2945
      %v4116 = vsel %vm690, %v2769, %v2945
      %v4119 = vsel %vm690, %v2770, %v2947
      %v4121 = vsel %vm690, %v2771, %v2947
      %v4124 = vsel %vm690, %v2772, %v2949
      %v4126 = vsel %vm690, %v2773, %v2949
      %v4129 = vsel %vm690, %v2774, %v2951
      %v4131 = vsel %vm690, %v2775, %v2951
      %v4134 = vsel %vm690, %v2776, %v2953
      %v4136 = vsel %vm690, %v2777, %v2953
      %v4139 = vsel %vm690, %v2778, %v2955
      %v4141 = vsel %vm690, %v2779, %v2955
      %v4144 = vsel %vm690, %v2780, %v2957
      %v4146 = vsel %vm690, %v2781, %v2957
      %v4149 = vsel %vm690, %v2782, %v2959
      %v4151 = vsel %vm690, %v2783, %v2959
      %v4154 = vsel %vm690, %v2784, %v2961
      %v4156 = vsel %vm690, %v2785, %v2961
      %v4159 = vsel %vm690, %v2786, %v2963
      %v4161 = vsel %vm690, %v2787, %v2963
      %v4164 = vsel %vm690, %v2788, %v2965
      %v4166 = vsel %vm690, %v2789, %v2965
      %vm4167 = vcmask 523264
      %v4169 = vsel %vm4167, %v4089, %v3064
      %v4171 = vsel %vm4167, %v4091, %v3066
      %v4173 = vsel %vm4167, %v4094, %v3068
      %v4175 = vsel %vm4167, %v4096, %v3070
      %v4177 = vsel %vm4167, %v4099, %v3072
      %v4179 = vsel %vm4167, %v4101, %v3074
      %v4181 = vsel %vm4167, %v4104, %v3076
      %v4183 = vsel %vm4167, %v4106, %v3078
      %v4185 = vsel %vm4167, %v4109, %v3080
      %v4187 = vsel %vm4167, %v4111, %v3082
      %v4189 = vsel %vm4167, %v4114, %v3084
      %v4191 = vsel %vm4167, %v4116, %v3086
      %v4193 = vsel %vm4167, %v4119, %v3088
      %v4195 = vsel %vm4167, %v4121, %v3090
      %v4197 = vsel %vm4167, %v4124, %v3092
      %v4199 = vsel %vm4167, %v4126, %v3094
      %v4201 = vsel %vm4167, %v4129, %v3096
      %v4203 = vsel %vm4167, %v4131, %v3098
      %v4205 = vsel %vm4167, %v4134, %v3100
      %v4207 = vsel %vm4167, %v4136, %v3102
      %v4209 = vsel %vm4167, %v4139, %v3104
      %v4211 = vsel %vm4167, %v4141, %v3106
      %v4213 = vsel %vm4167, %v4144, %v3108
      %v4215 = vsel %vm4167, %v4146, %v3110
      %v4217 = vsel %vm4167, %v4149, %v3112
      %v4219 = vsel %vm4167, %v4151, %v3114
      %v4221 = vsel %vm4167, %v4154, %v3116
      %v4223 = vsel %vm4167, %v4156, %v3118
      %v4225 = vsel %vm4167, %v4159, %v3120
      %v4227 = vsel %vm4167, %v4161, %v3122
      %v4229 = vsel %vm4167, %v4164, %v3124
      %v4231 = vsel %vm4167, %v4166, %v3126
      %vm4232 = vcmask 785408
      %v4234 = vsel %vm4232, %v4169, %v3256
      %v4236 = vsel %vm4232, %v4171, %v3258
      %v4238 = vsel %vm4232, %v4173, %v3260
      %v4240 = vsel %vm4232, %v4175, %v3262
      %v4242 = vsel %vm4232, %v4177, %v3264
      %v4244 = vsel %vm4232, %v4179, %v3266
      %v4246 = vsel %vm4232, %v4181, %v3268
      %v4248 = vsel %vm4232, %v4183, %v3270
      %v4250 = vsel %vm4232, %v4185, %v3272
      %v4252 = vsel %vm4232, %v4187, %v3274
      %v4254 = vsel %vm4232, %v4189, %v3276
      %v4256 = vsel %vm4232, %v4191, %v3278
      %v4258 = vsel %vm4232, %v4193, %v3280
      %v4260 = vsel %vm4232, %v4195, %v3282
      %v4262 = vsel %vm4232, %v4197, %v3284
      %v4264 = vsel %vm4232, %v4199, %v3286
      %v4266 = vsel %vm4232, %v4201, %v3288
      %v4268 = vsel %vm4232, %v4203, %v3290
      %v4270 = vsel %vm4232, %v4205, %v3292
      %v4272 = vsel %vm4232, %v4207, %v3294
      %v4274 = vsel %vm4232, %v4209, %v3296
      %v4276 = vsel %vm4232, %v4211, %v3298
      %v4278 = vsel %vm4232, %v4213, %v3300
      %v4280 = vsel %vm4232, %v4215, %v3302
      %v4282 = vsel %vm4232, %v4217, %v3304
      %v4284 = vsel %vm4232, %v4219, %v3306
      %v4286 = vsel %vm4232, %v4221, %v3308
      %v4288 = vsel %vm4232, %v4223, %v3310
      %v4290 = vsel %vm4232, %v4225, %v3312
      %v4292 = vsel %vm4232, %v4227, %v3314
      %v4294 = vsel %vm4232, %v4229, %v3316
      %v4296 = vsel %vm4232, %v4231, %v3318
      %v4299 = vsel %vm690, %v3342, %v3560
      %v4301 = vsel %vm690, %v3342, %v3562
      %v4304 = vsel %vm690, %v3350, %v3564
      %v4306 = vsel %vm690, %v3350, %v3566
      %v4309 = vsel %vm690, %v3358, %v3568
      %v4311 = vsel %vm690, %v3358, %v3570
      %v4314 = vsel %vm690, %v3366, %v3572
      %v4316 = vsel %vm690, %v3366, %v3574
      %v4319 = vsel %vm690, %v3374, %v3576
      %v4321 = vsel %vm690, %v3374, %v3578
      %v4324 = vsel %vm690, %v3382, %v3580
      %v4326 = vsel %vm690, %v3382, %v3582
      %v4329 = vsel %vm690, %v3390, %v3584
      %v4331 = vsel %vm690, %v3390, %v3586
      %v4334 = vsel %vm690, %v3398, %v3588
      %v4336 = vsel %vm690, %v3398, %v3590
      %v4339 = vsel %vm690, %v3406, %v3592
      %v4341 = vsel %vm690, %v3406, %v3594
      %v4344 = vsel %vm690, %v3414, %v3596
      %v4346 = vsel %vm690, %v3414, %v3598
      %v4349 = vsel %vm690, %v3422, %v3600
      %v4351 = vsel %vm690, %v3422, %v3602
      %v4354 = vsel %vm690, %v3430, %v3604
      %v4356 = vsel %vm690, %v3430, %v3606
      %v4359 = vsel %vm690, %v3438, %v3608
      %v4361 = vsel %vm690, %v3438, %v3610
      %v4364 = vsel %vm690, %v3446, %v3612
      %v4366 = vsel %vm690, %v3446, %v3614
      %v4369 = vsel %vm690, %v3454, %v3616
      %v4371 = vsel %vm690, %v3454, %v3618
      %v4374 = vsel %vm690, %v3462, %v3620
      %v4376 = vsel %vm690, %v3462, %v3622
      %v4378 = vsel %vm4167, %v4299, %v3752
      %v4380 = vsel %vm4167, %v4301, %v3754
      %v4382 = vsel %vm4167, %v4304, %v3756
      %v4384 = vsel %vm4167, %v4306, %v3758
      %v4386 = vsel %vm4167, %v4309, %v3760
      %v4388 = vsel %vm4167, %v4311, %v3762
      %v4390 = vsel %vm4167, %v4314, %v3764
      %v4392 = vsel %vm4167, %v4316, %v3766
      %v4394 = vsel %vm4167, %v4319, %v3768
      %v4396 = vsel %vm4167, %v4321, %v3770
      %v4398 = vsel %vm4167, %v4324, %v3772
      %v4400 = vsel %vm4167, %v4326, %v3774
      %v4402 = vsel %vm4167, %v4329, %v3776
      %v4404 = vsel %vm4167, %v4331, %v3778
      %v4406 = vsel %vm4167, %v4334, %v3780
      %v4408 = vsel %vm4167, %v4336, %v3782
      %v4410 = vsel %vm4167, %v4339, %v3784
      %v4412 = vsel %vm4167, %v4341, %v3786
      %v4414 = vsel %vm4167, %v4344, %v3788
      %v4416 = vsel %vm4167, %v4346, %v3790
      %v4418 = vsel %vm4167, %v4349, %v3792
      %v4420 = vsel %vm4167, %v4351, %v3794
      %v4422 = vsel %vm4167, %v4354, %v3796
      %v4424 = vsel %vm4167, %v4356, %v3798
      %v4426 = vsel %vm4167, %v4359, %v3800
      %v4428 = vsel %vm4167, %v4361, %v3802
      %v4430 = vsel %vm4167, %v4364, %v3804
      %v4432 = vsel %vm4167, %v4366, %v3806
      %v4434 = vsel %vm4167, %v4369, %v3808
      %v4436 = vsel %vm4167, %v4371, %v3810
      %v4438 = vsel %vm4167, %v4374, %v3812
      %v4440 = vsel %vm4167, %v4376, %v3814
      %v4442 = vsel %vm4232, %v4378, %v3960
      %v4443 = vsel %vm4232, %v4380, %v3960
      %v4445 = vsel %vm4232, %v4382, %v3962
      %v4446 = vsel %vm4232, %v4384, %v3962
      %v4448 = vsel %vm4232, %v4386, %v3964
      %v4449 = vsel %vm4232, %v4388, %v3964
      %v4451 = vsel %vm4232, %v4390, %v3966
      %v4452 = vsel %vm4232, %v4392, %v3966
      %v4454 = vsel %vm4232, %v4394, %v3968
      %v4455 = vsel %vm4232, %v4396, %v3968
      %v4457 = vsel %vm4232, %v4398, %v3970
      %v4458 = vsel %vm4232, %v4400, %v3970
      %v4460 = vsel %vm4232, %v4402, %v3972
      %v4461 = vsel %vm4232, %v4404, %v3972
      %v4463 = vsel %vm4232, %v4406, %v3974
      %v4464 = vsel %vm4232, %v4408, %v3974
      %v4466 = vsel %vm4232, %v4410, %v3976
      %v4467 = vsel %vm4232, %v4412, %v3976
      %v4469 = vsel %vm4232, %v4414, %v3978
      %v4470 = vsel %vm4232, %v4416, %v3978
      %v4472 = vsel %vm4232, %v4418, %v3980
      %v4473 = vsel %vm4232, %v4420, %v3980
      %v4475 = vsel %vm4232, %v4422, %v3982
      %v4476 = vsel %vm4232, %v4424, %v3982
      %v4478 = vsel %vm4232, %v4426, %v3984
      %v4479 = vsel %vm4232, %v4428, %v3984
      %v4481 = vsel %vm4232, %v4430, %v3986
      %v4482 = vsel %vm4232, %v4432, %v3986
      %v4484 = vsel %vm4232, %v4434, %v3988
      %v4485 = vsel %vm4232, %v4436, %v3988
      %v4487 = vsel %vm4232, %v4438, %v3990
      %v4488 = vsel %vm4232, %v4440, %v3990
      %vm4489 = vsmask.f32 4352
      %v4490 = vshrl.u32 %v4234, 16
      %v4492 = vrot.slane %v4490, 3
      %v4493 = vshll.u32 %v4234, 16
      %v4495 = vrot.slane %v4493, 4
      %v4496 = vor.u32 %v4492, %v4495
      %v4497 = vshrl.u32 %v4236, 16
      %v4499 = vrot.slane %v4497, 3
      %v4500 = vshll.u32 %v4236, 16
      %v4502 = vrot.slane %v4500, 4
      %v4503 = vor.u32 %v4499, %v4502
      %v4504 = vsel %vm4489, %v4496, %v4503
      %v4505 = vshrl.u32 %v4442, 16
      %v4507 = vrot.slane %v4505, 3
      %v4508 = vshll.u32 %v4442, 16
      %v4510 = vrot.slane %v4508, 4
      %v4511 = vor.u32 %v4507, %v4510
      %v4512 = vshrl.u32 %v4443, 16
      %v4514 = vrot.slane %v4512, 3
      %v4515 = vshll.u32 %v4443, 16
      %v4517 = vrot.slane %v4515, 4
      %v4518 = vor.u32 %v4514, %v4517
      %v4519 = vsel %vm4489, %v4511, %v4518
      %v4521 = vshrl.u32 %v4039, 16
      %v4523 = vrot.slane %v4521, 3
      %v4524 = vshll.u32 %v4039, 16
      %v4526 = vrot.slane %v4524, 4
      %v4527 = vor.u32 %v4523, %v4526
      %v4529 = vshrl.u32 %v4041, 16
      %v4531 = vrot.slane %v4529, 3
      %v4532 = vshll.u32 %v4041, 16
      %v4534 = vrot.slane %v4532, 4
      %v4535 = vor.u32 %v4531, %v4534
      %v4536 = vsel %vm4489, %v4527, %v4535
      %v4537 = vshrl.u32 %v4238, 16
      %v4539 = vrot.slane %v4537, 3
      %v4540 = vshll.u32 %v4238, 16
      %v4542 = vrot.slane %v4540, 4
      %v4543 = vor.u32 %v4539, %v4542
      %v4544 = vshrl.u32 %v4240, 16
      %v4546 = vrot.slane %v4544, 3
      %v4547 = vshll.u32 %v4240, 16
      %v4549 = vrot.slane %v4547, 4
      %v4550 = vor.u32 %v4546, %v4549
      %v4551 = vsel %vm4489, %v4543, %v4550
      %v4552 = vshrl.u32 %v4445, 16
      %v4554 = vrot.slane %v4552, 3
      %v4555 = vshll.u32 %v4445, 16
      %v4557 = vrot.slane %v4555, 4
      %v4558 = vor.u32 %v4554, %v4557
      %v4559 = vshrl.u32 %v4446, 16
      %v4561 = vrot.slane %v4559, 3
      %v4562 = vshll.u32 %v4446, 16
      %v4564 = vrot.slane %v4562, 4
      %v4565 = vor.u32 %v4561, %v4564
      %v4566 = vsel %vm4489, %v4558, %v4565
      %v4568 = vshrl.u32 %v4042, 16
      %v4570 = vrot.slane %v4568, 3
      %v4571 = vshll.u32 %v4042, 16
      %v4573 = vrot.slane %v4571, 4
      %v4574 = vor.u32 %v4570, %v4573
      %v4576 = vshrl.u32 %v4044, 16
      %v4578 = vrot.slane %v4576, 3
      %v4579 = vshll.u32 %v4044, 16
      %v4581 = vrot.slane %v4579, 4
      %v4582 = vor.u32 %v4578, %v4581
      %v4583 = vsel %vm4489, %v4574, %v4582
      %v4584 = vshrl.u32 %v4242, 16
      %v4586 = vrot.slane %v4584, 3
      %v4587 = vshll.u32 %v4242, 16
      %v4589 = vrot.slane %v4587, 4
      %v4590 = vor.u32 %v4586, %v4589
      %v4591 = vshrl.u32 %v4244, 16
      %v4593 = vrot.slane %v4591, 3
      %v4594 = vshll.u32 %v4244, 16
      %v4596 = vrot.slane %v4594, 4
      %v4597 = vor.u32 %v4593, %v4596
      %v4598 = vsel %vm4489, %v4590, %v4597
      %v4599 = vshrl.u32 %v4448, 16
      %v4601 = vrot.slane %v4599, 3
      %v4602 = vshll.u32 %v4448, 16
      %v4604 = vrot.slane %v4602, 4
      %v4605 = vor.u32 %v4601, %v4604
      %v4606 = vshrl.u32 %v4449, 16
      %v4608 = vrot.slane %v4606, 3
      %v4609 = vshll.u32 %v4449, 16
      %v4611 = vrot.slane %v4609, 4
      %v4612 = vor.u32 %v4608, %v4611
      %v4613 = vsel %vm4489, %v4605, %v4612
      %v4615 = vshrl.u32 %v4045, 16
      %v4617 = vrot.slane %v4615, 3
      %v4618 = vshll.u32 %v4045, 16
      %v4620 = vrot.slane %v4618, 4
      %v4621 = vor.u32 %v4617, %v4620
      %v4623 = vshrl.u32 %v4047, 16
      %v4625 = vrot.slane %v4623, 3
      %v4626 = vshll.u32 %v4047, 16
      %v4628 = vrot.slane %v4626, 4
      %v4629 = vor.u32 %v4625, %v4628
      %v4630 = vsel %vm4489, %v4621, %v4629
      %v4631 = vshrl.u32 %v4246, 16
      %v4633 = vrot.slane %v4631, 3
      %v4634 = vshll.u32 %v4246, 16
      %v4636 = vrot.slane %v4634, 4
      %v4637 = vor.u32 %v4633, %v4636
      %v4638 = vshrl.u32 %v4248, 16
      %v4640 = vrot.slane %v4638, 3
      %v4641 = vshll.u32 %v4248, 16
      %v4643 = vrot.slane %v4641, 4
      %v4644 = vor.u32 %v4640, %v4643
      %v4645 = vsel %vm4489, %v4637, %v4644
      %v4646 = vshrl.u32 %v4451, 16
      %v4648 = vrot.slane %v4646, 3
      %v4649 = vshll.u32 %v4451, 16
      %v4651 = vrot.slane %v4649, 4
      %v4652 = vor.u32 %v4648, %v4651
      %v4653 = vshrl.u32 %v4452, 16
      %v4655 = vrot.slane %v4653, 3
      %v4656 = vshll.u32 %v4452, 16
      %v4658 = vrot.slane %v4656, 4
      %v4659 = vor.u32 %v4655, %v4658
      %v4660 = vsel %vm4489, %v4652, %v4659
      %v4662 = vshrl.u32 %v4048, 16
      %v4664 = vrot.slane %v4662, 3
      %v4665 = vshll.u32 %v4048, 16
      %v4667 = vrot.slane %v4665, 4
      %v4668 = vor.u32 %v4664, %v4667
      %v4670 = vshrl.u32 %v4050, 16
      %v4672 = vrot.slane %v4670, 3
      %v4673 = vshll.u32 %v4050, 16
      %v4675 = vrot.slane %v4673, 4
      %v4676 = vor.u32 %v4672, %v4675
      %v4677 = vsel %vm4489, %v4668, %v4676
      %v4678 = vshrl.u32 %v4250, 16
      %v4680 = vrot.slane %v4678, 3
      %v4681 = vshll.u32 %v4250, 16
      %v4683 = vrot.slane %v4681, 4
      %v4684 = vor.u32 %v4680, %v4683
      %v4685 = vshrl.u32 %v4252, 16
      %v4687 = vrot.slane %v4685, 3
      %v4688 = vshll.u32 %v4252, 16
      %v4690 = vrot.slane %v4688, 4
      %v4691 = vor.u32 %v4687, %v4690
      %v4692 = vsel %vm4489, %v4684, %v4691
      %v4693 = vshrl.u32 %v4454, 16
      %v4695 = vrot.slane %v4693, 3
      %v4696 = vshll.u32 %v4454, 16
      %v4698 = vrot.slane %v4696, 4
      %v4699 = vor.u32 %v4695, %v4698
      %v4700 = vshrl.u32 %v4455, 16
      %v4702 = vrot.slane %v4700, 3
      %v4703 = vshll.u32 %v4455, 16
      %v4705 = vrot.slane %v4703, 4
      %v4706 = vor.u32 %v4702, %v4705
      %v4707 = vsel %vm4489, %v4699, %v4706
      %v4709 = vshrl.u32 %v4051, 16
      %v4711 = vrot.slane %v4709, 3
      %v4712 = vshll.u32 %v4051, 16
      %v4714 = vrot.slane %v4712, 4
      %v4715 = vor.u32 %v4711, %v4714
      %v4717 = vshrl.u32 %v4053, 16
      %v4719 = vrot.slane %v4717, 3
      %v4720 = vshll.u32 %v4053, 16
      %v4722 = vrot.slane %v4720, 4
      %v4723 = vor.u32 %v4719, %v4722
      %v4724 = vsel %vm4489, %v4715, %v4723
      %v4725 = vshrl.u32 %v4254, 16
      %v4727 = vrot.slane %v4725, 3
      %v4728 = vshll.u32 %v4254, 16
      %v4730 = vrot.slane %v4728, 4
      %v4731 = vor.u32 %v4727, %v4730
      %v4732 = vshrl.u32 %v4256, 16
      %v4734 = vrot.slane %v4732, 3
      %v4735 = vshll.u32 %v4256, 16
      %v4737 = vrot.slane %v4735, 4
      %v4738 = vor.u32 %v4734, %v4737
      %v4739 = vsel %vm4489, %v4731, %v4738
      %v4740 = vshrl.u32 %v4457, 16
      %v4742 = vrot.slane %v4740, 3
      %v4743 = vshll.u32 %v4457, 16
      %v4745 = vrot.slane %v4743, 4
      %v4746 = vor.u32 %v4742, %v4745
      %v4747 = vshrl.u32 %v4458, 16
      %v4749 = vrot.slane %v4747, 3
      %v4750 = vshll.u32 %v4458, 16
      %v4752 = vrot.slane %v4750, 4
      %v4753 = vor.u32 %v4749, %v4752
      %v4754 = vsel %vm4489, %v4746, %v4753
      %v4756 = vshrl.u32 %v4054, 16
      %v4758 = vrot.slane %v4756, 3
      %v4759 = vshll.u32 %v4054, 16
      %v4761 = vrot.slane %v4759, 4
      %v4762 = vor.u32 %v4758, %v4761
      %v4764 = vshrl.u32 %v4056, 16
      %v4766 = vrot.slane %v4764, 3
      %v4767 = vshll.u32 %v4056, 16
      %v4769 = vrot.slane %v4767, 4
      %v4770 = vor.u32 %v4766, %v4769
      %v4771 = vsel %vm4489, %v4762, %v4770
      %v4772 = vshrl.u32 %v4258, 16
      %v4774 = vrot.slane %v4772, 3
      %v4775 = vshll.u32 %v4258, 16
      %v4777 = vrot.slane %v4775, 4
      %v4778 = vor.u32 %v4774, %v4777
      %v4779 = vshrl.u32 %v4260, 16
      %v4781 = vrot.slane %v4779, 3
      %v4782 = vshll.u32 %v4260, 16
      %v4784 = vrot.slane %v4782, 4
      %v4785 = vor.u32 %v4781, %v4784
      %v4786 = vsel %vm4489, %v4778, %v4785
      %v4787 = vshrl.u32 %v4460, 16
      %v4789 = vrot.slane %v4787, 3
      %v4790 = vshll.u32 %v4460, 16
      %v4792 = vrot.slane %v4790, 4
      %v4793 = vor.u32 %v4789, %v4792
      %v4794 = vshrl.u32 %v4461, 16
      %v4796 = vrot.slane %v4794, 3
      %v4797 = vshll.u32 %v4461, 16
      %v4799 = vrot.slane %v4797, 4
      %v4800 = vor.u32 %v4796, %v4799
      %v4801 = vsel %vm4489, %v4793, %v4800
      %v4803 = vshrl.u32 %v4057, 16
      %v4805 = vrot.slane %v4803, 3
      %v4806 = vshll.u32 %v4057, 16
      %v4808 = vrot.slane %v4806, 4
      %v4809 = vor.u32 %v4805, %v4808
      %v4811 = vshrl.u32 %v4059, 16
      %v4813 = vrot.slane %v4811, 3
      %v4814 = vshll.u32 %v4059, 16
      %v4816 = vrot.slane %v4814, 4
      %v4817 = vor.u32 %v4813, %v4816
      %v4818 = vsel %vm4489, %v4809, %v4817
      %v4819 = vshrl.u32 %v4262, 16
      %v4821 = vrot.slane %v4819, 3
      %v4822 = vshll.u32 %v4262, 16
      %v4824 = vrot.slane %v4822, 4
      %v4825 = vor.u32 %v4821, %v4824
      %v4826 = vshrl.u32 %v4264, 16
      %v4828 = vrot.slane %v4826, 3
      %v4829 = vshll.u32 %v4264, 16
      %v4831 = vrot.slane %v4829, 4
      %v4832 = vor.u32 %v4828, %v4831
      %v4833 = vsel %vm4489, %v4825, %v4832
      %v4834 = vshrl.u32 %v4463, 16
      %v4836 = vrot.slane %v4834, 3
      %v4837 = vshll.u32 %v4463, 16
      %v4839 = vrot.slane %v4837, 4
      %v4840 = vor.u32 %v4836, %v4839
      %v4841 = vshrl.u32 %v4464, 16
      %v4843 = vrot.slane %v4841, 3
      %v4844 = vshll.u32 %v4464, 16
      %v4846 = vrot.slane %v4844, 4
      %v4847 = vor.u32 %v4843, %v4846
      %v4848 = vsel %vm4489, %v4840, %v4847
      %v4850 = vshrl.u32 %v4060, 16
      %v4852 = vrot.slane %v4850, 3
      %v4853 = vshll.u32 %v4060, 16
      %v4855 = vrot.slane %v4853, 4
      %v4856 = vor.u32 %v4852, %v4855
      %v4858 = vshrl.u32 %v4062, 16
      %v4860 = vrot.slane %v4858, 3
      %v4861 = vshll.u32 %v4062, 16
      %v4863 = vrot.slane %v4861, 4
      %v4864 = vor.u32 %v4860, %v4863
      %v4865 = vsel %vm4489, %v4856, %v4864
      %v4866 = vshrl.u32 %v4266, 16
      %v4868 = vrot.slane %v4866, 3
      %v4869 = vshll.u32 %v4266, 16
      %v4871 = vrot.slane %v4869, 4
      %v4872 = vor.u32 %v4868, %v4871
      %v4873 = vshrl.u32 %v4268, 16
      %v4875 = vrot.slane %v4873, 3
      %v4876 = vshll.u32 %v4268, 16
      %v4878 = vrot.slane %v4876, 4
      %v4879 = vor.u32 %v4875, %v4878
      %v4880 = vsel %vm4489, %v4872, %v4879
      %v4881 = vshrl.u32 %v4466, 16
      %v4883 = vrot.slane %v4881, 3
      %v4884 = vshll.u32 %v4466, 16
      %v4886 = vrot.slane %v4884, 4
      %v4887 = vor.u32 %v4883, %v4886
      %v4888 = vshrl.u32 %v4467, 16
      %v4890 = vrot.slane %v4888, 3
      %v4891 = vshll.u32 %v4467, 16
      %v4893 = vrot.slane %v4891, 4
      %v4894 = vor.u32 %v4890, %v4893
      %v4895 = vsel %vm4489, %v4887, %v4894
      %v4897 = vshrl.u32 %v4063, 16
      %v4899 = vrot.slane %v4897, 3
      %v4900 = vshll.u32 %v4063, 16
      %v4902 = vrot.slane %v4900, 4
      %v4903 = vor.u32 %v4899, %v4902
      %v4905 = vshrl.u32 %v4065, 16
      %v4907 = vrot.slane %v4905, 3
      %v4908 = vshll.u32 %v4065, 16
      %v4910 = vrot.slane %v4908, 4
      %v4911 = vor.u32 %v4907, %v4910
      %v4912 = vsel %vm4489, %v4903, %v4911
      %v4913 = vshrl.u32 %v4270, 16
      %v4915 = vrot.slane %v4913, 3
      %v4916 = vshll.u32 %v4270, 16
      %v4918 = vrot.slane %v4916, 4
      %v4919 = vor.u32 %v4915, %v4918
      %v4920 = vshrl.u32 %v4272, 16
      %v4922 = vrot.slane %v4920, 3
      %v4923 = vshll.u32 %v4272, 16
      %v4925 = vrot.slane %v4923, 4
      %v4926 = vor.u32 %v4922, %v4925
      %v4927 = vsel %vm4489, %v4919, %v4926
      %v4928 = vshrl.u32 %v4469, 16
      %v4930 = vrot.slane %v4928, 3
      %v4931 = vshll.u32 %v4469, 16
      %v4933 = vrot.slane %v4931, 4
      %v4934 = vor.u32 %v4930, %v4933
      %v4935 = vshrl.u32 %v4470, 16
      %v4937 = vrot.slane %v4935, 3
      %v4938 = vshll.u32 %v4470, 16
      %v4940 = vrot.slane %v4938, 4
      %v4941 = vor.u32 %v4937, %v4940
      %v4942 = vsel %vm4489, %v4934, %v4941
      %v4944 = vshrl.u32 %v4066, 16
      %v4946 = vrot.slane %v4944, 3
      %v4947 = vshll.u32 %v4066, 16
      %v4949 = vrot.slane %v4947, 4
      %v4950 = vor.u32 %v4946, %v4949
      %v4952 = vshrl.u32 %v4068, 16
      %v4954 = vrot.slane %v4952, 3
      %v4955 = vshll.u32 %v4068, 16
      %v4957 = vrot.slane %v4955, 4
      %v4958 = vor.u32 %v4954, %v4957
      %v4959 = vsel %vm4489, %v4950, %v4958
      %v4960 = vshrl.u32 %v4274, 16
      %v4962 = vrot.slane %v4960, 3
      %v4963 = vshll.u32 %v4274, 16
      %v4965 = vrot.slane %v4963, 4
      %v4966 = vor.u32 %v4962, %v4965
      %v4967 = vshrl.u32 %v4276, 16
      %v4969 = vrot.slane %v4967, 3
      %v4970 = vshll.u32 %v4276, 16
      %v4972 = vrot.slane %v4970, 4
      %v4973 = vor.u32 %v4969, %v4972
      %v4974 = vsel %vm4489, %v4966, %v4973
      %v4975 = vshrl.u32 %v4472, 16
      %v4977 = vrot.slane %v4975, 3
      %v4978 = vshll.u32 %v4472, 16
      %v4980 = vrot.slane %v4978, 4
      %v4981 = vor.u32 %v4977, %v4980
      %v4982 = vshrl.u32 %v4473, 16
      %v4984 = vrot.slane %v4982, 3
      %v4985 = vshll.u32 %v4473, 16
      %v4987 = vrot.slane %v4985, 4
      %v4988 = vor.u32 %v4984, %v4987
      %v4989 = vsel %vm4489, %v4981, %v4988
      %v4991 = vshrl.u32 %v4069, 16
      %v4993 = vrot.slane %v4991, 3
      %v4994 = vshll.u32 %v4069, 16
      %v4996 = vrot.slane %v4994, 4
      %v4997 = vor.u32 %v4993, %v4996
      %v4999 = vshrl.u32 %v4071, 16
      %v5001 = vrot.slane %v4999, 3
      %v5002 = vshll.u32 %v4071, 16
      %v5004 = vrot.slane %v5002, 4
      %v5005 = vor.u32 %v5001, %v5004
      %v5006 = vsel %vm4489, %v4997, %v5005
      %v5007 = vshrl.u32 %v4278, 16
      %v5009 = vrot.slane %v5007, 3
      %v5010 = vshll.u32 %v4278, 16
      %v5012 = vrot.slane %v5010, 4
      %v5013 = vor.u32 %v5009, %v5012
      %v5014 = vshrl.u32 %v4280, 16
      %v5016 = vrot.slane %v5014, 3
      %v5017 = vshll.u32 %v4280, 16
      %v5019 = vrot.slane %v5017, 4
      %v5020 = vor.u32 %v5016, %v5019
      %v5021 = vsel %vm4489, %v5013, %v5020
      %v5022 = vshrl.u32 %v4475, 16
      %v5024 = vrot.slane %v5022, 3
      %v5025 = vshll.u32 %v4475, 16
      %v5027 = vrot.slane %v5025, 4
      %v5028 = vor.u32 %v5024, %v5027
      %v5029 = vshrl.u32 %v4476, 16
      %v5031 = vrot.slane %v5029, 3
      %v5032 = vshll.u32 %v4476, 16
      %v5034 = vrot.slane %v5032, 4
      %v5035 = vor.u32 %v5031, %v5034
      %v5036 = vsel %vm4489, %v5028, %v5035
      %v5038 = vshrl.u32 %v4072, 16
      %v5040 = vrot.slane %v5038, 3
      %v5041 = vshll.u32 %v4072, 16
      %v5043 = vrot.slane %v5041, 4
      %v5044 = vor.u32 %v5040, %v5043
      %v5046 = vshrl.u32 %v4074, 16
      %v5048 = vrot.slane %v5046, 3
      %v5049 = vshll.u32 %v4074, 16
      %v5051 = vrot.slane %v5049, 4
      %v5052 = vor.u32 %v5048, %v5051
      %v5053 = vsel %vm4489, %v5044, %v5052
      %v5054 = vshrl.u32 %v4282, 16
      %v5056 = vrot.slane %v5054, 3
      %v5057 = vshll.u32 %v4282, 16
      %v5059 = vrot.slane %v5057, 4
      %v5060 = vor.u32 %v5056, %v5059
      %v5061 = vshrl.u32 %v4284, 16
      %v5063 = vrot.slane %v5061, 3
      %v5064 = vshll.u32 %v4284, 16
      %v5066 = vrot.slane %v5064, 4
      %v5067 = vor.u32 %v5063, %v5066
      %v5068 = vsel %vm4489, %v5060, %v5067
      %v5069 = vshrl.u32 %v4478, 16
      %v5071 = vrot.slane %v5069, 3
      %v5072 = vshll.u32 %v4478, 16
      %v5074 = vrot.slane %v5072, 4
      %v5075 = vor.u32 %v5071, %v5074
      %v5076 = vshrl.u32 %v4479, 16
      %v5078 = vrot.slane %v5076, 3
      %v5079 = vshll.u32 %v4479, 16
      %v5081 = vrot.slane %v5079, 4
      %v5082 = vor.u32 %v5078, %v5081
      %v5083 = vsel %vm4489, %v5075, %v5082
      %v5085 = vshrl.u32 %v4075, 16
      %v5087 = vrot.slane %v5085, 3
      %v5088 = vshll.u32 %v4075, 16
      %v5090 = vrot.slane %v5088, 4
      %v5091 = vor.u32 %v5087, %v5090
      %v5093 = vshrl.u32 %v4077, 16
      %v5095 = vrot.slane %v5093, 3
      %v5096 = vshll.u32 %v4077, 16
      %v5098 = vrot.slane %v5096, 4
      %v5099 = vor.u32 %v5095, %v5098
      %v5100 = vsel %vm4489, %v5091, %v5099
      %v5101 = vshrl.u32 %v4286, 16
      %v5103 = vrot.slane %v5101, 3
      %v5104 = vshll.u32 %v4286, 16
      %v5106 = vrot.slane %v5104, 4
      %v5107 = vor.u32 %v5103, %v5106
      %v5108 = vshrl.u32 %v4288, 16
      %v5110 = vrot.slane %v5108, 3
      %v5111 = vshll.u32 %v4288, 16
      %v5113 = vrot.slane %v5111, 4
      %v5114 = vor.u32 %v5110, %v5113
      %v5115 = vsel %vm4489, %v5107, %v5114
      %v5116 = vshrl.u32 %v4481, 16
      %v5118 = vrot.slane %v5116, 3
      %v5119 = vshll.u32 %v4481, 16
      %v5121 = vrot.slane %v5119, 4
      %v5122 = vor.u32 %v5118, %v5121
      %v5123 = vshrl.u32 %v4482, 16
      %v5125 = vrot.slane %v5123, 3
      %v5126 = vshll.u32 %v4482, 16
      %v5128 = vrot.slane %v5126, 4
      %v5129 = vor.u32 %v5125, %v5128
      %v5130 = vsel %vm4489, %v5122, %v5129
      %v5132 = vshrl.u32 %v4078, 16
      %v5134 = vrot.slane %v5132, 3
      %v5135 = vshll.u32 %v4078, 16
      %v5137 = vrot.slane %v5135, 4
      %v5138 = vor.u32 %v5134, %v5137
      %v5140 = vshrl.u32 %v4080, 16
      %v5142 = vrot.slane %v5140, 3
      %v5143 = vshll.u32 %v4080, 16
      %v5145 = vrot.slane %v5143, 4
      %v5146 = vor.u32 %v5142, %v5145
      %v5147 = vsel %vm4489, %v5138, %v5146
      %v5148 = vshrl.u32 %v4290, 16
      %v5150 = vrot.slane %v5148, 3
      %v5151 = vshll.u32 %v4290, 16
      %v5153 = vrot.slane %v5151, 4
      %v5154 = vor.u32 %v5150, %v5153
      %v5155 = vshrl.u32 %v4292, 16
      %v5157 = vrot.slane %v5155, 3
      %v5158 = vshll.u32 %v4292, 16
      %v5160 = vrot.slane %v5158, 4
      %v5161 = vor.u32 %v5157, %v5160
      %v5162 = vsel %vm4489, %v5154, %v5161
      %v5163 = vshrl.u32 %v4484, 16
      %v5165 = vrot.slane %v5163, 3
      %v5166 = vshll.u32 %v4484, 16
      %v5168 = vrot.slane %v5166, 4
      %v5169 = vor.u32 %v5165, %v5168
      %v5170 = vshrl.u32 %v4485, 16
      %v5172 = vrot.slane %v5170, 3
      %v5173 = vshll.u32 %v4485, 16
      %v5175 = vrot.slane %v5173, 4
      %v5176 = vor.u32 %v5172, %v5175
      %v5177 = vsel %vm4489, %v5169, %v5176
      %v5179 = vshrl.u32 %v4081, 16
      %v5181 = vrot.slane %v5179, 3
      %v5182 = vshll.u32 %v4081, 16
      %v5184 = vrot.slane %v5182, 4
      %v5185 = vor.u32 %v5181, %v5184
      %v5187 = vshrl.u32 %v4083, 16
      %v5189 = vrot.slane %v5187, 3
      %v5190 = vshll.u32 %v4083, 16
      %v5192 = vrot.slane %v5190, 4
      %v5193 = vor.u32 %v5189, %v5192
      %v5194 = vsel %vm4489, %v5185, %v5193
      %v5195 = vshrl.u32 %v4294, 16
      %v5197 = vrot.slane %v5195, 3
      %v5198 = vshll.u32 %v4294, 16
      %v5200 = vrot.slane %v5198, 4
      %v5201 = vor.u32 %v5197, %v5200
      %v5202 = vshrl.u32 %v4296, 16
      %v5204 = vrot.slane %v5202, 3
      %v5205 = vshll.u32 %v4296, 16
      %v5207 = vrot.slane %v5205, 4
      %v5208 = vor.u32 %v5204, %v5207
      %v5209 = vsel %vm4489, %v5201, %v5208
      %v5210 = vshrl.u32 %v4487, 16
      %v5212 = vrot.slane %v5210, 3
      %v5213 = vshll.u32 %v4487, 16
      %v5215 = vrot.slane %v5213, 4
      %v5216 = vor.u32 %v5212, %v5215
      %v5217 = vshrl.u32 %v4488, 16
      %v5219 = vrot.slane %v5217, 3
      %v5220 = vshll.u32 %v4488, 16
      %v5222 = vrot.slane %v5220, 4
      %v5223 = vor.u32 %v5219, %v5222
      %v5224 = vsel %vm4489, %v5216, %v5223
      %v5226 = vshrl.u32 %v4084, 16
      %v5228 = vrot.slane %v5226, 3
      %v5229 = vshll.u32 %v4084, 16
      %v5231 = vrot.slane %v5229, 4
      %v5232 = vor.u32 %v5228, %v5231
      %v5234 = vshrl.u32 %v4086, 16
      %v5236 = vrot.slane %v5234, 3
      %v5237 = vshll.u32 %v4086, 16
      %v5239 = vrot.slane %v5237, 4
      %v5240 = vor.u32 %v5236, %v5239
      %v5241 = vsel %vm4489, %v5232, %v5240
      %v5274 = vld [vmem:[%s3] sm:$0xf]
      %v5275 = vld [vmem:[%s3 + $0x4] sm:$0xf]
      %v5276 = vld [vmem:[%s3 + $0x8] sm:$0xf]
      %v5277 = vld [vmem:[%s3 + $0xc] sm:$0xf]
      %v5278 = vld [vmem:[%s3 + $0x10] sm:$0xf]
      %v5279 = vld [vmem:[%s3 + $0x14] sm:$0xf]
      %v5280 = vld [vmem:[%s3 + $0x18] sm:$0xf]
      %v5281 = vld [vmem:[%s3 + $0x1c] sm:$0xf]
      %v5282 = vld [vmem:[%s3 + $0x20] sm:$0xf]
      %v5283 = vld [vmem:[%s3 + $0x24] sm:$0xf]
      %v5284 = vld [vmem:[%s3 + $0x28] sm:$0xf]
      %v5285 = vld [vmem:[%s3 + $0x2c] sm:$0xf]
      %v5286 = vld [vmem:[%s3 + $0x30] sm:$0xf]
      %v5287 = vld [vmem:[%s3 + $0x34] sm:$0xf]
      %v5288 = vld [vmem:[%s3 + $0x38] sm:$0xf]
      %v5289 = vld [vmem:[%s3 + $0x3c] sm:$0xf]
      %v5290 = vld [vmem:[%s3 + $0x40] sm:$0xf]
      %v5291 = vld [vmem:[%s3 + $0x44] sm:$0xf]
      %v5292 = vld [vmem:[%s3 + $0x48] sm:$0xf]
      %v5293 = vld [vmem:[%s3 + $0x4c] sm:$0xf]
      %v5294 = vld [vmem:[%s3 + $0x50] sm:$0xf]
      %v5295 = vld [vmem:[%s3 + $0x54] sm:$0xf]
      %v5296 = vld [vmem:[%s3 + $0x58] sm:$0xf]
      %v5297 = vld [vmem:[%s3 + $0x5c] sm:$0xf]
      %v5298 = vld [vmem:[%s3 + $0x60] sm:$0xf]
      %v5299 = vld [vmem:[%s3 + $0x64] sm:$0xf]
      %v5300 = vld [vmem:[%s3 + $0x68] sm:$0xf]
      %v5301 = vld [vmem:[%s3 + $0x6c] sm:$0xf]
      %v5302 = vld [vmem:[%s3 + $0x70] sm:$0xf]
      %v5303 = vld [vmem:[%s3 + $0x74] sm:$0xf]
      %v5304 = vld [vmem:[%s3 + $0x78] sm:$0xf]
      %v5305 = vld [vmem:[%s3 + $0x7c] sm:$0xf]
      %v5306 = vld [vmem:[%s3 + $0x80] sm:$0xf]
      %v5307 = vld [vmem:[%s3 + $0x84] sm:$0xf]
      %v5308 = vld [vmem:[%s3 + $0x88] sm:$0xf]
      %v5309 = vld [vmem:[%s3 + $0x8c] sm:$0xf]
      %v5346 = vunpack.c.l.b16 %v5274
      %v5347 = vunpack.c.l.b16 %v5275
      %v5348 = vunpack.c.l.b16 %v5276
      %v5349 = vunpack.c.l.b16 %v5277
      %v5350 = vunpack.c.l.b16 %v5278
      %v5351 = vunpack.c.l.b16 %v5279
      %v5352 = vunpack.c.l.b16 %v5280
      %v5353 = vunpack.c.l.b16 %v5281
      %v5354 = vunpack.c.l.b16 %v5282
      %v5355 = vunpack.c.l.b16 %v5283
      %v5356 = vunpack.c.l.b16 %v5284
      %v5357 = vunpack.c.l.b16 %v5285
      %v5358 = vunpack.c.l.b16 %v5286
      %v5359 = vunpack.c.l.b16 %v5287
      %v5360 = vunpack.c.l.b16 %v5288
      %v5361 = vunpack.c.l.b16 %v5289
      %v5362 = vunpack.c.l.b16 %v5290
      %v5363 = vunpack.c.l.b16 %v5291
      %v5364 = vunpack.c.l.b16 %v5292
      %v5365 = vunpack.c.l.b16 %v5293
      %v5366 = vunpack.c.l.b16 %v5294
      %v5367 = vunpack.c.l.b16 %v5295
      %v5368 = vunpack.c.l.b16 %v5296
      %v5369 = vunpack.c.l.b16 %v5297
      %v5370 = vunpack.c.l.b16 %v5298
      %v5371 = vunpack.c.l.b16 %v5299
      %v5372 = vunpack.c.l.b16 %v5300
      %v5373 = vunpack.c.l.b16 %v5301
      %v5374 = vunpack.c.l.b16 %v5302
      %v5375 = vunpack.c.l.b16 %v5303
      %v5376 = vunpack.c.l.b16 %v5304
      %v5377 = vunpack.c.l.b16 %v5305
      %v5378 = vunpack.c.l.b16 %v5306
      %v5379 = vunpack.c.l.b16 %v5307
      %v5380 = vunpack.c.l.b16 %v5308
      %v5381 = vunpack.c.l.b16 %v5309
      %v5382 = vpack.c.b16 %v5347, %v5346
      %v5383 = vpack.c.b16 %v5349, %v5348
      %v5384 = vpack.c.b16 %v5351, %v5350
      %v5385 = vpack.c.b16 %v5353, %v5352
      %v5386 = vpack.c.b16 %v5355, %v5354
      %v5387 = vpack.c.b16 %v5357, %v5356
      %v5388 = vpack.c.b16 %v5359, %v5358
      %v5389 = vpack.c.b16 %v5361, %v5360
      %v5390 = vpack.c.b16 %v5363, %v5362
      %v5391 = vpack.c.b16 %v5365, %v5364
      %v5392 = vpack.c.b16 %v5367, %v5366
      %v5393 = vpack.c.b16 %v5369, %v5368
      %v5394 = vpack.c.b16 %v5371, %v5370
      %v5395 = vpack.c.b16 %v5373, %v5372
      %v5396 = vpack.c.b16 %v5375, %v5374
      %v5397 = vpack.c.b16 %v5377, %v5376
      %v5398 = vpack.c.b16 %v5379, %v5378
      %v5399 = vpack.c.b16 %v5381, %v5380
      %v5419 = vsel %vm690, %v4536, 0
      %v5422 = vsel %vm690, %v4583, 0
      %v5425 = vsel %vm690, %v4630, 0
      %v5428 = vsel %vm690, %v4677, 0
      %v5431 = vsel %vm690, %v4724, 0
      %v5434 = vsel %vm690, %v4771, 0
      %v5437 = vsel %vm690, %v4818, 0
      %v5440 = vsel %vm690, %v4865, 0
      %v5443 = vsel %vm690, %v4912, 0
      %v5446 = vsel %vm690, %v4959, 0
      %v5449 = vsel %vm690, %v5006, 0
      %v5452 = vsel %vm690, %v5053, 0
      %v5455 = vsel %vm690, %v5100, 0
      %v5458 = vsel %vm690, %v5147, 0
      %v5461 = vsel %vm690, %v5194, 0
      %v5464 = vsel %vm690, %v5241, 0
      %5466 = vmatprep.subr.bf16.mxu0 0
      %5467 = vmatpush1.bf16.msra.mxu0 %v5389
      %5468 = vmatprep.subr.bf16.mxu0 0
      %5469 = vmatpush1.bf16.msra.mxu0 %v5388
      %5470 = vmatprep.subr.bf16.mxu0 0
      %5471 = vmatpush1.bf16.msra.mxu0 %v5387
      %5472 = vmatprep.subr.bf16.mxu0 0
      %5473 = vmatpush1.bf16.msra.mxu0 %v5386
      %5474 = vmatprep.subr.bf16.mxu0 0
      %5475 = vmatpush1.bf16.msra.mxu0 %v5385
      %5476 = vmatprep.subr.bf16.mxu0 0
      %5477 = vmatpush1.bf16.msra.mxu0 %v5384
      %5478 = vmatprep.subr.bf16.mxu0 0
      %5479 = vmatpush1.bf16.msra.mxu0 %v5383
      %5480 = vmatprep.subr.bf16.mxu0 0
      %5481 = vmatpush1.bf16.msra.mxu0 %v5382
      %5482 = vmatprep.subr.bf16.mxu0 0
      %5483 = vmatpush2.bf16.msra.mxu0 %v5397
      %5484 = vmatprep.subr.bf16.mxu0 0
      %5485 = vmatpush2.bf16.msra.mxu0 %v5396
      %5486 = vmatprep.subr.bf16.mxu0 0
      %5487 = vmatpush2.bf16.msra.mxu0 %v5395
      %5488 = vmatprep.subr.bf16.mxu0 0
      %5489 = vmatpush2.bf16.msra.mxu0 %v5394
      %5490 = vmatprep.subr.bf16.mxu0 0
      %5491 = vmatpush2.bf16.msra.mxu0 %v5393
      %5492 = vmatprep.subr.bf16.mxu0 0
      %5493 = vmatpush2.bf16.msra.mxu0 %v5392
      %5494 = vmatprep.subr.bf16.mxu0 0
      %5495 = vmatpush2.bf16.msra.mxu0 %v5391
      %5496 = vmatprep.subr.bf16.mxu0 0
      %5497 = vmatpush2.bf16.msra.mxu0 %v5390
      %5498 = vmatprep.mubr.bf16.mxu0 %v4519
      %5499 = vmatmul.mubr.bf16.gmra.mxu0 %v4504
      %v5500 = vpop.f32.mrf.mxu0
      %v5501 = vadd.f32 0.0, %v5500
      %v5502 = vpop.f32.mrf.mxu0
      %v5503 = vpop.f32.mrf.mxu0
      %v5504 = vadd.f32 0.0, %v5503
      %v5505 = vpop.f32.mrf.mxu0
      %5506 = vmatprep.mubr.bf16.mxu0 %v4566
      %5507 = vmatmul.mubr.bf16.gmra.mxu0 %v4551
      %v5508 = vpop.f32.mrf.mxu0
      %v5509 = vadd.f32 0.0, %v5508
      %v5510 = vpop.f32.mrf.mxu0
      %v5511 = vpop.f32.mrf.mxu0
      %v5512 = vadd.f32 0.0, %v5511
      %v5513 = vpop.f32.mrf.mxu0
      %5514 = vmatprep.mubr.bf16.mxu0 %v4613
      %5515 = vmatmul.mubr.bf16.gmra.mxu0 %v4598
      %v5516 = vpop.f32.mrf.mxu0
      %v5517 = vadd.f32 0.0, %v5516
      %v5518 = vpop.f32.mrf.mxu0
      %v5519 = vpop.f32.mrf.mxu0
      %v5520 = vadd.f32 0.0, %v5519
      %v5521 = vpop.f32.mrf.mxu0
      %5522 = vmatprep.mubr.bf16.mxu0 %v4660
      %5523 = vmatmul.mubr.bf16.gmra.mxu0 %v4645
      %v5524 = vpop.f32.mrf.mxu0
      %v5525 = vadd.f32 0.0, %v5524
      %v5526 = vpop.f32.mrf.mxu0
      %v5527 = vpop.f32.mrf.mxu0
      %v5528 = vadd.f32 0.0, %v5527
      %v5529 = vpop.f32.mrf.mxu0
      %5530 = vmatprep.mubr.bf16.mxu0 %v4707
      %5531 = vmatmul.mubr.bf16.gmra.mxu0 %v4692
      %v5532 = vpop.f32.mrf.mxu0
      %v5533 = vadd.f32 0.0, %v5532
      %v5534 = vpop.f32.mrf.mxu0
      %v5535 = vpop.f32.mrf.mxu0
      %v5536 = vadd.f32 0.0, %v5535
      %v5537 = vpop.f32.mrf.mxu0
      %5538 = vmatprep.mubr.bf16.mxu0 %v4754
      %5539 = vmatmul.mubr.bf16.gmra.mxu0 %v4739
      %v5540 = vpop.f32.mrf.mxu0
      %v5541 = vadd.f32 0.0, %v5540
      %v5542 = vpop.f32.mrf.mxu0
      %v5543 = vpop.f32.mrf.mxu0
      %v5544 = vadd.f32 0.0, %v5543
      %v5545 = vpop.f32.mrf.mxu0
      %5546 = vmatprep.mubr.bf16.mxu0 %v4801
      %5547 = vmatmul.mubr.bf16.gmra.mxu0 %v4786
      %v5548 = vpop.f32.mrf.mxu0
      %v5549 = vadd.f32 0.0, %v5548
      %v5550 = vpop.f32.mrf.mxu0
      %v5551 = vpop.f32.mrf.mxu0
      %v5552 = vadd.f32 0.0, %v5551
      %v5553 = vpop.f32.mrf.mxu0
      %5554 = vmatprep.mubr.bf16.mxu0 %v4848
      %5555 = vmatmul.mubr.bf16.gmra.mxu0 %v4833
      %v5556 = vpop.f32.mrf.mxu0
      %v5557 = vadd.f32 0.0, %v5556
      %v5558 = vpop.f32.mrf.mxu0
      %v5559 = vpop.f32.mrf.mxu0
      %v5560 = vadd.f32 0.0, %v5559
      %v5561 = vpop.f32.mrf.mxu0
      %5562 = vmatprep.mubr.bf16.mxu0 %v4895
      %5563 = vmatmul.mubr.bf16.gmra.mxu0 %v4880
      %v5564 = vpop.f32.mrf.mxu0
      %v5565 = vadd.f32 0.0, %v5564
      %v5566 = vpop.f32.mrf.mxu0
      %v5567 = vpop.f32.mrf.mxu0
      %v5568 = vadd.f32 0.0, %v5567
      %v5569 = vpop.f32.mrf.mxu0
      %5570 = vmatprep.mubr.bf16.mxu0 %v4942
      %5571 = vmatmul.mubr.bf16.gmra.mxu0 %v4927
      %v5572 = vpop.f32.mrf.mxu0
      %v5573 = vadd.f32 0.0, %v5572
      %v5574 = vpop.f32.mrf.mxu0
      %v5575 = vpop.f32.mrf.mxu0
      %v5576 = vadd.f32 0.0, %v5575
      %v5577 = vpop.f32.mrf.mxu0
      %5578 = vmatprep.mubr.bf16.mxu0 %v4989
      %5579 = vmatmul.mubr.bf16.gmra.mxu0 %v4974
      %v5580 = vpop.f32.mrf.mxu0
      %v5581 = vadd.f32 0.0, %v5580
      %v5582 = vpop.f32.mrf.mxu0
      %v5583 = vpop.f32.mrf.mxu0
      %v5584 = vadd.f32 0.0, %v5583
      %v5585 = vpop.f32.mrf.mxu0
      %5586 = vmatprep.mubr.bf16.mxu0 %v5036
      %5587 = vmatmul.mubr.bf16.gmra.mxu0 %v5021
      %v5588 = vpop.f32.mrf.mxu0
      %v5589 = vadd.f32 0.0, %v5588
      %v5590 = vpop.f32.mrf.mxu0
      %v5591 = vpop.f32.mrf.mxu0
      %v5592 = vadd.f32 0.0, %v5591
      %v5593 = vpop.f32.mrf.mxu0
      %5594 = vmatprep.mubr.bf16.mxu0 %v5083
      %5595 = vmatmul.mubr.bf16.gmra.mxu0 %v5068
      %v5596 = vpop.f32.mrf.mxu0
      %v5597 = vadd.f32 0.0, %v5596
      %v5598 = vpop.f32.mrf.mxu0
      %v5599 = vpop.f32.mrf.mxu0
      %v5600 = vadd.f32 0.0, %v5599
      %v5601 = vpop.f32.mrf.mxu0
      %5602 = vmatprep.mubr.bf16.mxu0 %v5130
      %5603 = vmatmul.mubr.bf16.gmra.mxu0 %v5115
      %v5604 = vpop.f32.mrf.mxu0
      %v5605 = vadd.f32 0.0, %v5604
      %v5606 = vpop.f32.mrf.mxu0
      %v5607 = vpop.f32.mrf.mxu0
      %v5608 = vadd.f32 0.0, %v5607
      %v5609 = vpop.f32.mrf.mxu0
      %5610 = vmatprep.mubr.bf16.mxu0 %v5177
      %5611 = vmatmul.mubr.bf16.gmra.mxu0 %v5162
      %v5612 = vpop.f32.mrf.mxu0
      %v5613 = vadd.f32 0.0, %v5612
      %v5614 = vpop.f32.mrf.mxu0
      %v5615 = vpop.f32.mrf.mxu0
      %v5616 = vadd.f32 0.0, %v5615
      %v5617 = vpop.f32.mrf.mxu0
      %5618 = vmatprep.mubr.bf16.mxu0 %v5224
      %5619 = vmatmul.mubr.bf16.gmra.mxu0 %v5209
      %v5620 = vpop.f32.mrf.mxu0
      %v5621 = vadd.f32 0.0, %v5620
      %v5622 = vpop.f32.mrf.mxu0
      %v5623 = vpop.f32.mrf.mxu0
      %v5624 = vadd.f32 0.0, %v5623
      %v5625 = vpop.f32.mrf.mxu0
      %5626 = vdwg.mxu0
      %5627 = vmatprep.subr.bf16.mxu0 0
      %5628 = vmatpush1.bf16.msra.mxu0 0
      %5629 = vmatprep.subr.bf16.mxu0 0
      %5630 = vmatpush1.bf16.msra.mxu0 0
      %5631 = vmatprep.subr.bf16.mxu0 0
      %5632 = vmatpush1.bf16.msra.mxu0 0
      %5633 = vmatprep.subr.bf16.mxu0 0
      %5634 = vmatpush1.bf16.msra.mxu0 0
      %5635 = vmatprep.subr.bf16.mxu0 0
      %5636 = vmatpush1.bf16.msra.mxu0 0
      %5637 = vmatprep.subr.bf16.mxu0 0
      %5638 = vmatpush1.bf16.msra.mxu0 0
      %5639 = vmatprep.subr.bf16.mxu0 0
      %5640 = vmatpush1.bf16.msra.mxu0 %v5399
      %5641 = vmatprep.subr.bf16.mxu0 0
      %5642 = vmatpush1.bf16.msra.mxu0 %v5398
      %5643 = vmatprep.subr.bf16.mxu0 0
      %5644 = vmatpush2.bf16.msra.mxu0 0
      %5645 = vmatprep.subr.bf16.mxu0 0
      %5646 = vmatpush2.bf16.msra.mxu0 0
      %5647 = vmatprep.subr.bf16.mxu0 0
      %5648 = vmatpush2.bf16.msra.mxu0 0
      %5649 = vmatprep.subr.bf16.mxu0 0
      %5650 = vmatpush2.bf16.msra.mxu0 0
      %5651 = vmatprep.subr.bf16.mxu0 0
      %5652 = vmatpush2.bf16.msra.mxu0 0
      %5653 = vmatprep.subr.bf16.mxu0 0
      %5654 = vmatpush2.bf16.msra.mxu0 0
      %5655 = vmatprep.subr.bf16.mxu0 0
      %5656 = vmatpush2.bf16.msra.mxu0 0
      %5657 = vmatprep.subr.bf16.mxu0 0
      %5658 = vmatpush2.bf16.msra.mxu0 0
      %5659 = vmatprep.mubr.bf16.mxu0 0
      %5660 = vmatmul.mubr.bf16.gmra.mxu0 %v5419
      %v5661 = vpop.f32.mrf.mxu0
      %v5662 = vadd.f32 %v5501, %v5661
      %v5663 = vpop.f32.mrf.mxu0
      %v5664 = vpop.f32.mrf.mxu0
      %v5665 = vadd.f32 %v5504, %v5664
      %v5666 = vpop.f32.mrf.mxu0
      %5667 = vmatprep.mubr.bf16.mxu0 0
      %5668 = vmatmul.mubr.bf16.gmra.mxu0 %v5422
      %v5669 = vpop.f32.mrf.mxu0
      %v5670 = vadd.f32 %v5509, %v5669
      %v5671 = vpop.f32.mrf.mxu0
      %v5672 = vpop.f32.mrf.mxu0
      %v5673 = vadd.f32 %v5512, %v5672
      %v5674 = vpop.f32.mrf.mxu0
      %5675 = vmatprep.mubr.bf16.mxu0 0
      %5676 = vmatmul.mubr.bf16.gmra.mxu0 %v5425
      %v5677 = vpop.f32.mrf.mxu0
      %v5678 = vadd.f32 %v5517, %v5677
      %v5679 = vpop.f32.mrf.mxu0
      %v5680 = vpop.f32.mrf.mxu0
      %v5681 = vadd.f32 %v5520, %v5680
      %v5682 = vpop.f32.mrf.mxu0
      %5683 = vmatprep.mubr.bf16.mxu0 0
      %5684 = vmatmul.mubr.bf16.gmra.mxu0 %v5428
      %v5685 = vpop.f32.mrf.mxu0
      %v5686 = vadd.f32 %v5525, %v5685
      %v5687 = vpop.f32.mrf.mxu0
      %v5688 = vpop.f32.mrf.mxu0
      %v5689 = vadd.f32 %v5528, %v5688
      %v5690 = vpop.f32.mrf.mxu0
      %5691 = vmatprep.mubr.bf16.mxu0 0
      %5692 = vmatmul.mubr.bf16.gmra.mxu0 %v5431
      %v5693 = vpop.f32.mrf.mxu0
      %v5694 = vadd.f32 %v5533, %v5693
      %v5695 = vpop.f32.mrf.mxu0
      %v5696 = vpop.f32.mrf.mxu0
      %v5697 = vadd.f32 %v5536, %v5696
      %v5698 = vpop.f32.mrf.mxu0
      %5699 = vmatprep.mubr.bf16.mxu0 0
      %5700 = vmatmul.mubr.bf16.gmra.mxu0 %v5434
      %v5701 = vpop.f32.mrf.mxu0
      %v5702 = vadd.f32 %v5541, %v5701
      %v5703 = vpop.f32.mrf.mxu0
      %v5704 = vpop.f32.mrf.mxu0
      %v5705 = vadd.f32 %v5544, %v5704
      %v5706 = vpop.f32.mrf.mxu0
      %5707 = vmatprep.mubr.bf16.mxu0 0
      %5708 = vmatmul.mubr.bf16.gmra.mxu0 %v5437
      %v5709 = vpop.f32.mrf.mxu0
      %v5710 = vadd.f32 %v5549, %v5709
      %v5711 = vpop.f32.mrf.mxu0
      %v5712 = vpop.f32.mrf.mxu0
      %v5713 = vadd.f32 %v5552, %v5712
      %v5714 = vpop.f32.mrf.mxu0
      %5715 = vmatprep.mubr.bf16.mxu0 0
      %5716 = vmatmul.mubr.bf16.gmra.mxu0 %v5440
      %v5717 = vpop.f32.mrf.mxu0
      %v5718 = vadd.f32 %v5557, %v5717
      %v5719 = vpop.f32.mrf.mxu0
      %v5720 = vpop.f32.mrf.mxu0
      %v5721 = vadd.f32 %v5560, %v5720
      %v5722 = vpop.f32.mrf.mxu0
      %5723 = vmatprep.mubr.bf16.mxu0 0
      %5724 = vmatmul.mubr.bf16.gmra.mxu0 %v5443
      %v5725 = vpop.f32.mrf.mxu0
      %v5726 = vadd.f32 %v5565, %v5725
      %v5727 = vpop.f32.mrf.mxu0
      %v5728 = vpop.f32.mrf.mxu0
      %v5729 = vadd.f32 %v5568, %v5728
      %v5730 = vpop.f32.mrf.mxu0
      %5731 = vmatprep.mubr.bf16.mxu0 0
      %5732 = vmatmul.mubr.bf16.gmra.mxu0 %v5446
      %v5733 = vpop.f32.mrf.mxu0
      %v5734 = vadd.f32 %v5573, %v5733
      %v5735 = vpop.f32.mrf.mxu0
      %v5736 = vpop.f32.mrf.mxu0
      %v5737 = vadd.f32 %v5576, %v5736
      %v5738 = vpop.f32.mrf.mxu0
      %5739 = vmatprep.mubr.bf16.mxu0 0
      %5740 = vmatmul.mubr.bf16.gmra.mxu0 %v5449
      %v5741 = vpop.f32.mrf.mxu0
      %v5742 = vadd.f32 %v5581, %v5741
      %v5743 = vpop.f32.mrf.mxu0
      %v5744 = vpop.f32.mrf.mxu0
      %v5745 = vadd.f32 %v5584, %v5744
      %v5746 = vpop.f32.mrf.mxu0
      %5747 = vmatprep.mubr.bf16.mxu0 0
      %5748 = vmatmul.mubr.bf16.gmra.mxu0 %v5452
      %v5749 = vpop.f32.mrf.mxu0
      %v5750 = vadd.f32 %v5589, %v5749
      %v5751 = vpop.f32.mrf.mxu0
      %v5752 = vpop.f32.mrf.mxu0
      %v5753 = vadd.f32 %v5592, %v5752
      %v5754 = vpop.f32.mrf.mxu0
      %5755 = vmatprep.mubr.bf16.mxu0 0
      %5756 = vmatmul.mubr.bf16.gmra.mxu0 %v5455
      %v5757 = vpop.f32.mrf.mxu0
      %v5758 = vadd.f32 %v5597, %v5757
      %v5759 = vpop.f32.mrf.mxu0
      %v5760 = vpop.f32.mrf.mxu0
      %v5761 = vadd.f32 %v5600, %v5760
      %v5762 = vpop.f32.mrf.mxu0
      %5763 = vmatprep.mubr.bf16.mxu0 0
      %5764 = vmatmul.mubr.bf16.gmra.mxu0 %v5458
      %v5765 = vpop.f32.mrf.mxu0
      %v5766 = vadd.f32 %v5605, %v5765
      %v5767 = vpop.f32.mrf.mxu0
      %v5768 = vpop.f32.mrf.mxu0
      %v5769 = vadd.f32 %v5608, %v5768
      %v5770 = vpop.f32.mrf.mxu0
      %5771 = vmatprep.mubr.bf16.mxu0 0
      %5772 = vmatmul.mubr.bf16.gmra.mxu0 %v5461
      %v5773 = vpop.f32.mrf.mxu0
      %v5774 = vadd.f32 %v5613, %v5773
      %v5775 = vpop.f32.mrf.mxu0
      %v5776 = vpop.f32.mrf.mxu0
      %v5777 = vadd.f32 %v5616, %v5776
      %v5778 = vpop.f32.mrf.mxu0
      %5779 = vmatprep.mubr.bf16.mxu0 0
      %5780 = vmatmul.mubr.bf16.gmra.mxu0 %v5464
      %v5781 = vpop.f32.mrf.mxu0
      %v5782 = vadd.f32 %v5621, %v5781
      %v5783 = vpop.f32.mrf.mxu0
      %v5784 = vpop.f32.mrf.mxu0
      %v5785 = vadd.f32 %v5624, %v5784
      %v5786 = vpop.f32.mrf.mxu0
      %5787 = vdwg.mxu0
      %v5788 = vld [vmem:[%s4] sm:$0x1]
      %v5790 = vlaneseq
      %v5791 = vshrl.u32 %v5790, 7
      %v5792 = vsub.s32 0, %v5791
      %v5793 = vrot.slane %v5788, %v5792
      %v5795 = vadd.f32 %v5662, %v5793
      %v5796 = vadd.f32 %v5665, %v5793
      %v5797 = vadd.f32 %v5670, %v5793
      %v5798 = vadd.f32 %v5673, %v5793
      %v5799 = vadd.f32 %v5678, %v5793
      %v5800 = vadd.f32 %v5681, %v5793
      %v5801 = vadd.f32 %v5686, %v5793
      %v5802 = vadd.f32 %v5689, %v5793
      %v5803 = vadd.f32 %v5694, %v5793
      %v5804 = vadd.f32 %v5697, %v5793
      %v5805 = vadd.f32 %v5702, %v5793
      %v5806 = vadd.f32 %v5705, %v5793
      %v5807 = vadd.f32 %v5710, %v5793
      %v5808 = vadd.f32 %v5713, %v5793
      %v5809 = vadd.f32 %v5718, %v5793
      %v5810 = vadd.f32 %v5721, %v5793
      %v5811 = vadd.f32 %v5726, %v5793
      %v5812 = vadd.f32 %v5729, %v5793
      %v5813 = vadd.f32 %v5734, %v5793
      %v5814 = vadd.f32 %v5737, %v5793
      %v5815 = vadd.f32 %v5742, %v5793
      %v5816 = vadd.f32 %v5745, %v5793
      %v5817 = vadd.f32 %v5750, %v5793
      %v5818 = vadd.f32 %v5753, %v5793
      %v5819 = vadd.f32 %v5758, %v5793
      %v5820 = vadd.f32 %v5761, %v5793
      %v5821 = vadd.f32 %v5766, %v5793
      %v5822 = vadd.f32 %v5769, %v5793
      %v5823 = vadd.f32 %v5774, %v5793
      %v5824 = vadd.f32 %v5777, %v5793
      %v5825 = vadd.f32 %v5782, %v5793
      %v5826 = vadd.f32 %v5785, %v5793
      %v5827 = vmax.f32 %v5795, 0.0
      %v5828 = vmax.f32 %v5796, 0.0
      %v5829 = vmax.f32 %v5797, 0.0
      %v5830 = vmax.f32 %v5798, 0.0
      %v5831 = vmax.f32 %v5799, 0.0
      %v5832 = vmax.f32 %v5800, 0.0
      %v5833 = vmax.f32 %v5801, 0.0
      %v5834 = vmax.f32 %v5802, 0.0
      %v5835 = vmax.f32 %v5803, 0.0
      %v5836 = vmax.f32 %v5804, 0.0
      %v5837 = vmax.f32 %v5805, 0.0
      %v5838 = vmax.f32 %v5806, 0.0
      %v5839 = vmax.f32 %v5807, 0.0
      %v5840 = vmax.f32 %v5808, 0.0
      %v5841 = vmax.f32 %v5809, 0.0
      %v5842 = vmax.f32 %v5810, 0.0
      %v5843 = vmax.f32 %v5811, 0.0
      %v5844 = vmax.f32 %v5812, 0.0
      %v5845 = vmax.f32 %v5813, 0.0
      %v5846 = vmax.f32 %v5814, 0.0
      %v5847 = vmax.f32 %v5815, 0.0
      %v5848 = vmax.f32 %v5816, 0.0
      %v5849 = vmax.f32 %v5817, 0.0
      %v5850 = vmax.f32 %v5818, 0.0
      %v5851 = vmax.f32 %v5819, 0.0
      %v5852 = vmax.f32 %v5820, 0.0
      %v5853 = vmax.f32 %v5821, 0.0
      %v5854 = vmax.f32 %v5822, 0.0
      %v5855 = vmax.f32 %v5823, 0.0
      %v5856 = vmax.f32 %v5824, 0.0
      %v5857 = vmax.f32 %v5825, 0.0
      %v5858 = vmax.f32 %v5826, 0.0
      %5859 = vst.msk [vmem:[#allocation5] sm:$0xff] %vm4167, %v5827
      %5860 = vst.msk [vmem:[#allocation5 + $0x8] sm:$0xff] %vm4167, %v5828
      %5861 = vst.msk [vmem:[#allocation5 + $0x10] sm:$0xff] %vm4167, %v5829
      %5862 = vst.msk [vmem:[#allocation5 + $0x18] sm:$0xff] %vm4167, %v5830
      %5863 = vst.msk [vmem:[#allocation5 + $0x20] sm:$0xff] %vm4167, %v5831
      %5864 = vst.msk [vmem:[#allocation5 + $0x28] sm:$0xff] %vm4167, %v5832
      %5865 = vst.msk [vmem:[#allocation5 + $0x30] sm:$0xff] %vm4167, %v5833
      %5866 = vst.msk [vmem:[#allocation5 + $0x38] sm:$0xff] %vm4167, %v5834
      %5867 = vst.msk [vmem:[#allocation5 + $0x40] sm:$0xff] %vm4167, %v5835
      %5868 = vst.msk [vmem:[#allocation5 + $0x48] sm:$0xff] %vm4167, %v5836
      %5869 = vst.msk [vmem:[#allocation5 + $0x50] sm:$0xff] %vm4167, %v5837
      %5870 = vst.msk [vmem:[#allocation5 + $0x58] sm:$0xff] %vm4167, %v5838
      %5871 = vst.msk [vmem:[#allocation5 + $0x60] sm:$0xff] %vm4167, %v5839
      %5872 = vst.msk [vmem:[#allocation5 + $0x68] sm:$0xff] %vm4167, %v5840
      %5873 = vst.msk [vmem:[#allocation5 + $0x70] sm:$0xff] %vm4167, %v5841
      %5874 = vst.msk [vmem:[#allocation5 + $0x78] sm:$0xff] %vm4167, %v5842
      %5875 = vst.msk [vmem:[#allocation5 + $0x80] sm:$0xff] %vm4167, %v5843
      %5876 = vst.msk [vmem:[#allocation5 + $0x88] sm:$0xff] %vm4167, %v5844
      %5877 = vst.msk [vmem:[#allocation5 + $0x90] sm:$0xff] %vm4167, %v5845
      %5878 = vst.msk [vmem:[#allocation5 + $0x98] sm:$0xff] %vm4167, %v5846
      %5879 = vst.msk [vmem:[#allocation5 + $0xa0] sm:$0xff] %vm4167, %v5847
      %5880 = vst.msk [vmem:[#allocation5 + $0xa8] sm:$0xff] %vm4167, %v5848
      %5881 = vst.msk [vmem:[#allocation5 + $0xb0] sm:$0xff] %vm4167, %v5849
      %5882 = vst.msk [vmem:[#allocation5 + $0xb8] sm:$0xff] %vm4167, %v5850
      %5883 = vst.msk [vmem:[#allocation5 + $0xc0] sm:$0xff] %vm4167, %v5851
      %5884 = vst.msk [vmem:[#allocation5 + $0xc8] sm:$0xff] %vm4167, %v5852
      %5885 = vst.msk [vmem:[#allocation5 + $0xd0] sm:$0xff] %vm4167, %v5853
      %5886 = vst.msk [vmem:[#allocation5 + $0xd8] sm:$0xff] %vm4167, %v5854
      %5887 = vst.msk [vmem:[#allocation5 + $0xe0] sm:$0xff] %vm4167, %v5855
      %5888 = vst.msk [vmem:[#allocation5 + $0xe8] sm:$0xff] %vm4167, %v5856
      %5889 = vst.msk [vmem:[#allocation5 + $0xf0] sm:$0xff] %vm4167, %v5857
      %5890 = vst.msk [vmem:[#allocation5 + $0xf8] sm:$0xff] %vm4167, %v5858
      %v5891 = vld [vmem:[#allocation5] sm:$0xff]
      %v5892 = vld [vmem:[#allocation5 + $0x8] sm:$0xff]
      %v5893 = vld [vmem:[#allocation5 + $0x20] sm:$0xff]
      %v5894 = vld [vmem:[#allocation5 + $0x28] sm:$0xff]
      %v5895 = vld [vmem:[#allocation5 + $0x40] sm:$0xff]
      %v5896 = vld [vmem:[#allocation5 + $0x48] sm:$0xff]
      %v5897 = vld [vmem:[#allocation5 + $0x60] sm:$0xff]
      %v5898 = vld [vmem:[#allocation5 + $0x68] sm:$0xff]
      %v5899 = vld [vmem:[#allocation5 + $0x80] sm:$0xff]
      %v5900 = vld [vmem:[#allocation5 + $0x88] sm:$0xff]
      %v5901 = vld [vmem:[#allocation5 + $0xa0] sm:$0xff]
      %v5902 = vld [vmem:[#allocation5 + $0xa8] sm:$0xff]
      %v5903 = vld [vmem:[#allocation5 + $0xc0] sm:$0xff]
      %v5904 = vld [vmem:[#allocation5 + $0xc8] sm:$0xff]
      %v5905 = vld [vmem:[#allocation5 + $0xe0] sm:$0xff]
      %v5906 = vld [vmem:[#allocation5 + $0xe8] sm:$0xff]
      %s5907 = scalar_lea.vmem [#allocation5], 16
      %v5908 = vld [vmem:[%s5907] sm:$0xff]
      %v5909 = vld [vmem:[%s5907 + $0x8] sm:$0xff]
      %v5910 = vld [vmem:[%s5907 + $0x20] sm:$0xff]
      %v5911 = vld [vmem:[%s5907 + $0x28] sm:$0xff]
      %v5912 = vld [vmem:[%s5907 + $0x40] sm:$0xff]
      %v5913 = vld [vmem:[%s5907 + $0x48] sm:$0xff]
      %v5914 = vld [vmem:[%s5907 + $0x60] sm:$0xff]
      %v5915 = vld [vmem:[%s5907 + $0x68] sm:$0xff]
      %v5916 = vld [vmem:[%s5907 + $0x80] sm:$0xff]
      %v5917 = vld [vmem:[%s5907 + $0x88] sm:$0xff]
      %v5918 = vld [vmem:[%s5907 + $0xa0] sm:$0xff]
      %v5919 = vld [vmem:[%s5907 + $0xa8] sm:$0xff]
      %v5920 = vld [vmem:[%s5907 + $0xc0] sm:$0xff]
      %v5921 = vld [vmem:[%s5907 + $0xc8] sm:$0xff]
      %v5922 = vld [vmem:[%s5907 + $0xe0] sm:$0xff]
      %v5923 = vld [vmem:[%s5907 + $0xe8] sm:$0xff]
      %v5924 = vmax.f32 %v5891, %v5908
      %v5925 = vmax.f32 %v5892, %v5909
      %v5926 = vmax.f32 %v5893, %v5910
      %v5927 = vmax.f32 %v5894, %v5911
      %v5928 = vmax.f32 %v5895, %v5912
      %v5929 = vmax.f32 %v5896, %v5913
      %v5930 = vmax.f32 %v5897, %v5914
      %v5931 = vmax.f32 %v5898, %v5915
      %v5932 = vmax.f32 %v5899, %v5916
      %v5933 = vmax.f32 %v5900, %v5917
      %v5934 = vmax.f32 %v5901, %v5918
      %v5935 = vmax.f32 %v5902, %v5919
      %v5936 = vmax.f32 %v5903, %v5920
      %v5937 = vmax.f32 %v5904, %v5921
      %v5938 = vmax.f32 %v5905, %v5922
      %v5939 = vmax.f32 %v5906, %v5923
      %5940 = vst.msk [vmem:[#allocation6] sm:$0xff] %vm4167, %v5924
      %5941 = vst.msk [vmem:[#allocation6 + $0x8] sm:$0xff] %vm4167, %v5925
      %5942 = vst.msk [vmem:[#allocation6 + $0x10] sm:$0xff] %vm4167, %v5926
      %5943 = vst.msk [vmem:[#allocation6 + $0x18] sm:$0xff] %vm4167, %v5927
      %5944 = vst.msk [vmem:[#allocation6 + $0x20] sm:$0xff] %vm4167, %v5928
      %5945 = vst.msk [vmem:[#allocation6 + $0x28] sm:$0xff] %vm4167, %v5929
      %5946 = vst.msk [vmem:[#allocation6 + $0x30] sm:$0xff] %vm4167, %v5930
      %5947 = vst.msk [vmem:[#allocation6 + $0x38] sm:$0xff] %vm4167, %v5931
      %5948 = vst.msk [vmem:[#allocation6 + $0x40] sm:$0xff] %vm4167, %v5932
      %5949 = vst.msk [vmem:[#allocation6 + $0x48] sm:$0xff] %vm4167, %v5933
      %5950 = vst.msk [vmem:[#allocation6 + $0x50] sm:$0xff] %vm4167, %v5934
      %5951 = vst.msk [vmem:[#allocation6 + $0x58] sm:$0xff] %vm4167, %v5935
      %5952 = vst.msk [vmem:[#allocation6 + $0x60] sm:$0xff] %vm4167, %v5936
      %5953 = vst.msk [vmem:[#allocation6 + $0x68] sm:$0xff] %vm4167, %v5937
      %5954 = vst.msk [vmem:[#allocation6 + $0x70] sm:$0xff] %vm4167, %v5938
      %5955 = vst.msk [vmem:[#allocation6 + $0x78] sm:$0xff] %vm4167, %v5939
      %v5956 = vld [vmem:[#allocation6] ss:$2 sm:$0xff]
      %s5957 = scalar_lea.vmem [#allocation6], 16
      %v5958 = vld [vmem:[%s5957] ss:$2 sm:$0xff]
      %s5959 = scalar_lea.vmem [#allocation6], 32
      %v5960 = vld [vmem:[%s5959] ss:$2 sm:$0xff]
      %s5961 = scalar_lea.vmem [#allocation6], 48
      %v5962 = vld [vmem:[%s5961] ss:$2 sm:$0xff]
      %s5963 = scalar_lea.vmem [#allocation6], 64
      %v5964 = vld [vmem:[%s5963] ss:$2 sm:$0xff]
      %s5965 = scalar_lea.vmem [#allocation6], 80
      %v5966 = vld [vmem:[%s5965] ss:$2 sm:$0xff]
      %s5967 = scalar_lea.vmem [#allocation6], 96
      %v5968 = vld [vmem:[%s5967] ss:$2 sm:$0xff]
      %s5969 = scalar_lea.vmem [#allocation6], 112
      %v5970 = vld [vmem:[%s5969] ss:$2 sm:$0xff]
      %s5971 = scalar_lea.vmem [#allocation6], 1
      %v5972 = vld [vmem:[%s5971] ss:$2 sm:$0xff]
      %s5973 = scalar_lea.vmem [#allocation6], 17
      %v5974 = vld [vmem:[%s5973] ss:$2 sm:$0xff]
      %s5975 = scalar_lea.vmem [#allocation6], 33
      %v5976 = vld [vmem:[%s5975] ss:$2 sm:$0xff]
      %s5977 = scalar_lea.vmem [#allocation6], 49
      %v5978 = vld [vmem:[%s5977] ss:$2 sm:$0xff]
      %s5979 = scalar_lea.vmem [#allocation6], 65
      %v5980 = vld [vmem:[%s5979] ss:$2 sm:$0xff]
      %s5981 = scalar_lea.vmem [#allocation6], 81
      %v5982 = vld [vmem:[%s5981] ss:$2 sm:$0xff]
      %s5983 = scalar_lea.vmem [#allocation6], 97
      %v5984 = vld [vmem:[%s5983] ss:$2 sm:$0xff]
      %s5985 = scalar_lea.vmem [#allocation6], 113
      %v5986 = vld [vmem:[%s5985] ss:$2 sm:$0xff]
      %v5987 = vmax.f32 %v5956, %v5972
      %v5988 = vmax.f32 %v5958, %v5974
      %v5989 = vmax.f32 %v5960, %v5976
      %v5990 = vmax.f32 %v5962, %v5978
      %v5991 = vmax.f32 %v5964, %v5980
      %v5992 = vmax.f32 %v5966, %v5982
      %v5993 = vmax.f32 %v5968, %v5984
      %v5994 = vmax.f32 %v5970, %v5986
      %v5995 = vpack.c.bf16 %v5987, %v5987
      %v5996 = vpack.c.bf16 %v5988, %v5988
      %v5997 = vpack.c.bf16 %v5989, %v5989
      %v5998 = vpack.c.bf16 %v5990, %v5990
      %v5999 = vpack.c.bf16 %v5991, %v5991
      %v6000 = vpack.c.bf16 %v5992, %v5992
      %v6001 = vpack.c.bf16 %v5993, %v5993
      %v6002 = vpack.c.bf16 %v5994, %v5994
      %vm6003 = vcmask 519168
      %6004 = vst.msk [vmem:[%s224] sm:$0xf] %vm6003, %v5995
      %6005 = vst.msk [vmem:[%s224 + $0x4] sm:$0xf] %vm6003, %v5996
      %6006 = vst.msk [vmem:[%s224 + $0x8] sm:$0xf] %vm6003, %v5997
      %6007 = vst.msk [vmem:[%s224 + $0xc] sm:$0xf] %vm6003, %v5998
      %6008 = vst.msk [vmem:[%s224 + $0x10] sm:$0xf] %vm6003, %v5999
      %6009 = vst.msk [vmem:[%s224 + $0x14] sm:$0xf] %vm6003, %v6000
      %6010 = vst.msk [vmem:[%s224 + $0x18] sm:$0xf] %vm6003, %v6001
      %6011 = vst.msk [vmem:[%s224 + $0x1c] sm:$0xf] %vm6003, %v6002
      %p6012 = scmp.lt.s32.totalorder %s16, 1
      %s6013 = scalar_select %p6012, %s16, 1
      %s6014 = smul.addr %s6013, 8
      %s6015 = smul.addr %s6014, 4
      %s6016 = scalar_lea.vmem %s5, %s6015
      // Predicated region
      $region41: #{simple_cnn_forward.2} parent=39 // pred_check
        %p6017 = pneg %p144
      $region42: #{simple_cnn_forward.2} parent=39 // pred_check_branch
        %6019 = sbr.rel (%p6017) target = $region44
      $region43: #{simple_cnn_forward.2} parent=39 // pred_region
        _
      $region44: #{simple_cnn_forward.2} parent=39 // pred_fallthru
        _
    $region40: #{simple_cnn_forward.2} parent=5 // pred_fallthru
      _
    %p6020 = scmp.le.s32.totalorder 2, %s11
    // Predicated region
    $region45: #{simple_cnn_forward.2} parent=5 // pred_check
      %p6021 = pneg %p6020
    $region46: #{simple_cnn_forward.2} parent=5 // pred_check_branch
      %6023 = sbr.rel (%p6021) target = $region48
    $region47: #{simple_cnn_forward.2} parent=5 // pred_region
      %s6024 = ssub.s32 %s11, 2
      // Predicated region
      $region49: #{simple_cnn_forward.2} parent=47 // pred_check
        %p6025 = pneg %p150
      $region50: #{simple_cnn_forward.2} parent=47 // pred_check_branch
        %6027 = sbr.rel (%p6025) target = $region52
      $region51: #{simple_cnn_forward.2} parent=47 // pred_region
        %p6028 = scmp.lt.s32.totalorder %s17, 1
        %s6029 = scalar_select %p6028, %s17, 1
        %s6030 = smul.addr %s6029, 8
        %s6031 = smul.addr %s6030, 4
        %s6032 = scalar_lea.vmem %s5, %s6031
      $region52: #{simple_cnn_forward.2} parent=47 // pred_fallthru
        _
    $region48: #{simple_cnn_forward.2} parent=5 // pred_fallthru
      _
  $region6: #{simple_cnn_forward.2} parent=0 // loop_footer
    %s15 = sadd.s32 1, %s11
  $region7: #{simple_cnn_forward.2} parent=0 // loop_footer_branch
    %10 = sbr.rel target = $region3
  $region8: #{simple_cnn_forward.2} parent=0 // loop_exit
    _

</llo_original>
